<compile_context>
chip_gen: v7x
topology: tpu7x:2x2x1
jax: 0.10.0
libtpu: 0.0.40
codegen_flags: <defaults>
</compile_context>

<pallas_src>
import functools

import jax
import jax.numpy as jnp
from jax.experimental import pallas as pl
from jax.experimental.pallas import tpu as pltpu

# --- model hyper-parameters (synthetic `opt`) ---------------------------------
D = 512               # self.size[1]
NUM_HEADS = 8         # opt['Network'] attention heads (synthetic choice)
HEAD_DIM = D // NUM_HEADS
MLP_DIM = 1024        # opt['Network'] mlp dim (synthetic choice)
CDKN_LAYERS = 2       # opt['Network']['CDKN_layers'] (synthetic choice)
EPS = 1e-6


# --- shared math helpers (pure jnp: usable both inside kernel and as ref) -----
def _layernorm(x, g, b):
    mu = jnp.mean(x, axis=-1, keepdims=True)
    var = jnp.mean(jnp.square(x - mu), axis=-1, keepdims=True)
    return (x - mu) * jax.lax.rsqrt(var + EPS) * g + b


def _gelu(x):
    # TODO(synk): PyTorch F.gelu default is exact erf GELU; tanh approximation
    # is used here for robust Mosaic lowering (numerics differ at ~1e-3 level).
    return jax.nn.gelu(x, approximate=True)


# --- fused encoder kernel ------------------------------------------------------
def cdkn_kernel(x_ref,
                ln1_g, ln1_b, wqkv, bqkv, wo, bo,
                ln2_g, ln2_b, w1, b1, w2, b2,
                enc_g, enc_b,
                out_ref,
                act_ref,
                *, batch, seq):
    l = pl.program_id(0)
    bf16 = jnp.bfloat16

    # Load the whole (B*S, D) activation into the resident scratch at layer 0.
    @pl.when(l == 0)
    def _():
        act_ref[...] = x_ref[...]

    x = act_ref[...]                                    # (B*S, D) f32

    # --- multi-head self-attention (pre-LN) ---
    h = _layernorm(x, ln1_g[0, 0], ln1_b[0, 0])
    qkv = jnp.dot(h.astype(bf16), wqkv[0],
                  preferred_element_type=jnp.float32) + bqkv[0, 0]   # (B*S, 3D)
    q = qkv[:, :D]
    k = qkv[:, D:2 * D]
    v = qkv[:, 2 * D:]

    # Per-(batch, head) scores.  1/sqrt(HEAD_DIM) is pre-folded into Wq / bq,
    # so no scale op here.  All score tiles are stacked along sublanes and
    # softmax'd with a single exp / reduce launch per layer.
    scores = []
    for b in range(batch):
        rs = slice(b * seq, (b + 1) * seq)
        for hh in range(NUM_HEADS):
            cs = slice(hh * HEAD_DIM, (hh + 1) * HEAD_DIM)
            qh = q[rs, cs].astype(bf16)                 # (S, 64)
            kh = k[rs, cs].astype(bf16)                 # (S, 64)
            scores.append(jax.lax.dot_general(
                qh, kh, (((1,), (1,)), ((), ())),
                preferred_element_type=jnp.float32))    # (S, S)
    p_all = jax.nn.softmax(jnp.concatenate(scores, axis=0), axis=-1)  # (B*H*S, S)

    # Per-head PV matmuls; contexts assembled into one lane-dense (B*S, D)
    # value (no masked 64-lane stores, no VMEM ctx scratch).
    ctx_rows = []
    for b in range(batch):
        rs = slice(b * seq, (b + 1) * seq)
        head_ctx = []
        for hh in range(NUM_HEADS):
            cs = slice(hh * HEAD_DIM, (hh + 1) * HEAD_DIM)
            idx = (b * NUM_HEADS + hh) * seq
            ph = p_all[idx:idx + seq, :].astype(bf16)   # (S, S)
            vh = v[rs, cs].astype(bf16)                 # (S, 64)
            head_ctx.append(jnp.dot(ph, vh, preferred_element_type=jnp.float32))
        ctx_rows.append(jnp.concatenate(head_ctx, axis=1))   # (S, D)
    ctx = jnp.concatenate(ctx_rows, axis=0)                   # (B*S, D)

    attn_out = jnp.dot(ctx.astype(bf16), wo[0],
                       preferred_element_type=jnp.float32) + bo[0, 0]
    x = x + attn_out                                    # residual (f32)

    # --- MLP (pre-LN) ---
    h = _layernorm(x, ln2_g[0, 0], ln2_b[0, 0])
    m = jnp.dot(h.astype(bf16), w1[0],
                preferred_element_type=jnp.float32) + b1[0, 0]
    m = _gelu(m)
    m = jnp.dot(m.astype(bf16), w2[0],
                preferred_element_type=jnp.float32) + b2[0, 0]
    x = x + m                                           # residual (f32)

    act_ref[...] = x                                    # carry to next layer

    # Final encoder LayerNorm on the last layer only.
    @pl.when(l == pl.num_programs(0) - 1)
    def _():
        out_ref[...] = _layernorm(x, enc_g[0], enc_b[0])


# --- wrapper -------------------------------------------------------------------
def mine_cdkn_forward(x, p):
    B, S, _ = x.shape
    L = p['wqkv'].shape[0]
    BS = B * S

    # Whole batch in one block -> weights are fetched once per LAYER, not once
    # per (batch, layer).  Reshape outside the kernel keeps the kernel lane /
    # sublane layouts trivial.
    x2d = x.reshape(BS, D)

    act_spec = pl.BlockSpec((BS, D), lambda l: (0, 0))      # constant block index

    def lspec(shape):
        return pl.BlockSpec(shape, lambda l: (l, 0, 0))     # stream per layer

    const2 = pl.BlockSpec((1, D), lambda l: (0, 0))

    in_specs = [
        act_spec,
        lspec((1, 1, D)), lspec((1, 1, D)),              # ln1 gamma / beta
        lspec((1, D, 3 * D)), lspec((1, 1, 3 * D)),      # fused Wqkv / bqkv
        lspec((1, D, D)), lspec((1, 1, D)),              # Wo / bo
        lspec((1, 1, D)), lspec((1, 1, D)),              # ln2 gamma / beta
        lspec((1, D, MLP_DIM)), lspec((1, 1, MLP_DIM)),  # fc1
        lspec((1, MLP_DIM, D)), lspec((1, 1, D)),        # fc2
        const2, const2,                                  # encoder-norm gamma/beta
    ]

    # Cost estimate (kernel is weight-DMA bound; flops are small).
    proj_flops = 2 * BS * D * (3 * D + D + 2 * MLP_DIM)
    attn_flops = 4 * B * NUM_HEADS * S * S * HEAD_DIM
    flops = L * (proj_flops + attn_flops)
    transcendentals = L * (B * NUM_HEADS * S * S + BS * MLP_DIM)
    weight_bytes = L * 2 * (D * 3 * D + D * D + 2 * D * MLP_DIM)      # bf16
    small_bytes = L * 4 * (3 * D + D + MLP_DIM + 5 * D) + 8 * D       # biases / LN
    bytes_accessed = weight_bytes + small_bytes + 2 * BS * D * 4      # + x in/out

    out2d = pl.pallas_call(
        functools.partial(cdkn_kernel, batch=B, seq=S),
        out_shape=jax.ShapeDtypeStruct((BS, D), jnp.float32),
        grid=(L,),
        in_specs=in_specs,
        out_specs=act_spec,
        scratch_shapes=[pltpu.VMEM((BS, D), jnp.float32)],   # resident activation
        compiler_params=pltpu.CompilerParams(
            dimension_semantics=("arbitrary",),
            vmem_limit_bytes=32 * 1024 * 1024),               # fits v7x 64 MiB VMEM
        cost_estimate=pl.CostEstimate(flops=flops,
                                      transcendentals=transcendentals,
                                      bytes_accessed=bytes_accessed),
    )(x2d, p['ln1_g'], p['ln1_b'], p['wqkv'], p['bqkv'], p['wo'], p['bo'],
      p['ln2_g'], p['ln2_b'], p['w1'], p['b1'], p['w2'], p['b2'],
      p['enc_g'], p['enc_b'])

    return out2d.reshape(B, S, D)


# --- pure-JAX reference (identical math incl. bf16 matmul operands) ------------
def mine_cdkn_ref(x, p):
    B, S, _ = x.shape
    L = p['wqkv'].shape[0]
    bf16 = jnp.bfloat16
    for l in range(L):
        h = _layernorm(x, p['ln1_g'][l, 0], p['ln1_b'][l, 0])
        qkv = jnp.einsum('bsd,de->bse', h.astype(bf16), p['wqkv'][l],
                         preferred_element_type=jnp.float32) + p['bqkv'][l, 0]
        q = qkv[..., :D].reshape(B, S, NUM_HEADS, HEAD_DIM)
        k = qkv[..., D:2 * D].reshape(B, S, NUM_HEADS, HEAD_DIM)
        v = qkv[..., 2 * D:].reshape(B, S, NUM_HEADS, HEAD_DIM)
        # 1/sqrt(HEAD_DIM) is pre-folded into Wq / bq at init.
        scores = jnp.einsum('bqhd,bkhd->bhqk', q.astype(bf16), k.astype(bf16),
                            preferred_element_type=jnp.float32)
        probs = jax.nn.softmax(scores, axis=-1)
        ctx = jnp.einsum('bhqk,bkhd->bqhd', probs.astype(bf16), v.astype(bf16),
                         preferred_element_type=jnp.float32).reshape(B, S, D)
        attn_out = jnp.einsum('bsd,de->bse', ctx.astype(bf16), p['wo'][l],
                              preferred_element_type=jnp.float32) + p['bo'][l, 0]
        x = x + attn_out
        h = _layernorm(x, p['ln2_g'][l, 0], p['ln2_b'][l, 0])
        m = jnp.einsum('bsd,dm->bsm', h.astype(bf16), p['w1'][l],
                       preferred_element_type=jnp.float32) + p['b1'][l, 0]
        m = _gelu(m)
        m = jnp.einsum('bsm,md->bsd', m.astype(bf16), p['w2'][l],
                       preferred_element_type=jnp.float32) + p['b2'][l, 0]
        x = x + m
    return _layernorm(x, p['enc_g'][0], p['enc_b'][0])


# --- deterministic parameter init (weights stored as bf16, biases/LN as f32) ---
def init_params(key, num_layers=CDKN_LAYERS):
    def stack_lin(k, fan_in, fan_out):
        k1, k2 = jax.random.split(k)
        w = jax.random.normal(k1, (num_layers, fan_in, fan_out), jnp.float32) * 0.02
        b = jax.random.normal(k2, (num_layers, 1, fan_out), jnp.float32) * 0.02
        return w, b

    k0, k1, k2, k3 = jax.random.split(key, 4)
    wqkv, bqkv = stack_lin(k0, D, 3 * D)
    # Fold 1/sqrt(head_dim) into the query columns (weight AND bias) so the
    # kernel / reference never apply a per-score scale.
    scale = 1.0 / float(HEAD_DIM) ** 0.5
    wqkv = wqkv.at[:, :, :D].multiply(scale)
    bqkv = bqkv.at[:, :, :D].multiply(scale)
    wo, bo = stack_lin(k1, D, D)
    w1, b1 = stack_lin(k2, D, MLP_DIM)
    w2, b2 = stack_lin(k3, MLP_DIM, D)
    ones = jnp.ones((num_layers, 1, D), jnp.float32)
    zeros = jnp.zeros((num_layers, 1, D), jnp.float32)
    return dict(ln1_g=ones, ln1_b=zeros,
                wqkv=wqkv.astype(jnp.bfloat16), bqkv=bqkv,
                wo=wo.astype(jnp.bfloat16), bo=bo,
                ln2_g=ones, ln2_b=zeros,
                w1=w1.astype(jnp.bfloat16), b1=b1,
                w2=w2.astype(jnp.bfloat16), b2=b2,
                enc_g=jnp.ones((1, D), jnp.float32),
                enc_b=jnp.zeros((1, D), jnp.float32))


if __name__ == "__main__":
    key = jax.random.PRNGKey(0)
    key, xk, pk = jax.random.split(key, 3)

    B, S = 2, 8                               # small batch / sequence
    x = jax.random.normal(xk, (B, S, D), jnp.float32)
    params = init_params(pk)

    out = mine_cdkn_forward(x, params)
    out = jax.block_until_ready(out)

    ref = mine_cdkn_ref(x, params)
    assert out.shape == (B, S, D)
    assert bool(jnp.all(jnp.isfinite(out)))
    assert bool(jnp.allclose(out, ref, atol=1e-2, rtol=1e-2)), "mismatch vs JAX reference"

    print("KERNEL_OK")
</pallas_src>

<mosaic_0001>
module attributes {stable_mosaic.version = 11 : i64} {
  func.func @cdkn_kernel(%arg0: i32, %arg1: memref<16x512xf32, #tpu.memory_space<vmem>>, %arg2: memref<1x1x512xf32, #tpu.memory_space<vmem>>, %arg3: memref<1x1x512xf32, #tpu.memory_space<vmem>>, %arg4: memref<1x512x1536xbf16, #tpu.memory_space<vmem>>, %arg5: memref<1x1x1536xf32, #tpu.memory_space<vmem>>, %arg6: memref<1x512x512xbf16, #tpu.memory_space<vmem>>, %arg7: memref<1x1x512xf32, #tpu.memory_space<vmem>>, %arg8: memref<1x1x512xf32, #tpu.memory_space<vmem>>, %arg9: memref<1x1x512xf32, #tpu.memory_space<vmem>>, %arg10: memref<1x512x1024xbf16, #tpu.memory_space<vmem>>, %arg11: memref<1x1x1024xf32, #tpu.memory_space<vmem>>, %arg12: memref<1x1024x512xbf16, #tpu.memory_space<vmem>>, %arg13: memref<1x1x512xf32, #tpu.memory_space<vmem>>, %arg14: memref<1x512xf32, #tpu.memory_space<vmem>>, %arg15: memref<1x512xf32, #tpu.memory_space<vmem>>, %arg16: memref<16x512xf32, #tpu.memory_space<vmem>>, %arg17: memref<16x512xf32, #tpu.memory_space<vmem>>) attributes {dimension_semantics = [#tpu.dimension_semantics<arbitrary>], iteration_bounds = array<i64: 2>, scalar_prefetch = 0 : i64, scratch_operands = 1 : i64, tpu.core_type = #tpu.core_type<tc>, window_params = [{pipeline_mode = #tpu.pipeline_mode<synchronous>, transform_indices = @transform_0, window_bounds = array<i64: 16, 512>}, {transform_indices = @transform_1, window_bounds = array<i64: 1, 1, 512>}, {transform_indices = @transform_2, window_bounds = array<i64: 1, 1, 512>}, {transform_indices = @transform_3, window_bounds = array<i64: 1, 512, 1536>}, {transform_indices = @transform_4, window_bounds = array<i64: 1, 1, 1536>}, {transform_indices = @transform_5, window_bounds = array<i64: 1, 512, 512>}, {transform_indices = @transform_6, window_bounds = array<i64: 1, 1, 512>}, {transform_indices = @transform_7, window_bounds = array<i64: 1, 1, 512>}, {transform_indices = @transform_8, window_bounds = array<i64: 1, 1, 512>}, {transform_indices = @transform_9, window_bounds = array<i64: 1, 512, 1024>}, {transform_indices = @transform_10, window_bounds = array<i64: 1, 1, 1024>}, {transform_indices = @transform_11, window_bounds = array<i64: 1, 1024, 512>}, {transform_indices = @transform_12, window_bounds = array<i64: 1, 1, 512>}, {pipeline_mode = #tpu.pipeline_mode<synchronous>, transform_indices = @transform_13, window_bounds = array<i64: 1, 512>}, {pipeline_mode = #tpu.pipeline_mode<synchronous>, transform_indices = @transform_14, window_bounds = array<i64: 1, 512>}, {pipeline_mode = #tpu.pipeline_mode<synchronous>, transform_indices = @transform_15, window_bounds = array<i64: 16, 512>}]} {
    %c0_i32 = arith.constant 0 : i32
    %0 = arith.cmpi eq, %arg0, %c0_i32 : i32
    %1 = arith.extui %0 : i1 to i32
    %c0_i32_0 = arith.constant 0 : i32
    %2 = arith.cmpi ne, %1, %c0_i32_0 : i32
    scf.if %2 {
      %c0_93 = arith.constant 0 : index
      %c0_94 = arith.constant 0 : index
      %293 = vector.load %arg1[%c0_93, %c0_94] : memref<16x512xf32, #tpu.memory_space<vmem>>, vector<16x512xf32>
      %c0_95 = arith.constant 0 : index
      %c0_96 = arith.constant 0 : index
      %294 = vector.load %arg17[%c0_95, %c0_96] : memref<16x512xf32, #tpu.memory_space<vmem>>, vector<16x512xf32>
      tpu.vector_store %arg17[%c0_95, %c0_96], %293 {strides = array<i32>} : memref<16x512xf32, #tpu.memory_space<vmem>>, vector<16x512xf32>,
    } else {
    }
    %c0 = arith.constant 0 : index
    %c0_1 = arith.constant 0 : index
    %3 = vector.load %arg17[%c0, %c0_1] : memref<16x512xf32, #tpu.memory_space<vmem>>, vector<16x512xf32>
    %c0_2 = arith.constant 0 : index
    %c0_3 = arith.constant 0 : index
    %c0_4 = arith.constant 0 : index
    %4 = vector.load %arg2[%c0_2, %c0_3, %c0_4] : memref<1x1x512xf32, #tpu.memory_space<vmem>>, vector<1x1x512xf32>
    %5 = vector.shape_cast %4 : vector<1x1x512xf32> to vector<512xf32>
    %c0_5 = arith.constant 0 : index
    %c0_6 = arith.constant 0 : index
    %c0_7 = arith.constant 0 : index
    %6 = vector.load %arg3[%c0_5, %c0_6, %c0_7] : memref<1x1x512xf32, #tpu.memory_space<vmem>>, vector<1x1x512xf32>
    %7 = vector.shape_cast %6 : vector<1x1x512xf32> to vector<512xf32>
    %cst = arith.constant dense<0.000000e+00> : vector<16xf32>
    %8 = vector.multi_reduction <add>, %3, %cst [1] : vector<16x512xf32> to vector<16xf32>
    %9 = vector.shape_cast %8 : vector<16xf32> to vector<16x1xf32>
    %cst_8 = arith.constant 5.120000e+02 : f32
    %10 = vector.broadcast %cst_8 : f32 to vector<16x1xf32>
    %11 = arith.divf %9, %10 : vector<16x1xf32>
    %12 = vector.broadcast %11 : vector<16x1xf32> to vector<16x512xf32>
    %13 = arith.subf %3, %12 : vector<16x512xf32>
    %14 = arith.mulf %13, %13 : vector<16x512xf32>
    %cst_9 = arith.constant dense<0.000000e+00> : vector<16xf32>
    %15 = vector.multi_reduction <add>, %14, %cst_9 [1] : vector<16x512xf32> to vector<16xf32>
    %16 = vector.shape_cast %15 : vector<16xf32> to vector<16x1xf32>
    %cst_10 = arith.constant 5.120000e+02 : f32
    %17 = vector.broadcast %cst_10 : f32 to vector<16x1xf32>
    %18 = arith.divf %16, %17 : vector<16x1xf32>
    %19 = vector.broadcast %11 : vector<16x1xf32> to vector<16x512xf32>
    %20 = arith.subf %3, %19 : vector<16x512xf32>
    %cst_11 = arith.constant 9.99999997E-7 : f32
    %21 = vector.broadcast %cst_11 : f32 to vector<16x1xf32>
    %22 = arith.addf %18, %21 : vector<16x1xf32>
    %23 = math.rsqrt %22 : vector<16x1xf32>
    %24 = vector.broadcast %23 : vector<16x1xf32> to vector<16x512xf32>
    %25 = arith.mulf %20, %24 : vector<16x512xf32>
    %26 = vector.shape_cast %5 : vector<512xf32> to vector<1x512xf32>
    %27 = vector.broadcast %26 : vector<1x512xf32> to vector<16x512xf32>
    %28 = arith.mulf %25, %27 : vector<16x512xf32>
    %29 = vector.shape_cast %7 : vector<512xf32> to vector<1x512xf32>
    %30 = vector.broadcast %29 : vector<1x512xf32> to vector<16x512xf32>
    %31 = arith.addf %28, %30 : vector<16x512xf32>
    %32 = arith.truncf %31 : vector<16x512xf32> to vector<16x512xbf16>
    %c0_12 = arith.constant 0 : index
    %c0_13 = arith.constant 0 : index
    %c0_14 = arith.constant 0 : index
    %33 = vector.load %arg4[%c0_12, %c0_13, %c0_14] : memref<1x512x1536xbf16, #tpu.memory_space<vmem>>, vector<1x512x1536xbf16>
    %34 = vector.shape_cast %33 : vector<1x512x1536xbf16> to vector<512x1536xbf16>
    %cst_15 = arith.constant dense<0.000000e+00> : vector<16x1536xf32>
    %35 = tpu.matmul %32, %34, %cst_15 {dimension_numbers = #tpu.dot_dimension_numbers<[1], [0], [0], [1], [0, 0, 1, 1], [], []>} : vector<16x512xbf16>, vector<512x1536xbf16>, vector<16x1536xf32> -> vector<16x1536xf32>
    %c0_16 = arith.constant 0 : index
    %c0_17 = arith.constant 0 : index
    %c0_18 = arith.constant 0 : index
    %36 = vector.load %arg5[%c0_16, %c0_17, %c0_18] : memref<1x1x1536xf32, #tpu.memory_space<vmem>>, vector<1x1x1536xf32>
    %37 = vector.shape_cast %36 : vector<1x1x1536xf32> to vector<1536xf32>
    %38 = vector.shape_cast %37 : vector<1536xf32> to vector<1x1536xf32>
    %39 = vector.broadcast %38 : vector<1x1536xf32> to vector<16x1536xf32>
    %40 = arith.addf %35, %39 : vector<16x1536xf32>
    %41 = vector.extract_strided_slice %40 {offsets = [0, 0], sizes = [16, 512], strides = [1, 1]} : vector<16x1536xf32> to vector<16x512xf32>
    %42 = vector.extract_strided_slice %40 {offsets = [0, 512], sizes = [16, 512], strides = [1, 1]} : vector<16x1536xf32> to vector<16x512xf32>
    %43 = vector.extract_strided_slice %40 {offsets = [0, 1024], sizes = [16, 512], strides = [1, 1]} : vector<16x1536xf32> to vector<16x512xf32>
    %44 = vector.extract_strided_slice %41 {offsets = [0, 0], sizes = [8, 64], strides = [1, 1]} : vector<16x512xf32> to vector<8x64xf32>
    %45 = arith.truncf %44 : vector<8x64xf32> to vector<8x64xbf16>
    %46 = vector.extract_strided_slice %42 {offsets = [0, 0], sizes = [8, 64], strides = [1, 1]} : vector<16x512xf32> to vector<8x64xf32>
    %47 = arith.truncf %46 : vector<8x64xf32> to vector<8x64xbf16>
    %cst_19 = arith.constant dense<0.000000e+00> : vector<8x8xf32>
    %48 = tpu.matmul %45, %47, %cst_19 {dimension_numbers = #tpu.dot_dimension_numbers<[1], [1], [0], [0], [0, 0, 1, 0], [], []>} : vector<8x64xbf16>, vector<8x64xbf16>, vector<8x8xf32> -> vector<8x8xf32>
    %49 = vector.extract_strided_slice %41 {offsets = [0, 64], sizes = [8, 64], strides = [1, 1]} : vector<16x512xf32> to vector<8x64xf32>
    %50 = arith.truncf %49 : vector<8x64xf32> to vector<8x64xbf16>
    %51 = vector.extract_strided_slice %42 {offsets = [0, 64], sizes = [8, 64], strides = [1, 1]} : vector<16x512xf32> to vector<8x64xf32>
    %52 = arith.truncf %51 : vector<8x64xf32> to vector<8x64xbf16>
    %cst_20 = arith.constant dense<0.000000e+00> : vector<8x8xf32>
    %53 = tpu.matmul %50, %52, %cst_20 {dimension_numbers = #tpu.dot_dimension_numbers<[1], [1], [0], [0], [0, 0, 1, 0], [], []>} : vector<8x64xbf16>, vector<8x64xbf16>, vector<8x8xf32> -> vector<8x8xf32>
    %54 = vector.extract_strided_slice %41 {offsets = [0, 128], sizes = [8, 64], strides = [1, 1]} : vector<16x512xf32> to vector<8x64xf32>
    %55 = arith.truncf %54 : vector<8x64xf32> to vector<8x64xbf16>
    %56 = vector.extract_strided_slice %42 {offsets = [0, 128], sizes = [8, 64], strides = [1, 1]} : vector<16x512xf32> to vector<8x64xf32>
    %57 = arith.truncf %56 : vector<8x64xf32> to vector<8x64xbf16>
    %cst_21 = arith.constant dense<0.000000e+00> : vector<8x8xf32>
    %58 = tpu.matmul %55, %57, %cst_21 {dimension_numbers = #tpu.dot_dimension_numbers<[1], [1], [0], [0], [0, 0, 1, 0], [], []>} : vector<8x64xbf16>, vector<8x64xbf16>, vector<8x8xf32> -> vector<8x8xf32>
    %59 = vector.extract_strided_slice %41 {offsets = [0, 192], sizes = [8, 64], strides = [1, 1]} : vector<16x512xf32> to vector<8x64xf32>
    %60 = arith.truncf %59 : vector<8x64xf32> to vector<8x64xbf16>
    %61 = vector.extract_strided_slice %42 {offsets = [0, 192], sizes = [8, 64], strides = [1, 1]} : vector<16x512xf32> to vector<8x64xf32>
    %62 = arith.truncf %61 : vector<8x64xf32> to vector<8x64xbf16>
    %cst_22 = arith.constant dense<0.000000e+00> : vector<8x8xf32>
    %63 = tpu.matmul %60, %62, %cst_22 {dimension_numbers = #tpu.dot_dimension_numbers<[1], [1], [0], [0], [0, 0, 1, 0], [], []>} : vector<8x64xbf16>, vector<8x64xbf16>, vector<8x8xf32> -> vector<8x8xf32>
    %64 = vector.extract_strided_slice %41 {offsets = [0, 256], sizes = [8, 64], strides = [1, 1]} : vector<16x512xf32> to vector<8x64xf32>
    %65 = arith.truncf %64 : vector<8x64xf32> to vector<8x64xbf16>
    %66 = vector.extract_strided_slice %42 {offsets = [0, 256], sizes = [8, 64], strides = [1, 1]} : vector<16x512xf32> to vector<8x64xf32>
    %67 = arith.truncf %66 : vector<8x64xf32> to vector<8x64xbf16>
    %cst_23 = arith.constant dense<0.000000e+00> : vector<8x8xf32>
    %68 = tpu.matmul %65, %67, %cst_23 {dimension_numbers = #tpu.dot_dimension_numbers<[1], [1], [0], [0], [0, 0, 1, 0], [], []>} : vector<8x64xbf16>, vector<8x64xbf16>, vector<8x8xf32> -> vector<8x8xf32>
    %69 = vector.extract_strided_slice %41 {offsets = [0, 320], sizes = [8, 64], strides = [1, 1]} : vector<16x512xf32> to vector<8x64xf32>
    %70 = arith.truncf %69 : vector<8x64xf32> to vector<8x64xbf16>
    %71 = vector.extract_strided_slice %42 {offsets = [0, 320], sizes = [8, 64], strides = [1, 1]} : vector<16x512xf32> to vector<8x64xf32>
    %72 = arith.truncf %71 : vector<8x64xf32> to vector<8x64xbf16>
    %cst_24 = arith.constant dense<0.000000e+00> : vector<8x8xf32>
    %73 = tpu.matmul %70, %72, %cst_24 {dimension_numbers = #tpu.dot_dimension_numbers<[1], [1], [0], [0], [0, 0, 1, 0], [], []>} : vector<8x64xbf16>, vector<8x64xbf16>, vector<8x8xf32> -> vector<8x8xf32>
    %74 = vector.extract_strided_slice %41 {offsets = [0, 384], sizes = [8, 64], strides = [1, 1]} : vector<16x512xf32> to vector<8x64xf32>
    %75 = arith.truncf %74 : vector<8x64xf32> to vector<8x64xbf16>
    %76 = vector.extract_strided_slice %42 {offsets = [0, 384], sizes = [8, 64], strides = [1, 1]} : vector<16x512xf32> to vector<8x64xf32>
    %77 = arith.truncf %76 : vector<8x64xf32> to vector<8x64xbf16>
    %cst_25 = arith.constant dense<0.000000e+00> : vector<8x8xf32>
    %78 = tpu.matmul %75, %77, %cst_25 {dimension_numbers = #tpu.dot_dimension_numbers<[1], [1], [0], [0], [0, 0, 1, 0], [], []>} : vector<8x64xbf16>, vector<8x64xbf16>, vector<8x8xf32> -> vector<8x8xf32>
    %79 = vector.extract_strided_slice %41 {offsets = [0, 448], sizes = [8, 64], strides = [1, 1]} : vector<16x512xf32> to vector<8x64xf32>
    %80 = arith.truncf %79 : vector<8x64xf32> to vector<8x64xbf16>
    %81 = vector.extract_strided_slice %42 {offsets = [0, 448], sizes = [8, 64], strides = [1, 1]} : vector<16x512xf32> to vector<8x64xf32>
    %82 = arith.truncf %81 : vector<8x64xf32> to vector<8x64xbf16>
    %cst_26 = arith.constant dense<0.000000e+00> : vector<8x8xf32>
    %83 = tpu.matmul %80, %82, %cst_26 {dimension_numbers = #tpu.dot_dimension_numbers<[1], [1], [0], [0], [0, 0, 1, 0], [], []>} : vector<8x64xbf16>, vector<8x64xbf16>, vector<8x8xf32> -> vector<8x8xf32>
    %84 = vector.extract_strided_slice %41 {offsets = [8, 0], sizes = [8, 64], strides = [1, 1]} : vector<16x512xf32> to vector<8x64xf32>
    %85 = arith.truncf %84 : vector<8x64xf32> to vector<8x64xbf16>
    %86 = vector.extract_strided_slice %42 {offsets = [8, 0], sizes = [8, 64], strides = [1, 1]} : vector<16x512xf32> to vector<8x64xf32>
    %87 = arith.truncf %86 : vector<8x64xf32> to vector<8x64xbf16>
    %cst_27 = arith.constant dense<0.000000e+00> : vector<8x8xf32>
    %88 = tpu.matmul %85, %87, %cst_27 {dimension_numbers = #tpu.dot_dimension_numbers<[1], [1], [0], [0], [0, 0, 1, 0], [], []>} : vector<8x64xbf16>, vector<8x64xbf16>, vector<8x8xf32> -> vector<8x8xf32>
    %89 = vector.extract_strided_slice %41 {offsets = [8, 64], sizes = [8, 64], strides = [1, 1]} : vector<16x512xf32> to vector<8x64xf32>
    %90 = arith.truncf %89 : vector<8x64xf32> to vector<8x64xbf16>
    %91 = vector.extract_strided_slice %42 {offsets = [8, 64], sizes = [8, 64], strides = [1, 1]} : vector<16x512xf32> to vector<8x64xf32>
    %92 = arith.truncf %91 : vector<8x64xf32> to vector<8x64xbf16>
    %cst_28 = arith.constant dense<0.000000e+00> : vector<8x8xf32>
    %93 = tpu.matmul %90, %92, %cst_28 {dimension_numbers = #tpu.dot_dimension_numbers<[1], [1], [0], [0], [0, 0, 1, 0], [], []>} : vector<8x64xbf16>, vector<8x64xbf16>, vector<8x8xf32> -> vector<8x8xf32>
    %94 = vector.extract_strided_slice %41 {offsets = [8, 128], sizes = [8, 64], strides = [1, 1]} : vector<16x512xf32> to vector<8x64xf32>
    %95 = arith.truncf %94 : vector<8x64xf32> to vector<8x64xbf16>
    %96 = vector.extract_strided_slice %42 {offsets = [8, 128], sizes = [8, 64], strides = [1, 1]} : vector<16x512xf32> to vector<8x64xf32>
    %97 = arith.truncf %96 : vector<8x64xf32> to vector<8x64xbf16>
    %cst_29 = arith.constant dense<0.000000e+00> : vector<8x8xf32>
    %98 = tpu.matmul %95, %97, %cst_29 {dimension_numbers = #tpu.dot_dimension_numbers<[1], [1], [0], [0], [0, 0, 1, 0], [], []>} : vector<8x64xbf16>, vector<8x64xbf16>, vector<8x8xf32> -> vector<8x8xf32>
    %99 = vector.extract_strided_slice %41 {offsets = [8, 192], sizes = [8, 64], strides = [1, 1]} : vector<16x512xf32> to vector<8x64xf32>
    %100 = arith.truncf %99 : vector<8x64xf32> to vector<8x64xbf16>
    %101 = vector.extract_strided_slice %42 {offsets = [8, 192], sizes = [8, 64], strides = [1, 1]} : vector<16x512xf32> to vector<8x64xf32>
    %102 = arith.truncf %101 : vector<8x64xf32> to vector<8x64xbf16>
    %cst_30 = arith.constant dense<0.000000e+00> : vector<8x8xf32>
    %103 = tpu.matmul %100, %102, %cst_30 {dimension_numbers = #tpu.dot_dimension_numbers<[1], [1], [0], [0], [0, 0, 1, 0], [], []>} : vector<8x64xbf16>, vector<8x64xbf16>, vector<8x8xf32> -> vector<8x8xf32>
    %104 = vector.extract_strided_slice %41 {offsets = [8, 256], sizes = [8, 64], strides = [1, 1]} : vector<16x512xf32> to vector<8x64xf32>
    %105 = arith.truncf %104 : vector<8x64xf32> to vector<8x64xbf16>
    %106 = vector.extract_strided_slice %42 {offsets = [8, 256], sizes = [8, 64], strides = [1, 1]} : vector<16x512xf32> to vector<8x64xf32>
    %107 = arith.truncf %106 : vector<8x64xf32> to vector<8x64xbf16>
    %cst_31 = arith.constant dense<0.000000e+00> : vector<8x8xf32>
    %108 = tpu.matmul %105, %107, %cst_31 {dimension_numbers = #tpu.dot_dimension_numbers<[1], [1], [0], [0], [0, 0, 1, 0], [], []>} : vector<8x64xbf16>, vector<8x64xbf16>, vector<8x8xf32> -> vector<8x8xf32>
    %109 = vector.extract_strided_slice %41 {offsets = [8, 320], sizes = [8, 64], strides = [1, 1]} : vector<16x512xf32> to vector<8x64xf32>
    %110 = arith.truncf %109 : vector<8x64xf32> to vector<8x64xbf16>
    %111 = vector.extract_strided_slice %42 {offsets = [8, 320], sizes = [8, 64], strides = [1, 1]} : vector<16x512xf32> to vector<8x64xf32>
    %112 = arith.truncf %111 : vector<8x64xf32> to vector<8x64xbf16>
    %cst_32 = arith.constant dense<0.000000e+00> : vector<8x8xf32>
    %113 = tpu.matmul %110, %112, %cst_32 {dimension_numbers = #tpu.dot_dimension_numbers<[1], [1], [0], [0], [0, 0, 1, 0], [], []>} : vector<8x64xbf16>, vector<8x64xbf16>, vector<8x8xf32> -> vector<8x8xf32>
    %114 = vector.extract_strided_slice %41 {offsets = [8, 384], sizes = [8, 64], strides = [1, 1]} : vector<16x512xf32> to vector<8x64xf32>
    %115 = arith.truncf %114 : vector<8x64xf32> to vector<8x64xbf16>
    %116 = vector.extract_strided_slice %42 {offsets = [8, 384], sizes = [8, 64], strides = [1, 1]} : vector<16x512xf32> to vector<8x64xf32>
    %117 = arith.truncf %116 : vector<8x64xf32> to vector<8x64xbf16>
    %cst_33 = arith.constant dense<0.000000e+00> : vector<8x8xf32>
    %118 = tpu.matmul %115, %117, %cst_33 {dimension_numbers = #tpu.dot_dimension_numbers<[1], [1], [0], [0], [0, 0, 1, 0], [], []>} : vector<8x64xbf16>, vector<8x64xbf16>, vector<8x8xf32> -> vector<8x8xf32>
    %119 = vector.extract_strided_slice %41 {offsets = [8, 448], sizes = [8, 64], strides = [1, 1]} : vector<16x512xf32> to vector<8x64xf32>
    %120 = arith.truncf %119 : vector<8x64xf32> to vector<8x64xbf16>
    %121 = vector.extract_strided_slice %42 {offsets = [8, 448], sizes = [8, 64], strides = [1, 1]} : vector<16x512xf32> to vector<8x64xf32>
    %122 = arith.truncf %121 : vector<8x64xf32> to vector<8x64xbf16>
    %cst_34 = arith.constant dense<0.000000e+00> : vector<8x8xf32>
    %123 = tpu.matmul %120, %122, %cst_34 {dimension_numbers = #tpu.dot_dimension_numbers<[1], [1], [0], [0], [0, 0, 1, 0], [], []>} : vector<8x64xbf16>, vector<8x64xbf16>, vector<8x8xf32> -> vector<8x8xf32>
    %124 = tpu.concatenate %48, %53, %58, %63, %68, %73, %78, %83, %88, %93, %98, %103, %108, %113, %118, %123 in 0 : vector<8x8xf32>, vector<8x8xf32>, vector<8x8xf32>, vector<8x8xf32>, vector<8x8xf32>, vector<8x8xf32>, vector<8x8xf32>, vector<8x8xf32>, vector<8x8xf32>, vector<8x8xf32>, vector<8x8xf32>, vector<8x8xf32>, vector<8x8xf32>, vector<8x8xf32>, vector<8x8xf32>, vector<8x8xf32> -> vector<128x8xf32>
    %cst_35 = arith.constant dense<0xFF800000> : vector<128xf32>
    %125 = vector.multi_reduction <maximumf>, %124, %cst_35 [1] : vector<128x8xf32> to vector<128xf32>
    %cst_36 = arith.constant 0xFF800000 : f32
    %126 = vector.broadcast %cst_36 : f32 to vector<128xf32>
    %127 = arith.maximumf %126, %125 : vector<128xf32>
    %128 = vector.shape_cast %127 : vector<128xf32> to vector<128x1xf32>
    %129 = vector.broadcast %128 : vector<128x1xf32> to vector<128x8xf32>
    %130 = arith.subf %124, %129 : vector<128x8xf32>
    %131 = math.exp %130 : vector<128x8xf32>
    %cst_37 = arith.constant dense<0.000000e+00> : vector<128xf32>
    %132 = vector.multi_reduction <add>, %131, %cst_37 [1] : vector<128x8xf32> to vector<128xf32>
    %133 = vector.shape_cast %132 : vector<128xf32> to vector<128x1xf32>
    %134 = vector.broadcast %133 : vector<128x1xf32> to vector<128x8xf32>
    %135 = arith.divf %131, %134 : vector<128x8xf32>
    %136 = vector.extract_strided_slice %135 {offsets = [0, 0], sizes = [8, 8], strides = [1, 1]} : vector<128x8xf32> to vector<8x8xf32>
    %137 = arith.truncf %136 : vector<8x8xf32> to vector<8x8xbf16>
    %138 = vector.extract_strided_slice %43 {offsets = [0, 0], sizes = [8, 64], strides = [1, 1]} : vector<16x512xf32> to vector<8x64xf32>
    %139 = arith.truncf %138 : vector<8x64xf32> to vector<8x64xbf16>
    %cst_38 = arith.constant dense<0.000000e+00> : vector<8x64xf32>
    %140 = tpu.matmul %137, %139, %cst_38 {dimension_numbers = #tpu.dot_dimension_numbers<[1], [0], [0], [1], [0, 0, 1, 1], [], []>} : vector<8x8xbf16>, vector<8x64xbf16>, vector<8x64xf32> -> vector<8x64xf32>
    %141 = vector.extract_strided_slice %135 {offsets = [8, 0], sizes = [8, 8], strides = [1, 1]} : vector<128x8xf32> to vector<8x8xf32>
    %142 = arith.truncf %141 : vector<8x8xf32> to vector<8x8xbf16>
    %143 = vector.extract_strided_slice %43 {offsets = [0, 64], sizes = [8, 64], strides = [1, 1]} : vector<16x512xf32> to vector<8x64xf32>
    %144 = arith.truncf %143 : vector<8x64xf32> to vector<8x64xbf16>
    %cst_39 = arith.constant dense<0.000000e+00> : vector<8x64xf32>
    %145 = tpu.matmul %142, %144, %cst_39 {dimension_numbers = #tpu.dot_dimension_numbers<[1], [0], [0], [1], [0, 0, 1, 1], [], []>} : vector<8x8xbf16>, vector<8x64xbf16>, vector<8x64xf32> -> vector<8x64xf32>
    %146 = vector.extract_strided_slice %135 {offsets = [16, 0], sizes = [8, 8], strides = [1, 1]} : vector<128x8xf32> to vector<8x8xf32>
    %147 = arith.truncf %146 : vector<8x8xf32> to vector<8x8xbf16>
    %148 = vector.extract_strided_slice %43 {offsets = [0, 128], sizes = [8, 64], strides = [1, 1]} : vector<16x512xf32> to vector<8x64xf32>
    %149 = arith.truncf %148 : vector<8x64xf32> to vector<8x64xbf16>
    %cst_40 = arith.constant dense<0.000000e+00> : vector<8x64xf32>
    %150 = tpu.matmul %147, %149, %cst_40 {dimension_numbers = #tpu.dot_dimension_numbers<[1], [0], [0], [1], [0, 0, 1, 1], [], []>} : vector<8x8xbf16>, vector<8x64xbf16>, vector<8x64xf32> -> vector<8x64xf32>
    %151 = vector.extract_strided_slice %135 {offsets = [24, 0], sizes = [8, 8], strides = [1, 1]} : vector<128x8xf32> to vector<8x8xf32>
    %152 = arith.truncf %151 : vector<8x8xf32> to vector<8x8xbf16>
    %153 = vector.extract_strided_slice %43 {offsets = [0, 192], sizes = [8, 64], strides = [1, 1]} : vector<16x512xf32> to vector<8x64xf32>
    %154 = arith.truncf %153 : vector<8x64xf32> to vector<8x64xbf16>
    %cst_41 = arith.constant dense<0.000000e+00> : vector<8x64xf32>
    %155 = tpu.matmul %152, %154, %cst_41 {dimension_numbers = #tpu.dot_dimension_numbers<[1], [0], [0], [1], [0, 0, 1, 1], [], []>} : vector<8x8xbf16>, vector<8x64xbf16>, vector<8x64xf32> -> vector<8x64xf32>
    %156 = vector.extract_strided_slice %135 {offsets = [32, 0], sizes = [8, 8], strides = [1, 1]} : vector<128x8xf32> to vector<8x8xf32>
    %157 = arith.truncf %156 : vector<8x8xf32> to vector<8x8xbf16>
    %158 = vector.extract_strided_slice %43 {offsets = [0, 256], sizes = [8, 64], strides = [1, 1]} : vector<16x512xf32> to vector<8x64xf32>
    %159 = arith.truncf %158 : vector<8x64xf32> to vector<8x64xbf16>
    %cst_42 = arith.constant dense<0.000000e+00> : vector<8x64xf32>
    %160 = tpu.matmul %157, %159, %cst_42 {dimension_numbers = #tpu.dot_dimension_numbers<[1], [0], [0], [1], [0, 0, 1, 1], [], []>} : vector<8x8xbf16>, vector<8x64xbf16>, vector<8x64xf32> -> vector<8x64xf32>
    %161 = vector.extract_strided_slice %135 {offsets = [40, 0], sizes = [8, 8], strides = [1, 1]} : vector<128x8xf32> to vector<8x8xf32>
    %162 = arith.truncf %161 : vector<8x8xf32> to vector<8x8xbf16>
    %163 = vector.extract_strided_slice %43 {offsets = [0, 320], sizes = [8, 64], strides = [1, 1]} : vector<16x512xf32> to vector<8x64xf32>
    %164 = arith.truncf %163 : vector<8x64xf32> to vector<8x64xbf16>
    %cst_43 = arith.constant dense<0.000000e+00> : vector<8x64xf32>
    %165 = tpu.matmul %162, %164, %cst_43 {dimension_numbers = #tpu.dot_dimension_numbers<[1], [0], [0], [1], [0, 0, 1, 1], [], []>} : vector<8x8xbf16>, vector<8x64xbf16>, vector<8x64xf32> -> vector<8x64xf32>
    %166 = vector.extract_strided_slice %135 {offsets = [48, 0], sizes = [8, 8], strides = [1, 1]} : vector<128x8xf32> to vector<8x8xf32>
    %167 = arith.truncf %166 : vector<8x8xf32> to vector<8x8xbf16>
    %168 = vector.extract_strided_slice %43 {offsets = [0, 384], sizes = [8, 64], strides = [1, 1]} : vector<16x512xf32> to vector<8x64xf32>
    %169 = arith.truncf %168 : vector<8x64xf32> to vector<8x64xbf16>
    %cst_44 = arith.constant dense<0.000000e+00> : vector<8x64xf32>
    %170 = tpu.matmul %167, %169, %cst_44 {dimension_numbers = #tpu.dot_dimension_numbers<[1], [0], [0], [1], [0, 0, 1, 1], [], []>} : vector<8x8xbf16>, vector<8x64xbf16>, vector<8x64xf32> -> vector<8x64xf32>
    %171 = vector.extract_strided_slice %135 {offsets = [56, 0], sizes = [8, 8], strides = [1, 1]} : vector<128x8xf32> to vector<8x8xf32>
    %172 = arith.truncf %171 : vector<8x8xf32> to vector<8x8xbf16>
    %173 = vector.extract_strided_slice %43 {offsets = [0, 448], sizes = [8, 64], strides = [1, 1]} : vector<16x512xf32> to vector<8x64xf32>
    %174 = arith.truncf %173 : vector<8x64xf32> to vector<8x64xbf16>
    %cst_45 = arith.constant dense<0.000000e+00> : vector<8x64xf32>
    %175 = tpu.matmul %172, %174, %cst_45 {dimension_numbers = #tpu.dot_dimension_numbers<[1], [0], [0], [1], [0, 0, 1, 1], [], []>} : vector<8x8xbf16>, vector<8x64xbf16>, vector<8x64xf32> -> vector<8x64xf32>
    %176 = tpu.concatenate %140, %145, %150, %155, %160, %165, %170, %175 in 1 : vector<8x64xf32>, vector<8x64xf32>, vector<8x64xf32>, vector<8x64xf32>, vector<8x64xf32>, vector<8x64xf32>, vector<8x64xf32>, vector<8x64xf32> -> vector<8x512xf32>
    %177 = vector.extract_strided_slice %135 {offsets = [64, 0], sizes = [8, 8], strides = [1, 1]} : vector<128x8xf32> to vector<8x8xf32>
    %178 = arith.truncf %177 : vector<8x8xf32> to vector<8x8xbf16>
    %179 = vector.extract_strided_slice %43 {offsets = [8, 0], sizes = [8, 64], strides = [1, 1]} : vector<16x512xf32> to vector<8x64xf32>
    %180 = arith.truncf %179 : vector<8x64xf32> to vector<8x64xbf16>
    %cst_46 = arith.constant dense<0.000000e+00> : vector<8x64xf32>
    %181 = tpu.matmul %178, %180, %cst_46 {dimension_numbers = #tpu.dot_dimension_numbers<[1], [0], [0], [1], [0, 0, 1, 1], [], []>} : vector<8x8xbf16>, vector<8x64xbf16>, vector<8x64xf32> -> vector<8x64xf32>
    %182 = vector.extract_strided_slice %135 {offsets = [72, 0], sizes = [8, 8], strides = [1, 1]} : vector<128x8xf32> to vector<8x8xf32>
    %183 = arith.truncf %182 : vector<8x8xf32> to vector<8x8xbf16>
    %184 = vector.extract_strided_slice %43 {offsets = [8, 64], sizes = [8, 64], strides = [1, 1]} : vector<16x512xf32> to vector<8x64xf32>
    %185 = arith.truncf %184 : vector<8x64xf32> to vector<8x64xbf16>
    %cst_47 = arith.constant dense<0.000000e+00> : vector<8x64xf32>
    %186 = tpu.matmul %183, %185, %cst_47 {dimension_numbers = #tpu.dot_dimension_numbers<[1], [0], [0], [1], [0, 0, 1, 1], [], []>} : vector<8x8xbf16>, vector<8x64xbf16>, vector<8x64xf32> -> vector<8x64xf32>
    %187 = vector.extract_strided_slice %135 {offsets = [80, 0], sizes = [8, 8], strides = [1, 1]} : vector<128x8xf32> to vector<8x8xf32>
    %188 = arith.truncf %187 : vector<8x8xf32> to vector<8x8xbf16>
    %189 = vector.extract_strided_slice %43 {offsets = [8, 128], sizes = [8, 64], strides = [1, 1]} : vector<16x512xf32> to vector<8x64xf32>
    %190 = arith.truncf %189 : vector<8x64xf32> to vector<8x64xbf16>
    %cst_48 = arith.constant dense<0.000000e+00> : vector<8x64xf32>
    %191 = tpu.matmul %188, %190, %cst_48 {dimension_numbers = #tpu.dot_dimension_numbers<[1], [0], [0], [1], [0, 0, 1, 1], [], []>} : vector<8x8xbf16>, vector<8x64xbf16>, vector<8x64xf32> -> vector<8x64xf32>
    %192 = vector.extract_strided_slice %135 {offsets = [88, 0], sizes = [8, 8], strides = [1, 1]} : vector<128x8xf32> to vector<8x8xf32>
    %193 = arith.truncf %192 : vector<8x8xf32> to vector<8x8xbf16>
    %194 = vector.extract_strided_slice %43 {offsets = [8, 192], sizes = [8, 64], strides = [1, 1]} : vector<16x512xf32> to vector<8x64xf32>
    %195 = arith.truncf %194 : vector<8x64xf32> to vector<8x64xbf16>
    %cst_49 = arith.constant dense<0.000000e+00> : vector<8x64xf32>
    %196 = tpu.matmul %193, %195, %cst_49 {dimension_numbers = #tpu.dot_dimension_numbers<[1], [0], [0], [1], [0, 0, 1, 1], [], []>} : vector<8x8xbf16>, vector<8x64xbf16>, vector<8x64xf32> -> vector<8x64xf32>
    %197 = vector.extract_strided_slice %135 {offsets = [96, 0], sizes = [8, 8], strides = [1, 1]} : vector<128x8xf32> to vector<8x8xf32>
    %198 = arith.truncf %197 : vector<8x8xf32> to vector<8x8xbf16>
    %199 = vector.extract_strided_slice %43 {offsets = [8, 256], sizes = [8, 64], strides = [1, 1]} : vector<16x512xf32> to vector<8x64xf32>
    %200 = arith.truncf %199 : vector<8x64xf32> to vector<8x64xbf16>
    %cst_50 = arith.constant dense<0.000000e+00> : vector<8x64xf32>
    %201 = tpu.matmul %198, %200, %cst_50 {dimension_numbers = #tpu.dot_dimension_numbers<[1], [0], [0], [1], [0, 0, 1, 1], [], []>} : vector<8x8xbf16>, vector<8x64xbf16>, vector<8x64xf32> -> vector<8x64xf32>
    %202 = vector.extract_strided_slice %135 {offsets = [104, 0], sizes = [8, 8], strides = [1, 1]} : vector<128x8xf32> to vector<8x8xf32>
    %203 = arith.truncf %202 : vector<8x8xf32> to vector<8x8xbf16>
    %204 = vector.extract_strided_slice %43 {offsets = [8, 320], sizes = [8, 64], strides = [1, 1]} : vector<16x512xf32> to vector<8x64xf32>
    %205 = arith.truncf %204 : vector<8x64xf32> to vector<8x64xbf16>
    %cst_51 = arith.constant dense<0.000000e+00> : vector<8x64xf32>
    %206 = tpu.matmul %203, %205, %cst_51 {dimension_numbers = #tpu.dot_dimension_numbers<[1], [0], [0], [1], [0, 0, 1, 1], [], []>} : vector<8x8xbf16>, vector<8x64xbf16>, vector<8x64xf32> -> vector<8x64xf32>
    %207 = vector.extract_strided_slice %135 {offsets = [112, 0], sizes = [8, 8], strides = [1, 1]} : vector<128x8xf32> to vector<8x8xf32>
    %208 = arith.truncf %207 : vector<8x8xf32> to vector<8x8xbf16>
    %209 = vector.extract_strided_slice %43 {offsets = [8, 384], sizes = [8, 64], strides = [1, 1]} : vector<16x512xf32> to vector<8x64xf32>
    %210 = arith.truncf %209 : vector<8x64xf32> to vector<8x64xbf16>
    %cst_52 = arith.constant dense<0.000000e+00> : vector<8x64xf32>
    %211 = tpu.matmul %208, %210, %cst_52 {dimension_numbers = #tpu.dot_dimension_numbers<[1], [0], [0], [1], [0, 0, 1, 1], [], []>} : vector<8x8xbf16>, vector<8x64xbf16>, vector<8x64xf32> -> vector<8x64xf32>
    %212 = vector.extract_strided_slice %135 {offsets = [120, 0], sizes = [8, 8], strides = [1, 1]} : vector<128x8xf32> to vector<8x8xf32>
    %213 = arith.truncf %212 : vector<8x8xf32> to vector<8x8xbf16>
    %214 = vector.extract_strided_slice %43 {offsets = [8, 448], sizes = [8, 64], strides = [1, 1]} : vector<16x512xf32> to vector<8x64xf32>
    %215 = arith.truncf %214 : vector<8x64xf32> to vector<8x64xbf16>
    %cst_53 = arith.constant dense<0.000000e+00> : vector<8x64xf32>
    %216 = tpu.matmul %213, %215, %cst_53 {dimension_numbers = #tpu.dot_dimension_numbers<[1], [0], [0], [1], [0, 0, 1, 1], [], []>} : vector<8x8xbf16>, vector<8x64xbf16>, vector<8x64xf32> -> vector<8x64xf32>
    %217 = tpu.concatenate %181, %186, %191, %196, %201, %206, %211, %216 in 1 : vector<8x64xf32>, vector<8x64xf32>, vector<8x64xf32>, vector<8x64xf32>, vector<8x64xf32>, vector<8x64xf32>, vector<8x64xf32>, vector<8x64xf32> -> vector<8x512xf32>
    %218 = tpu.concatenate %176, %217 in 0 : vector<8x512xf32>, vector<8x512xf32> -> vector<16x512xf32>
    %219 = arith.truncf %218 : vector<16x512xf32> to vector<16x512xbf16>
    %c0_54 = arith.constant 0 : index
    %c0_55 = arith.constant 0 : index
    %c0_56 = arith.constant 0 : index
    %220 = vector.load %arg6[%c0_54, %c0_55, %c0_56] : memref<1x512x512xbf16, #tpu.memory_space<vmem>>, vector<1x512x512xbf16>
    %221 = vector.shape_cast %220 : vector<1x512x512xbf16> to vector<512x512xbf16>
    %cst_57 = arith.constant dense<0.000000e+00> : vector<16x512xf32>
    %222 = tpu.matmul %219, %221, %cst_57 {dimension_numbers = #tpu.dot_dimension_numbers<[1], [0], [0], [1], [0, 0, 1, 1], [], []>} : vector<16x512xbf16>, vector<512x512xbf16>, vector<16x512xf32> -> vector<16x512xf32>
    %c0_58 = arith.constant 0 : index
    %c0_59 = arith.constant 0 : index
    %c0_60 = arith.constant 0 : index
    %223 = vector.load %arg7[%c0_58, %c0_59, %c0_60] : memref<1x1x512xf32, #tpu.memory_space<vmem>>, vector<1x1x512xf32>
    %224 = vector.shape_cast %223 : vector<1x1x512xf32> to vector<512xf32>
    %225 = vector.shape_cast %224 : vector<512xf32> to vector<1x512xf32>
    %226 = vector.broadcast %225 : vector<1x512xf32> to vector<16x512xf32>
    %227 = arith.addf %222, %226 : vector<16x512xf32>
    %228 = arith.addf %3, %227 : vector<16x512xf32>
    %c0_61 = arith.constant 0 : index
    %c0_62 = arith.constant 0 : index
    %c0_63 = arith.constant 0 : index
    %229 = vector.load %arg8[%c0_61, %c0_62, %c0_63] : memref<1x1x512xf32, #tpu.memory_space<vmem>>, vector<1x1x512xf32>
    %230 = vector.shape_cast %229 : vector<1x1x512xf32> to vector<512xf32>
    %c0_64 = arith.constant 0 : index
    %c0_65 = arith.constant 0 : index
    %c0_66 = arith.constant 0 : index
    %231 = vector.load %arg9[%c0_64, %c0_65, %c0_66] : memref<1x1x512xf32, #tpu.memory_space<vmem>>, vector<1x1x512xf32>
    %232 = vector.shape_cast %231 : vector<1x1x512xf32> to vector<512xf32>
    %cst_67 = arith.constant dense<0.000000e+00> : vector<16xf32>
    %233 = vector.multi_reduction <add>, %228, %cst_67 [1] : vector<16x512xf32> to vector<16xf32>
    %234 = vector.shape_cast %233 : vector<16xf32> to vector<16x1xf32>
    %cst_68 = arith.constant 5.120000e+02 : f32
    %235 = vector.broadcast %cst_68 : f32 to vector<16x1xf32>
    %236 = arith.divf %234, %235 : vector<16x1xf32>
    %237 = vector.broadcast %236 : vector<16x1xf32> to vector<16x512xf32>
    %238 = arith.subf %228, %237 : vector<16x512xf32>
    %239 = arith.mulf %238, %238 : vector<16x512xf32>
    %cst_69 = arith.constant dense<0.000000e+00> : vector<16xf32>
    %240 = vector.multi_reduction <add>, %239, %cst_69 [1] : vector<16x512xf32> to vector<16xf32>
    %241 = vector.shape_cast %240 : vector<16xf32> to vector<16x1xf32>
    %cst_70 = arith.constant 5.120000e+02 : f32
    %242 = vector.broadcast %cst_70 : f32 to vector<16x1xf32>
    %243 = arith.divf %241, %242 : vector<16x1xf32>
    %244 = vector.broadcast %236 : vector<16x1xf32> to vector<16x512xf32>
    %245 = arith.subf %228, %244 : vector<16x512xf32>
    %cst_71 = arith.constant 9.99999997E-7 : f32
    %246 = vector.broadcast %cst_71 : f32 to vector<16x1xf32>
    %247 = arith.addf %243, %246 : vector<16x1xf32>
    %248 = math.rsqrt %247 : vector<16x1xf32>
    %249 = vector.broadcast %248 : vector<16x1xf32> to vector<16x512xf32>
    %250 = arith.mulf %245, %249 : vector<16x512xf32>
    %251 = vector.shape_cast %230 : vector<512xf32> to vector<1x512xf32>
    %252 = vector.broadcast %251 : vector<1x512xf32> to vector<16x512xf32>
    %253 = arith.mulf %250, %252 : vector<16x512xf32>
    %254 = vector.shape_cast %232 : vector<512xf32> to vector<1x512xf32>
    %255 = vector.broadcast %254 : vector<1x512xf32> to vector<16x512xf32>
    %256 = arith.addf %253, %255 : vector<16x512xf32>
    %257 = arith.truncf %256 : vector<16x512xf32> to vector<16x512xbf16>
    %c0_72 = arith.constant 0 : index
    %c0_73 = arith.constant 0 : index
    %c0_74 = arith.constant 0 : index
    %258 = vector.load %arg10[%c0_72, %c0_73, %c0_74] : memref<1x512x1024xbf16, #tpu.memory_space<vmem>>, vector<1x512x1024xbf16>
    %259 = vector.shape_cast %258 : vector<1x512x1024xbf16> to vector<512x1024xbf16>
    %cst_75 = arith.constant dense<0.000000e+00> : vector<16x1024xf32>
    %260 = tpu.matmul %257, %259, %cst_75 {dimension_numbers = #tpu.dot_dimension_numbers<[1], [0], [0], [1], [0, 0, 1, 1], [], []>} : vector<16x512xbf16>, vector<512x1024xbf16>, vector<16x1024xf32> -> vector<16x1024xf32>
    %c0_76 = arith.constant 0 : index
    %c0_77 = arith.constant 0 : index
    %c0_78 = arith.constant 0 : index
    %261 = vector.load %arg11[%c0_76, %c0_77, %c0_78] : memref<1x1x1024xf32, #tpu.memory_space<vmem>>, vector<1x1x1024xf32>
    %262 = vector.shape_cast %261 : vector<1x1x1024xf32> to vector<1024xf32>
    %263 = vector.shape_cast %262 : vector<1024xf32> to vector<1x1024xf32>
    %264 = vector.broadcast %263 : vector<1x1024xf32> to vector<16x1024xf32>
    %265 = arith.addf %260, %264 : vector<16x1024xf32>
    %266 = arith.mulf %265, %265 : vector<16x1024xf32>
    %267 = arith.mulf %265, %266 : vector<16x1024xf32>
    %cst_79 = arith.constant 4.471500e-02 : f32
    %268 = vector.broadcast %cst_79 : f32 to vector<16x1024xf32>
    %269 = arith.mulf %268, %267 : vector<16x1024xf32>
    %270 = arith.addf %265, %269 : vector<16x1024xf32>
    %cst_80 = arith.constant 0.797884583 : f32
    %271 = vector.broadcast %cst_80 : f32 to vector<16x1024xf32>
    %272 = arith.mulf %271, %270 : vector<16x1024xf32>
    %273 = math.tanh %272 : vector<16x1024xf32>
    %cst_81 = arith.constant 1.000000e+00 : f32
    %274 = vector.broadcast %cst_81 : f32 to vector<16x1024xf32>
    %275 = arith.addf %274, %273 : vector<16x1024xf32>
    %cst_82 = arith.constant 5.000000e-01 : f32
    %276 = vector.broadcast %cst_82 : f32 to vector<16x1024xf32>
    %277 = arith.mulf %276, %275 : vector<16x1024xf32>
    %278 = arith.mulf %265, %277 : vector<16x1024xf32>
    %279 = arith.truncf %278 : vector<16x1024xf32> to vector<16x1024xbf16>
    %c0_83 = arith.constant 0 : index
    %c0_84 = arith.constant 0 : index
    %c0_85 = arith.constant 0 : index
    %280 = vector.load %arg12[%c0_83, %c0_84, %c0_85] : memref<1x1024x512xbf16, #tpu.memory_space<vmem>>, vector<1x1024x512xbf16>
    %281 = vector.shape_cast %280 : vector<1x1024x512xbf16> to vector<1024x512xbf16>
    %cst_86 = arith.constant dense<0.000000e+00> : vector<16x512xf32>
    %282 = tpu.matmul %279, %281, %cst_86 {dimension_numbers = #tpu.dot_dimension_numbers<[1], [0], [0], [1], [0, 0, 1, 1], [], []>} : vector<16x1024xbf16>, vector<1024x512xbf16>, vector<16x512xf32> -> vector<16x512xf32>
    %c0_87 = arith.constant 0 : index
    %c0_88 = arith.constant 0 : index
    %c0_89 = arith.constant 0 : index
    %283 = vector.load %arg13[%c0_87, %c0_88, %c0_89] : memref<1x1x512xf32, #tpu.memory_space<vmem>>, vector<1x1x512xf32>
    %284 = vector.shape_cast %283 : vector<1x1x512xf32> to vector<512xf32>
    %285 = vector.shape_cast %284 : vector<512xf32> to vector<1x512xf32>
    %286 = vector.broadcast %285 : vector<1x512xf32> to vector<16x512xf32>
    %287 = arith.addf %282, %286 : vector<16x512xf32>
    %288 = arith.addf %228, %287 : vector<16x512xf32>
    %c0_90 = arith.constant 0 : index
    %c0_91 = arith.constant 0 : index
    %289 = vector.load %arg17[%c0_90, %c0_91] : memref<16x512xf32, #tpu.memory_space<vmem>>, vector<16x512xf32>
    tpu.vector_store %arg17[%c0_90, %c0_91], %288 {strides = array<i32>} : memref<16x512xf32, #tpu.memory_space<vmem>>, vector<16x512xf32>,
    %c1_i32 = arith.constant 1 : i32
    %290 = arith.cmpi eq, %arg0, %c1_i32 : i32
    %291 = arith.extui %290 : i1 to i32
    %c0_i32_92 = arith.constant 0 : i32
    %292 = arith.cmpi ne, %291, %c0_i32_92 : i32
    scf.if %292 {
      %c0_93 = arith.constant 0 : index
      %c0_94 = arith.constant 0 : index
      %293 = vector.load %arg14[%c0_93, %c0_94] : memref<1x512xf32, #tpu.memory_space<vmem>>, vector<1x512xf32>
      %294 = vector.shape_cast %293 : vector<1x512xf32> to vector<512xf32>
      %c0_95 = arith.constant 0 : index
      %c0_96 = arith.constant 0 : index
      %295 = vector.load %arg15[%c0_95, %c0_96] : memref<1x512xf32, #tpu.memory_space<vmem>>, vector<1x512xf32>
      %296 = vector.shape_cast %295 : vector<1x512xf32> to vector<512xf32>
      %cst_97 = arith.constant dense<0.000000e+00> : vector<16xf32>
      %297 = vector.multi_reduction <add>, %288, %cst_97 [1] : vector<16x512xf32> to vector<16xf32>
      %298 = vector.shape_cast %297 : vector<16xf32> to vector<16x1xf32>
      %cst_98 = arith.constant 5.120000e+02 : f32
      %299 = vector.broadcast %cst_98 : f32 to vector<16x1xf32>
      %300 = arith.divf %298, %299 : vector<16x1xf32>
      %301 = vector.broadcast %300 : vector<16x1xf32> to vector<16x512xf32>
      %302 = arith.subf %288, %301 : vector<16x512xf32>
      %303 = arith.mulf %302, %302 : vector<16x512xf32>
      %cst_99 = arith.constant dense<0.000000e+00> : vector<16xf32>
      %304 = vector.multi_reduction <add>, %303, %cst_99 [1] : vector<16x512xf32> to vector<16xf32>
      %305 = vector.shape_cast %304 : vector<16xf32> to vector<16x1xf32>
      %cst_100 = arith.constant 5.120000e+02 : f32
      %306 = vector.broadcast %cst_100 : f32 to vector<16x1xf32>
      %307 = arith.divf %305, %306 : vector<16x1xf32>
      %308 = vector.broadcast %300 : vector<16x1xf32> to vector<16x512xf32>
      %309 = arith.subf %288, %308 : vector<16x512xf32>
      %cst_101 = arith.constant 9.99999997E-7 : f32
      %310 = vector.broadcast %cst_101 : f32 to vector<16x1xf32>
      %311 = arith.addf %307, %310 : vector<16x1xf32>
      %312 = math.rsqrt %311 : vector<16x1xf32>
      %313 = vector.broadcast %312 : vector<16x1xf32> to vector<16x512xf32>
      %314 = arith.mulf %309, %313 : vector<16x512xf32>
      %315 = vector.shape_cast %294 : vector<512xf32> to vector<1x512xf32>
      %316 = vector.broadcast %315 : vector<1x512xf32> to vector<16x512xf32>
      %317 = arith.mulf %314, %316 : vector<16x512xf32>
      %318 = vector.shape_cast %296 : vector<512xf32> to vector<1x512xf32>
      %319 = vector.broadcast %318 : vector<1x512xf32> to vector<16x512xf32>
      %320 = arith.addf %317, %319 : vector<16x512xf32>
      %c0_102 = arith.constant 0 : index
      %c0_103 = arith.constant 0 : index
      %321 = vector.load %arg16[%c0_102, %c0_103] : memref<16x512xf32, #tpu.memory_space<vmem>>, vector<16x512xf32>
      tpu.vector_store %arg16[%c0_102, %c0_103], %320 {strides = array<i32>} : memref<16x512xf32, #tpu.memory_space<vmem>>, vector<16x512xf32>,
    } else {
    }
    return
  }
  func.func @transform_0(%arg0: i32) -> (i32, i32) {
    %c0_i32 = arith.constant 0 : i32
    %c0_i32_0 = arith.constant 0 : i32
    %c0_i32_1 = arith.constant 0 : i32
    return %c0_i32, %c0_i32_0 : i32, i32
  }
  func.func @transform_1(%arg0: i32) -> (i32, i32, i32) {
    %c0_i32 = arith.constant 0 : i32
    %c0_i32_0 = arith.constant 0 : i32
    %c0_i32_1 = arith.constant 0 : i32
    return %arg0, %c0_i32, %c0_i32_0 : i32, i32, i32
  }
  func.func @transform_2(%arg0: i32) -> (i32, i32, i32) {
    %c0_i32 = arith.constant 0 : i32
    %c0_i32_0 = arith.constant 0 : i32
    %c0_i32_1 = arith.constant 0 : i32
    return %arg0, %c0_i32, %c0_i32_0 : i32, i32, i32
  }
  func.func @transform_3(%arg0: i32) -> (i32, i32, i32) {
    %c0_i32 = arith.constant 0 : i32
    %c0_i32_0 = arith.constant 0 : i32
    %c0_i32_1 = arith.constant 0 : i32
    return %arg0, %c0_i32, %c0_i32_0 : i32, i32, i32
  }
  func.func @transform_4(%arg0: i32) -> (i32, i32, i32) {
    %c0_i32 = arith.constant 0 : i32
    %c0_i32_0 = arith.constant 0 : i32
    %c0_i32_1 = arith.constant 0 : i32
    return %arg0, %c0_i32, %c0_i32_0 : i32, i32, i32
  }
  func.func @transform_5(%arg0: i32) -> (i32, i32, i32) {
    %c0_i32 = arith.constant 0 : i32
    %c0_i32_0 = arith.constant 0 : i32
    %c0_i32_1 = arith.constant 0 : i32
    return %arg0, %c0_i32, %c0_i32_0 : i32, i32, i32
  }
  func.func @transform_6(%arg0: i32) -> (i32, i32, i32) {
    %c0_i32 = arith.constant 0 : i32
    %c0_i32_0 = arith.constant 0 : i32
    %c0_i32_1 = arith.constant 0 : i32
    return %arg0, %c0_i32, %c0_i32_0 : i32, i32, i32
  }
  func.func @transform_7(%arg0: i32) -> (i32, i32, i32) {
    %c0_i32 = arith.constant 0 : i32
    %c0_i32_0 = arith.constant 0 : i32
    %c0_i32_1 = arith.constant 0 : i32
    return %arg0, %c0_i32, %c0_i32_0 : i32, i32, i32
  }
  func.func @transform_8(%arg0: i32) -> (i32, i32, i32) {
    %c0_i32 = arith.constant 0 : i32
    %c0_i32_0 = arith.constant 0 : i32
    %c0_i32_1 = arith.constant 0 : i32
    return %arg0, %c0_i32, %c0_i32_0 : i32, i32, i32
  }
  func.func @transform_9(%arg0: i32) -> (i32, i32, i32) {
    %c0_i32 = arith.constant 0 : i32
    %c0_i32_0 = arith.constant 0 : i32
    %c0_i32_1 = arith.constant 0 : i32
    return %arg0, %c0_i32, %c0_i32_0 : i32, i32, i32
  }
  func.func @transform_10(%arg0: i32) -> (i32, i32, i32) {
    %c0_i32 = arith.constant 0 : i32
    %c0_i32_0 = arith.constant 0 : i32
    %c0_i32_1 = arith.constant 0 : i32
    return %arg0, %c0_i32, %c0_i32_0 : i32, i32, i32
  }
  func.func @transform_11(%arg0: i32) -> (i32, i32, i32) {
    %c0_i32 = arith.constant 0 : i32
    %c0_i32_0 = arith.constant 0 : i32
    %c0_i32_1 = arith.constant 0 : i32
    return %arg0, %c0_i32, %c0_i32_0 : i32, i32, i32
  }
  func.func @transform_12(%arg0: i32) -> (i32, i32, i32) {
    %c0_i32 = arith.constant 0 : i32
    %c0_i32_0 = arith.constant 0 : i32
    %c0_i32_1 = arith.constant 0 : i32
    return %arg0, %c0_i32, %c0_i32_0 : i32, i32, i32
  }
  func.func @transform_13(%arg0: i32) -> (i32, i32) {
    %c0_i32 = arith.constant 0 : i32
    %c0_i32_0 = arith.constant 0 : i32
    %c0_i32_1 = arith.constant 0 : i32
    return %c0_i32, %c0_i32_0 : i32, i32
  }
  func.func @transform_14(%arg0: i32) -> (i32, i32) {
    %c0_i32 = arith.constant 0 : i32
    %c0_i32_0 = arith.constant 0 : i32
    %c0_i32_1 = arith.constant 0 : i32
    return %c0_i32, %c0_i32_0 : i32, i32
  }
  func.func @transform_15(%arg0: i32) -> (i32, i32) {
    %c0_i32 = arith.constant 0 : i32
    %c0_i32_0 = arith.constant 0 : i32
    %c0_i32_1 = arith.constant 0 : i32
    return %c0_i32, %c0_i32_0 : i32, i32
  }
}

</mosaic_0001>

<llo_original>
// kernel: tpu_custom_call.1
$region0: #{tpu_custom_call.1}
  #allocation0 [shape = 'u32[]', space=smem, size = 0x4, offset = 0x4, fixed_abs, tag = 'smem constant byte address 0x4 - core index']
  #allocation1 [shape = 'u32[144,128]{1,0:T(1,128)}', space=vmem, size = 0x12000, scoped, tag = 'internal scratch']
  #allocation2 [shape = 'f32[16,512]{1,0:T(8,128)}', space=vmem, size = 0x8000, scoped, tag = 'scratch operand']
  %s0 = inlined_call_operand.hbm [shape: f32[16,512], index: 0, kind: input, shape index: {}]
  %s1 = inlined_call_operand.hbm [shape: f32[2,1,512], index: 1, kind: input, shape index: {}]
  %s2 = inlined_call_operand.hbm [shape: f32[2,1,512], index: 2, kind: input, shape index: {}]
  %s3 = inlined_call_operand.hbm [shape: bf16[2,512,1536], index: 3, kind: input, shape index: {}]
  %s4 = inlined_call_operand.hbm [shape: f32[2,1,1536], index: 4, kind: input, shape index: {}]
  %s5 = inlined_call_operand.hbm [shape: bf16[2,512,512], index: 5, kind: input, shape index: {}]
  %s6 = inlined_call_operand.hbm [shape: f32[2,1,512], index: 6, kind: input, shape index: {}]
  %s7 = inlined_call_operand.hbm [shape: f32[2,1,512], index: 7, kind: input, shape index: {}]
  %s8 = inlined_call_operand.hbm [shape: f32[2,1,512], index: 8, kind: input, shape index: {}]
  %s9 = inlined_call_operand.hbm [shape: bf16[2,512,1024], index: 9, kind: input, shape index: {}]
  %s10 = inlined_call_operand.hbm [shape: f32[2,1,1024], index: 10, kind: input, shape index: {}]
  %s11 = inlined_call_operand.hbm [shape: bf16[2,1024,512], index: 11, kind: input, shape index: {}]
  %s12 = inlined_call_operand.hbm [shape: f32[2,1,512], index: 12, kind: input, shape index: {}]
  %s13 = inlined_call_operand.hbm [shape: f32[1,512], index: 13, kind: input, shape index: {}]
  %s14 = inlined_call_operand.hbm [shape: f32[1,512], index: 14, kind: input, shape index: {}]
  %s15 = inlined_call_operand.hbm [shape: f32[16,512], index: 15, kind: output, shape index: {}]
  %s16 = sld [smem:[#allocation0]]
  $region161: #{tpu_custom_call.1} parent=0
    _
  %s18 = ssub.s32 1, %s16
  %s19 = scalar_select 0, %s18, %s16
  $region1: #{tpu_custom_call.1} parent=0
    #allocation3 [shape = 'u8[32768]{0}', space=vmem, size = 0x8000, scoped, tag = 'input window, operand 0, single buffered']
    #allocation4 [shape = 's32[2]{0}', space=sflag, size = 0x8, scoped, tag = 'scoped memory for tpu_custom_call.1']
    #allocation5 [shape = 's32[2]{0}', space=sflag, size = 0x8, scoped, tag = 'scoped memory for tpu_custom_call.1']
    #allocation6 [shape = 'u8[4096]{0}', space=vmem, size = 0x1000, scoped, tag = 'input window, operand 1']
    #allocation7 [shape = 's32[2]{0}', space=sflag, size = 0x8, scoped, tag = 'scoped memory for tpu_custom_call.1']
    #allocation8 [shape = 'u8[4096]{0}', space=vmem, size = 0x1000, scoped, tag = 'input window, operand 2']
    #allocation9 [shape = 'u8[3145728]{0}', space=vmem, size = 0x300000, scoped, tag = 'input window, operand 3']
    #allocation10 [shape = 's32[2]{0}', space=sflag, size = 0x8, scoped, tag = 'scoped memory for tpu_custom_call.1']
    #allocation11 [shape = 'u8[12288]{0}', space=vmem, size = 0x3000, scoped, tag = 'input window, operand 4']
    #allocation12 [shape = 'u8[1048576]{0}', space=vmem, size = 0x100000, scoped, tag = 'input window, operand 5']
    #allocation13 [shape = 's32[2]{0}', space=sflag, size = 0x8, scoped, tag = 'scoped memory for tpu_custom_call.1']
    #allocation14 [shape = 'u8[4096]{0}', space=vmem, size = 0x1000, scoped, tag = 'input window, operand 6']
    #allocation15 [shape = 'u8[4096]{0}', space=vmem, size = 0x1000, scoped, tag = 'input window, operand 7']
    #allocation16 [shape = 's32[2]{0}', space=sflag, size = 0x8, scoped, tag = 'scoped memory for tpu_custom_call.1']
    #allocation17 [shape = 'u8[4096]{0}', space=vmem, size = 0x1000, scoped, tag = 'input window, operand 8']
    #allocation18 [shape = 'u8[2097152]{0}', space=vmem, size = 0x200000, scoped, tag = 'input window, operand 9']
    #allocation19 [shape = 's32[2]{0}', space=sflag, size = 0x8, scoped, tag = 'scoped memory for tpu_custom_call.1']
    #allocation20 [shape = 'u8[8192]{0}', space=vmem, size = 0x2000, scoped, tag = 'input window, operand 10']
    #allocation21 [shape = 'u8[2097152]{0}', space=vmem, size = 0x200000, scoped, tag = 'input window, operand 11']
    #allocation22 [shape = 's32[2]{0}', space=sflag, size = 0x8, scoped, tag = 'scoped memory for tpu_custom_call.1']
    #allocation23 [shape = 'u8[4096]{0}', space=vmem, size = 0x1000, scoped, tag = 'input window, operand 12']
    #allocation24 [shape = 'u8[2048]{0}', space=vmem, size = 0x800, scoped, tag = 'input window, operand 13, single buffered']
    #allocation25 [shape = 's32[1]{0}', space=sflag, size = 0x4, scoped, tag = 'scoped memory for tpu_custom_call.1']
    #allocation26 [shape = 'u8[2048]{0}', space=vmem, size = 0x800, scoped, tag = 'input window, operand 14, single buffered']
    #allocation27 [shape = 'u8[32768]{0}', space=vmem, size = 0x8000, scoped, tag = 'output window, operand 0, single buffered']
    %20 = vsyncpa [#allocation4], 0
    %21 = vsyncpa [#allocation7], 0
    %s22 = scalar_lea.sflag [#allocation7], 1
    %23 = vsyncpa %s22, 0
    %24 = vsyncpa [#allocation10], 0
    %s25 = scalar_lea.sflag [#allocation10], 1
    %26 = vsyncpa %s25, 0
    %27 = vsyncpa [#allocation13], 0
    %s28 = scalar_lea.sflag [#allocation13], 1
    %29 = vsyncpa %s28, 0
    %30 = vsyncpa [#allocation16], 0
    %s31 = scalar_lea.sflag [#allocation16], 1
    %32 = vsyncpa %s31, 0
    %33 = vsyncpa [#allocation19], 0
    %s34 = scalar_lea.sflag [#allocation19], 1
    %35 = vsyncpa %s34, 0
    %36 = vsyncpa [#allocation22], 0
    %s37 = scalar_lea.sflag [#allocation22], 1
    %38 = vsyncpa %s37, 0
    %39 = vsyncpa [#allocation25], 0
    %40 = vsyncpa [#allocation5], 0
    loop: start=0, step=1, limit=4
    $region2: #{tpu_custom_call.1} parent=1 // loop_pre_header
      _
    $region3: #{tpu_custom_call.1} parent=1 // loop_header
      %s42 = sphi 0, %s46
      %p43 = scmp.ge.s32.totalorder %s42, 4
      %s50 = sphi 0, %s50
      %s52 = sphi 0, %s50
      %s53 = sphi 0, %s52
      %s67 = sphi 0, %s53
      %s73 = sphi 0, %s75
      %s76 = sphi 0, %s73
      %s77 = sphi 0, %s76
      %s93 = sphi 0, %s77
      %s99 = sphi 0, %s101
      %s102 = sphi 0, %s99
      %s103 = sphi 0, %s102
      %s119 = sphi 0, %s103
      %s125 = sphi 0, %s127
      %s128 = sphi 0, %s125
      %s129 = sphi 0, %s128
      %s145 = sphi 0, %s129
      %s151 = sphi 0, %s153
      %s154 = sphi 0, %s151
      %s155 = sphi 0, %s154
      %s171 = sphi 0, %s155
      %s177 = sphi 0, %s179
      %s180 = sphi 0, %s177
      %s181 = sphi 0, %s180
      %s197 = sphi 0, %s181
      %s203 = sphi 0, %s205
      %s206 = sphi 0, %s203
      %s207 = sphi 0, %s206
      %s223 = sphi 0, %s207
      %s229 = sphi 0, %s231
      %s232 = sphi 0, %s229
      %s233 = sphi 0, %s232
      %s249 = sphi 0, %s233
      %s255 = sphi 0, %s257
      %s258 = sphi 0, %s255
      %s259 = sphi 0, %s258
      %s275 = sphi 0, %s259
      %s281 = sphi 0, %s283
      %s284 = sphi 0, %s281
      %s285 = sphi 0, %s284
      %s301 = sphi 0, %s285
      %s307 = sphi 0, %s309
      %s310 = sphi 0, %s307
      %s311 = sphi 0, %s310
      %s327 = sphi 0, %s311
      %s333 = sphi 0, %s335
      %s336 = sphi 0, %s333
      %s337 = sphi 0, %s336
      %s353 = sphi 0, %s337
      %s359 = sphi 0, %s361
      %s362 = sphi 0, %s359
      %s363 = sphi 0, %s362
      %s379 = sphi 0, %s363
      %s383 = sphi 0, %s383
      %s385 = sphi 0, %s383
      %s386 = sphi 0, %s385
      %s400 = sphi 0, %s386
      %s404 = sphi 0, %s404
      %s406 = sphi 0, %s404
      %s407 = sphi 0, %s406
      %s421 = sphi 0, %s407
      %s425 = sphi 0, %s425
      %s427 = sphi 0, %s425
      %s428 = sphi 0, %s427
      %s442 = sphi 0, %s428
    $region4: #{tpu_custom_call.1} parent=1 // loop_header_branch
      %45 = sbr.rel (%p43) target = $region8
    $region5: #{tpu_custom_call.1} parent=1 // loop_body
      %s47 = ssub.s32 %s42, 1
      %s48 = ssub.s32 %s42, 2
      %s49 = sadd.s32 %s42, 1
      %s51 = sadd.s32 %s50, 1
      %p54 = scmp.eq.s32.totalorder %s42, 1
      %p55 = scmp.ne.s32.totalorder %s50, %s52
      %p56 = scmp.eq.s32.totalorder %s42, 0
      %p57 = por %p55, %p56
      %p58 = scmp.ne.s32.totalorder %s50, %s52
      %p59 = scmp.eq.s32.totalorder %s47, 1
      %p60 = por %p58, %p59
      %p61 = scmp.ne.s32.totalorder %s52, %s53
      %p62 = scmp.eq.s32.totalorder %s47, 0
      %p63 = por %p61, %p62
      %p64 = scmp.ne.s32.totalorder %s52, %s53
      %p65 = scmp.eq.s32.totalorder %s48, 1
      %p66 = por %p64, %p65
      %p68 = scmp.ne.s32.totalorder %s53, %s67
      %p69 = scmp.eq.s32.totalorder %s48, 0
      %p70 = por %p68, %p69
      %s71 = ssub.s32 %s42, %s49
      %p72 = scmp.eq.s32.totalorder %s71, 0
      %s74 = sadd.s32 %s73, 1
      %s75 = scalar_select %p72, %s73, %s74
      %p78 = pneg %p72
      %p79 = scmp.eq.s32.totalorder %s42, 1
      %p80 = por %p78, %p79
      %p81 = scmp.ne.s32.totalorder %s73, %s76
      %p82 = scmp.eq.s32.totalorder %s42, 0
      %p83 = por %p81, %p82
      %p84 = scmp.ne.s32.totalorder %s73, %s76
      %p85 = scmp.eq.s32.totalorder %s47, 1
      %p86 = por %p84, %p85
      %p87 = scmp.ne.s32.totalorder %s76, %s77
      %p88 = scmp.eq.s32.totalorder %s47, 0
      %p89 = por %p87, %p88
      %p90 = scmp.ne.s32.totalorder %s76, %s77
      %p91 = scmp.eq.s32.totalorder %s48, 1
      %p92 = por %p90, %p91
      %p94 = scmp.ne.s32.totalorder %s77, %s93
      %p95 = scmp.eq.s32.totalorder %s48, 0
      %p96 = por %p94, %p95
      %s97 = ssub.s32 %s42, %s49
      %p98 = scmp.eq.s32.totalorder %s97, 0
      %s100 = sadd.s32 %s99, 1
      %s101 = scalar_select %p98, %s99, %s100
      %p104 = pneg %p98
      %p105 = scmp.eq.s32.totalorder %s42, 1
      %p106 = por %p104, %p105
      %p107 = scmp.ne.s32.totalorder %s99, %s102
      %p108 = scmp.eq.s32.totalorder %s42, 0
      %p109 = por %p107, %p108
      %p110 = scmp.ne.s32.totalorder %s99, %s102
      %p111 = scmp.eq.s32.totalorder %s47, 1
      %p112 = por %p110, %p111
      %p113 = scmp.ne.s32.totalorder %s102, %s103
      %p114 = scmp.eq.s32.totalorder %s47, 0
      %p115 = por %p113, %p114
      %p116 = scmp.ne.s32.totalorder %s102, %s103
      %p117 = scmp.eq.s32.totalorder %s48, 1
      %p118 = por %p116, %p117
      %p120 = scmp.ne.s32.totalorder %s103, %s119
      %p121 = scmp.eq.s32.totalorder %s48, 0
      %p122 = por %p120, %p121
      %s123 = ssub.s32 %s42, %s49
      %p124 = scmp.eq.s32.totalorder %s123, 0
      %s126 = sadd.s32 %s125, 1
      %s127 = scalar_select %p124, %s125, %s126
      %p130 = pneg %p124
      %p131 = scmp.eq.s32.totalorder %s42, 1
      %p132 = por %p130, %p131
      %p133 = scmp.ne.s32.totalorder %s125, %s128
      %p134 = scmp.eq.s32.totalorder %s42, 0
      %p135 = por %p133, %p134
      %p136 = scmp.ne.s32.totalorder %s125, %s128
      %p137 = scmp.eq.s32.totalorder %s47, 1
      %p138 = por %p136, %p137
      %p139 = scmp.ne.s32.totalorder %s128, %s129
      %p140 = scmp.eq.s32.totalorder %s47, 0
      %p141 = por %p139, %p140
      %p142 = scmp.ne.s32.totalorder %s128, %s129
      %p143 = scmp.eq.s32.totalorder %s48, 1
      %p144 = por %p142, %p143
      %p146 = scmp.ne.s32.totalorder %s129, %s145
      %p147 = scmp.eq.s32.totalorder %s48, 0
      %p148 = por %p146, %p147
      %s149 = ssub.s32 %s42, %s49
      %p150 = scmp.eq.s32.totalorder %s149, 0
      %s152 = sadd.s32 %s151, 1
      %s153 = scalar_select %p150, %s151, %s152
      %p156 = pneg %p150
      %p157 = scmp.eq.s32.totalorder %s42, 1
      %p158 = por %p156, %p157
      %p159 = scmp.ne.s32.totalorder %s151, %s154
      %p160 = scmp.eq.s32.totalorder %s42, 0
      %p161 = por %p159, %p160
      %p162 = scmp.ne.s32.totalorder %s151, %s154
      %p163 = scmp.eq.s32.totalorder %s47, 1
      %p164 = por %p162, %p163
      %p165 = scmp.ne.s32.totalorder %s154, %s155
      %p166 = scmp.eq.s32.totalorder %s47, 0
      %p167 = por %p165, %p166
      %p168 = scmp.ne.s32.totalorder %s154, %s155
      %p169 = scmp.eq.s32.totalorder %s48, 1
      %p170 = por %p168, %p169
      %p172 = scmp.ne.s32.totalorder %s155, %s171
      %p173 = scmp.eq.s32.totalorder %s48, 0
      %p174 = por %p172, %p173
      %s175 = ssub.s32 %s42, %s49
      %p176 = scmp.eq.s32.totalorder %s175, 0
      %s178 = sadd.s32 %s177, 1
      %s179 = scalar_select %p176, %s177, %s178
      %p182 = pneg %p176
      %p183 = scmp.eq.s32.totalorder %s42, 1
      %p184 = por %p182, %p183
      %p185 = scmp.ne.s32.totalorder %s177, %s180
      %p186 = scmp.eq.s32.totalorder %s42, 0
      %p187 = por %p185, %p186
      %p188 = scmp.ne.s32.totalorder %s177, %s180
      %p189 = scmp.eq.s32.totalorder %s47, 1
      %p190 = por %p188, %p189
      %p191 = scmp.ne.s32.totalorder %s180, %s181
      %p192 = scmp.eq.s32.totalorder %s47, 0
      %p193 = por %p191, %p192
      %p194 = scmp.ne.s32.totalorder %s180, %s181
      %p195 = scmp.eq.s32.totalorder %s48, 1
      %p196 = por %p194, %p195
      %p198 = scmp.ne.s32.totalorder %s181, %s197
      %p199 = scmp.eq.s32.totalorder %s48, 0
      %p200 = por %p198, %p199
      %s201 = ssub.s32 %s42, %s49
      %p202 = scmp.eq.s32.totalorder %s201, 0
      %s204 = sadd.s32 %s203, 1
      %s205 = scalar_select %p202, %s203, %s204
      %p208 = pneg %p202
      %p209 = scmp.eq.s32.totalorder %s42, 1
      %p210 = por %p208, %p209
      %p211 = scmp.ne.s32.totalorder %s203, %s206
      %p212 = scmp.eq.s32.totalorder %s42, 0
      %p213 = por %p211, %p212
      %p214 = scmp.ne.s32.totalorder %s203, %s206
      %p215 = scmp.eq.s32.totalorder %s47, 1
      %p216 = por %p214, %p215
      %p217 = scmp.ne.s32.totalorder %s206, %s207
      %p218 = scmp.eq.s32.totalorder %s47, 0
      %p219 = por %p217, %p218
      %p220 = scmp.ne.s32.totalorder %s206, %s207
      %p221 = scmp.eq.s32.totalorder %s48, 1
      %p222 = por %p220, %p221
      %p224 = scmp.ne.s32.totalorder %s207, %s223
      %p225 = scmp.eq.s32.totalorder %s48, 0
      %p226 = por %p224, %p225
      %s227 = ssub.s32 %s42, %s49
      %p228 = scmp.eq.s32.totalorder %s227, 0
      %s230 = sadd.s32 %s229, 1
      %s231 = scalar_select %p228, %s229, %s230
      %p234 = pneg %p228
      %p235 = scmp.eq.s32.totalorder %s42, 1
      %p236 = por %p234, %p235
      %p237 = scmp.ne.s32.totalorder %s229, %s232
      %p238 = scmp.eq.s32.totalorder %s42, 0
      %p239 = por %p237, %p238
      %p240 = scmp.ne.s32.totalorder %s229, %s232
      %p241 = scmp.eq.s32.totalorder %s47, 1
      %p242 = por %p240, %p241
      %p243 = scmp.ne.s32.totalorder %s232, %s233
      %p244 = scmp.eq.s32.totalorder %s47, 0
      %p245 = por %p243, %p244
      %p246 = scmp.ne.s32.totalorder %s232, %s233
      %p247 = scmp.eq.s32.totalorder %s48, 1
      %p248 = por %p246, %p247
      %p250 = scmp.ne.s32.totalorder %s233, %s249
      %p251 = scmp.eq.s32.totalorder %s48, 0
      %p252 = por %p250, %p251
      %s253 = ssub.s32 %s42, %s49
      %p254 = scmp.eq.s32.totalorder %s253, 0
      %s256 = sadd.s32 %s255, 1
      %s257 = scalar_select %p254, %s255, %s256
      %p260 = pneg %p254
      %p261 = scmp.eq.s32.totalorder %s42, 1
      %p262 = por %p260, %p261
      %p263 = scmp.ne.s32.totalorder %s255, %s258
      %p264 = scmp.eq.s32.totalorder %s42, 0
      %p265 = por %p263, %p264
      %p266 = scmp.ne.s32.totalorder %s255, %s258
      %p267 = scmp.eq.s32.totalorder %s47, 1
      %p268 = por %p266, %p267
      %p269 = scmp.ne.s32.totalorder %s258, %s259
      %p270 = scmp.eq.s32.totalorder %s47, 0
      %p271 = por %p269, %p270
      %p272 = scmp.ne.s32.totalorder %s258, %s259
      %p273 = scmp.eq.s32.totalorder %s48, 1
      %p274 = por %p272, %p273
      %p276 = scmp.ne.s32.totalorder %s259, %s275
      %p277 = scmp.eq.s32.totalorder %s48, 0
      %p278 = por %p276, %p277
      %s279 = ssub.s32 %s42, %s49
      %p280 = scmp.eq.s32.totalorder %s279, 0
      %s282 = sadd.s32 %s281, 1
      %s283 = scalar_select %p280, %s281, %s282
      %p286 = pneg %p280
      %p287 = scmp.eq.s32.totalorder %s42, 1
      %p288 = por %p286, %p287
      %p289 = scmp.ne.s32.totalorder %s281, %s284
      %p290 = scmp.eq.s32.totalorder %s42, 0
      %p291 = por %p289, %p290
      %p292 = scmp.ne.s32.totalorder %s281, %s284
      %p293 = scmp.eq.s32.totalorder %s47, 1
      %p294 = por %p292, %p293
      %p295 = scmp.ne.s32.totalorder %s284, %s285
      %p296 = scmp.eq.s32.totalorder %s47, 0
      %p297 = por %p295, %p296
      %p298 = scmp.ne.s32.totalorder %s284, %s285
      %p299 = scmp.eq.s32.totalorder %s48, 1
      %p300 = por %p298, %p299
      %p302 = scmp.ne.s32.totalorder %s285, %s301
      %p303 = scmp.eq.s32.totalorder %s48, 0
      %p304 = por %p302, %p303
      %s305 = ssub.s32 %s42, %s49
      %p306 = scmp.eq.s32.totalorder %s305, 0
      %s308 = sadd.s32 %s307, 1
      %s309 = scalar_select %p306, %s307, %s308
      %p312 = pneg %p306
      %p313 = scmp.eq.s32.totalorder %s42, 1
      %p314 = por %p312, %p313
      %p315 = scmp.ne.s32.totalorder %s307, %s310
      %p316 = scmp.eq.s32.totalorder %s42, 0
      %p317 = por %p315, %p316
      %p318 = scmp.ne.s32.totalorder %s307, %s310
      %p319 = scmp.eq.s32.totalorder %s47, 1
      %p320 = por %p318, %p319
      %p321 = scmp.ne.s32.totalorder %s310, %s311
      %p322 = scmp.eq.s32.totalorder %s47, 0
      %p323 = por %p321, %p322
      %p324 = scmp.ne.s32.totalorder %s310, %s311
      %p325 = scmp.eq.s32.totalorder %s48, 1
      %p326 = por %p324, %p325
      %p328 = scmp.ne.s32.totalorder %s311, %s327
      %p329 = scmp.eq.s32.totalorder %s48, 0
      %p330 = por %p328, %p329
      %s331 = ssub.s32 %s42, %s49
      %p332 = scmp.eq.s32.totalorder %s331, 0
      %s334 = sadd.s32 %s333, 1
      %s335 = scalar_select %p332, %s333, %s334
      %p338 = pneg %p332
      %p339 = scmp.eq.s32.totalorder %s42, 1
      %p340 = por %p338, %p339
      %p341 = scmp.ne.s32.totalorder %s333, %s336
      %p342 = scmp.eq.s32.totalorder %s42, 0
      %p343 = por %p341, %p342
      %p344 = scmp.ne.s32.totalorder %s333, %s336
      %p345 = scmp.eq.s32.totalorder %s47, 1
      %p346 = por %p344, %p345
      %p347 = scmp.ne.s32.totalorder %s336, %s337
      %p348 = scmp.eq.s32.totalorder %s47, 0
      %p349 = por %p347, %p348
      %p350 = scmp.ne.s32.totalorder %s336, %s337
      %p351 = scmp.eq.s32.totalorder %s48, 1
      %p352 = por %p350, %p351
      %p354 = scmp.ne.s32.totalorder %s337, %s353
      %p355 = scmp.eq.s32.totalorder %s48, 0
      %p356 = por %p354, %p355
      %s357 = ssub.s32 %s42, %s49
      %p358 = scmp.eq.s32.totalorder %s357, 0
      %s360 = sadd.s32 %s359, 1
      %s361 = scalar_select %p358, %s359, %s360
      %p364 = pneg %p358
      %p365 = scmp.eq.s32.totalorder %s42, 1
      %p366 = por %p364, %p365
      %p367 = scmp.ne.s32.totalorder %s359, %s362
      %p368 = scmp.eq.s32.totalorder %s42, 0
      %p369 = por %p367, %p368
      %p370 = scmp.ne.s32.totalorder %s359, %s362
      %p371 = scmp.eq.s32.totalorder %s47, 1
      %p372 = por %p370, %p371
      %p373 = scmp.ne.s32.totalorder %s362, %s363
      %p374 = scmp.eq.s32.totalorder %s47, 0
      %p375 = por %p373, %p374
      %p376 = scmp.ne.s32.totalorder %s362, %s363
      %p377 = scmp.eq.s32.totalorder %s48, 1
      %p378 = por %p376, %p377
      %p380 = scmp.ne.s32.totalorder %s363, %s379
      %p381 = scmp.eq.s32.totalorder %s48, 0
      %p382 = por %p380, %p381
      %s384 = sadd.s32 %s383, 1
      %p387 = scmp.eq.s32.totalorder %s42, 1
      %p388 = scmp.ne.s32.totalorder %s383, %s385
      %p389 = scmp.eq.s32.totalorder %s42, 0
      %p390 = por %p388, %p389
      %p391 = scmp.ne.s32.totalorder %s383, %s385
      %p392 = scmp.eq.s32.totalorder %s47, 1
      %p393 = por %p391, %p392
      %p394 = scmp.ne.s32.totalorder %s385, %s386
      %p395 = scmp.eq.s32.totalorder %s47, 0
      %p396 = por %p394, %p395
      %p397 = scmp.ne.s32.totalorder %s385, %s386
      %p398 = scmp.eq.s32.totalorder %s48, 1
      %p399 = por %p397, %p398
      %p401 = scmp.ne.s32.totalorder %s386, %s400
      %p402 = scmp.eq.s32.totalorder %s48, 0
      %p403 = por %p401, %p402
      %s405 = sadd.s32 %s404, 1
      %p408 = scmp.eq.s32.totalorder %s42, 1
      %p409 = scmp.ne.s32.totalorder %s404, %s406
      %p410 = scmp.eq.s32.totalorder %s42, 0
      %p411 = por %p409, %p410
      %p412 = scmp.ne.s32.totalorder %s404, %s406
      %p413 = scmp.eq.s32.totalorder %s47, 1
      %p414 = por %p412, %p413
      %p415 = scmp.ne.s32.totalorder %s406, %s407
      %p416 = scmp.eq.s32.totalorder %s47, 0
      %p417 = por %p415, %p416
      %p418 = scmp.ne.s32.totalorder %s406, %s407
      %p419 = scmp.eq.s32.totalorder %s48, 1
      %p420 = por %p418, %p419
      %p422 = scmp.ne.s32.totalorder %s407, %s421
      %p423 = scmp.eq.s32.totalorder %s48, 0
      %p424 = por %p422, %p423
      %s426 = sadd.s32 %s425, 1
      %p429 = scmp.eq.s32.totalorder %s42, 1
      %p430 = scmp.ne.s32.totalorder %s425, %s427
      %p431 = scmp.eq.s32.totalorder %s42, 0
      %p432 = por %p430, %p431
      %p433 = scmp.ne.s32.totalorder %s425, %s427
      %p434 = scmp.eq.s32.totalorder %s47, 1
      %p435 = por %p433, %p434
      %p436 = scmp.ne.s32.totalorder %s427, %s428
      %p437 = scmp.eq.s32.totalorder %s47, 0
      %p438 = por %p436, %p437
      %p439 = scmp.ne.s32.totalorder %s427, %s428
      %p440 = scmp.eq.s32.totalorder %s48, 1
      %p441 = por %p439, %p440
      %p443 = scmp.ne.s32.totalorder %s428, %s442
      %p444 = scmp.eq.s32.totalorder %s48, 0
      %p445 = por %p443, %p444
      %p446 = scmp.le.s32.totalorder 1, %s42
      %p447 = scmp.lt.s32.totalorder %s42, 3
      %p448 = pnand %p446, %p447
      %p449 = pneg %p448
      // Predicated region
      $region9: #{tpu_custom_call.1} parent=5 // pred_check
        _
      $region10: #{tpu_custom_call.1} parent=5 // pred_check_branch
        %451 = sbr.rel (%p448) target = $region12
      $region11: #{tpu_custom_call.1} parent=5 // pred_region
        %s452 = ssub.s32 %s42, 1
        // Predicated region
        $region13: #{tpu_custom_call.1} parent=11 // pred_check
          %p453 = pneg %p63
        $region14: #{tpu_custom_call.1} parent=11 // pred_check_branch
          %455 = sbr.rel (%p453) target = $region16
        $region15: #{tpu_custom_call.1} parent=11 // pred_region
          %s457 = ssub.s32 1024, 1024
          %458 = vsyncadd [#allocation4], %s457
          %s459 = sshll.u32 [#allocation3], 4
          %s460 = int_to_ptr.vmem [resolvable:$true] %s459
          %465 = dma.hbm_to_vmem [thread:$0]  %s0, 1024, %s460, [#allocation4], 512, 512, 32
        $region16: #{tpu_custom_call.1} parent=11 // pred_fallthru
          _
        // Predicated region
        $region17: #{tpu_custom_call.1} parent=11 // pred_check
          %p466 = pneg %p396
        $region18: #{tpu_custom_call.1} parent=11 // pred_check_branch
          %468 = sbr.rel (%p466) target = $region20
        $region19: #{tpu_custom_call.1} parent=11 // pred_region
          %s470 = ssub.s32 64, 64
          %471 = vsyncadd [#allocation25], %s470
          %s473 = sshll.u32 [#allocation24], 4
          %s474 = int_to_ptr.vmem [resolvable:$true] %s473
          %476 = dma.hbm_to_vmem [thread:$0]  %s13, 64, %s474, [#allocation25]
        $region20: #{tpu_custom_call.1} parent=11 // pred_fallthru
          _
        // Predicated region
        $region21: #{tpu_custom_call.1} parent=11 // pred_check
          %p477 = pneg %p417
        $region22: #{tpu_custom_call.1} parent=11 // pred_check_branch
          %479 = sbr.rel (%p477) target = $region24
        $region23: #{tpu_custom_call.1} parent=11 // pred_region
          %s481 = ssub.s32 64, 64
          %482 = vsyncadd [#allocation25], %s481
          %s484 = sshll.u32 [#allocation26], 4
          %s485 = int_to_ptr.vmem [resolvable:$true] %s484
          %487 = dma.hbm_to_vmem [thread:$0]  %s14, 64, %s485, [#allocation25]
        $region24: #{tpu_custom_call.1} parent=11 // pred_fallthru
          _
      $region12: #{tpu_custom_call.1} parent=5 // pred_fallthru
        _
      %p488 = scmp.lt.s32.totalorder %s42, 2
      // Predicated region
      $region25: #{tpu_custom_call.1} parent=5 // pred_check
        %p489 = pneg %p488
      $region26: #{tpu_custom_call.1} parent=5 // pred_check_branch
        %491 = sbr.rel (%p489) target = $region28
      $region27: #{tpu_custom_call.1} parent=5 // pred_region
        // Predicated region
        $region29: #{tpu_custom_call.1} parent=27 // pred_check
          %p492 = pneg %p83
        $region30: #{tpu_custom_call.1} parent=27 // pred_check_branch
          %494 = sbr.rel (%p492) target = $region32
        $region31: #{tpu_custom_call.1} parent=27 // pred_region
          %s495 = sand.u32 %s42, 1
          %s496 = scalar_lea.sflag [#allocation7], %s495
          %s497 = sand.u32 %s73, 1
          %s498 = smul.addr %s497, 4
          %s499 = scalar_lea.vmem [#allocation6], %s498
          %s501 = ssub.s32 64, 64
          %502 = vsyncadd %s496, %s501
          %s503 = smul.addr %s42, 4
          %s504 = smul.addr %s503, 16
          %s505 = scalar_lea.hbm %s1, %s504
          %s507 = sshll.u32 %s499, 4
          %s508 = int_to_ptr.vmem [resolvable:$true] %s507
          %510 = dma.hbm_to_vmem [thread:$0]  %s505, 64, %s508, %s496
        $region32: #{tpu_custom_call.1} parent=27 // pred_fallthru
          _
        // Predicated region
        $region33: #{tpu_custom_call.1} parent=27 // pred_check
          %p511 = pneg %p109
        $region34: #{tpu_custom_call.1} parent=27 // pred_check_branch
          %513 = sbr.rel (%p511) target = $region36
        $region35: #{tpu_custom_call.1} parent=27 // pred_region
          %s514 = sand.u32 %s42, 1
          %s515 = scalar_lea.sflag [#allocation7], %s514
          %s516 = sand.u32 %s99, 1
          %s517 = smul.addr %s516, 4
          %s518 = scalar_lea.vmem [#allocation8], %s517
          %s520 = ssub.s32 64, 64
          %521 = vsyncadd %s515, %s520
          %s522 = smul.addr %s42, 4
          %s523 = smul.addr %s522, 16
          %s524 = scalar_lea.hbm %s2, %s523
          %s526 = sshll.u32 %s518, 4
          %s527 = int_to_ptr.vmem [resolvable:$true] %s526
          %529 = dma.hbm_to_vmem [thread:$0]  %s524, 64, %s527, %s515
        $region36: #{tpu_custom_call.1} parent=27 // pred_fallthru
          _
        // Predicated region
        $region37: #{tpu_custom_call.1} parent=27 // pred_check
          %p530 = pneg %p135
        $region38: #{tpu_custom_call.1} parent=27 // pred_check_branch
          %532 = sbr.rel (%p530) target = $region40
        $region39: #{tpu_custom_call.1} parent=27 // pred_region
          %s533 = sand.u32 %s42, 1
          %s534 = scalar_lea.sflag [#allocation10], %s533
          %s535 = sand.u32 %s125, 1
          %s536 = smul.addr %s535, 3072
          %s537 = scalar_lea.vmem [#allocation9], %s536
          %s539 = ssub.s32 49152, 49152
          %540 = vsyncadd %s534, %s539
          %s541 = smul.addr %s42, 768
          %s542 = smul.addr %s541, 64
          %s543 = scalar_lea.hbm %s3, %s542
          %s544 = sshll.u32 %s537, 4
          %s545 = int_to_ptr.vmem [resolvable:$true] %s544
          %550 = dma.hbm_to_vmem [thread:$0]  %s543, 49152, %s545, %s534, 768, 768, 48
        $region40: #{tpu_custom_call.1} parent=27 // pred_fallthru
          _
        // Predicated region
        $region41: #{tpu_custom_call.1} parent=27 // pred_check
          %p551 = pneg %p161
        $region42: #{tpu_custom_call.1} parent=27 // pred_check_branch
          %553 = sbr.rel (%p551) target = $region44
        $region43: #{tpu_custom_call.1} parent=27 // pred_region
          %s554 = sand.u32 %s42, 1
          %s555 = scalar_lea.sflag [#allocation10], %s554
          %s556 = sand.u32 %s151, 1
          %s557 = smul.addr %s556, 12
          %s558 = scalar_lea.vmem [#allocation11], %s557
          %s560 = ssub.s32 192, 192
          %561 = vsyncadd %s555, %s560
          %s562 = smul.addr %s42, 12
          %s563 = smul.addr %s562, 16
          %s564 = scalar_lea.hbm %s4, %s563
          %s566 = sshll.u32 %s558, 4
          %s567 = int_to_ptr.vmem [resolvable:$true] %s566
          %569 = dma.hbm_to_vmem [thread:$0]  %s564, 192, %s567, %s555
        $region44: #{tpu_custom_call.1} parent=27 // pred_fallthru
          _
        // Predicated region
        $region45: #{tpu_custom_call.1} parent=27 // pred_check
          %p570 = pneg %p187
        $region46: #{tpu_custom_call.1} parent=27 // pred_check_branch
          %572 = sbr.rel (%p570) target = $region48
        $region47: #{tpu_custom_call.1} parent=27 // pred_region
          %s573 = sand.u32 %s42, 1
          %s574 = scalar_lea.sflag [#allocation13], %s573
          %s575 = sand.u32 %s177, 1
          %s576 = smul.addr %s575, 1024
          %s577 = scalar_lea.vmem [#allocation12], %s576
          %s579 = ssub.s32 16384, 16384
          %580 = vsyncadd %s574, %s579
          %s581 = smul.addr %s42, 256
          %s582 = smul.addr %s581, 64
          %s583 = scalar_lea.hbm %s5, %s582
          %s584 = sshll.u32 %s577, 4
          %s585 = int_to_ptr.vmem [resolvable:$true] %s584
          %590 = dma.hbm_to_vmem [thread:$0]  %s583, 16384, %s585, %s574, 256, 256, 16
        $region48: #{tpu_custom_call.1} parent=27 // pred_fallthru
          _
        // Predicated region
        $region49: #{tpu_custom_call.1} parent=27 // pred_check
          %p591 = pneg %p213
        $region50: #{tpu_custom_call.1} parent=27 // pred_check_branch
          %593 = sbr.rel (%p591) target = $region52
        $region51: #{tpu_custom_call.1} parent=27 // pred_region
          %s594 = sand.u32 %s42, 1
          %s595 = scalar_lea.sflag [#allocation13], %s594
          %s596 = sand.u32 %s203, 1
          %s597 = smul.addr %s596, 4
          %s598 = scalar_lea.vmem [#allocation14], %s597
          %s600 = ssub.s32 64, 64
          %601 = vsyncadd %s595, %s600
          %s602 = smul.addr %s42, 4
          %s603 = smul.addr %s602, 16
          %s604 = scalar_lea.hbm %s6, %s603
          %s606 = sshll.u32 %s598, 4
          %s607 = int_to_ptr.vmem [resolvable:$true] %s606
          %609 = dma.hbm_to_vmem [thread:$0]  %s604, 64, %s607, %s595
        $region52: #{tpu_custom_call.1} parent=27 // pred_fallthru
          _
        // Predicated region
        $region53: #{tpu_custom_call.1} parent=27 // pred_check
          %p610 = pneg %p239
        $region54: #{tpu_custom_call.1} parent=27 // pred_check_branch
          %612 = sbr.rel (%p610) target = $region56
        $region55: #{tpu_custom_call.1} parent=27 // pred_region
          %s613 = sand.u32 %s42, 1
          %s614 = scalar_lea.sflag [#allocation16], %s613
          %s615 = sand.u32 %s229, 1
          %s616 = smul.addr %s615, 4
          %s617 = scalar_lea.vmem [#allocation15], %s616
          %s619 = ssub.s32 64, 64
          %620 = vsyncadd %s614, %s619
          %s621 = smul.addr %s42, 4
          %s622 = smul.addr %s621, 16
          %s623 = scalar_lea.hbm %s7, %s622
          %s625 = sshll.u32 %s617, 4
          %s626 = int_to_ptr.vmem [resolvable:$true] %s625
          %628 = dma.hbm_to_vmem [thread:$0]  %s623, 64, %s626, %s614
        $region56: #{tpu_custom_call.1} parent=27 // pred_fallthru
          _
        // Predicated region
        $region57: #{tpu_custom_call.1} parent=27 // pred_check
          %p629 = pneg %p265
        $region58: #{tpu_custom_call.1} parent=27 // pred_check_branch
          %631 = sbr.rel (%p629) target = $region60
        $region59: #{tpu_custom_call.1} parent=27 // pred_region
          %s632 = sand.u32 %s42, 1
          %s633 = scalar_lea.sflag [#allocation16], %s632
          %s634 = sand.u32 %s255, 1
          %s635 = smul.addr %s634, 4
          %s636 = scalar_lea.vmem [#allocation17], %s635
          %s638 = ssub.s32 64, 64
          %639 = vsyncadd %s633, %s638
          %s640 = smul.addr %s42, 4
          %s641 = smul.addr %s640, 16
          %s642 = scalar_lea.hbm %s8, %s641
          %s644 = sshll.u32 %s636, 4
          %s645 = int_to_ptr.vmem [resolvable:$true] %s644
          %647 = dma.hbm_to_vmem [thread:$0]  %s642, 64, %s645, %s633
        $region60: #{tpu_custom_call.1} parent=27 // pred_fallthru
          _
        // Predicated region
        $region61: #{tpu_custom_call.1} parent=27 // pred_check
          %p648 = pneg %p291
        $region62: #{tpu_custom_call.1} parent=27 // pred_check_branch
          %650 = sbr.rel (%p648) target = $region64
        $region63: #{tpu_custom_call.1} parent=27 // pred_region
          %s651 = sand.u32 %s42, 1
          %s652 = scalar_lea.sflag [#allocation19], %s651
          %s653 = sand.u32 %s281, 1
          %s654 = smul.addr %s653, 2048
          %s655 = scalar_lea.vmem [#allocation18], %s654
          %s657 = ssub.s32 32768, 32768
          %658 = vsyncadd %s652, %s657
          %s659 = smul.addr %s42, 512
          %s660 = smul.addr %s659, 64
          %s661 = scalar_lea.hbm %s9, %s660
          %s662 = sshll.u32 %s655, 4
          %s663 = int_to_ptr.vmem [resolvable:$true] %s662
          %668 = dma.hbm_to_vmem [thread:$0]  %s661, 32768, %s663, %s652, 512, 512, 32
        $region64: #{tpu_custom_call.1} parent=27 // pred_fallthru
          _
        // Predicated region
        $region65: #{tpu_custom_call.1} parent=27 // pred_check
          %p669 = pneg %p317
        $region66: #{tpu_custom_call.1} parent=27 // pred_check_branch
          %671 = sbr.rel (%p669) target = $region68
        $region67: #{tpu_custom_call.1} parent=27 // pred_region
          %s672 = sand.u32 %s42, 1
          %s673 = scalar_lea.sflag [#allocation19], %s672
          %s674 = sand.u32 %s307, 1
          %s675 = smul.addr %s674, 8
          %s676 = scalar_lea.vmem [#allocation20], %s675
          %s678 = ssub.s32 128, 128
          %679 = vsyncadd %s673, %s678
          %s680 = smul.addr %s42, 8
          %s681 = smul.addr %s680, 16
          %s682 = scalar_lea.hbm %s10, %s681
          %s684 = sshll.u32 %s676, 4
          %s685 = int_to_ptr.vmem [resolvable:$true] %s684
          %687 = dma.hbm_to_vmem [thread:$0]  %s682, 128, %s685, %s673
        $region68: #{tpu_custom_call.1} parent=27 // pred_fallthru
          _
        // Predicated region
        $region69: #{tpu_custom_call.1} parent=27 // pred_check
          %p688 = pneg %p343
        $region70: #{tpu_custom_call.1} parent=27 // pred_check_branch
          %690 = sbr.rel (%p688) target = $region72
        $region71: #{tpu_custom_call.1} parent=27 // pred_region
          %s691 = sand.u32 %s42, 1
          %s692 = scalar_lea.sflag [#allocation22], %s691
          %s693 = sand.u32 %s333, 1
          %s694 = smul.addr %s693, 2048
          %s695 = scalar_lea.vmem [#allocation21], %s694
          %s697 = ssub.s32 32768, 32768
          %698 = vsyncadd %s692, %s697
          %s699 = smul.addr %s42, 512
          %s700 = smul.addr %s699, 64
          %s701 = scalar_lea.hbm %s11, %s700
          %s702 = sshll.u32 %s695, 4
          %s703 = int_to_ptr.vmem [resolvable:$true] %s702
          %708 = dma.hbm_to_vmem [thread:$0]  %s701, 32768, %s703, %s692, 256, 256, 16
        $region72: #{tpu_custom_call.1} parent=27 // pred_fallthru
          _
        // Predicated region
        $region73: #{tpu_custom_call.1} parent=27 // pred_check
          %p709 = pneg %p369
        $region74: #{tpu_custom_call.1} parent=27 // pred_check_branch
          %711 = sbr.rel (%p709) target = $region76
        $region75: #{tpu_custom_call.1} parent=27 // pred_region
          %s712 = sand.u32 %s42, 1
          %s713 = scalar_lea.sflag [#allocation22], %s712
          %s714 = sand.u32 %s359, 1
          %s715 = smul.addr %s714, 4
          %s716 = scalar_lea.vmem [#allocation23], %s715
          %s718 = ssub.s32 64, 64
          %719 = vsyncadd %s713, %s718
          %s720 = smul.addr %s42, 4
          %s721 = smul.addr %s720, 16
          %s722 = scalar_lea.hbm %s12, %s721
          %s724 = sshll.u32 %s716, 4
          %s725 = int_to_ptr.vmem [resolvable:$true] %s724
          %727 = dma.hbm_to_vmem [thread:$0]  %s722, 64, %s725, %s713
        $region76: #{tpu_custom_call.1} parent=27 // pred_fallthru
          _
      $region28: #{tpu_custom_call.1} parent=5 // pred_fallthru
        _
      %p728 = scmp.le.s32.totalorder 1, %s42
      %p729 = scmp.lt.s32.totalorder %s42, 3
      %p730 = pnand %p728, %p729
      %p731 = pneg %p730
      // Predicated region
      $region77: #{tpu_custom_call.1} parent=5 // pred_check
        _
      $region78: #{tpu_custom_call.1} parent=5 // pred_check_branch
        %733 = sbr.rel (%p730) target = $region80
      $region79: #{tpu_custom_call.1} parent=5 // pred_region
        %s734 = ssub.s32 %s42, 1
        // Predicated region
        $region81: #{tpu_custom_call.1} parent=79 // pred_check
          %p735 = pneg %p63
        $region82: #{tpu_custom_call.1} parent=79 // pred_check_branch
          %737 = sbr.rel (%p735) target = $region84
        $region83: #{tpu_custom_call.1} parent=79 // pred_region
          %738 = dma.done [#allocation4], 1024
        $region84: #{tpu_custom_call.1} parent=79 // pred_fallthru
          _
        %s739 = sand.u32 %s47, 1
        %s740 = scalar_lea.sflag [#allocation7], %s739
        %s741 = sand.u32 %s76, 1
        %s742 = smul.addr %s741, 4
        %s743 = scalar_lea.vmem [#allocation6], %s742
        // Predicated region
        $region85: #{tpu_custom_call.1} parent=79 // pred_check
          %p744 = pneg %p89
        $region86: #{tpu_custom_call.1} parent=79 // pred_check_branch
          %746 = sbr.rel (%p744) target = $region88
        $region87: #{tpu_custom_call.1} parent=79 // pred_region
          %747 = dma.done %s740, 64
        $region88: #{tpu_custom_call.1} parent=79 // pred_fallthru
          _
        %s748 = sand.u32 %s47, 1
        %s749 = scalar_lea.sflag [#allocation7], %s748
        %s750 = sand.u32 %s102, 1
        %s751 = smul.addr %s750, 4
        %s752 = scalar_lea.vmem [#allocation8], %s751
        // Predicated region
        $region89: #{tpu_custom_call.1} parent=79 // pred_check
          %p753 = pneg %p115
        $region90: #{tpu_custom_call.1} parent=79 // pred_check_branch
          %755 = sbr.rel (%p753) target = $region92
        $region91: #{tpu_custom_call.1} parent=79 // pred_region
          %756 = dma.done %s749, 64
        $region92: #{tpu_custom_call.1} parent=79 // pred_fallthru
          _
        %s757 = sand.u32 %s47, 1
        %s758 = scalar_lea.sflag [#allocation10], %s757
        %s759 = sand.u32 %s128, 1
        %s760 = smul.addr %s759, 3072
        %s761 = scalar_lea.vmem [#allocation9], %s760
        // Predicated region
        $region93: #{tpu_custom_call.1} parent=79 // pred_check
          %p762 = pneg %p141
        $region94: #{tpu_custom_call.1} parent=79 // pred_check_branch
          %764 = sbr.rel (%p762) target = $region96
        $region95: #{tpu_custom_call.1} parent=79 // pred_region
          %765 = dma.done %s758, 49152
        $region96: #{tpu_custom_call.1} parent=79 // pred_fallthru
          _
        %s766 = sand.u32 %s47, 1
        %s767 = scalar_lea.sflag [#allocation10], %s766
        %s768 = sand.u32 %s154, 1
        %s769 = smul.addr %s768, 12
        %s770 = scalar_lea.vmem [#allocation11], %s769
        // Predicated region
        $region97: #{tpu_custom_call.1} parent=79 // pred_check
          %p771 = pneg %p167
        $region98: #{tpu_custom_call.1} parent=79 // pred_check_branch
          %773 = sbr.rel (%p771) target = $region100
        $region99: #{tpu_custom_call.1} parent=79 // pred_region
          %774 = dma.done %s767, 192
        $region100: #{tpu_custom_call.1} parent=79 // pred_fallthru
          _
        %s775 = sand.u32 %s47, 1
        %s776 = scalar_lea.sflag [#allocation13], %s775
        %s777 = sand.u32 %s180, 1
        %s778 = smul.addr %s777, 1024
        %s779 = scalar_lea.vmem [#allocation12], %s778
        // Predicated region
        $region101: #{tpu_custom_call.1} parent=79 // pred_check
          %p780 = pneg %p193
        $region102: #{tpu_custom_call.1} parent=79 // pred_check_branch
          %782 = sbr.rel (%p780) target = $region104
        $region103: #{tpu_custom_call.1} parent=79 // pred_region
          %783 = dma.done %s776, 16384
        $region104: #{tpu_custom_call.1} parent=79 // pred_fallthru
          _
        %s784 = sand.u32 %s47, 1
        %s785 = scalar_lea.sflag [#allocation13], %s784
        %s786 = sand.u32 %s206, 1
        %s787 = smul.addr %s786, 4
        %s788 = scalar_lea.vmem [#allocation14], %s787
        // Predicated region
        $region105: #{tpu_custom_call.1} parent=79 // pred_check
          %p789 = pneg %p219
        $region106: #{tpu_custom_call.1} parent=79 // pred_check_branch
          %791 = sbr.rel (%p789) target = $region108
        $region107: #{tpu_custom_call.1} parent=79 // pred_region
          %792 = dma.done %s785, 64
        $region108: #{tpu_custom_call.1} parent=79 // pred_fallthru
          _
        %s793 = sand.u32 %s47, 1
        %s794 = scalar_lea.sflag [#allocation16], %s793
        %s795 = sand.u32 %s232, 1
        %s796 = smul.addr %s795, 4
        %s797 = scalar_lea.vmem [#allocation15], %s796
        // Predicated region
        $region109: #{tpu_custom_call.1} parent=79 // pred_check
          %p798 = pneg %p245
        $region110: #{tpu_custom_call.1} parent=79 // pred_check_branch
          %800 = sbr.rel (%p798) target = $region112
        $region111: #{tpu_custom_call.1} parent=79 // pred_region
          %801 = dma.done %s794, 64
        $region112: #{tpu_custom_call.1} parent=79 // pred_fallthru
          _
        %s802 = sand.u32 %s47, 1
        %s803 = scalar_lea.sflag [#allocation16], %s802
        %s804 = sand.u32 %s258, 1
        %s805 = smul.addr %s804, 4
        %s806 = scalar_lea.vmem [#allocation17], %s805
        // Predicated region
        $region113: #{tpu_custom_call.1} parent=79 // pred_check
          %p807 = pneg %p271
        $region114: #{tpu_custom_call.1} parent=79 // pred_check_branch
          %809 = sbr.rel (%p807) target = $region116
        $region115: #{tpu_custom_call.1} parent=79 // pred_region
          %810 = dma.done %s803, 64
        $region116: #{tpu_custom_call.1} parent=79 // pred_fallthru
          _
        %s811 = sand.u32 %s47, 1
        %s812 = scalar_lea.sflag [#allocation19], %s811
        %s813 = sand.u32 %s284, 1
        %s814 = smul.addr %s813, 2048
        %s815 = scalar_lea.vmem [#allocation18], %s814
        // Predicated region
        $region117: #{tpu_custom_call.1} parent=79 // pred_check
          %p816 = pneg %p297
        $region118: #{tpu_custom_call.1} parent=79 // pred_check_branch
          %818 = sbr.rel (%p816) target = $region120
        $region119: #{tpu_custom_call.1} parent=79 // pred_region
          %819 = dma.done %s812, 32768
        $region120: #{tpu_custom_call.1} parent=79 // pred_fallthru
          _
        %s820 = sand.u32 %s47, 1
        %s821 = scalar_lea.sflag [#allocation19], %s820
        %s822 = sand.u32 %s310, 1
        %s823 = smul.addr %s822, 8
        %s824 = scalar_lea.vmem [#allocation20], %s823
        // Predicated region
        $region121: #{tpu_custom_call.1} parent=79 // pred_check
          %p825 = pneg %p323
        $region122: #{tpu_custom_call.1} parent=79 // pred_check_branch
          %827 = sbr.rel (%p825) target = $region124
        $region123: #{tpu_custom_call.1} parent=79 // pred_region
          %828 = dma.done %s821, 128
        $region124: #{tpu_custom_call.1} parent=79 // pred_fallthru
          _
        %s829 = sand.u32 %s47, 1
        %s830 = scalar_lea.sflag [#allocation22], %s829
        %s831 = sand.u32 %s336, 1
        %s832 = smul.addr %s831, 2048
        %s833 = scalar_lea.vmem [#allocation21], %s832
        // Predicated region
        $region125: #{tpu_custom_call.1} parent=79 // pred_check
          %p834 = pneg %p349
        $region126: #{tpu_custom_call.1} parent=79 // pred_check_branch
          %836 = sbr.rel (%p834) target = $region128
        $region127: #{tpu_custom_call.1} parent=79 // pred_region
          %837 = dma.done %s830, 32768
        $region128: #{tpu_custom_call.1} parent=79 // pred_fallthru
          _
        %s838 = sand.u32 %s47, 1
        %s839 = scalar_lea.sflag [#allocation22], %s838
        %s840 = sand.u32 %s362, 1
        %s841 = smul.addr %s840, 4
        %s842 = scalar_lea.vmem [#allocation23], %s841
        // Predicated region
        $region129: #{tpu_custom_call.1} parent=79 // pred_check
          %p843 = pneg %p375
        $region130: #{tpu_custom_call.1} parent=79 // pred_check_branch
          %845 = sbr.rel (%p843) target = $region132
        $region131: #{tpu_custom_call.1} parent=79 // pred_region
          %846 = dma.done %s839, 64
        $region132: #{tpu_custom_call.1} parent=79 // pred_fallthru
          _
        // Predicated region
        $region133: #{tpu_custom_call.1} parent=79 // pred_check
          %p847 = pneg %p396
        $region134: #{tpu_custom_call.1} parent=79 // pred_check_branch
          %849 = sbr.rel (%p847) target = $region136
        $region135: #{tpu_custom_call.1} parent=79 // pred_region
          %850 = dma.done [#allocation25], 64
        $region136: #{tpu_custom_call.1} parent=79 // pred_fallthru
          _
        // Predicated region
        $region137: #{tpu_custom_call.1} parent=79 // pred_check
          %p851 = pneg %p417
        $region138: #{tpu_custom_call.1} parent=79 // pred_check_branch
          %853 = sbr.rel (%p851) target = $region140
        $region139: #{tpu_custom_call.1} parent=79 // pred_region
          %854 = dma.done [#allocation25], 64
        $region140: #{tpu_custom_call.1} parent=79 // pred_fallthru
          _
        %p855 = pneg %p63
        %p856 = pneg %p60
        %s857 = sand.u32 %s47, 1
        %s858 = scalar_lea.sflag [#allocation7], %s857
        %s859 = sand.u32 %s76, 1
        %s860 = smul.addr %s859, 4
        %s861 = scalar_lea.vmem [#allocation6], %s860
        %p862 = pneg %p89
        %p863 = pneg %p86
        %s864 = sand.u32 %s47, 1
        %s865 = scalar_lea.sflag [#allocation7], %s864
        %s866 = sand.u32 %s102, 1
        %s867 = smul.addr %s866, 4
        %s868 = scalar_lea.vmem [#allocation8], %s867
        %p869 = pneg %p115
        %p870 = pneg %p112
        %s871 = sand.u32 %s47, 1
        %s872 = scalar_lea.sflag [#allocation10], %s871
        %s873 = sand.u32 %s128, 1
        %s874 = smul.addr %s873, 3072
        %s875 = scalar_lea.vmem [#allocation9], %s874
        %p876 = pneg %p141
        %p877 = pneg %p138
        %s878 = sand.u32 %s47, 1
        %s879 = scalar_lea.sflag [#allocation10], %s878
        %s880 = sand.u32 %s154, 1
        %s881 = smul.addr %s880, 12
        %s882 = scalar_lea.vmem [#allocation11], %s881
        %p883 = pneg %p167
        %p884 = pneg %p164
        %s885 = sand.u32 %s47, 1
        %s886 = scalar_lea.sflag [#allocation13], %s885
        %s887 = sand.u32 %s180, 1
        %s888 = smul.addr %s887, 1024
        %s889 = scalar_lea.vmem [#allocation12], %s888
        %p890 = pneg %p193
        %p891 = pneg %p190
        %s892 = sand.u32 %s47, 1
        %s893 = scalar_lea.sflag [#allocation13], %s892
        %s894 = sand.u32 %s206, 1
        %s895 = smul.addr %s894, 4
        %s896 = scalar_lea.vmem [#allocation14], %s895
        %p897 = pneg %p219
        %p898 = pneg %p216
        %s899 = sand.u32 %s47, 1
        %s900 = scalar_lea.sflag [#allocation16], %s899
        %s901 = sand.u32 %s232, 1
        %s902 = smul.addr %s901, 4
        %s903 = scalar_lea.vmem [#allocation15], %s902
        %p904 = pneg %p245
        %p905 = pneg %p242
        %s906 = sand.u32 %s47, 1
        %s907 = scalar_lea.sflag [#allocation16], %s906
        %s908 = sand.u32 %s258, 1
        %s909 = smul.addr %s908, 4
        %s910 = scalar_lea.vmem [#allocation17], %s909
        %p911 = pneg %p271
        %p912 = pneg %p268
        %s913 = sand.u32 %s47, 1
        %s914 = scalar_lea.sflag [#allocation19], %s913
        %s915 = sand.u32 %s284, 1
        %s916 = smul.addr %s915, 2048
        %s917 = scalar_lea.vmem [#allocation18], %s916
        %p918 = pneg %p297
        %p919 = pneg %p294
        %s920 = sand.u32 %s47, 1
        %s921 = scalar_lea.sflag [#allocation19], %s920
        %s922 = sand.u32 %s310, 1
        %s923 = smul.addr %s922, 8
        %s924 = scalar_lea.vmem [#allocation20], %s923
        %p925 = pneg %p323
        %p926 = pneg %p320
        %s927 = sand.u32 %s47, 1
        %s928 = scalar_lea.sflag [#allocation22], %s927
        %s929 = sand.u32 %s336, 1
        %s930 = smul.addr %s929, 2048
        %s931 = scalar_lea.vmem [#allocation21], %s930
        %p932 = pneg %p349
        %p933 = pneg %p346
        %s934 = sand.u32 %s47, 1
        %s935 = scalar_lea.sflag [#allocation22], %s934
        %s936 = sand.u32 %s362, 1
        %s937 = smul.addr %s936, 4
        %s938 = scalar_lea.vmem [#allocation23], %s937
        %p939 = pneg %p375
        %p940 = pneg %p372
        %p941 = pneg %p396
        %p942 = pneg %p393
        %p943 = pneg %p417
        %p944 = pneg %p414
        %p945 = pneg %p438
        %p946 = pneg %p435
        %p948 = scmp.eq.s32.totalorder %s47, 0
        // Predicated region
        $region141: #{tpu_custom_call.1} parent=79 // pred_check
          %p949 = pneg %p948
        $region142: #{tpu_custom_call.1} parent=79 // pred_check_branch
          %951 = sbr.rel (%p949) target = $region144
        $region143: #{tpu_custom_call.1} parent=79 // pred_region
          %v952 = vld [vmem:[#allocation3] sm:$0xff]
          %v953 = vld [vmem:[#allocation3 + $0x8] sm:$0xff]
          %v954 = vld [vmem:[#allocation3 + $0x10] sm:$0xff]
          %v955 = vld [vmem:[#allocation3 + $0x18] sm:$0xff]
          %v956 = vld [vmem:[#allocation3 + $0x20] sm:$0xff]
          %v957 = vld [vmem:[#allocation3 + $0x28] sm:$0xff]
          %v958 = vld [vmem:[#allocation3 + $0x30] sm:$0xff]
          %v959 = vld [vmem:[#allocation3 + $0x38] sm:$0xff]
          %960 = vst [vmem:[#allocation2] sm:$0xff] %v952
          %961 = vst [vmem:[#allocation2 + $0x8] sm:$0xff] %v953
          %962 = vst [vmem:[#allocation2 + $0x10] sm:$0xff] %v954
          %963 = vst [vmem:[#allocation2 + $0x18] sm:$0xff] %v955
          %964 = vst [vmem:[#allocation2 + $0x20] sm:$0xff] %v956
          %965 = vst [vmem:[#allocation2 + $0x28] sm:$0xff] %v957
          %966 = vst [vmem:[#allocation2 + $0x30] sm:$0xff] %v958
          %967 = vst [vmem:[#allocation2 + $0x38] sm:$0xff] %v959
        $region144: #{tpu_custom_call.1} parent=79 // pred_fallthru
          _
        %v968 = vld [vmem:[#allocation2] sm:$0xff]
        %v969 = vld [vmem:[#allocation2 + $0x8] sm:$0xff]
        %v970 = vld [vmem:[#allocation2 + $0x10] sm:$0xff]
        %v971 = vld [vmem:[#allocation2 + $0x18] sm:$0xff]
        %v972 = vld [vmem:[#allocation2 + $0x20] sm:$0xff]
        %v973 = vld [vmem:[#allocation2 + $0x28] sm:$0xff]
        %v974 = vld [vmem:[#allocation2 + $0x30] sm:$0xff]
        %v975 = vld [vmem:[#allocation2 + $0x38] sm:$0xff]
        %v976 = vld [vmem:[%s743] sm:$0xf]
        %v977 = vld [vmem:[%s752] sm:$0xf]
        %v978 = vadd.f32 %v968, %v969
        %v979 = vadd.f32 %v978, %v970
        %v980 = vadd.f32 %v979, %v971
        %981 = vadd.xlane.f32.xlu0 %v980
        %v982 = vpop.xlane.xlu0 %981
        %v983 = vadd.f32 %v972, %v973
        %v984 = vadd.f32 %v983, %v974
        %v985 = vadd.f32 %v984, %v975
        %986 = vadd.xlane.f32.xlu0 %v985
        %v987 = vpop.xlane.xlu0 %986
        %v988 = vrcp.pop 512.0
        %v989 = vmul.f32 %v982, %v988
        %v990 = vmul.f32 %v987, %v988
        %v991 = vsub.f32 %v968, %v989
        %v992 = vsub.f32 %v969, %v989
        %v993 = vsub.f32 %v970, %v989
        %v994 = vsub.f32 %v971, %v989
        %v995 = vsub.f32 %v972, %v990
        %v996 = vsub.f32 %v973, %v990
        %v997 = vsub.f32 %v974, %v990
        %v998 = vsub.f32 %v975, %v990
        %v999 = vmul.f32 %v991, %v991
        %v1000 = vmul.f32 %v992, %v992
        %v1001 = vmul.f32 %v993, %v993
        %v1002 = vmul.f32 %v994, %v994
        %v1003 = vmul.f32 %v995, %v995
        %v1004 = vmul.f32 %v996, %v996
        %v1005 = vmul.f32 %v997, %v997
        %v1006 = vmul.f32 %v998, %v998
        %v1007 = vadd.f32 %v999, %v1000
        %v1008 = vadd.f32 %v1007, %v1001
        %v1009 = vadd.f32 %v1008, %v1002
        %1010 = vadd.xlane.f32.xlu0 %v1009
        %v1011 = vpop.xlane.xlu0 %1010
        %v1012 = vadd.f32 %v1003, %v1004
        %v1013 = vadd.f32 %v1012, %v1005
        %v1014 = vadd.f32 %v1013, %v1006
        %1015 = vadd.xlane.f32.xlu0 %v1014
        %v1016 = vpop.xlane.xlu0 %1015
        %v1017 = vmul.f32 %v1011, %v988
        %v1018 = vmul.f32 %v1016, %v988
        %v1019 = vadd.f32 %v1017, 1e-06
        %v1020 = vadd.f32 %v1018, 1e-06
        %v1021 = vrsqrt.pop %v1019
        %v1022 = vrsqrt.pop %v1020
        %v1023 = vmul.f32 %v991, %v1021
        %v1024 = vmul.f32 %v992, %v1021
        %v1025 = vmul.f32 %v993, %v1021
        %v1026 = vmul.f32 %v994, %v1021
        %v1027 = vmul.f32 %v995, %v1022
        %v1028 = vmul.f32 %v996, %v1022
        %v1029 = vmul.f32 %v997, %v1022
        %v1030 = vmul.f32 %v998, %v1022
        %v1032 = vlaneseq
        %v1033 = vshrl.u32 %v1032, 7
        %v1034 = vsub.s32 0, %v1033
        %v1035 = vrot.slane %v976, %v1034
        %v1036 = vlaneseq
        %v1037 = vshrl.u32 %v1036, 7
        %v1038 = vsub.s32 1, %v1037
        %v1039 = vrot.slane %v976, %v1038
        %v1040 = vlaneseq
        %v1041 = vshrl.u32 %v1040, 7
        %v1042 = vsub.s32 2, %v1041
        %v1043 = vrot.slane %v976, %v1042
        %v1044 = vlaneseq
        %v1045 = vshrl.u32 %v1044, 7
        %v1046 = vsub.s32 3, %v1045
        %v1047 = vrot.slane %v976, %v1046
        %v1052 = vmul.f32 %v1023, %v1035
        %v1053 = vmul.f32 %v1024, %v1039
        %v1054 = vmul.f32 %v1025, %v1043
        %v1055 = vmul.f32 %v1026, %v1047
        %v1056 = vmul.f32 %v1027, %v1035
        %v1057 = vmul.f32 %v1028, %v1039
        %v1058 = vmul.f32 %v1029, %v1043
        %v1059 = vmul.f32 %v1030, %v1047
        %v1061 = vlaneseq
        %v1062 = vshrl.u32 %v1061, 7
        %v1063 = vsub.s32 0, %v1062
        %v1064 = vrot.slane %v977, %v1063
        %v1065 = vlaneseq
        %v1066 = vshrl.u32 %v1065, 7
        %v1067 = vsub.s32 1, %v1066
        %v1068 = vrot.slane %v977, %v1067
        %v1069 = vlaneseq
        %v1070 = vshrl.u32 %v1069, 7
        %v1071 = vsub.s32 2, %v1070
        %v1072 = vrot.slane %v977, %v1071
        %v1073 = vlaneseq
        %v1074 = vshrl.u32 %v1073, 7
        %v1075 = vsub.s32 3, %v1074
        %v1076 = vrot.slane %v977, %v1075
        %v1081 = vadd.f32 %v1052, %v1064
        %v1082 = vadd.f32 %v1053, %v1068
        %v1083 = vadd.f32 %v1054, %v1072
        %v1084 = vadd.f32 %v1055, %v1076
        %v1085 = vadd.f32 %v1056, %v1064
        %v1086 = vadd.f32 %v1057, %v1068
        %v1087 = vadd.f32 %v1058, %v1072
        %v1088 = vadd.f32 %v1059, %v1076
        %v1089 = vpack.c.bf16 %v1085, %v1081
        %v1090 = vpack.c.bf16 %v1086, %v1082
        %v1091 = vpack.c.bf16 %v1087, %v1083
        %v1092 = vpack.c.bf16 %v1088, %v1084
        %v1093 = vld [vmem:[%s761] sm:$0xff]
        %v1094 = vld [vmem:[%s761 + $0x8] sm:$0xff]
        %v1095 = vld [vmem:[%s761 + $0x10] sm:$0xff]
        %v1096 = vld [vmem:[%s761 + $0x18] sm:$0xff]
        %v1097 = vld [vmem:[%s761 + $0x20] sm:$0xff]
        %v1098 = vld [vmem:[%s761 + $0x28] sm:$0xff]
        %v1099 = vld [vmem:[%s761 + $0x30] sm:$0xff]
        %v1100 = vld [vmem:[%s761 + $0x38] sm:$0xff]
        %v1101 = vld [vmem:[%s761 + $0x40] sm:$0xff]
        %v1102 = vld [vmem:[%s761 + $0x48] sm:$0xff]
        %v1103 = vld [vmem:[%s761 + $0x50] sm:$0xff]
        %v1104 = vld [vmem:[%s761 + $0x58] sm:$0xff]
        %v1105 = vld [vmem:[%s761 + $0x60] sm:$0xff]
        %v1106 = vld [vmem:[%s761 + $0x68] sm:$0xff]
        %v1107 = vld [vmem:[%s761 + $0x70] sm:$0xff]
        %v1108 = vld [vmem:[%s761 + $0x78] sm:$0xff]
        %v1109 = vld [vmem:[%s761 + $0x80] sm:$0xff]
        %v1110 = vld [vmem:[%s761 + $0x88] sm:$0xff]
        %v1111 = vld [vmem:[%s761 + $0x90] sm:$0xff]
        %v1112 = vld [vmem:[%s761 + $0x98] sm:$0xff]
        %v1113 = vld [vmem:[%s761 + $0xa0] sm:$0xff]
        %v1114 = vld [vmem:[%s761 + $0xa8] sm:$0xff]
        %v1115 = vld [vmem:[%s761 + $0xb0] sm:$0xff]
        %v1116 = vld [vmem:[%s761 + $0xb8] sm:$0xff]
        %v1117 = vld [vmem:[%s761 + $0xc0] sm:$0xff]
        %v1118 = vld [vmem:[%s761 + $0xc8] sm:$0xff]
        %v1119 = vld [vmem:[%s761 + $0xd0] sm:$0xff]
        %v1120 = vld [vmem:[%s761 + $0xd8] sm:$0xff]
        %v1121 = vld [vmem:[%s761 + $0xe0] sm:$0xff]
        %v1122 = vld [vmem:[%s761 + $0xe8] sm:$0xff]
        %v1123 = vld [vmem:[%s761 + $0xf0] sm:$0xff]
        %v1124 = vld [vmem:[%s761 + $0xf8] sm:$0xff]
        %v1125 = vld [vmem:[%s761 + $0x100] sm:$0xff]
        %v1126 = vld [vmem:[%s761 + $0x108] sm:$0xff]
        %v1127 = vld [vmem:[%s761 + $0x110] sm:$0xff]
        %v1128 = vld [vmem:[%s761 + $0x118] sm:$0xff]
        %v1129 = vld [vmem:[%s761 + $0x120] sm:$0xff]
        %v1130 = vld [vmem:[%s761 + $0x128] sm:$0xff]
        %v1131 = vld [vmem:[%s761 + $0x130] sm:$0xff]
        %v1132 = vld [vmem:[%s761 + $0x138] sm:$0xff]
        %v1133 = vld [vmem:[%s761 + $0x140] sm:$0xff]
        %v1134 = vld [vmem:[%s761 + $0x148] sm:$0xff]
        %v1135 = vld [vmem:[%s761 + $0x150] sm:$0xff]
        %v1136 = vld [vmem:[%s761 + $0x158] sm:$0xff]
        %v1137 = vld [vmem:[%s761 + $0x160] sm:$0xff]
        %v1138 = vld [vmem:[%s761 + $0x168] sm:$0xff]
        %v1139 = vld [vmem:[%s761 + $0x170] sm:$0xff]
        %v1140 = vld [vmem:[%s761 + $0x178] sm:$0xff]
        %v1141 = vld [vmem:[%s761 + $0x180] sm:$0xff]
        %v1142 = vld [vmem:[%s761 + $0x188] sm:$0xff]
        %v1143 = vld [vmem:[%s761 + $0x190] sm:$0xff]
        %v1144 = vld [vmem:[%s761 + $0x198] sm:$0xff]
        %v1145 = vld [vmem:[%s761 + $0x1a0] sm:$0xff]
        %v1146 = vld [vmem:[%s761 + $0x1a8] sm:$0xff]
        %v1147 = vld [vmem:[%s761 + $0x1b0] sm:$0xff]
        %v1148 = vld [vmem:[%s761 + $0x1b8] sm:$0xff]
        %v1149 = vld [vmem:[%s761 + $0x1c0] sm:$0xff]
        %v1150 = vld [vmem:[%s761 + $0x1c8] sm:$0xff]
        %v1151 = vld [vmem:[%s761 + $0x1d0] sm:$0xff]
        %v1152 = vld [vmem:[%s761 + $0x1d8] sm:$0xff]
        %v1153 = vld [vmem:[%s761 + $0x1e0] sm:$0xff]
        %v1154 = vld [vmem:[%s761 + $0x1e8] sm:$0xff]
        %v1155 = vld [vmem:[%s761 + $0x1f0] sm:$0xff]
        %v1156 = vld [vmem:[%s761 + $0x1f8] sm:$0xff]
        %v1157 = vld [vmem:[%s761 + $0x200] sm:$0xff]
        %v1158 = vld [vmem:[%s761 + $0x208] sm:$0xff]
        %v1159 = vld [vmem:[%s761 + $0x210] sm:$0xff]
        %v1160 = vld [vmem:[%s761 + $0x218] sm:$0xff]
        %v1161 = vld [vmem:[%s761 + $0x220] sm:$0xff]
        %v1162 = vld [vmem:[%s761 + $0x228] sm:$0xff]
        %v1163 = vld [vmem:[%s761 + $0x230] sm:$0xff]
        %v1164 = vld [vmem:[%s761 + $0x238] sm:$0xff]
        %v1165 = vld [vmem:[%s761 + $0x240] sm:$0xff]
        %v1166 = vld [vmem:[%s761 + $0x248] sm:$0xff]
        %v1167 = vld [vmem:[%s761 + $0x250] sm:$0xff]
        %v1168 = vld [vmem:[%s761 + $0x258] sm:$0xff]
        %v1169 = vld [vmem:[%s761 + $0x260] sm:$0xff]
        %v1170 = vld [vmem:[%s761 + $0x268] sm:$0xff]
        %v1171 = vld [vmem:[%s761 + $0x270] sm:$0xff]
        %v1172 = vld [vmem:[%s761 + $0x278] sm:$0xff]
        %v1173 = vld [vmem:[%s761 + $0x280] sm:$0xff]
        %v1174 = vld [vmem:[%s761 + $0x288] sm:$0xff]
        %v1175 = vld [vmem:[%s761 + $0x290] sm:$0xff]
        %v1176 = vld [vmem:[%s761 + $0x298] sm:$0xff]
        %v1177 = vld [vmem:[%s761 + $0x2a0] sm:$0xff]
        %v1178 = vld [vmem:[%s761 + $0x2a8] sm:$0xff]
        %v1179 = vld [vmem:[%s761 + $0x2b0] sm:$0xff]
        %v1180 = vld [vmem:[%s761 + $0x2b8] sm:$0xff]
        %v1181 = vld [vmem:[%s761 + $0x2c0] sm:$0xff]
        %v1182 = vld [vmem:[%s761 + $0x2c8] sm:$0xff]
        %v1183 = vld [vmem:[%s761 + $0x2d0] sm:$0xff]
        %v1184 = vld [vmem:[%s761 + $0x2d8] sm:$0xff]
        %v1185 = vld [vmem:[%s761 + $0x2e0] sm:$0xff]
        %v1186 = vld [vmem:[%s761 + $0x2e8] sm:$0xff]
        %v1187 = vld [vmem:[%s761 + $0x2f0] sm:$0xff]
        %v1188 = vld [vmem:[%s761 + $0x2f8] sm:$0xff]
        %v1189 = vld [vmem:[%s761 + $0x300] sm:$0xff]
        %v1190 = vld [vmem:[%s761 + $0x308] sm:$0xff]
        %v1191 = vld [vmem:[%s761 + $0x310] sm:$0xff]
        %v1192 = vld [vmem:[%s761 + $0x318] sm:$0xff]
        %v1193 = vld [vmem:[%s761 + $0x320] sm:$0xff]
        %v1194 = vld [vmem:[%s761 + $0x328] sm:$0xff]
        %v1195 = vld [vmem:[%s761 + $0x330] sm:$0xff]
        %v1196 = vld [vmem:[%s761 + $0x338] sm:$0xff]
        %v1197 = vld [vmem:[%s761 + $0x340] sm:$0xff]
        %v1198 = vld [vmem:[%s761 + $0x348] sm:$0xff]
        %v1199 = vld [vmem:[%s761 + $0x350] sm:$0xff]
        %v1200 = vld [vmem:[%s761 + $0x358] sm:$0xff]
        %v1201 = vld [vmem:[%s761 + $0x360] sm:$0xff]
        %v1202 = vld [vmem:[%s761 + $0x368] sm:$0xff]
        %v1203 = vld [vmem:[%s761 + $0x370] sm:$0xff]
        %v1204 = vld [vmem:[%s761 + $0x378] sm:$0xff]
        %v1205 = vld [vmem:[%s761 + $0x380] sm:$0xff]
        %v1206 = vld [vmem:[%s761 + $0x388] sm:$0xff]
        %v1207 = vld [vmem:[%s761 + $0x390] sm:$0xff]
        %v1208 = vld [vmem:[%s761 + $0x398] sm:$0xff]
        %v1209 = vld [vmem:[%s761 + $0x3a0] sm:$0xff]
        %v1210 = vld [vmem:[%s761 + $0x3a8] sm:$0xff]
        %v1211 = vld [vmem:[%s761 + $0x3b0] sm:$0xff]
        %v1212 = vld [vmem:[%s761 + $0x3b8] sm:$0xff]
        %v1213 = vld [vmem:[%s761 + $0x3c0] sm:$0xff]
        %v1214 = vld [vmem:[%s761 + $0x3c8] sm:$0xff]
        %v1215 = vld [vmem:[%s761 + $0x3d0] sm:$0xff]
        %v1216 = vld [vmem:[%s761 + $0x3d8] sm:$0xff]
        %v1217 = vld [vmem:[%s761 + $0x3e0] sm:$0xff]
        %v1218 = vld [vmem:[%s761 + $0x3e8] sm:$0xff]
        %v1219 = vld [vmem:[%s761 + $0x3f0] sm:$0xff]
        %v1220 = vld [vmem:[%s761 + $0x3f8] sm:$0xff]
        %v1221 = vld [vmem:[%s761 + $0x400] sm:$0xff]
        %v1222 = vld [vmem:[%s761 + $0x408] sm:$0xff]
        %v1223 = vld [vmem:[%s761 + $0x410] sm:$0xff]
        %v1224 = vld [vmem:[%s761 + $0x418] sm:$0xff]
        %v1225 = vld [vmem:[%s761 + $0x420] sm:$0xff]
        %v1226 = vld [vmem:[%s761 + $0x428] sm:$0xff]
        %v1227 = vld [vmem:[%s761 + $0x430] sm:$0xff]
        %v1228 = vld [vmem:[%s761 + $0x438] sm:$0xff]
        %v1229 = vld [vmem:[%s761 + $0x440] sm:$0xff]
        %v1230 = vld [vmem:[%s761 + $0x448] sm:$0xff]
        %v1231 = vld [vmem:[%s761 + $0x450] sm:$0xff]
        %v1232 = vld [vmem:[%s761 + $0x458] sm:$0xff]
        %v1233 = vld [vmem:[%s761 + $0x460] sm:$0xff]
        %v1234 = vld [vmem:[%s761 + $0x468] sm:$0xff]
        %v1235 = vld [vmem:[%s761 + $0x470] sm:$0xff]
        %v1236 = vld [vmem:[%s761 + $0x478] sm:$0xff]
        %v1237 = vld [vmem:[%s761 + $0x480] sm:$0xff]
        %v1238 = vld [vmem:[%s761 + $0x488] sm:$0xff]
        %v1239 = vld [vmem:[%s761 + $0x490] sm:$0xff]
        %v1240 = vld [vmem:[%s761 + $0x498] sm:$0xff]
        %v1241 = vld [vmem:[%s761 + $0x4a0] sm:$0xff]
        %v1242 = vld [vmem:[%s761 + $0x4a8] sm:$0xff]
        %v1243 = vld [vmem:[%s761 + $0x4b0] sm:$0xff]
        %v1244 = vld [vmem:[%s761 + $0x4b8] sm:$0xff]
        %v1245 = vld [vmem:[%s761 + $0x4c0] sm:$0xff]
        %v1246 = vld [vmem:[%s761 + $0x4c8] sm:$0xff]
        %v1247 = vld [vmem:[%s761 + $0x4d0] sm:$0xff]
        %v1248 = vld [vmem:[%s761 + $0x4d8] sm:$0xff]
        %v1249 = vld [vmem:[%s761 + $0x4e0] sm:$0xff]
        %v1250 = vld [vmem:[%s761 + $0x4e8] sm:$0xff]
        %v1251 = vld [vmem:[%s761 + $0x4f0] sm:$0xff]
        %v1252 = vld [vmem:[%s761 + $0x4f8] sm:$0xff]
        %v1253 = vld [vmem:[%s761 + $0x500] sm:$0xff]
        %v1254 = vld [vmem:[%s761 + $0x508] sm:$0xff]
        %v1255 = vld [vmem:[%s761 + $0x510] sm:$0xff]
        %v1256 = vld [vmem:[%s761 + $0x518] sm:$0xff]
        %v1257 = vld [vmem:[%s761 + $0x520] sm:$0xff]
        %v1258 = vld [vmem:[%s761 + $0x528] sm:$0xff]
        %v1259 = vld [vmem:[%s761 + $0x530] sm:$0xff]
        %v1260 = vld [vmem:[%s761 + $0x538] sm:$0xff]
        %v1261 = vld [vmem:[%s761 + $0x540] sm:$0xff]
        %v1262 = vld [vmem:[%s761 + $0x548] sm:$0xff]
        %v1263 = vld [vmem:[%s761 + $0x550] sm:$0xff]
        %v1264 = vld [vmem:[%s761 + $0x558] sm:$0xff]
        %v1265 = vld [vmem:[%s761 + $0x560] sm:$0xff]
        %v1266 = vld [vmem:[%s761 + $0x568] sm:$0xff]
        %v1267 = vld [vmem:[%s761 + $0x570] sm:$0xff]
        %v1268 = vld [vmem:[%s761 + $0x578] sm:$0xff]
        %v1269 = vld [vmem:[%s761 + $0x580] sm:$0xff]
        %v1270 = vld [vmem:[%s761 + $0x588] sm:$0xff]
        %v1271 = vld [vmem:[%s761 + $0x590] sm:$0xff]
        %v1272 = vld [vmem:[%s761 + $0x598] sm:$0xff]
        %v1273 = vld [vmem:[%s761 + $0x5a0] sm:$0xff]
        %v1274 = vld [vmem:[%s761 + $0x5a8] sm:$0xff]
        %v1275 = vld [vmem:[%s761 + $0x5b0] sm:$0xff]
        %v1276 = vld [vmem:[%s761 + $0x5b8] sm:$0xff]
        %v1277 = vld [vmem:[%s761 + $0x5c0] sm:$0xff]
        %v1278 = vld [vmem:[%s761 + $0x5c8] sm:$0xff]
        %v1279 = vld [vmem:[%s761 + $0x5d0] sm:$0xff]
        %v1280 = vld [vmem:[%s761 + $0x5d8] sm:$0xff]
        %v1281 = vld [vmem:[%s761 + $0x5e0] sm:$0xff]
        %v1282 = vld [vmem:[%s761 + $0x5e8] sm:$0xff]
        %v1283 = vld [vmem:[%s761 + $0x5f0] sm:$0xff]
        %v1284 = vld [vmem:[%s761 + $0x5f8] sm:$0xff]
        %v1285 = vld [vmem:[%s761 + $0x600] sm:$0xff]
        %v1286 = vld [vmem:[%s761 + $0x608] sm:$0xff]
        %v1287 = vld [vmem:[%s761 + $0x610] sm:$0xff]
        %v1288 = vld [vmem:[%s761 + $0x618] sm:$0xff]
        %v1289 = vld [vmem:[%s761 + $0x620] sm:$0xff]
        %v1290 = vld [vmem:[%s761 + $0x628] sm:$0xff]
        %v1291 = vld [vmem:[%s761 + $0x630] sm:$0xff]
        %v1292 = vld [vmem:[%s761 + $0x638] sm:$0xff]
        %v1293 = vld [vmem:[%s761 + $0x640] sm:$0xff]
        %v1294 = vld [vmem:[%s761 + $0x648] sm:$0xff]
        %v1295 = vld [vmem:[%s761 + $0x650] sm:$0xff]
        %v1296 = vld [vmem:[%s761 + $0x658] sm:$0xff]
        %v1297 = vld [vmem:[%s761 + $0x660] sm:$0xff]
        %v1298 = vld [vmem:[%s761 + $0x668] sm:$0xff]
        %v1299 = vld [vmem:[%s761 + $0x670] sm:$0xff]
        %v1300 = vld [vmem:[%s761 + $0x678] sm:$0xff]
        %v1301 = vld [vmem:[%s761 + $0x680] sm:$0xff]
        %v1302 = vld [vmem:[%s761 + $0x688] sm:$0xff]
        %v1303 = vld [vmem:[%s761 + $0x690] sm:$0xff]
        %v1304 = vld [vmem:[%s761 + $0x698] sm:$0xff]
        %v1305 = vld [vmem:[%s761 + $0x6a0] sm:$0xff]
        %v1306 = vld [vmem:[%s761 + $0x6a8] sm:$0xff]
        %v1307 = vld [vmem:[%s761 + $0x6b0] sm:$0xff]
        %v1308 = vld [vmem:[%s761 + $0x6b8] sm:$0xff]
        %v1309 = vld [vmem:[%s761 + $0x6c0] sm:$0xff]
        %v1310 = vld [vmem:[%s761 + $0x6c8] sm:$0xff]
        %v1311 = vld [vmem:[%s761 + $0x6d0] sm:$0xff]
        %v1312 = vld [vmem:[%s761 + $0x6d8] sm:$0xff]
        %v1313 = vld [vmem:[%s761 + $0x6e0] sm:$0xff]
        %v1314 = vld [vmem:[%s761 + $0x6e8] sm:$0xff]
        %v1315 = vld [vmem:[%s761 + $0x6f0] sm:$0xff]
        %v1316 = vld [vmem:[%s761 + $0x6f8] sm:$0xff]
        %v1317 = vld [vmem:[%s761 + $0x700] sm:$0xff]
        %v1318 = vld [vmem:[%s761 + $0x708] sm:$0xff]
        %v1319 = vld [vmem:[%s761 + $0x710] sm:$0xff]
        %v1320 = vld [vmem:[%s761 + $0x718] sm:$0xff]
        %v1321 = vld [vmem:[%s761 + $0x720] sm:$0xff]
        %v1322 = vld [vmem:[%s761 + $0x728] sm:$0xff]
        %v1323 = vld [vmem:[%s761 + $0x730] sm:$0xff]
        %v1324 = vld [vmem:[%s761 + $0x738] sm:$0xff]
        %v1325 = vld [vmem:[%s761 + $0x740] sm:$0xff]
        %v1326 = vld [vmem:[%s761 + $0x748] sm:$0xff]
        %v1327 = vld [vmem:[%s761 + $0x750] sm:$0xff]
        %v1328 = vld [vmem:[%s761 + $0x758] sm:$0xff]
        %v1329 = vld [vmem:[%s761 + $0x760] sm:$0xff]
        %v1330 = vld [vmem:[%s761 + $0x768] sm:$0xff]
        %v1331 = vld [vmem:[%s761 + $0x770] sm:$0xff]
        %v1332 = vld [vmem:[%s761 + $0x778] sm:$0xff]
        %v1333 = vld [vmem:[%s761 + $0x780] sm:$0xff]
        %v1334 = vld [vmem:[%s761 + $0x788] sm:$0xff]
        %v1335 = vld [vmem:[%s761 + $0x790] sm:$0xff]
        %v1336 = vld [vmem:[%s761 + $0x798] sm:$0xff]
        %v1337 = vld [vmem:[%s761 + $0x7a0] sm:$0xff]
        %v1338 = vld [vmem:[%s761 + $0x7a8] sm:$0xff]
        %v1339 = vld [vmem:[%s761 + $0x7b0] sm:$0xff]
        %v1340 = vld [vmem:[%s761 + $0x7b8] sm:$0xff]
        %v1341 = vld [vmem:[%s761 + $0x7c0] sm:$0xff]
        %v1342 = vld [vmem:[%s761 + $0x7c8] sm:$0xff]
        %v1343 = vld [vmem:[%s761 + $0x7d0] sm:$0xff]
        %v1344 = vld [vmem:[%s761 + $0x7d8] sm:$0xff]
        %v1345 = vld [vmem:[%s761 + $0x7e0] sm:$0xff]
        %v1346 = vld [vmem:[%s761 + $0x7e8] sm:$0xff]
        %v1347 = vld [vmem:[%s761 + $0x7f0] sm:$0xff]
        %v1348 = vld [vmem:[%s761 + $0x7f8] sm:$0xff]
        %v1349 = vld [vmem:[%s761 + $0x800] sm:$0xff]
        %v1350 = vld [vmem:[%s761 + $0x808] sm:$0xff]
        %v1351 = vld [vmem:[%s761 + $0x810] sm:$0xff]
        %v1352 = vld [vmem:[%s761 + $0x818] sm:$0xff]
        %v1353 = vld [vmem:[%s761 + $0x820] sm:$0xff]
        %v1354 = vld [vmem:[%s761 + $0x828] sm:$0xff]
        %v1355 = vld [vmem:[%s761 + $0x830] sm:$0xff]
        %v1356 = vld [vmem:[%s761 + $0x838] sm:$0xff]
        %v1357 = vld [vmem:[%s761 + $0x840] sm:$0xff]
        %v1358 = vld [vmem:[%s761 + $0x848] sm:$0xff]
        %v1359 = vld [vmem:[%s761 + $0x850] sm:$0xff]
        %v1360 = vld [vmem:[%s761 + $0x858] sm:$0xff]
        %v1361 = vld [vmem:[%s761 + $0x860] sm:$0xff]
        %v1362 = vld [vmem:[%s761 + $0x868] sm:$0xff]
        %v1363 = vld [vmem:[%s761 + $0x870] sm:$0xff]
        %v1364 = vld [vmem:[%s761 + $0x878] sm:$0xff]
        %v1365 = vld [vmem:[%s761 + $0x880] sm:$0xff]
        %v1366 = vld [vmem:[%s761 + $0x888] sm:$0xff]
        %v1367 = vld [vmem:[%s761 + $0x890] sm:$0xff]
        %v1368 = vld [vmem:[%s761 + $0x898] sm:$0xff]
        %v1369 = vld [vmem:[%s761 + $0x8a0] sm:$0xff]
        %v1370 = vld [vmem:[%s761 + $0x8a8] sm:$0xff]
        %v1371 = vld [vmem:[%s761 + $0x8b0] sm:$0xff]
        %v1372 = vld [vmem:[%s761 + $0x8b8] sm:$0xff]
        %v1373 = vld [vmem:[%s761 + $0x8c0] sm:$0xff]
        %v1374 = vld [vmem:[%s761 + $0x8c8] sm:$0xff]
        %v1375 = vld [vmem:[%s761 + $0x8d0] sm:$0xff]
        %v1376 = vld [vmem:[%s761 + $0x8d8] sm:$0xff]
        %v1377 = vld [vmem:[%s761 + $0x8e0] sm:$0xff]
        %v1378 = vld [vmem:[%s761 + $0x8e8] sm:$0xff]
        %v1379 = vld [vmem:[%s761 + $0x8f0] sm:$0xff]
        %v1380 = vld [vmem:[%s761 + $0x8f8] sm:$0xff]
        %v1381 = vld [vmem:[%s761 + $0x900] sm:$0xff]
        %v1382 = vld [vmem:[%s761 + $0x908] sm:$0xff]
        %v1383 = vld [vmem:[%s761 + $0x910] sm:$0xff]
        %v1384 = vld [vmem:[%s761 + $0x918] sm:$0xff]
        %v1385 = vld [vmem:[%s761 + $0x920] sm:$0xff]
        %v1386 = vld [vmem:[%s761 + $0x928] sm:$0xff]
        %v1387 = vld [vmem:[%s761 + $0x930] sm:$0xff]
        %v1388 = vld [vmem:[%s761 + $0x938] sm:$0xff]
        %v1389 = vld [vmem:[%s761 + $0x940] sm:$0xff]
        %v1390 = vld [vmem:[%s761 + $0x948] sm:$0xff]
        %v1391 = vld [vmem:[%s761 + $0x950] sm:$0xff]
        %v1392 = vld [vmem:[%s761 + $0x958] sm:$0xff]
        %v1393 = vld [vmem:[%s761 + $0x960] sm:$0xff]
        %v1394 = vld [vmem:[%s761 + $0x968] sm:$0xff]
        %v1395 = vld [vmem:[%s761 + $0x970] sm:$0xff]
        %v1396 = vld [vmem:[%s761 + $0x978] sm:$0xff]
        %v1397 = vld [vmem:[%s761 + $0x980] sm:$0xff]
        %v1398 = vld [vmem:[%s761 + $0x988] sm:$0xff]
        %v1399 = vld [vmem:[%s761 + $0x990] sm:$0xff]
        %v1400 = vld [vmem:[%s761 + $0x998] sm:$0xff]
        %v1401 = vld [vmem:[%s761 + $0x9a0] sm:$0xff]
        %v1402 = vld [vmem:[%s761 + $0x9a8] sm:$0xff]
        %v1403 = vld [vmem:[%s761 + $0x9b0] sm:$0xff]
        %v1404 = vld [vmem:[%s761 + $0x9b8] sm:$0xff]
        %v1405 = vld [vmem:[%s761 + $0x9c0] sm:$0xff]
        %v1406 = vld [vmem:[%s761 + $0x9c8] sm:$0xff]
        %v1407 = vld [vmem:[%s761 + $0x9d0] sm:$0xff]
        %v1408 = vld [vmem:[%s761 + $0x9d8] sm:$0xff]
        %v1409 = vld [vmem:[%s761 + $0x9e0] sm:$0xff]
        %v1410 = vld [vmem:[%s761 + $0x9e8] sm:$0xff]
        %v1411 = vld [vmem:[%s761 + $0x9f0] sm:$0xff]
        %v1412 = vld [vmem:[%s761 + $0x9f8] sm:$0xff]
        %v1413 = vld [vmem:[%s761 + $0xa00] sm:$0xff]
        %v1414 = vld [vmem:[%s761 + $0xa08] sm:$0xff]
        %v1415 = vld [vmem:[%s761 + $0xa10] sm:$0xff]
        %v1416 = vld [vmem:[%s761 + $0xa18] sm:$0xff]
        %v1417 = vld [vmem:[%s761 + $0xa20] sm:$0xff]
        %v1418 = vld [vmem:[%s761 + $0xa28] sm:$0xff]
        %v1419 = vld [vmem:[%s761 + $0xa30] sm:$0xff]
        %v1420 = vld [vmem:[%s761 + $0xa38] sm:$0xff]
        %v1421 = vld [vmem:[%s761 + $0xa40] sm:$0xff]
        %v1422 = vld [vmem:[%s761 + $0xa48] sm:$0xff]
        %v1423 = vld [vmem:[%s761 + $0xa50] sm:$0xff]
        %v1424 = vld [vmem:[%s761 + $0xa58] sm:$0xff]
        %v1425 = vld [vmem:[%s761 + $0xa60] sm:$0xff]
        %v1426 = vld [vmem:[%s761 + $0xa68] sm:$0xff]
        %v1427 = vld [vmem:[%s761 + $0xa70] sm:$0xff]
        %v1428 = vld [vmem:[%s761 + $0xa78] sm:$0xff]
        %v1429 = vld [vmem:[%s761 + $0xa80] sm:$0xff]
        %v1430 = vld [vmem:[%s761 + $0xa88] sm:$0xff]
        %v1431 = vld [vmem:[%s761 + $0xa90] sm:$0xff]
        %v1432 = vld [vmem:[%s761 + $0xa98] sm:$0xff]
        %v1433 = vld [vmem:[%s761 + $0xaa0] sm:$0xff]
        %v1434 = vld [vmem:[%s761 + $0xaa8] sm:$0xff]
        %v1435 = vld [vmem:[%s761 + $0xab0] sm:$0xff]
        %v1436 = vld [vmem:[%s761 + $0xab8] sm:$0xff]
        %v1437 = vld [vmem:[%s761 + $0xac0] sm:$0xff]
        %v1438 = vld [vmem:[%s761 + $0xac8] sm:$0xff]
        %v1439 = vld [vmem:[%s761 + $0xad0] sm:$0xff]
        %v1440 = vld [vmem:[%s761 + $0xad8] sm:$0xff]
        %v1441 = vld [vmem:[%s761 + $0xae0] sm:$0xff]
        %v1442 = vld [vmem:[%s761 + $0xae8] sm:$0xff]
        %v1443 = vld [vmem:[%s761 + $0xaf0] sm:$0xff]
        %v1444 = vld [vmem:[%s761 + $0xaf8] sm:$0xff]
        %v1445 = vld [vmem:[%s761 + $0xb00] sm:$0xff]
        %v1446 = vld [vmem:[%s761 + $0xb08] sm:$0xff]
        %v1447 = vld [vmem:[%s761 + $0xb10] sm:$0xff]
        %v1448 = vld [vmem:[%s761 + $0xb18] sm:$0xff]
        %v1449 = vld [vmem:[%s761 + $0xb20] sm:$0xff]
        %v1450 = vld [vmem:[%s761 + $0xb28] sm:$0xff]
        %v1451 = vld [vmem:[%s761 + $0xb30] sm:$0xff]
        %v1452 = vld [vmem:[%s761 + $0xb38] sm:$0xff]
        %v1453 = vld [vmem:[%s761 + $0xb40] sm:$0xff]
        %v1454 = vld [vmem:[%s761 + $0xb48] sm:$0xff]
        %v1455 = vld [vmem:[%s761 + $0xb50] sm:$0xff]
        %v1456 = vld [vmem:[%s761 + $0xb58] sm:$0xff]
        %v1457 = vld [vmem:[%s761 + $0xb60] sm:$0xff]
        %v1458 = vld [vmem:[%s761 + $0xb68] sm:$0xff]
        %v1459 = vld [vmem:[%s761 + $0xb70] sm:$0xff]
        %v1460 = vld [vmem:[%s761 + $0xb78] sm:$0xff]
        %v1461 = vld [vmem:[%s761 + $0xb80] sm:$0xff]
        %v1462 = vld [vmem:[%s761 + $0xb88] sm:$0xff]
        %v1463 = vld [vmem:[%s761 + $0xb90] sm:$0xff]
        %v1464 = vld [vmem:[%s761 + $0xb98] sm:$0xff]
        %v1465 = vld [vmem:[%s761 + $0xba0] sm:$0xff]
        %v1466 = vld [vmem:[%s761 + $0xba8] sm:$0xff]
        %v1467 = vld [vmem:[%s761 + $0xbb0] sm:$0xff]
        %v1468 = vld [vmem:[%s761 + $0xbb8] sm:$0xff]
        %v1469 = vld [vmem:[%s761 + $0xbc0] sm:$0xff]
        %v1470 = vld [vmem:[%s761 + $0xbc8] sm:$0xff]
        %v1471 = vld [vmem:[%s761 + $0xbd0] sm:$0xff]
        %v1472 = vld [vmem:[%s761 + $0xbd8] sm:$0xff]
        %v1473 = vld [vmem:[%s761 + $0xbe0] sm:$0xff]
        %v1474 = vld [vmem:[%s761 + $0xbe8] sm:$0xff]
        %v1475 = vld [vmem:[%s761 + $0xbf0] sm:$0xff]
        %v1476 = vld [vmem:[%s761 + $0xbf8] sm:$0xff]
        %v1477 = vld [vmem:[%s770] sm:$0xff]
        %v1478 = vld [vmem:[%s770 + $0x8] sm:$0xf]
        %v1481 = vlaneseq
        %v1482 = vshrl.u32 %v1481, 7
        %v1483 = vsub.s32 0, %v1482
        %v1484 = vrot.slane %v1477, %v1483
        %v1485 = vlaneseq
        %v1486 = vshrl.u32 %v1485, 7
        %v1487 = vsub.s32 1, %v1486
        %v1488 = vrot.slane %v1477, %v1487
        %v1489 = vlaneseq
        %v1490 = vshrl.u32 %v1489, 7
        %v1491 = vsub.s32 2, %v1490
        %v1492 = vrot.slane %v1477, %v1491
        %v1493 = vlaneseq
        %v1494 = vshrl.u32 %v1493, 7
        %v1495 = vsub.s32 3, %v1494
        %v1496 = vrot.slane %v1477, %v1495
        %v1497 = vlaneseq
        %v1498 = vshrl.u32 %v1497, 7
        %v1499 = vsub.s32 4, %v1498
        %v1500 = vrot.slane %v1477, %v1499
        %v1501 = vlaneseq
        %v1502 = vshrl.u32 %v1501, 7
        %v1503 = vsub.s32 5, %v1502
        %v1504 = vrot.slane %v1477, %v1503
        %v1505 = vlaneseq
        %v1506 = vshrl.u32 %v1505, 7
        %v1507 = vsub.s32 6, %v1506
        %v1508 = vrot.slane %v1477, %v1507
        %v1509 = vlaneseq
        %v1510 = vshrl.u32 %v1509, 7
        %v1511 = vsub.s32 7, %v1510
        %v1512 = vrot.slane %v1477, %v1511
        %v1513 = vlaneseq
        %v1514 = vshrl.u32 %v1513, 7
        %v1515 = vsub.s32 0, %v1514
        %v1516 = vrot.slane %v1478, %v1515
        %v1517 = vlaneseq
        %v1518 = vshrl.u32 %v1517, 7
        %v1519 = vsub.s32 1, %v1518
        %v1520 = vrot.slane %v1478, %v1519
        %v1521 = vlaneseq
        %v1522 = vshrl.u32 %v1521, 7
        %v1523 = vsub.s32 2, %v1522
        %v1524 = vrot.slane %v1478, %v1523
        %v1525 = vlaneseq
        %v1526 = vshrl.u32 %v1525, 7
        %v1527 = vsub.s32 3, %v1526
        %v1528 = vrot.slane %v1478, %v1527
        %v1925 = vunpack.c.l.b16 %v1093
        %v1926 = vunpack.c.h.b16 %v1093
        %v1927 = vunpack.c.l.b16 %v1094
        %v1928 = vunpack.c.h.b16 %v1094
        %v1929 = vunpack.c.l.b16 %v1095
        %v1930 = vunpack.c.h.b16 %v1095
        %v1931 = vunpack.c.l.b16 %v1096
        %v1932 = vunpack.c.h.b16 %v1096
        %v1933 = vunpack.c.l.b16 %v1097
        %v1934 = vunpack.c.h.b16 %v1097
        %v1935 = vunpack.c.l.b16 %v1098
        %v1936 = vunpack.c.h.b16 %v1098
        %v1937 = vunpack.c.l.b16 %v1099
        %v1938 = vunpack.c.h.b16 %v1099
        %v1939 = vunpack.c.l.b16 %v1100
        %v1940 = vunpack.c.h.b16 %v1100
        %v1941 = vunpack.c.l.b16 %v1101
        %v1942 = vunpack.c.h.b16 %v1101
        %v1943 = vunpack.c.l.b16 %v1102
        %v1944 = vunpack.c.h.b16 %v1102
        %v1945 = vunpack.c.l.b16 %v1103
        %v1946 = vunpack.c.h.b16 %v1103
        %v1947 = vunpack.c.l.b16 %v1104
        %v1948 = vunpack.c.h.b16 %v1104
        %v1949 = vunpack.c.l.b16 %v1105
        %v1950 = vunpack.c.h.b16 %v1105
        %v1951 = vunpack.c.l.b16 %v1106
        %v1952 = vunpack.c.h.b16 %v1106
        %v1953 = vunpack.c.l.b16 %v1107
        %v1954 = vunpack.c.h.b16 %v1107
        %v1955 = vunpack.c.l.b16 %v1108
        %v1956 = vunpack.c.h.b16 %v1108
        %v1957 = vunpack.c.l.b16 %v1109
        %v1958 = vunpack.c.h.b16 %v1109
        %v1959 = vunpack.c.l.b16 %v1110
        %v1960 = vunpack.c.h.b16 %v1110
        %v1961 = vunpack.c.l.b16 %v1111
        %v1962 = vunpack.c.h.b16 %v1111
        %v1963 = vunpack.c.l.b16 %v1112
        %v1964 = vunpack.c.h.b16 %v1112
        %v1965 = vunpack.c.l.b16 %v1113
        %v1966 = vunpack.c.h.b16 %v1113
        %v1967 = vunpack.c.l.b16 %v1114
        %v1968 = vunpack.c.h.b16 %v1114
        %v1969 = vunpack.c.l.b16 %v1115
        %v1970 = vunpack.c.h.b16 %v1115
        %v1971 = vunpack.c.l.b16 %v1116
        %v1972 = vunpack.c.h.b16 %v1116
        %v1973 = vunpack.c.l.b16 %v1117
        %v1974 = vunpack.c.h.b16 %v1117
        %v1975 = vunpack.c.l.b16 %v1118
        %v1976 = vunpack.c.h.b16 %v1118
        %v1977 = vunpack.c.l.b16 %v1119
        %v1978 = vunpack.c.h.b16 %v1119
        %v1979 = vunpack.c.l.b16 %v1120
        %v1980 = vunpack.c.h.b16 %v1120
        %v1981 = vunpack.c.l.b16 %v1121
        %v1982 = vunpack.c.h.b16 %v1121
        %v1983 = vunpack.c.l.b16 %v1122
        %v1984 = vunpack.c.h.b16 %v1122
        %v1985 = vunpack.c.l.b16 %v1123
        %v1986 = vunpack.c.h.b16 %v1123
        %v1987 = vunpack.c.l.b16 %v1124
        %v1988 = vunpack.c.h.b16 %v1124
        %v1989 = vunpack.c.l.b16 %v1125
        %v1990 = vunpack.c.h.b16 %v1125
        %v1991 = vunpack.c.l.b16 %v1126
        %v1992 = vunpack.c.h.b16 %v1126
        %v1993 = vunpack.c.l.b16 %v1127
        %v1994 = vunpack.c.h.b16 %v1127
        %v1995 = vunpack.c.l.b16 %v1128
        %v1996 = vunpack.c.h.b16 %v1128
        %v1997 = vunpack.c.l.b16 %v1129
        %v1998 = vunpack.c.h.b16 %v1129
        %v1999 = vunpack.c.l.b16 %v1130
        %v2000 = vunpack.c.h.b16 %v1130
        %v2001 = vunpack.c.l.b16 %v1131
        %v2002 = vunpack.c.h.b16 %v1131
        %v2003 = vunpack.c.l.b16 %v1132
        %v2004 = vunpack.c.h.b16 %v1132
        %v2005 = vunpack.c.l.b16 %v1133
        %v2006 = vunpack.c.h.b16 %v1133
        %v2007 = vunpack.c.l.b16 %v1134
        %v2008 = vunpack.c.h.b16 %v1134
        %v2009 = vunpack.c.l.b16 %v1135
        %v2010 = vunpack.c.h.b16 %v1135
        %v2011 = vunpack.c.l.b16 %v1136
        %v2012 = vunpack.c.h.b16 %v1136
        %v2013 = vunpack.c.l.b16 %v1137
        %v2014 = vunpack.c.h.b16 %v1137
        %v2015 = vunpack.c.l.b16 %v1138
        %v2016 = vunpack.c.h.b16 %v1138
        %v2017 = vunpack.c.l.b16 %v1139
        %v2018 = vunpack.c.h.b16 %v1139
        %v2019 = vunpack.c.l.b16 %v1140
        %v2020 = vunpack.c.h.b16 %v1140
        %v2021 = vunpack.c.l.b16 %v1141
        %v2022 = vunpack.c.h.b16 %v1141
        %v2023 = vunpack.c.l.b16 %v1142
        %v2024 = vunpack.c.h.b16 %v1142
        %v2025 = vunpack.c.l.b16 %v1143
        %v2026 = vunpack.c.h.b16 %v1143
        %v2027 = vunpack.c.l.b16 %v1144
        %v2028 = vunpack.c.h.b16 %v1144
        %v2029 = vunpack.c.l.b16 %v1145
        %v2030 = vunpack.c.h.b16 %v1145
        %v2031 = vunpack.c.l.b16 %v1146
        %v2032 = vunpack.c.h.b16 %v1146
        %v2033 = vunpack.c.l.b16 %v1147
        %v2034 = vunpack.c.h.b16 %v1147
        %v2035 = vunpack.c.l.b16 %v1148
        %v2036 = vunpack.c.h.b16 %v1148
        %v2037 = vunpack.c.l.b16 %v1149
        %v2038 = vunpack.c.h.b16 %v1149
        %v2039 = vunpack.c.l.b16 %v1150
        %v2040 = vunpack.c.h.b16 %v1150
        %v2041 = vunpack.c.l.b16 %v1151
        %v2042 = vunpack.c.h.b16 %v1151
        %v2043 = vunpack.c.l.b16 %v1152
        %v2044 = vunpack.c.h.b16 %v1152
        %v2045 = vunpack.c.l.b16 %v1153
        %v2046 = vunpack.c.h.b16 %v1153
        %v2047 = vunpack.c.l.b16 %v1154
        %v2048 = vunpack.c.h.b16 %v1154
        %v2049 = vunpack.c.l.b16 %v1155
        %v2050 = vunpack.c.h.b16 %v1155
        %v2051 = vunpack.c.l.b16 %v1156
        %v2052 = vunpack.c.h.b16 %v1156
        %v2053 = vunpack.c.l.b16 %v1157
        %v2054 = vunpack.c.h.b16 %v1157
        %v2055 = vunpack.c.l.b16 %v1158
        %v2056 = vunpack.c.h.b16 %v1158
        %v2057 = vunpack.c.l.b16 %v1159
        %v2058 = vunpack.c.h.b16 %v1159
        %v2059 = vunpack.c.l.b16 %v1160
        %v2060 = vunpack.c.h.b16 %v1160
        %v2061 = vunpack.c.l.b16 %v1161
        %v2062 = vunpack.c.h.b16 %v1161
        %v2063 = vunpack.c.l.b16 %v1162
        %v2064 = vunpack.c.h.b16 %v1162
        %v2065 = vunpack.c.l.b16 %v1163
        %v2066 = vunpack.c.h.b16 %v1163
        %v2067 = vunpack.c.l.b16 %v1164
        %v2068 = vunpack.c.h.b16 %v1164
        %v2069 = vunpack.c.l.b16 %v1165
        %v2070 = vunpack.c.h.b16 %v1165
        %v2071 = vunpack.c.l.b16 %v1166
        %v2072 = vunpack.c.h.b16 %v1166
        %v2073 = vunpack.c.l.b16 %v1167
        %v2074 = vunpack.c.h.b16 %v1167
        %v2075 = vunpack.c.l.b16 %v1168
        %v2076 = vunpack.c.h.b16 %v1168
        %v2077 = vunpack.c.l.b16 %v1169
        %v2078 = vunpack.c.h.b16 %v1169
        %v2079 = vunpack.c.l.b16 %v1170
        %v2080 = vunpack.c.h.b16 %v1170
        %v2081 = vunpack.c.l.b16 %v1171
        %v2082 = vunpack.c.h.b16 %v1171
        %v2083 = vunpack.c.l.b16 %v1172
        %v2084 = vunpack.c.h.b16 %v1172
        %v2085 = vunpack.c.l.b16 %v1173
        %v2086 = vunpack.c.h.b16 %v1173
        %v2087 = vunpack.c.l.b16 %v1174
        %v2088 = vunpack.c.h.b16 %v1174
        %v2089 = vunpack.c.l.b16 %v1175
        %v2090 = vunpack.c.h.b16 %v1175
        %v2091 = vunpack.c.l.b16 %v1176
        %v2092 = vunpack.c.h.b16 %v1176
        %v2093 = vunpack.c.l.b16 %v1177
        %v2094 = vunpack.c.h.b16 %v1177
        %v2095 = vunpack.c.l.b16 %v1178
        %v2096 = vunpack.c.h.b16 %v1178
        %v2097 = vunpack.c.l.b16 %v1179
        %v2098 = vunpack.c.h.b16 %v1179
        %v2099 = vunpack.c.l.b16 %v1180
        %v2100 = vunpack.c.h.b16 %v1180
        %v2101 = vunpack.c.l.b16 %v1181
        %v2102 = vunpack.c.h.b16 %v1181
        %v2103 = vunpack.c.l.b16 %v1182
        %v2104 = vunpack.c.h.b16 %v1182
        %v2105 = vunpack.c.l.b16 %v1183
        %v2106 = vunpack.c.h.b16 %v1183
        %v2107 = vunpack.c.l.b16 %v1184
        %v2108 = vunpack.c.h.b16 %v1184
        %v2109 = vunpack.c.l.b16 %v1185
        %v2110 = vunpack.c.h.b16 %v1185
        %v2111 = vunpack.c.l.b16 %v1186
        %v2112 = vunpack.c.h.b16 %v1186
        %v2113 = vunpack.c.l.b16 %v1187
        %v2114 = vunpack.c.h.b16 %v1187
        %v2115 = vunpack.c.l.b16 %v1188
        %v2116 = vunpack.c.h.b16 %v1188
        %v2117 = vunpack.c.l.b16 %v1189
        %v2118 = vunpack.c.h.b16 %v1189
        %v2119 = vunpack.c.l.b16 %v1190
        %v2120 = vunpack.c.h.b16 %v1190
        %v2121 = vunpack.c.l.b16 %v1191
        %v2122 = vunpack.c.h.b16 %v1191
        %v2123 = vunpack.c.l.b16 %v1192
        %v2124 = vunpack.c.h.b16 %v1192
        %v2125 = vunpack.c.l.b16 %v1193
        %v2126 = vunpack.c.h.b16 %v1193
        %v2127 = vunpack.c.l.b16 %v1194
        %v2128 = vunpack.c.h.b16 %v1194
        %v2129 = vunpack.c.l.b16 %v1195
        %v2130 = vunpack.c.h.b16 %v1195
        %v2131 = vunpack.c.l.b16 %v1196
        %v2132 = vunpack.c.h.b16 %v1196
        %v2133 = vunpack.c.l.b16 %v1197
        %v2134 = vunpack.c.h.b16 %v1197
        %v2135 = vunpack.c.l.b16 %v1198
        %v2136 = vunpack.c.h.b16 %v1198
        %v2137 = vunpack.c.l.b16 %v1199
        %v2138 = vunpack.c.h.b16 %v1199
        %v2139 = vunpack.c.l.b16 %v1200
        %v2140 = vunpack.c.h.b16 %v1200
        %v2141 = vunpack.c.l.b16 %v1201
        %v2142 = vunpack.c.h.b16 %v1201
        %v2143 = vunpack.c.l.b16 %v1202
        %v2144 = vunpack.c.h.b16 %v1202
        %v2145 = vunpack.c.l.b16 %v1203
        %v2146 = vunpack.c.h.b16 %v1203
        %v2147 = vunpack.c.l.b16 %v1204
        %v2148 = vunpack.c.h.b16 %v1204
        %v2149 = vunpack.c.l.b16 %v1205
        %v2150 = vunpack.c.h.b16 %v1205
        %v2151 = vunpack.c.l.b16 %v1206
        %v2152 = vunpack.c.h.b16 %v1206
        %v2153 = vunpack.c.l.b16 %v1207
        %v2154 = vunpack.c.h.b16 %v1207
        %v2155 = vunpack.c.l.b16 %v1208
        %v2156 = vunpack.c.h.b16 %v1208
        %v2157 = vunpack.c.l.b16 %v1209
        %v2158 = vunpack.c.h.b16 %v1209
        %v2159 = vunpack.c.l.b16 %v1210
        %v2160 = vunpack.c.h.b16 %v1210
        %v2161 = vunpack.c.l.b16 %v1211
        %v2162 = vunpack.c.h.b16 %v1211
        %v2163 = vunpack.c.l.b16 %v1212
        %v2164 = vunpack.c.h.b16 %v1212
        %v2165 = vunpack.c.l.b16 %v1213
        %v2166 = vunpack.c.h.b16 %v1213
        %v2167 = vunpack.c.l.b16 %v1214
        %v2168 = vunpack.c.h.b16 %v1214
        %v2169 = vunpack.c.l.b16 %v1215
        %v2170 = vunpack.c.h.b16 %v1215
        %v2171 = vunpack.c.l.b16 %v1216
        %v2172 = vunpack.c.h.b16 %v1216
        %v2173 = vunpack.c.l.b16 %v1217
        %v2174 = vunpack.c.h.b16 %v1217
        %v2175 = vunpack.c.l.b16 %v1218
        %v2176 = vunpack.c.h.b16 %v1218
        %v2177 = vunpack.c.l.b16 %v1219
        %v2178 = vunpack.c.h.b16 %v1219
        %v2179 = vunpack.c.l.b16 %v1220
        %v2180 = vunpack.c.h.b16 %v1220
        %v2181 = vunpack.c.l.b16 %v1221
        %v2182 = vunpack.c.h.b16 %v1221
        %v2183 = vunpack.c.l.b16 %v1222
        %v2184 = vunpack.c.h.b16 %v1222
        %v2185 = vunpack.c.l.b16 %v1223
        %v2186 = vunpack.c.h.b16 %v1223
        %v2187 = vunpack.c.l.b16 %v1224
        %v2188 = vunpack.c.h.b16 %v1224
        %v2189 = vunpack.c.l.b16 %v1225
        %v2190 = vunpack.c.h.b16 %v1225
        %v2191 = vunpack.c.l.b16 %v1226
        %v2192 = vunpack.c.h.b16 %v1226
        %v2193 = vunpack.c.l.b16 %v1227
        %v2194 = vunpack.c.h.b16 %v1227
        %v2195 = vunpack.c.l.b16 %v1228
        %v2196 = vunpack.c.h.b16 %v1228
        %v2197 = vunpack.c.l.b16 %v1229
        %v2198 = vunpack.c.h.b16 %v1229
        %v2199 = vunpack.c.l.b16 %v1230
        %v2200 = vunpack.c.h.b16 %v1230
        %v2201 = vunpack.c.l.b16 %v1231
        %v2202 = vunpack.c.h.b16 %v1231
        %v2203 = vunpack.c.l.b16 %v1232
        %v2204 = vunpack.c.h.b16 %v1232
        %v2205 = vunpack.c.l.b16 %v1233
        %v2206 = vunpack.c.h.b16 %v1233
        %v2207 = vunpack.c.l.b16 %v1234
        %v2208 = vunpack.c.h.b16 %v1234
        %v2209 = vunpack.c.l.b16 %v1235
        %v2210 = vunpack.c.h.b16 %v1235
        %v2211 = vunpack.c.l.b16 %v1236
        %v2212 = vunpack.c.h.b16 %v1236
        %v2213 = vunpack.c.l.b16 %v1237
        %v2214 = vunpack.c.h.b16 %v1237
        %v2215 = vunpack.c.l.b16 %v1238
        %v2216 = vunpack.c.h.b16 %v1238
        %v2217 = vunpack.c.l.b16 %v1239
        %v2218 = vunpack.c.h.b16 %v1239
        %v2219 = vunpack.c.l.b16 %v1240
        %v2220 = vunpack.c.h.b16 %v1240
        %v2221 = vunpack.c.l.b16 %v1241
        %v2222 = vunpack.c.h.b16 %v1241
        %v2223 = vunpack.c.l.b16 %v1242
        %v2224 = vunpack.c.h.b16 %v1242
        %v2225 = vunpack.c.l.b16 %v1243
        %v2226 = vunpack.c.h.b16 %v1243
        %v2227 = vunpack.c.l.b16 %v1244
        %v2228 = vunpack.c.h.b16 %v1244
        %v2229 = vunpack.c.l.b16 %v1245
        %v2230 = vunpack.c.h.b16 %v1245
        %v2231 = vunpack.c.l.b16 %v1246
        %v2232 = vunpack.c.h.b16 %v1246
        %v2233 = vunpack.c.l.b16 %v1247
        %v2234 = vunpack.c.h.b16 %v1247
        %v2235 = vunpack.c.l.b16 %v1248
        %v2236 = vunpack.c.h.b16 %v1248
        %v2237 = vunpack.c.l.b16 %v1249
        %v2238 = vunpack.c.h.b16 %v1249
        %v2239 = vunpack.c.l.b16 %v1250
        %v2240 = vunpack.c.h.b16 %v1250
        %v2241 = vunpack.c.l.b16 %v1251
        %v2242 = vunpack.c.h.b16 %v1251
        %v2243 = vunpack.c.l.b16 %v1252
        %v2244 = vunpack.c.h.b16 %v1252
        %v2245 = vunpack.c.l.b16 %v1253
        %v2246 = vunpack.c.h.b16 %v1253
        %v2247 = vunpack.c.l.b16 %v1254
        %v2248 = vunpack.c.h.b16 %v1254
        %v2249 = vunpack.c.l.b16 %v1255
        %v2250 = vunpack.c.h.b16 %v1255
        %v2251 = vunpack.c.l.b16 %v1256
        %v2252 = vunpack.c.h.b16 %v1256
        %v2253 = vunpack.c.l.b16 %v1257
        %v2254 = vunpack.c.h.b16 %v1257
        %v2255 = vunpack.c.l.b16 %v1258
        %v2256 = vunpack.c.h.b16 %v1258
        %v2257 = vunpack.c.l.b16 %v1259
        %v2258 = vunpack.c.h.b16 %v1259
        %v2259 = vunpack.c.l.b16 %v1260
        %v2260 = vunpack.c.h.b16 %v1260
        %v2261 = vunpack.c.l.b16 %v1261
        %v2262 = vunpack.c.h.b16 %v1261
        %v2263 = vunpack.c.l.b16 %v1262
        %v2264 = vunpack.c.h.b16 %v1262
        %v2265 = vunpack.c.l.b16 %v1263
        %v2266 = vunpack.c.h.b16 %v1263
        %v2267 = vunpack.c.l.b16 %v1264
        %v2268 = vunpack.c.h.b16 %v1264
        %v2269 = vunpack.c.l.b16 %v1265
        %v2270 = vunpack.c.h.b16 %v1265
        %v2271 = vunpack.c.l.b16 %v1266
        %v2272 = vunpack.c.h.b16 %v1266
        %v2273 = vunpack.c.l.b16 %v1267
        %v2274 = vunpack.c.h.b16 %v1267
        %v2275 = vunpack.c.l.b16 %v1268
        %v2276 = vunpack.c.h.b16 %v1268
        %v2277 = vunpack.c.l.b16 %v1269
        %v2278 = vunpack.c.h.b16 %v1269
        %v2279 = vunpack.c.l.b16 %v1270
        %v2280 = vunpack.c.h.b16 %v1270
        %v2281 = vunpack.c.l.b16 %v1271
        %v2282 = vunpack.c.h.b16 %v1271
        %v2283 = vunpack.c.l.b16 %v1272
        %v2284 = vunpack.c.h.b16 %v1272
        %v2285 = vunpack.c.l.b16 %v1273
        %v2286 = vunpack.c.h.b16 %v1273
        %v2287 = vunpack.c.l.b16 %v1274
        %v2288 = vunpack.c.h.b16 %v1274
        %v2289 = vunpack.c.l.b16 %v1275
        %v2290 = vunpack.c.h.b16 %v1275
        %v2291 = vunpack.c.l.b16 %v1276
        %v2292 = vunpack.c.h.b16 %v1276
        %v2293 = vunpack.c.l.b16 %v1277
        %v2294 = vunpack.c.h.b16 %v1277
        %v2295 = vunpack.c.l.b16 %v1278
        %v2296 = vunpack.c.h.b16 %v1278
        %v2297 = vunpack.c.l.b16 %v1279
        %v2298 = vunpack.c.h.b16 %v1279
        %v2299 = vunpack.c.l.b16 %v1280
        %v2300 = vunpack.c.h.b16 %v1280
        %v2301 = vunpack.c.l.b16 %v1281
        %v2302 = vunpack.c.h.b16 %v1281
        %v2303 = vunpack.c.l.b16 %v1282
        %v2304 = vunpack.c.h.b16 %v1282
        %v2305 = vunpack.c.l.b16 %v1283
        %v2306 = vunpack.c.h.b16 %v1283
        %v2307 = vunpack.c.l.b16 %v1284
        %v2308 = vunpack.c.h.b16 %v1284
        %v2309 = vunpack.c.l.b16 %v1285
        %v2310 = vunpack.c.h.b16 %v1285
        %v2311 = vunpack.c.l.b16 %v1286
        %v2312 = vunpack.c.h.b16 %v1286
        %v2313 = vunpack.c.l.b16 %v1287
        %v2314 = vunpack.c.h.b16 %v1287
        %v2315 = vunpack.c.l.b16 %v1288
        %v2316 = vunpack.c.h.b16 %v1288
        %v2317 = vunpack.c.l.b16 %v1289
        %v2318 = vunpack.c.h.b16 %v1289
        %v2319 = vunpack.c.l.b16 %v1290
        %v2320 = vunpack.c.h.b16 %v1290
        %v2321 = vunpack.c.l.b16 %v1291
        %v2322 = vunpack.c.h.b16 %v1291
        %v2323 = vunpack.c.l.b16 %v1292
        %v2324 = vunpack.c.h.b16 %v1292
        %v2325 = vunpack.c.l.b16 %v1293
        %v2326 = vunpack.c.h.b16 %v1293
        %v2327 = vunpack.c.l.b16 %v1294
        %v2328 = vunpack.c.h.b16 %v1294
        %v2329 = vunpack.c.l.b16 %v1295
        %v2330 = vunpack.c.h.b16 %v1295
        %v2331 = vunpack.c.l.b16 %v1296
        %v2332 = vunpack.c.h.b16 %v1296
        %v2333 = vunpack.c.l.b16 %v1297
        %v2334 = vunpack.c.h.b16 %v1297
        %v2335 = vunpack.c.l.b16 %v1298
        %v2336 = vunpack.c.h.b16 %v1298
        %v2337 = vunpack.c.l.b16 %v1299
        %v2338 = vunpack.c.h.b16 %v1299
        %v2339 = vunpack.c.l.b16 %v1300
        %v2340 = vunpack.c.h.b16 %v1300
        %v2341 = vunpack.c.l.b16 %v1301
        %v2342 = vunpack.c.h.b16 %v1301
        %v2343 = vunpack.c.l.b16 %v1302
        %v2344 = vunpack.c.h.b16 %v1302
        %v2345 = vunpack.c.l.b16 %v1303
        %v2346 = vunpack.c.h.b16 %v1303
        %v2347 = vunpack.c.l.b16 %v1304
        %v2348 = vunpack.c.h.b16 %v1304
        %v2349 = vunpack.c.l.b16 %v1305
        %v2350 = vunpack.c.h.b16 %v1305
        %v2351 = vunpack.c.l.b16 %v1306
        %v2352 = vunpack.c.h.b16 %v1306
        %v2353 = vunpack.c.l.b16 %v1307
        %v2354 = vunpack.c.h.b16 %v1307
        %v2355 = vunpack.c.l.b16 %v1308
        %v2356 = vunpack.c.h.b16 %v1308
        %v2357 = vunpack.c.l.b16 %v1309
        %v2358 = vunpack.c.h.b16 %v1309
        %v2359 = vunpack.c.l.b16 %v1310
        %v2360 = vunpack.c.h.b16 %v1310
        %v2361 = vunpack.c.l.b16 %v1311
        %v2362 = vunpack.c.h.b16 %v1311
        %v2363 = vunpack.c.l.b16 %v1312
        %v2364 = vunpack.c.h.b16 %v1312
        %v2365 = vunpack.c.l.b16 %v1313
        %v2366 = vunpack.c.h.b16 %v1313
        %v2367 = vunpack.c.l.b16 %v1314
        %v2368 = vunpack.c.h.b16 %v1314
        %v2369 = vunpack.c.l.b16 %v1315
        %v2370 = vunpack.c.h.b16 %v1315
        %v2371 = vunpack.c.l.b16 %v1316
        %v2372 = vunpack.c.h.b16 %v1316
        %v2373 = vunpack.c.l.b16 %v1317
        %v2374 = vunpack.c.h.b16 %v1317
        %v2375 = vunpack.c.l.b16 %v1318
        %v2376 = vunpack.c.h.b16 %v1318
        %v2377 = vunpack.c.l.b16 %v1319
        %v2378 = vunpack.c.h.b16 %v1319
        %v2379 = vunpack.c.l.b16 %v1320
        %v2380 = vunpack.c.h.b16 %v1320
        %v2381 = vunpack.c.l.b16 %v1321
        %v2382 = vunpack.c.h.b16 %v1321
        %v2383 = vunpack.c.l.b16 %v1322
        %v2384 = vunpack.c.h.b16 %v1322
        %v2385 = vunpack.c.l.b16 %v1323
        %v2386 = vunpack.c.h.b16 %v1323
        %v2387 = vunpack.c.l.b16 %v1324
        %v2388 = vunpack.c.h.b16 %v1324
        %v2389 = vunpack.c.l.b16 %v1325
        %v2390 = vunpack.c.h.b16 %v1325
        %v2391 = vunpack.c.l.b16 %v1326
        %v2392 = vunpack.c.h.b16 %v1326
        %v2393 = vunpack.c.l.b16 %v1327
        %v2394 = vunpack.c.h.b16 %v1327
        %v2395 = vunpack.c.l.b16 %v1328
        %v2396 = vunpack.c.h.b16 %v1328
        %v2397 = vunpack.c.l.b16 %v1329
        %v2398 = vunpack.c.h.b16 %v1329
        %v2399 = vunpack.c.l.b16 %v1330
        %v2400 = vunpack.c.h.b16 %v1330
        %v2401 = vunpack.c.l.b16 %v1331
        %v2402 = vunpack.c.h.b16 %v1331
        %v2403 = vunpack.c.l.b16 %v1332
        %v2404 = vunpack.c.h.b16 %v1332
        %v2405 = vunpack.c.l.b16 %v1333
        %v2406 = vunpack.c.h.b16 %v1333
        %v2407 = vunpack.c.l.b16 %v1334
        %v2408 = vunpack.c.h.b16 %v1334
        %v2409 = vunpack.c.l.b16 %v1335
        %v2410 = vunpack.c.h.b16 %v1335
        %v2411 = vunpack.c.l.b16 %v1336
        %v2412 = vunpack.c.h.b16 %v1336
        %v2413 = vunpack.c.l.b16 %v1337
        %v2414 = vunpack.c.h.b16 %v1337
        %v2415 = vunpack.c.l.b16 %v1338
        %v2416 = vunpack.c.h.b16 %v1338
        %v2417 = vunpack.c.l.b16 %v1339
        %v2418 = vunpack.c.h.b16 %v1339
        %v2419 = vunpack.c.l.b16 %v1340
        %v2420 = vunpack.c.h.b16 %v1340
        %v2421 = vunpack.c.l.b16 %v1341
        %v2422 = vunpack.c.h.b16 %v1341
        %v2423 = vunpack.c.l.b16 %v1342
        %v2424 = vunpack.c.h.b16 %v1342
        %v2425 = vunpack.c.l.b16 %v1343
        %v2426 = vunpack.c.h.b16 %v1343
        %v2427 = vunpack.c.l.b16 %v1344
        %v2428 = vunpack.c.h.b16 %v1344
        %v2429 = vunpack.c.l.b16 %v1345
        %v2430 = vunpack.c.h.b16 %v1345
        %v2431 = vunpack.c.l.b16 %v1346
        %v2432 = vunpack.c.h.b16 %v1346
        %v2433 = vunpack.c.l.b16 %v1347
        %v2434 = vunpack.c.h.b16 %v1347
        %v2435 = vunpack.c.l.b16 %v1348
        %v2436 = vunpack.c.h.b16 %v1348
        %v2437 = vunpack.c.l.b16 %v1349
        %v2438 = vunpack.c.h.b16 %v1349
        %v2439 = vunpack.c.l.b16 %v1350
        %v2440 = vunpack.c.h.b16 %v1350
        %v2441 = vunpack.c.l.b16 %v1351
        %v2442 = vunpack.c.h.b16 %v1351
        %v2443 = vunpack.c.l.b16 %v1352
        %v2444 = vunpack.c.h.b16 %v1352
        %v2445 = vunpack.c.l.b16 %v1353
        %v2446 = vunpack.c.h.b16 %v1353
        %v2447 = vunpack.c.l.b16 %v1354
        %v2448 = vunpack.c.h.b16 %v1354
        %v2449 = vunpack.c.l.b16 %v1355
        %v2450 = vunpack.c.h.b16 %v1355
        %v2451 = vunpack.c.l.b16 %v1356
        %v2452 = vunpack.c.h.b16 %v1356
        %v2453 = vunpack.c.l.b16 %v1357
        %v2454 = vunpack.c.h.b16 %v1357
        %v2455 = vunpack.c.l.b16 %v1358
        %v2456 = vunpack.c.h.b16 %v1358
        %v2457 = vunpack.c.l.b16 %v1359
        %v2458 = vunpack.c.h.b16 %v1359
        %v2459 = vunpack.c.l.b16 %v1360
        %v2460 = vunpack.c.h.b16 %v1360
        %v2461 = vunpack.c.l.b16 %v1361
        %v2462 = vunpack.c.h.b16 %v1361
        %v2463 = vunpack.c.l.b16 %v1362
        %v2464 = vunpack.c.h.b16 %v1362
        %v2465 = vunpack.c.l.b16 %v1363
        %v2466 = vunpack.c.h.b16 %v1363
        %v2467 = vunpack.c.l.b16 %v1364
        %v2468 = vunpack.c.h.b16 %v1364
        %v2469 = vunpack.c.l.b16 %v1365
        %v2470 = vunpack.c.h.b16 %v1365
        %v2471 = vunpack.c.l.b16 %v1366
        %v2472 = vunpack.c.h.b16 %v1366
        %v2473 = vunpack.c.l.b16 %v1367
        %v2474 = vunpack.c.h.b16 %v1367
        %v2475 = vunpack.c.l.b16 %v1368
        %v2476 = vunpack.c.h.b16 %v1368
        %v2477 = vunpack.c.l.b16 %v1369
        %v2478 = vunpack.c.h.b16 %v1369
        %v2479 = vunpack.c.l.b16 %v1370
        %v2480 = vunpack.c.h.b16 %v1370
        %v2481 = vunpack.c.l.b16 %v1371
        %v2482 = vunpack.c.h.b16 %v1371
        %v2483 = vunpack.c.l.b16 %v1372
        %v2484 = vunpack.c.h.b16 %v1372
        %v2485 = vunpack.c.l.b16 %v1373
        %v2486 = vunpack.c.h.b16 %v1373
        %v2487 = vunpack.c.l.b16 %v1374
        %v2488 = vunpack.c.h.b16 %v1374
        %v2489 = vunpack.c.l.b16 %v1375
        %v2490 = vunpack.c.h.b16 %v1375
        %v2491 = vunpack.c.l.b16 %v1376
        %v2492 = vunpack.c.h.b16 %v1376
        %v2493 = vunpack.c.l.b16 %v1377
        %v2494 = vunpack.c.h.b16 %v1377
        %v2495 = vunpack.c.l.b16 %v1378
        %v2496 = vunpack.c.h.b16 %v1378
        %v2497 = vunpack.c.l.b16 %v1379
        %v2498 = vunpack.c.h.b16 %v1379
        %v2499 = vunpack.c.l.b16 %v1380
        %v2500 = vunpack.c.h.b16 %v1380
        %v2501 = vunpack.c.l.b16 %v1381
        %v2502 = vunpack.c.h.b16 %v1381
        %v2503 = vunpack.c.l.b16 %v1382
        %v2504 = vunpack.c.h.b16 %v1382
        %v2505 = vunpack.c.l.b16 %v1383
        %v2506 = vunpack.c.h.b16 %v1383
        %v2507 = vunpack.c.l.b16 %v1384
        %v2508 = vunpack.c.h.b16 %v1384
        %v2509 = vunpack.c.l.b16 %v1385
        %v2510 = vunpack.c.h.b16 %v1385
        %v2511 = vunpack.c.l.b16 %v1386
        %v2512 = vunpack.c.h.b16 %v1386
        %v2513 = vunpack.c.l.b16 %v1387
        %v2514 = vunpack.c.h.b16 %v1387
        %v2515 = vunpack.c.l.b16 %v1388
        %v2516 = vunpack.c.h.b16 %v1388
        %v2517 = vunpack.c.l.b16 %v1389
        %v2518 = vunpack.c.h.b16 %v1389
        %v2519 = vunpack.c.l.b16 %v1390
        %v2520 = vunpack.c.h.b16 %v1390
        %v2521 = vunpack.c.l.b16 %v1391
        %v2522 = vunpack.c.h.b16 %v1391
        %v2523 = vunpack.c.l.b16 %v1392
        %v2524 = vunpack.c.h.b16 %v1392
        %v2525 = vunpack.c.l.b16 %v1393
        %v2526 = vunpack.c.h.b16 %v1393
        %v2527 = vunpack.c.l.b16 %v1394
        %v2528 = vunpack.c.h.b16 %v1394
        %v2529 = vunpack.c.l.b16 %v1395
        %v2530 = vunpack.c.h.b16 %v1395
        %v2531 = vunpack.c.l.b16 %v1396
        %v2532 = vunpack.c.h.b16 %v1396
        %v2533 = vunpack.c.l.b16 %v1397
        %v2534 = vunpack.c.h.b16 %v1397
        %v2535 = vunpack.c.l.b16 %v1398
        %v2536 = vunpack.c.h.b16 %v1398
        %v2537 = vunpack.c.l.b16 %v1399
        %v2538 = vunpack.c.h.b16 %v1399
        %v2539 = vunpack.c.l.b16 %v1400
        %v2540 = vunpack.c.h.b16 %v1400
        %v2541 = vunpack.c.l.b16 %v1401
        %v2542 = vunpack.c.h.b16 %v1401
        %v2543 = vunpack.c.l.b16 %v1402
        %v2544 = vunpack.c.h.b16 %v1402
        %v2545 = vunpack.c.l.b16 %v1403
        %v2546 = vunpack.c.h.b16 %v1403
        %v2547 = vunpack.c.l.b16 %v1404
        %v2548 = vunpack.c.h.b16 %v1404
        %v2549 = vunpack.c.l.b16 %v1405
        %v2550 = vunpack.c.h.b16 %v1405
        %v2551 = vunpack.c.l.b16 %v1406
        %v2552 = vunpack.c.h.b16 %v1406
        %v2553 = vunpack.c.l.b16 %v1407
        %v2554 = vunpack.c.h.b16 %v1407
        %v2555 = vunpack.c.l.b16 %v1408
        %v2556 = vunpack.c.h.b16 %v1408
        %v2557 = vunpack.c.l.b16 %v1409
        %v2558 = vunpack.c.h.b16 %v1409
        %v2559 = vunpack.c.l.b16 %v1410
        %v2560 = vunpack.c.h.b16 %v1410
        %v2561 = vunpack.c.l.b16 %v1411
        %v2562 = vunpack.c.h.b16 %v1411
        %v2563 = vunpack.c.l.b16 %v1412
        %v2564 = vunpack.c.h.b16 %v1412
        %v2565 = vunpack.c.l.b16 %v1413
        %v2566 = vunpack.c.h.b16 %v1413
        %v2567 = vunpack.c.l.b16 %v1414
        %v2568 = vunpack.c.h.b16 %v1414
        %v2569 = vunpack.c.l.b16 %v1415
        %v2570 = vunpack.c.h.b16 %v1415
        %v2571 = vunpack.c.l.b16 %v1416
        %v2572 = vunpack.c.h.b16 %v1416
        %v2573 = vunpack.c.l.b16 %v1417
        %v2574 = vunpack.c.h.b16 %v1417
        %v2575 = vunpack.c.l.b16 %v1418
        %v2576 = vunpack.c.h.b16 %v1418
        %v2577 = vunpack.c.l.b16 %v1419
        %v2578 = vunpack.c.h.b16 %v1419
        %v2579 = vunpack.c.l.b16 %v1420
        %v2580 = vunpack.c.h.b16 %v1420
        %v2581 = vunpack.c.l.b16 %v1421
        %v2582 = vunpack.c.h.b16 %v1421
        %v2583 = vunpack.c.l.b16 %v1422
        %v2584 = vunpack.c.h.b16 %v1422
        %v2585 = vunpack.c.l.b16 %v1423
        %v2586 = vunpack.c.h.b16 %v1423
        %v2587 = vunpack.c.l.b16 %v1424
        %v2588 = vunpack.c.h.b16 %v1424
        %v2589 = vunpack.c.l.b16 %v1425
        %v2590 = vunpack.c.h.b16 %v1425
        %v2591 = vunpack.c.l.b16 %v1426
        %v2592 = vunpack.c.h.b16 %v1426
        %v2593 = vunpack.c.l.b16 %v1427
        %v2594 = vunpack.c.h.b16 %v1427
        %v2595 = vunpack.c.l.b16 %v1428
        %v2596 = vunpack.c.h.b16 %v1428
        %v2597 = vunpack.c.l.b16 %v1429
        %v2598 = vunpack.c.h.b16 %v1429
        %v2599 = vunpack.c.l.b16 %v1430
        %v2600 = vunpack.c.h.b16 %v1430
        %v2601 = vunpack.c.l.b16 %v1431
        %v2602 = vunpack.c.h.b16 %v1431
        %v2603 = vunpack.c.l.b16 %v1432
        %v2604 = vunpack.c.h.b16 %v1432
        %v2605 = vunpack.c.l.b16 %v1433
        %v2606 = vunpack.c.h.b16 %v1433
        %v2607 = vunpack.c.l.b16 %v1434
        %v2608 = vunpack.c.h.b16 %v1434
        %v2609 = vunpack.c.l.b16 %v1435
        %v2610 = vunpack.c.h.b16 %v1435
        %v2611 = vunpack.c.l.b16 %v1436
        %v2612 = vunpack.c.h.b16 %v1436
        %v2613 = vunpack.c.l.b16 %v1437
        %v2614 = vunpack.c.h.b16 %v1437
        %v2615 = vunpack.c.l.b16 %v1438
        %v2616 = vunpack.c.h.b16 %v1438
        %v2617 = vunpack.c.l.b16 %v1439
        %v2618 = vunpack.c.h.b16 %v1439
        %v2619 = vunpack.c.l.b16 %v1440
        %v2620 = vunpack.c.h.b16 %v1440
        %v2621 = vunpack.c.l.b16 %v1441
        %v2622 = vunpack.c.h.b16 %v1441
        %v2623 = vunpack.c.l.b16 %v1442
        %v2624 = vunpack.c.h.b16 %v1442
        %v2625 = vunpack.c.l.b16 %v1443
        %v2626 = vunpack.c.h.b16 %v1443
        %v2627 = vunpack.c.l.b16 %v1444
        %v2628 = vunpack.c.h.b16 %v1444
        %v2629 = vunpack.c.l.b16 %v1445
        %v2630 = vunpack.c.h.b16 %v1445
        %v2631 = vunpack.c.l.b16 %v1446
        %v2632 = vunpack.c.h.b16 %v1446
        %v2633 = vunpack.c.l.b16 %v1447
        %v2634 = vunpack.c.h.b16 %v1447
        %v2635 = vunpack.c.l.b16 %v1448
        %v2636 = vunpack.c.h.b16 %v1448
        %v2637 = vunpack.c.l.b16 %v1449
        %v2638 = vunpack.c.h.b16 %v1449
        %v2639 = vunpack.c.l.b16 %v1450
        %v2640 = vunpack.c.h.b16 %v1450
        %v2641 = vunpack.c.l.b16 %v1451
        %v2642 = vunpack.c.h.b16 %v1451
        %v2643 = vunpack.c.l.b16 %v1452
        %v2644 = vunpack.c.h.b16 %v1452
        %v2645 = vunpack.c.l.b16 %v1453
        %v2646 = vunpack.c.h.b16 %v1453
        %v2647 = vunpack.c.l.b16 %v1454
        %v2648 = vunpack.c.h.b16 %v1454
        %v2649 = vunpack.c.l.b16 %v1455
        %v2650 = vunpack.c.h.b16 %v1455
        %v2651 = vunpack.c.l.b16 %v1456
        %v2652 = vunpack.c.h.b16 %v1456
        %v2653 = vunpack.c.l.b16 %v1457
        %v2654 = vunpack.c.h.b16 %v1457
        %v2655 = vunpack.c.l.b16 %v1458
        %v2656 = vunpack.c.h.b16 %v1458
        %v2657 = vunpack.c.l.b16 %v1459
        %v2658 = vunpack.c.h.b16 %v1459
        %v2659 = vunpack.c.l.b16 %v1460
        %v2660 = vunpack.c.h.b16 %v1460
        %v2661 = vunpack.c.l.b16 %v1461
        %v2662 = vunpack.c.h.b16 %v1461
        %v2663 = vunpack.c.l.b16 %v1462
        %v2664 = vunpack.c.h.b16 %v1462
        %v2665 = vunpack.c.l.b16 %v1463
        %v2666 = vunpack.c.h.b16 %v1463
        %v2667 = vunpack.c.l.b16 %v1464
        %v2668 = vunpack.c.h.b16 %v1464
        %v2669 = vunpack.c.l.b16 %v1465
        %v2670 = vunpack.c.h.b16 %v1465
        %v2671 = vunpack.c.l.b16 %v1466
        %v2672 = vunpack.c.h.b16 %v1466
        %v2673 = vunpack.c.l.b16 %v1467
        %v2674 = vunpack.c.h.b16 %v1467
        %v2675 = vunpack.c.l.b16 %v1468
        %v2676 = vunpack.c.h.b16 %v1468
        %v2677 = vunpack.c.l.b16 %v1469
        %v2678 = vunpack.c.h.b16 %v1469
        %v2679 = vunpack.c.l.b16 %v1470
        %v2680 = vunpack.c.h.b16 %v1470
        %v2681 = vunpack.c.l.b16 %v1471
        %v2682 = vunpack.c.h.b16 %v1471
        %v2683 = vunpack.c.l.b16 %v1472
        %v2684 = vunpack.c.h.b16 %v1472
        %v2685 = vunpack.c.l.b16 %v1473
        %v2686 = vunpack.c.h.b16 %v1473
        %v2687 = vunpack.c.l.b16 %v1474
        %v2688 = vunpack.c.h.b16 %v1474
        %v2689 = vunpack.c.l.b16 %v1475
        %v2690 = vunpack.c.h.b16 %v1475
        %v2691 = vunpack.c.l.b16 %v1476
        %v2692 = vunpack.c.h.b16 %v1476
        %v2693 = vpack.c.b16 %v1937, %v1925
        %v2694 = vpack.c.b16 %v1938, %v1926
        %v2695 = vpack.c.b16 %v1939, %v1927
        %v2696 = vpack.c.b16 %v1940, %v1928
        %v2697 = vpack.c.b16 %v1941, %v1929
        %v2698 = vpack.c.b16 %v1942, %v1930
        %v2699 = vpack.c.b16 %v1943, %v1931
        %v2700 = vpack.c.b16 %v1944, %v1932
        %v2701 = vpack.c.b16 %v1945, %v1933
        %v2702 = vpack.c.b16 %v1946, %v1934
        %v2703 = vpack.c.b16 %v1947, %v1935
        %v2704 = vpack.c.b16 %v1948, %v1936
        %v2705 = vpack.c.b16 %v1961, %v1949
        %v2706 = vpack.c.b16 %v1962, %v1950
        %v2707 = vpack.c.b16 %v1963, %v1951
        %v2708 = vpack.c.b16 %v1964, %v1952
        %v2709 = vpack.c.b16 %v1965, %v1953
        %v2710 = vpack.c.b16 %v1966, %v1954
        %v2711 = vpack.c.b16 %v1967, %v1955
        %v2712 = vpack.c.b16 %v1968, %v1956
        %v2713 = vpack.c.b16 %v1969, %v1957
        %v2714 = vpack.c.b16 %v1970, %v1958
        %v2715 = vpack.c.b16 %v1971, %v1959
        %v2716 = vpack.c.b16 %v1972, %v1960
        %v2717 = vpack.c.b16 %v1985, %v1973
        %v2718 = vpack.c.b16 %v1986, %v1974
        %v2719 = vpack.c.b16 %v1987, %v1975
        %v2720 = vpack.c.b16 %v1988, %v1976
        %v2721 = vpack.c.b16 %v1989, %v1977
        %v2722 = vpack.c.b16 %v1990, %v1978
        %v2723 = vpack.c.b16 %v1991, %v1979
        %v2724 = vpack.c.b16 %v1992, %v1980
        %v2725 = vpack.c.b16 %v1993, %v1981
        %v2726 = vpack.c.b16 %v1994, %v1982
        %v2727 = vpack.c.b16 %v1995, %v1983
        %v2728 = vpack.c.b16 %v1996, %v1984
        %v2729 = vpack.c.b16 %v2009, %v1997
        %v2730 = vpack.c.b16 %v2010, %v1998
        %v2731 = vpack.c.b16 %v2011, %v1999
        %v2732 = vpack.c.b16 %v2012, %v2000
        %v2733 = vpack.c.b16 %v2013, %v2001
        %v2734 = vpack.c.b16 %v2014, %v2002
        %v2735 = vpack.c.b16 %v2015, %v2003
        %v2736 = vpack.c.b16 %v2016, %v2004
        %v2737 = vpack.c.b16 %v2017, %v2005
        %v2738 = vpack.c.b16 %v2018, %v2006
        %v2739 = vpack.c.b16 %v2019, %v2007
        %v2740 = vpack.c.b16 %v2020, %v2008
        %v2741 = vpack.c.b16 %v2033, %v2021
        %v2742 = vpack.c.b16 %v2034, %v2022
        %v2743 = vpack.c.b16 %v2035, %v2023
        %v2744 = vpack.c.b16 %v2036, %v2024
        %v2745 = vpack.c.b16 %v2037, %v2025
        %v2746 = vpack.c.b16 %v2038, %v2026
        %v2747 = vpack.c.b16 %v2039, %v2027
        %v2748 = vpack.c.b16 %v2040, %v2028
        %v2749 = vpack.c.b16 %v2041, %v2029
        %v2750 = vpack.c.b16 %v2042, %v2030
        %v2751 = vpack.c.b16 %v2043, %v2031
        %v2752 = vpack.c.b16 %v2044, %v2032
        %v2753 = vpack.c.b16 %v2057, %v2045
        %v2754 = vpack.c.b16 %v2058, %v2046
        %v2755 = vpack.c.b16 %v2059, %v2047
        %v2756 = vpack.c.b16 %v2060, %v2048
        %v2757 = vpack.c.b16 %v2061, %v2049
        %v2758 = vpack.c.b16 %v2062, %v2050
        %v2759 = vpack.c.b16 %v2063, %v2051
        %v2760 = vpack.c.b16 %v2064, %v2052
        %v2761 = vpack.c.b16 %v2065, %v2053
        %v2762 = vpack.c.b16 %v2066, %v2054
        %v2763 = vpack.c.b16 %v2067, %v2055
        %v2764 = vpack.c.b16 %v2068, %v2056
        %v2765 = vpack.c.b16 %v2081, %v2069
        %v2766 = vpack.c.b16 %v2082, %v2070
        %v2767 = vpack.c.b16 %v2083, %v2071
        %v2768 = vpack.c.b16 %v2084, %v2072
        %v2769 = vpack.c.b16 %v2085, %v2073
        %v2770 = vpack.c.b16 %v2086, %v2074
        %v2771 = vpack.c.b16 %v2087, %v2075
        %v2772 = vpack.c.b16 %v2088, %v2076
        %v2773 = vpack.c.b16 %v2089, %v2077
        %v2774 = vpack.c.b16 %v2090, %v2078
        %v2775 = vpack.c.b16 %v2091, %v2079
        %v2776 = vpack.c.b16 %v2092, %v2080
        %v2777 = vpack.c.b16 %v2105, %v2093
        %v2778 = vpack.c.b16 %v2106, %v2094
        %v2779 = vpack.c.b16 %v2107, %v2095
        %v2780 = vpack.c.b16 %v2108, %v2096
        %v2781 = vpack.c.b16 %v2109, %v2097
        %v2782 = vpack.c.b16 %v2110, %v2098
        %v2783 = vpack.c.b16 %v2111, %v2099
        %v2784 = vpack.c.b16 %v2112, %v2100
        %v2785 = vpack.c.b16 %v2113, %v2101
        %v2786 = vpack.c.b16 %v2114, %v2102
        %v2787 = vpack.c.b16 %v2115, %v2103
        %v2788 = vpack.c.b16 %v2116, %v2104
        %v2789 = vpack.c.b16 %v2129, %v2117
        %v2790 = vpack.c.b16 %v2130, %v2118
        %v2791 = vpack.c.b16 %v2131, %v2119
        %v2792 = vpack.c.b16 %v2132, %v2120
        %v2793 = vpack.c.b16 %v2133, %v2121
        %v2794 = vpack.c.b16 %v2134, %v2122
        %v2795 = vpack.c.b16 %v2135, %v2123
        %v2796 = vpack.c.b16 %v2136, %v2124
        %v2797 = vpack.c.b16 %v2137, %v2125
        %v2798 = vpack.c.b16 %v2138, %v2126
        %v2799 = vpack.c.b16 %v2139, %v2127
        %v2800 = vpack.c.b16 %v2140, %v2128
        %v2801 = vpack.c.b16 %v2153, %v2141
        %v2802 = vpack.c.b16 %v2154, %v2142
        %v2803 = vpack.c.b16 %v2155, %v2143
        %v2804 = vpack.c.b16 %v2156, %v2144
        %v2805 = vpack.c.b16 %v2157, %v2145
        %v2806 = vpack.c.b16 %v2158, %v2146
        %v2807 = vpack.c.b16 %v2159, %v2147
        %v2808 = vpack.c.b16 %v2160, %v2148
        %v2809 = vpack.c.b16 %v2161, %v2149
        %v2810 = vpack.c.b16 %v2162, %v2150
        %v2811 = vpack.c.b16 %v2163, %v2151
        %v2812 = vpack.c.b16 %v2164, %v2152
        %v2813 = vpack.c.b16 %v2177, %v2165
        %v2814 = vpack.c.b16 %v2178, %v2166
        %v2815 = vpack.c.b16 %v2179, %v2167
        %v2816 = vpack.c.b16 %v2180, %v2168
        %v2817 = vpack.c.b16 %v2181, %v2169
        %v2818 = vpack.c.b16 %v2182, %v2170
        %v2819 = vpack.c.b16 %v2183, %v2171
        %v2820 = vpack.c.b16 %v2184, %v2172
        %v2821 = vpack.c.b16 %v2185, %v2173
        %v2822 = vpack.c.b16 %v2186, %v2174
        %v2823 = vpack.c.b16 %v2187, %v2175
        %v2824 = vpack.c.b16 %v2188, %v2176
        %v2825 = vpack.c.b16 %v2201, %v2189
        %v2826 = vpack.c.b16 %v2202, %v2190
        %v2827 = vpack.c.b16 %v2203, %v2191
        %v2828 = vpack.c.b16 %v2204, %v2192
        %v2829 = vpack.c.b16 %v2205, %v2193
        %v2830 = vpack.c.b16 %v2206, %v2194
        %v2831 = vpack.c.b16 %v2207, %v2195
        %v2832 = vpack.c.b16 %v2208, %v2196
        %v2833 = vpack.c.b16 %v2209, %v2197
        %v2834 = vpack.c.b16 %v2210, %v2198
        %v2835 = vpack.c.b16 %v2211, %v2199
        %v2836 = vpack.c.b16 %v2212, %v2200
        %v2837 = vpack.c.b16 %v2225, %v2213
        %v2838 = vpack.c.b16 %v2226, %v2214
        %v2839 = vpack.c.b16 %v2227, %v2215
        %v2840 = vpack.c.b16 %v2228, %v2216
        %v2841 = vpack.c.b16 %v2229, %v2217
        %v2842 = vpack.c.b16 %v2230, %v2218
        %v2843 = vpack.c.b16 %v2231, %v2219
        %v2844 = vpack.c.b16 %v2232, %v2220
        %v2845 = vpack.c.b16 %v2233, %v2221
        %v2846 = vpack.c.b16 %v2234, %v2222
        %v2847 = vpack.c.b16 %v2235, %v2223
        %v2848 = vpack.c.b16 %v2236, %v2224
        %v2849 = vpack.c.b16 %v2249, %v2237
        %v2850 = vpack.c.b16 %v2250, %v2238
        %v2851 = vpack.c.b16 %v2251, %v2239
        %v2852 = vpack.c.b16 %v2252, %v2240
        %v2853 = vpack.c.b16 %v2253, %v2241
        %v2854 = vpack.c.b16 %v2254, %v2242
        %v2855 = vpack.c.b16 %v2255, %v2243
        %v2856 = vpack.c.b16 %v2256, %v2244
        %v2857 = vpack.c.b16 %v2257, %v2245
        %v2858 = vpack.c.b16 %v2258, %v2246
        %v2859 = vpack.c.b16 %v2259, %v2247
        %v2860 = vpack.c.b16 %v2260, %v2248
        %v2861 = vpack.c.b16 %v2273, %v2261
        %v2862 = vpack.c.b16 %v2274, %v2262
        %v2863 = vpack.c.b16 %v2275, %v2263
        %v2864 = vpack.c.b16 %v2276, %v2264
        %v2865 = vpack.c.b16 %v2277, %v2265
        %v2866 = vpack.c.b16 %v2278, %v2266
        %v2867 = vpack.c.b16 %v2279, %v2267
        %v2868 = vpack.c.b16 %v2280, %v2268
        %v2869 = vpack.c.b16 %v2281, %v2269
        %v2870 = vpack.c.b16 %v2282, %v2270
        %v2871 = vpack.c.b16 %v2283, %v2271
        %v2872 = vpack.c.b16 %v2284, %v2272
        %v2873 = vpack.c.b16 %v2297, %v2285
        %v2874 = vpack.c.b16 %v2298, %v2286
        %v2875 = vpack.c.b16 %v2299, %v2287
        %v2876 = vpack.c.b16 %v2300, %v2288
        %v2877 = vpack.c.b16 %v2301, %v2289
        %v2878 = vpack.c.b16 %v2302, %v2290
        %v2879 = vpack.c.b16 %v2303, %v2291
        %v2880 = vpack.c.b16 %v2304, %v2292
        %v2881 = vpack.c.b16 %v2305, %v2293
        %v2882 = vpack.c.b16 %v2306, %v2294
        %v2883 = vpack.c.b16 %v2307, %v2295
        %v2884 = vpack.c.b16 %v2308, %v2296
        %v2885 = vpack.c.b16 %v2321, %v2309
        %v2886 = vpack.c.b16 %v2322, %v2310
        %v2887 = vpack.c.b16 %v2323, %v2311
        %v2888 = vpack.c.b16 %v2324, %v2312
        %v2889 = vpack.c.b16 %v2325, %v2313
        %v2890 = vpack.c.b16 %v2326, %v2314
        %v2891 = vpack.c.b16 %v2327, %v2315
        %v2892 = vpack.c.b16 %v2328, %v2316
        %v2893 = vpack.c.b16 %v2329, %v2317
        %v2894 = vpack.c.b16 %v2330, %v2318
        %v2895 = vpack.c.b16 %v2331, %v2319
        %v2896 = vpack.c.b16 %v2332, %v2320
        %v2897 = vpack.c.b16 %v2345, %v2333
        %v2898 = vpack.c.b16 %v2346, %v2334
        %v2899 = vpack.c.b16 %v2347, %v2335
        %v2900 = vpack.c.b16 %v2348, %v2336
        %v2901 = vpack.c.b16 %v2349, %v2337
        %v2902 = vpack.c.b16 %v2350, %v2338
        %v2903 = vpack.c.b16 %v2351, %v2339
        %v2904 = vpack.c.b16 %v2352, %v2340
        %v2905 = vpack.c.b16 %v2353, %v2341
        %v2906 = vpack.c.b16 %v2354, %v2342
        %v2907 = vpack.c.b16 %v2355, %v2343
        %v2908 = vpack.c.b16 %v2356, %v2344
        %v2909 = vpack.c.b16 %v2369, %v2357
        %v2910 = vpack.c.b16 %v2370, %v2358
        %v2911 = vpack.c.b16 %v2371, %v2359
        %v2912 = vpack.c.b16 %v2372, %v2360
        %v2913 = vpack.c.b16 %v2373, %v2361
        %v2914 = vpack.c.b16 %v2374, %v2362
        %v2915 = vpack.c.b16 %v2375, %v2363
        %v2916 = vpack.c.b16 %v2376, %v2364
        %v2917 = vpack.c.b16 %v2377, %v2365
        %v2918 = vpack.c.b16 %v2378, %v2366
        %v2919 = vpack.c.b16 %v2379, %v2367
        %v2920 = vpack.c.b16 %v2380, %v2368
        %v2921 = vpack.c.b16 %v2393, %v2381
        %v2922 = vpack.c.b16 %v2394, %v2382
        %v2923 = vpack.c.b16 %v2395, %v2383
        %v2924 = vpack.c.b16 %v2396, %v2384
        %v2925 = vpack.c.b16 %v2397, %v2385
        %v2926 = vpack.c.b16 %v2398, %v2386
        %v2927 = vpack.c.b16 %v2399, %v2387
        %v2928 = vpack.c.b16 %v2400, %v2388
        %v2929 = vpack.c.b16 %v2401, %v2389
        %v2930 = vpack.c.b16 %v2402, %v2390
        %v2931 = vpack.c.b16 %v2403, %v2391
        %v2932 = vpack.c.b16 %v2404, %v2392
        %v2933 = vpack.c.b16 %v2417, %v2405
        %v2934 = vpack.c.b16 %v2418, %v2406
        %v2935 = vpack.c.b16 %v2419, %v2407
        %v2936 = vpack.c.b16 %v2420, %v2408
        %v2937 = vpack.c.b16 %v2421, %v2409
        %v2938 = vpack.c.b16 %v2422, %v2410
        %v2939 = vpack.c.b16 %v2423, %v2411
        %v2940 = vpack.c.b16 %v2424, %v2412
        %v2941 = vpack.c.b16 %v2425, %v2413
        %v2942 = vpack.c.b16 %v2426, %v2414
        %v2943 = vpack.c.b16 %v2427, %v2415
        %v2944 = vpack.c.b16 %v2428, %v2416
        %v2945 = vpack.c.b16 %v2441, %v2429
        %v2946 = vpack.c.b16 %v2442, %v2430
        %v2947 = vpack.c.b16 %v2443, %v2431
        %v2948 = vpack.c.b16 %v2444, %v2432
        %v2949 = vpack.c.b16 %v2445, %v2433
        %v2950 = vpack.c.b16 %v2446, %v2434
        %v2951 = vpack.c.b16 %v2447, %v2435
        %v2952 = vpack.c.b16 %v2448, %v2436
        %v2953 = vpack.c.b16 %v2449, %v2437
        %v2954 = vpack.c.b16 %v2450, %v2438
        %v2955 = vpack.c.b16 %v2451, %v2439
        %v2956 = vpack.c.b16 %v2452, %v2440
        %v2957 = vpack.c.b16 %v2465, %v2453
        %v2958 = vpack.c.b16 %v2466, %v2454
        %v2959 = vpack.c.b16 %v2467, %v2455
        %v2960 = vpack.c.b16 %v2468, %v2456
        %v2961 = vpack.c.b16 %v2469, %v2457
        %v2962 = vpack.c.b16 %v2470, %v2458
        %v2963 = vpack.c.b16 %v2471, %v2459
        %v2964 = vpack.c.b16 %v2472, %v2460
        %v2965 = vpack.c.b16 %v2473, %v2461
        %v2966 = vpack.c.b16 %v2474, %v2462
        %v2967 = vpack.c.b16 %v2475, %v2463
        %v2968 = vpack.c.b16 %v2476, %v2464
        %v2969 = vpack.c.b16 %v2489, %v2477
        %v2970 = vpack.c.b16 %v2490, %v2478
        %v2971 = vpack.c.b16 %v2491, %v2479
        %v2972 = vpack.c.b16 %v2492, %v2480
        %v2973 = vpack.c.b16 %v2493, %v2481
        %v2974 = vpack.c.b16 %v2494, %v2482
        %v2975 = vpack.c.b16 %v2495, %v2483
        %v2976 = vpack.c.b16 %v2496, %v2484
        %v2977 = vpack.c.b16 %v2497, %v2485
        %v2978 = vpack.c.b16 %v2498, %v2486
        %v2979 = vpack.c.b16 %v2499, %v2487
        %v2980 = vpack.c.b16 %v2500, %v2488
        %v2981 = vpack.c.b16 %v2513, %v2501
        %v2982 = vpack.c.b16 %v2514, %v2502
        %v2983 = vpack.c.b16 %v2515, %v2503
        %v2984 = vpack.c.b16 %v2516, %v2504
        %v2985 = vpack.c.b16 %v2517, %v2505
        %v2986 = vpack.c.b16 %v2518, %v2506
        %v2987 = vpack.c.b16 %v2519, %v2507
        %v2988 = vpack.c.b16 %v2520, %v2508
        %v2989 = vpack.c.b16 %v2521, %v2509
        %v2990 = vpack.c.b16 %v2522, %v2510
        %v2991 = vpack.c.b16 %v2523, %v2511
        %v2992 = vpack.c.b16 %v2524, %v2512
        %v2993 = vpack.c.b16 %v2537, %v2525
        %v2994 = vpack.c.b16 %v2538, %v2526
        %v2995 = vpack.c.b16 %v2539, %v2527
        %v2996 = vpack.c.b16 %v2540, %v2528
        %v2997 = vpack.c.b16 %v2541, %v2529
        %v2998 = vpack.c.b16 %v2542, %v2530
        %v2999 = vpack.c.b16 %v2543, %v2531
        %v3000 = vpack.c.b16 %v2544, %v2532
        %v3001 = vpack.c.b16 %v2545, %v2533
        %v3002 = vpack.c.b16 %v2546, %v2534
        %v3003 = vpack.c.b16 %v2547, %v2535
        %v3004 = vpack.c.b16 %v2548, %v2536
        %v3005 = vpack.c.b16 %v2561, %v2549
        %v3006 = vpack.c.b16 %v2562, %v2550
        %v3007 = vpack.c.b16 %v2563, %v2551
        %v3008 = vpack.c.b16 %v2564, %v2552
        %v3009 = vpack.c.b16 %v2565, %v2553
        %v3010 = vpack.c.b16 %v2566, %v2554
        %v3011 = vpack.c.b16 %v2567, %v2555
        %v3012 = vpack.c.b16 %v2568, %v2556
        %v3013 = vpack.c.b16 %v2569, %v2557
        %v3014 = vpack.c.b16 %v2570, %v2558
        %v3015 = vpack.c.b16 %v2571, %v2559
        %v3016 = vpack.c.b16 %v2572, %v2560
        %v3017 = vpack.c.b16 %v2585, %v2573
        %v3018 = vpack.c.b16 %v2586, %v2574
        %v3019 = vpack.c.b16 %v2587, %v2575
        %v3020 = vpack.c.b16 %v2588, %v2576
        %v3021 = vpack.c.b16 %v2589, %v2577
        %v3022 = vpack.c.b16 %v2590, %v2578
        %v3023 = vpack.c.b16 %v2591, %v2579
        %v3024 = vpack.c.b16 %v2592, %v2580
        %v3025 = vpack.c.b16 %v2593, %v2581
        %v3026 = vpack.c.b16 %v2594, %v2582
        %v3027 = vpack.c.b16 %v2595, %v2583
        %v3028 = vpack.c.b16 %v2596, %v2584
        %v3029 = vpack.c.b16 %v2609, %v2597
        %v3030 = vpack.c.b16 %v2610, %v2598
        %v3031 = vpack.c.b16 %v2611, %v2599
        %v3032 = vpack.c.b16 %v2612, %v2600
        %v3033 = vpack.c.b16 %v2613, %v2601
        %v3034 = vpack.c.b16 %v2614, %v2602
        %v3035 = vpack.c.b16 %v2615, %v2603
        %v3036 = vpack.c.b16 %v2616, %v2604
        %v3037 = vpack.c.b16 %v2617, %v2605
        %v3038 = vpack.c.b16 %v2618, %v2606
        %v3039 = vpack.c.b16 %v2619, %v2607
        %v3040 = vpack.c.b16 %v2620, %v2608
        %v3041 = vpack.c.b16 %v2633, %v2621
        %v3042 = vpack.c.b16 %v2634, %v2622
        %v3043 = vpack.c.b16 %v2635, %v2623
        %v3044 = vpack.c.b16 %v2636, %v2624
        %v3045 = vpack.c.b16 %v2637, %v2625
        %v3046 = vpack.c.b16 %v2638, %v2626
        %v3047 = vpack.c.b16 %v2639, %v2627
        %v3048 = vpack.c.b16 %v2640, %v2628
        %v3049 = vpack.c.b16 %v2641, %v2629
        %v3050 = vpack.c.b16 %v2642, %v2630
        %v3051 = vpack.c.b16 %v2643, %v2631
        %v3052 = vpack.c.b16 %v2644, %v2632
        %v3053 = vpack.c.b16 %v2657, %v2645
        %v3054 = vpack.c.b16 %v2658, %v2646
        %v3055 = vpack.c.b16 %v2659, %v2647
        %v3056 = vpack.c.b16 %v2660, %v2648
        %v3057 = vpack.c.b16 %v2661, %v2649
        %v3058 = vpack.c.b16 %v2662, %v2650
        %v3059 = vpack.c.b16 %v2663, %v2651
        %v3060 = vpack.c.b16 %v2664, %v2652
        %v3061 = vpack.c.b16 %v2665, %v2653
        %v3062 = vpack.c.b16 %v2666, %v2654
        %v3063 = vpack.c.b16 %v2667, %v2655
        %v3064 = vpack.c.b16 %v2668, %v2656
        %v3065 = vpack.c.b16 %v2681, %v2669
        %v3066 = vpack.c.b16 %v2682, %v2670
        %v3067 = vpack.c.b16 %v2683, %v2671
        %v3068 = vpack.c.b16 %v2684, %v2672
        %v3069 = vpack.c.b16 %v2685, %v2673
        %v3070 = vpack.c.b16 %v2686, %v2674
        %v3071 = vpack.c.b16 %v2687, %v2675
        %v3072 = vpack.c.b16 %v2688, %v2676
        %v3073 = vpack.c.b16 %v2689, %v2677
        %v3074 = vpack.c.b16 %v2690, %v2678
        %v3075 = vpack.c.b16 %v2691, %v2679
        %v3076 = vpack.c.b16 %v2692, %v2680
        %3461 = vmatprep.subr.bf16.mxu0 %v2694
        %3462 = vmatpush1.bf16.msra.mxu0 %v2693
        %3463 = vmatprep.subr.bf16.mxu0 %v2706
        %3464 = vmatpush1.bf16.msra.mxu0 %v2705
        %3465 = vmatprep.subr.bf16.mxu0 %v2718
        %3466 = vmatpush1.bf16.msra.mxu0 %v2717
        %3467 = vmatprep.subr.bf16.mxu0 %v2730
        %3468 = vmatpush1.bf16.msra.mxu0 %v2729
        %3469 = vmatprep.subr.bf16.mxu0 %v2742
        %3470 = vmatpush1.bf16.msra.mxu0 %v2741
        %3471 = vmatprep.subr.bf16.mxu0 %v2754
        %3472 = vmatpush1.bf16.msra.mxu0 %v2753
        %3473 = vmatprep.subr.bf16.mxu0 %v2766
        %3474 = vmatpush1.bf16.msra.mxu0 %v2765
        %3475 = vmatprep.subr.bf16.mxu0 %v2778
        %3476 = vmatpush1.bf16.msra.mxu0 %v2777
        %3477 = vmatprep.subr.bf16.mxu0 %v2790
        %3478 = vmatpush1.bf16.msra.mxu0 %v2789
        %3479 = vmatprep.subr.bf16.mxu0 %v2802
        %3480 = vmatpush1.bf16.msra.mxu0 %v2801
        %3481 = vmatprep.subr.bf16.mxu0 %v2814
        %3482 = vmatpush1.bf16.msra.mxu0 %v2813
        %3483 = vmatprep.subr.bf16.mxu0 %v2826
        %3484 = vmatpush1.bf16.msra.mxu0 %v2825
        %3485 = vmatprep.subr.bf16.mxu0 %v2838
        %3486 = vmatpush1.bf16.msra.mxu0 %v2837
        %3487 = vmatprep.subr.bf16.mxu0 %v2850
        %3488 = vmatpush1.bf16.msra.mxu0 %v2849
        %3489 = vmatprep.subr.bf16.mxu0 %v2862
        %3490 = vmatpush1.bf16.msra.mxu0 %v2861
        %3491 = vmatprep.subr.bf16.mxu0 %v2874
        %3492 = vmatpush1.bf16.msra.mxu0 %v2873
        %3493 = vmatprep.mubr.bf16.mxu0 %v1090
        %3494 = vmatmul.mubr.bf16.gmra.mrb[0].mxu0 %v1089
        %v3495 = vpop.f32.mrb[0].mxu0
        %v3496 = vadd.f32 %v1484, %v3495
        %v3497 = vpop.f32.mrb[0].mxu0
        %v3498 = vadd.f32 %v1488, %v3497
        %v3499 = vpop.f32.mrb[0].mxu0
        %v3500 = vadd.f32 %v1484, %v3499
        %v3501 = vpop.f32.mrb[0].mxu0
        %v3502 = vadd.f32 %v1488, %v3501
        %3503 = vdwg.mxu0
        %3504 = vmatprep.subr.bf16.mxu0 %v2886
        %3505 = vmatpush1.bf16.msra.mxu0 %v2885
        %3506 = vmatprep.subr.bf16.mxu0 %v2898
        %3507 = vmatpush1.bf16.msra.mxu0 %v2897
        %3508 = vmatprep.subr.bf16.mxu0 %v2910
        %3509 = vmatpush1.bf16.msra.mxu0 %v2909
        %3510 = vmatprep.subr.bf16.mxu0 %v2922
        %3511 = vmatpush1.bf16.msra.mxu0 %v2921
        %3512 = vmatprep.subr.bf16.mxu0 %v2934
        %3513 = vmatpush1.bf16.msra.mxu0 %v2933
        %3514 = vmatprep.subr.bf16.mxu0 %v2946
        %3515 = vmatpush1.bf16.msra.mxu0 %v2945
        %3516 = vmatprep.subr.bf16.mxu0 %v2958
        %3517 = vmatpush1.bf16.msra.mxu0 %v2957
        %3518 = vmatprep.subr.bf16.mxu0 %v2970
        %3519 = vmatpush1.bf16.msra.mxu0 %v2969
        %3520 = vmatprep.subr.bf16.mxu0 %v2982
        %3521 = vmatpush1.bf16.msra.mxu0 %v2981
        %3522 = vmatprep.subr.bf16.mxu0 %v2994
        %3523 = vmatpush1.bf16.msra.mxu0 %v2993
        %3524 = vmatprep.subr.bf16.mxu0 %v3006
        %3525 = vmatpush1.bf16.msra.mxu0 %v3005
        %3526 = vmatprep.subr.bf16.mxu0 %v3018
        %3527 = vmatpush1.bf16.msra.mxu0 %v3017
        %3528 = vmatprep.subr.bf16.mxu0 %v3030
        %3529 = vmatpush1.bf16.msra.mxu0 %v3029
        %3530 = vmatprep.subr.bf16.mxu0 %v3042
        %3531 = vmatpush1.bf16.msra.mxu0 %v3041
        %3532 = vmatprep.subr.bf16.mxu0 %v3054
        %3533 = vmatpush1.bf16.msra.mxu0 %v3053
        %3534 = vmatprep.subr.bf16.mxu0 %v3066
        %3535 = vmatpush1.bf16.msra.mxu0 %v3065
        %3536 = vmatprep.mubr.bf16.mxu0 %v1092
        %3537 = vmatmul.mubr.bf16.gmra.mrb[0].mxu0 %v1091
        %v3538 = vpop.f32.mrb[0].mxu0
        %v3539 = vadd.f32 %v3496, %v3538
        %v3540 = vpop.f32.mrb[0].mxu0
        %v3541 = vadd.f32 %v3498, %v3540
        %v3542 = vpop.f32.mrb[0].mxu0
        %v3543 = vadd.f32 %v3500, %v3542
        %v3544 = vpop.f32.mrb[0].mxu0
        %v3545 = vadd.f32 %v3502, %v3544
        %3546 = vdwg.mxu0
        %3547 = vmatprep.subr.bf16.mxu0 %v2696
        %3548 = vmatpush1.bf16.msra.mxu0 %v2695
        %3549 = vmatprep.subr.bf16.mxu0 %v2708
        %3550 = vmatpush1.bf16.msra.mxu0 %v2707
        %3551 = vmatprep.subr.bf16.mxu0 %v2720
        %3552 = vmatpush1.bf16.msra.mxu0 %v2719
        %3553 = vmatprep.subr.bf16.mxu0 %v2732
        %3554 = vmatpush1.bf16.msra.mxu0 %v2731
        %3555 = vmatprep.subr.bf16.mxu0 %v2744
        %3556 = vmatpush1.bf16.msra.mxu0 %v2743
        %3557 = vmatprep.subr.bf16.mxu0 %v2756
        %3558 = vmatpush1.bf16.msra.mxu0 %v2755
        %3559 = vmatprep.subr.bf16.mxu0 %v2768
        %3560 = vmatpush1.bf16.msra.mxu0 %v2767
        %3561 = vmatprep.subr.bf16.mxu0 %v2780
        %3562 = vmatpush1.bf16.msra.mxu0 %v2779
        %3563 = vmatprep.subr.bf16.mxu0 %v2792
        %3564 = vmatpush1.bf16.msra.mxu0 %v2791
        %3565 = vmatprep.subr.bf16.mxu0 %v2804
        %3566 = vmatpush1.bf16.msra.mxu0 %v2803
        %3567 = vmatprep.subr.bf16.mxu0 %v2816
        %3568 = vmatpush1.bf16.msra.mxu0 %v2815
        %3569 = vmatprep.subr.bf16.mxu0 %v2828
        %3570 = vmatpush1.bf16.msra.mxu0 %v2827
        %3571 = vmatprep.subr.bf16.mxu0 %v2840
        %3572 = vmatpush1.bf16.msra.mxu0 %v2839
        %3573 = vmatprep.subr.bf16.mxu0 %v2852
        %3574 = vmatpush1.bf16.msra.mxu0 %v2851
        %3575 = vmatprep.subr.bf16.mxu0 %v2864
        %3576 = vmatpush1.bf16.msra.mxu0 %v2863
        %3577 = vmatprep.subr.bf16.mxu0 %v2876
        %3578 = vmatpush1.bf16.msra.mxu0 %v2875
        %3579 = vmatprep.mubr.bf16.mxu0 %v1090
        %3580 = vmatmul.mubr.bf16.gmra.mrb[0].mxu0 %v1089
        %v3581 = vpop.f32.mrb[0].mxu0
        %v3582 = vadd.f32 %v1492, %v3581
        %v3583 = vpop.f32.mrb[0].mxu0
        %v3584 = vadd.f32 %v1496, %v3583
        %v3585 = vpop.f32.mrb[0].mxu0
        %v3586 = vadd.f32 %v1492, %v3585
        %v3587 = vpop.f32.mrb[0].mxu0
        %v3588 = vadd.f32 %v1496, %v3587
        %3589 = vdwg.mxu0
        %3590 = vmatprep.subr.bf16.mxu0 %v2888
        %3591 = vmatpush1.bf16.msra.mxu0 %v2887
        %3592 = vmatprep.subr.bf16.mxu0 %v2900
        %3593 = vmatpush1.bf16.msra.mxu0 %v2899
        %3594 = vmatprep.subr.bf16.mxu0 %v2912
        %3595 = vmatpush1.bf16.msra.mxu0 %v2911
        %3596 = vmatprep.subr.bf16.mxu0 %v2924
        %3597 = vmatpush1.bf16.msra.mxu0 %v2923
        %3598 = vmatprep.subr.bf16.mxu0 %v2936
        %3599 = vmatpush1.bf16.msra.mxu0 %v2935
        %3600 = vmatprep.subr.bf16.mxu0 %v2948
        %3601 = vmatpush1.bf16.msra.mxu0 %v2947
        %3602 = vmatprep.subr.bf16.mxu0 %v2960
        %3603 = vmatpush1.bf16.msra.mxu0 %v2959
        %3604 = vmatprep.subr.bf16.mxu0 %v2972
        %3605 = vmatpush1.bf16.msra.mxu0 %v2971
        %3606 = vmatprep.subr.bf16.mxu0 %v2984
        %3607 = vmatpush1.bf16.msra.mxu0 %v2983
        %3608 = vmatprep.subr.bf16.mxu0 %v2996
        %3609 = vmatpush1.bf16.msra.mxu0 %v2995
        %3610 = vmatprep.subr.bf16.mxu0 %v3008
        %3611 = vmatpush1.bf16.msra.mxu0 %v3007
        %3612 = vmatprep.subr.bf16.mxu0 %v3020
        %3613 = vmatpush1.bf16.msra.mxu0 %v3019
        %3614 = vmatprep.subr.bf16.mxu0 %v3032
        %3615 = vmatpush1.bf16.msra.mxu0 %v3031
        %3616 = vmatprep.subr.bf16.mxu0 %v3044
        %3617 = vmatpush1.bf16.msra.mxu0 %v3043
        %3618 = vmatprep.subr.bf16.mxu0 %v3056
        %3619 = vmatpush1.bf16.msra.mxu0 %v3055
        %3620 = vmatprep.subr.bf16.mxu0 %v3068
        %3621 = vmatpush1.bf16.msra.mxu0 %v3067
        %3622 = vmatprep.mubr.bf16.mxu0 %v1092
        %3623 = vmatmul.mubr.bf16.gmra.mrb[0].mxu0 %v1091
        %v3624 = vpop.f32.mrb[0].mxu0
        %v3625 = vadd.f32 %v3582, %v3624
        %v3626 = vpop.f32.mrb[0].mxu0
        %v3627 = vadd.f32 %v3584, %v3626
        %v3628 = vpop.f32.mrb[0].mxu0
        %v3629 = vadd.f32 %v3586, %v3628
        %v3630 = vpop.f32.mrb[0].mxu0
        %v3631 = vadd.f32 %v3588, %v3630
        %3632 = vdwg.mxu0
        %3633 = vmatprep.subr.bf16.mxu0 %v2698
        %3634 = vmatpush1.bf16.msra.mxu0 %v2697
        %3635 = vmatprep.subr.bf16.mxu0 %v2710
        %3636 = vmatpush1.bf16.msra.mxu0 %v2709
        %3637 = vmatprep.subr.bf16.mxu0 %v2722
        %3638 = vmatpush1.bf16.msra.mxu0 %v2721
        %3639 = vmatprep.subr.bf16.mxu0 %v2734
        %3640 = vmatpush1.bf16.msra.mxu0 %v2733
        %3641 = vmatprep.subr.bf16.mxu0 %v2746
        %3642 = vmatpush1.bf16.msra.mxu0 %v2745
        %3643 = vmatprep.subr.bf16.mxu0 %v2758
        %3644 = vmatpush1.bf16.msra.mxu0 %v2757
        %3645 = vmatprep.subr.bf16.mxu0 %v2770
        %3646 = vmatpush1.bf16.msra.mxu0 %v2769
        %3647 = vmatprep.subr.bf16.mxu0 %v2782
        %3648 = vmatpush1.bf16.msra.mxu0 %v2781
        %3649 = vmatprep.subr.bf16.mxu0 %v2794
        %3650 = vmatpush1.bf16.msra.mxu0 %v2793
        %3651 = vmatprep.subr.bf16.mxu0 %v2806
        %3652 = vmatpush1.bf16.msra.mxu0 %v2805
        %3653 = vmatprep.subr.bf16.mxu0 %v2818
        %3654 = vmatpush1.bf16.msra.mxu0 %v2817
        %3655 = vmatprep.subr.bf16.mxu0 %v2830
        %3656 = vmatpush1.bf16.msra.mxu0 %v2829
        %3657 = vmatprep.subr.bf16.mxu0 %v2842
        %3658 = vmatpush1.bf16.msra.mxu0 %v2841
        %3659 = vmatprep.subr.bf16.mxu0 %v2854
        %3660 = vmatpush1.bf16.msra.mxu0 %v2853
        %3661 = vmatprep.subr.bf16.mxu0 %v2866
        %3662 = vmatpush1.bf16.msra.mxu0 %v2865
        %3663 = vmatprep.subr.bf16.mxu0 %v2878
        %3664 = vmatpush1.bf16.msra.mxu0 %v2877
        %3665 = vmatprep.mubr.bf16.mxu0 %v1090
        %3666 = vmatmul.mubr.bf16.gmra.mrb[0].mxu0 %v1089
        %v3667 = vpop.f32.mrb[0].mxu0
        %v3668 = vadd.f32 %v1500, %v3667
        %v3669 = vpop.f32.mrb[0].mxu0
        %v3670 = vadd.f32 %v1504, %v3669
        %v3671 = vpop.f32.mrb[0].mxu0
        %v3672 = vadd.f32 %v1500, %v3671
        %v3673 = vpop.f32.mrb[0].mxu0
        %v3674 = vadd.f32 %v1504, %v3673
        %3675 = vdwg.mxu0
        %3676 = vmatprep.subr.bf16.mxu0 %v2890
        %3677 = vmatpush1.bf16.msra.mxu0 %v2889
        %3678 = vmatprep.subr.bf16.mxu0 %v2902
        %3679 = vmatpush1.bf16.msra.mxu0 %v2901
        %3680 = vmatprep.subr.bf16.mxu0 %v2914
        %3681 = vmatpush1.bf16.msra.mxu0 %v2913
        %3682 = vmatprep.subr.bf16.mxu0 %v2926
        %3683 = vmatpush1.bf16.msra.mxu0 %v2925
        %3684 = vmatprep.subr.bf16.mxu0 %v2938
        %3685 = vmatpush1.bf16.msra.mxu0 %v2937
        %3686 = vmatprep.subr.bf16.mxu0 %v2950
        %3687 = vmatpush1.bf16.msra.mxu0 %v2949
        %3688 = vmatprep.subr.bf16.mxu0 %v2962
        %3689 = vmatpush1.bf16.msra.mxu0 %v2961
        %3690 = vmatprep.subr.bf16.mxu0 %v2974
        %3691 = vmatpush1.bf16.msra.mxu0 %v2973
        %3692 = vmatprep.subr.bf16.mxu0 %v2986
        %3693 = vmatpush1.bf16.msra.mxu0 %v2985
        %3694 = vmatprep.subr.bf16.mxu0 %v2998
        %3695 = vmatpush1.bf16.msra.mxu0 %v2997
        %3696 = vmatprep.subr.bf16.mxu0 %v3010
        %3697 = vmatpush1.bf16.msra.mxu0 %v3009
        %3698 = vmatprep.subr.bf16.mxu0 %v3022
        %3699 = vmatpush1.bf16.msra.mxu0 %v3021
        %3700 = vmatprep.subr.bf16.mxu0 %v3034
        %3701 = vmatpush1.bf16.msra.mxu0 %v3033
        %3702 = vmatprep.subr.bf16.mxu0 %v3046
        %3703 = vmatpush1.bf16.msra.mxu0 %v3045
        %3704 = vmatprep.subr.bf16.mxu0 %v3058
        %3705 = vmatpush1.bf16.msra.mxu0 %v3057
        %3706 = vmatprep.subr.bf16.mxu0 %v3070
        %3707 = vmatpush1.bf16.msra.mxu0 %v3069
        %3708 = vmatprep.mubr.bf16.mxu0 %v1092
        %3709 = vmatmul.mubr.bf16.gmra.mrb[0].mxu0 %v1091
        %v3710 = vpop.f32.mrb[0].mxu0
        %v3711 = vadd.f32 %v3668, %v3710
        %v3712 = vpop.f32.mrb[0].mxu0
        %v3713 = vadd.f32 %v3670, %v3712
        %v3714 = vpop.f32.mrb[0].mxu0
        %v3715 = vadd.f32 %v3672, %v3714
        %v3716 = vpop.f32.mrb[0].mxu0
        %v3717 = vadd.f32 %v3674, %v3716
        %3718 = vdwg.mxu0
        %3719 = vmatprep.subr.bf16.mxu0 %v2700
        %3720 = vmatpush1.bf16.msra.mxu0 %v2699
        %3721 = vmatprep.subr.bf16.mxu0 %v2712
        %3722 = vmatpush1.bf16.msra.mxu0 %v2711
        %3723 = vmatprep.subr.bf16.mxu0 %v2724
        %3724 = vmatpush1.bf16.msra.mxu0 %v2723
        %3725 = vmatprep.subr.bf16.mxu0 %v2736
        %3726 = vmatpush1.bf16.msra.mxu0 %v2735
        %3727 = vmatprep.subr.bf16.mxu0 %v2748
        %3728 = vmatpush1.bf16.msra.mxu0 %v2747
        %3729 = vmatprep.subr.bf16.mxu0 %v2760
        %3730 = vmatpush1.bf16.msra.mxu0 %v2759
        %3731 = vmatprep.subr.bf16.mxu0 %v2772
        %3732 = vmatpush1.bf16.msra.mxu0 %v2771
        %3733 = vmatprep.subr.bf16.mxu0 %v2784
        %3734 = vmatpush1.bf16.msra.mxu0 %v2783
        %3735 = vmatprep.subr.bf16.mxu0 %v2796
        %3736 = vmatpush1.bf16.msra.mxu0 %v2795
        %3737 = vmatprep.subr.bf16.mxu0 %v2808
        %3738 = vmatpush1.bf16.msra.mxu0 %v2807
        %3739 = vmatprep.subr.bf16.mxu0 %v2820
        %3740 = vmatpush1.bf16.msra.mxu0 %v2819
        %3741 = vmatprep.subr.bf16.mxu0 %v2832
        %3742 = vmatpush1.bf16.msra.mxu0 %v2831
        %3743 = vmatprep.subr.bf16.mxu0 %v2844
        %3744 = vmatpush1.bf16.msra.mxu0 %v2843
        %3745 = vmatprep.subr.bf16.mxu0 %v2856
        %3746 = vmatpush1.bf16.msra.mxu0 %v2855
        %3747 = vmatprep.subr.bf16.mxu0 %v2868
        %3748 = vmatpush1.bf16.msra.mxu0 %v2867
        %3749 = vmatprep.subr.bf16.mxu0 %v2880
        %3750 = vmatpush1.bf16.msra.mxu0 %v2879
        %3751 = vmatprep.mubr.bf16.mxu0 %v1090
        %3752 = vmatmul.mubr.bf16.gmra.mrb[0].mxu0 %v1089
        %v3753 = vpop.f32.mrb[0].mxu0
        %v3754 = vadd.f32 %v1508, %v3753
        %v3755 = vpop.f32.mrb[0].mxu0
        %v3756 = vadd.f32 %v1512, %v3755
        %v3757 = vpop.f32.mrb[0].mxu0
        %v3758 = vadd.f32 %v1508, %v3757
        %v3759 = vpop.f32.mrb[0].mxu0
        %v3760 = vadd.f32 %v1512, %v3759
        %3761 = vdwg.mxu0
        %3762 = vmatprep.subr.bf16.mxu0 %v2892
        %3763 = vmatpush1.bf16.msra.mxu0 %v2891
        %3764 = vmatprep.subr.bf16.mxu0 %v2904
        %3765 = vmatpush1.bf16.msra.mxu0 %v2903
        %3766 = vmatprep.subr.bf16.mxu0 %v2916
        %3767 = vmatpush1.bf16.msra.mxu0 %v2915
        %3768 = vmatprep.subr.bf16.mxu0 %v2928
        %3769 = vmatpush1.bf16.msra.mxu0 %v2927
        %3770 = vmatprep.subr.bf16.mxu0 %v2940
        %3771 = vmatpush1.bf16.msra.mxu0 %v2939
        %3772 = vmatprep.subr.bf16.mxu0 %v2952
        %3773 = vmatpush1.bf16.msra.mxu0 %v2951
        %3774 = vmatprep.subr.bf16.mxu0 %v2964
        %3775 = vmatpush1.bf16.msra.mxu0 %v2963
        %3776 = vmatprep.subr.bf16.mxu0 %v2976
        %3777 = vmatpush1.bf16.msra.mxu0 %v2975
        %3778 = vmatprep.subr.bf16.mxu0 %v2988
        %3779 = vmatpush1.bf16.msra.mxu0 %v2987
        %3780 = vmatprep.subr.bf16.mxu0 %v3000
        %3781 = vmatpush1.bf16.msra.mxu0 %v2999
        %3782 = vmatprep.subr.bf16.mxu0 %v3012
        %3783 = vmatpush1.bf16.msra.mxu0 %v3011
        %3784 = vmatprep.subr.bf16.mxu0 %v3024
        %3785 = vmatpush1.bf16.msra.mxu0 %v3023
        %3786 = vmatprep.subr.bf16.mxu0 %v3036
        %3787 = vmatpush1.bf16.msra.mxu0 %v3035
        %3788 = vmatprep.subr.bf16.mxu0 %v3048
        %3789 = vmatpush1.bf16.msra.mxu0 %v3047
        %3790 = vmatprep.subr.bf16.mxu0 %v3060
        %3791 = vmatpush1.bf16.msra.mxu0 %v3059
        %3792 = vmatprep.subr.bf16.mxu0 %v3072
        %3793 = vmatpush1.bf16.msra.mxu0 %v3071
        %3794 = vmatprep.mubr.bf16.mxu0 %v1092
        %3795 = vmatmul.mubr.bf16.gmra.mrb[0].mxu0 %v1091
        %v3796 = vpop.f32.mrb[0].mxu0
        %v3797 = vadd.f32 %v3754, %v3796
        %v3798 = vpop.f32.mrb[0].mxu0
        %v3799 = vadd.f32 %v3756, %v3798
        %v3800 = vpop.f32.mrb[0].mxu0
        %v3801 = vadd.f32 %v3758, %v3800
        %v3802 = vpop.f32.mrb[0].mxu0
        %v3803 = vadd.f32 %v3760, %v3802
        %3804 = vdwg.mxu0
        %3805 = vmatprep.subr.bf16.mxu0 %v2702
        %3806 = vmatpush1.bf16.msra.mxu0 %v2701
        %3807 = vmatprep.subr.bf16.mxu0 %v2714
        %3808 = vmatpush1.bf16.msra.mxu0 %v2713
        %3809 = vmatprep.subr.bf16.mxu0 %v2726
        %3810 = vmatpush1.bf16.msra.mxu0 %v2725
        %3811 = vmatprep.subr.bf16.mxu0 %v2738
        %3812 = vmatpush1.bf16.msra.mxu0 %v2737
        %3813 = vmatprep.subr.bf16.mxu0 %v2750
        %3814 = vmatpush1.bf16.msra.mxu0 %v2749
        %3815 = vmatprep.subr.bf16.mxu0 %v2762
        %3816 = vmatpush1.bf16.msra.mxu0 %v2761
        %3817 = vmatprep.subr.bf16.mxu0 %v2774
        %3818 = vmatpush1.bf16.msra.mxu0 %v2773
        %3819 = vmatprep.subr.bf16.mxu0 %v2786
        %3820 = vmatpush1.bf16.msra.mxu0 %v2785
        %3821 = vmatprep.subr.bf16.mxu0 %v2798
        %3822 = vmatpush1.bf16.msra.mxu0 %v2797
        %3823 = vmatprep.subr.bf16.mxu0 %v2810
        %3824 = vmatpush1.bf16.msra.mxu0 %v2809
        %3825 = vmatprep.subr.bf16.mxu0 %v2822
        %3826 = vmatpush1.bf16.msra.mxu0 %v2821
        %3827 = vmatprep.subr.bf16.mxu0 %v2834
        %3828 = vmatpush1.bf16.msra.mxu0 %v2833
        %3829 = vmatprep.subr.bf16.mxu0 %v2846
        %3830 = vmatpush1.bf16.msra.mxu0 %v2845
        %3831 = vmatprep.subr.bf16.mxu0 %v2858
        %3832 = vmatpush1.bf16.msra.mxu0 %v2857
        %3833 = vmatprep.subr.bf16.mxu0 %v2870
        %3834 = vmatpush1.bf16.msra.mxu0 %v2869
        %3835 = vmatprep.subr.bf16.mxu0 %v2882
        %3836 = vmatpush1.bf16.msra.mxu0 %v2881
        %3837 = vmatprep.mubr.bf16.mxu0 %v1090
        %3838 = vmatmul.mubr.bf16.gmra.mrb[0].mxu0 %v1089
        %v3839 = vpop.f32.mrb[0].mxu0
        %v3840 = vadd.f32 %v1516, %v3839
        %v3841 = vpop.f32.mrb[0].mxu0
        %v3842 = vadd.f32 %v1520, %v3841
        %v3843 = vpop.f32.mrb[0].mxu0
        %v3844 = vadd.f32 %v1516, %v3843
        %v3845 = vpop.f32.mrb[0].mxu0
        %v3846 = vadd.f32 %v1520, %v3845
        %3847 = vdwg.mxu0
        %3848 = vmatprep.subr.bf16.mxu0 %v2894
        %3849 = vmatpush1.bf16.msra.mxu0 %v2893
        %3850 = vmatprep.subr.bf16.mxu0 %v2906
        %3851 = vmatpush1.bf16.msra.mxu0 %v2905
        %3852 = vmatprep.subr.bf16.mxu0 %v2918
        %3853 = vmatpush1.bf16.msra.mxu0 %v2917
        %3854 = vmatprep.subr.bf16.mxu0 %v2930
        %3855 = vmatpush1.bf16.msra.mxu0 %v2929
        %3856 = vmatprep.subr.bf16.mxu0 %v2942
        %3857 = vmatpush1.bf16.msra.mxu0 %v2941
        %3858 = vmatprep.subr.bf16.mxu0 %v2954
        %3859 = vmatpush1.bf16.msra.mxu0 %v2953
        %3860 = vmatprep.subr.bf16.mxu0 %v2966
        %3861 = vmatpush1.bf16.msra.mxu0 %v2965
        %3862 = vmatprep.subr.bf16.mxu0 %v2978
        %3863 = vmatpush1.bf16.msra.mxu0 %v2977
        %3864 = vmatprep.subr.bf16.mxu0 %v2990
        %3865 = vmatpush1.bf16.msra.mxu0 %v2989
        %3866 = vmatprep.subr.bf16.mxu0 %v3002
        %3867 = vmatpush1.bf16.msra.mxu0 %v3001
        %3868 = vmatprep.subr.bf16.mxu0 %v3014
        %3869 = vmatpush1.bf16.msra.mxu0 %v3013
        %3870 = vmatprep.subr.bf16.mxu0 %v3026
        %3871 = vmatpush1.bf16.msra.mxu0 %v3025
        %3872 = vmatprep.subr.bf16.mxu0 %v3038
        %3873 = vmatpush1.bf16.msra.mxu0 %v3037
        %3874 = vmatprep.subr.bf16.mxu0 %v3050
        %3875 = vmatpush1.bf16.msra.mxu0 %v3049
        %3876 = vmatprep.subr.bf16.mxu0 %v3062
        %3877 = vmatpush1.bf16.msra.mxu0 %v3061
        %3878 = vmatprep.subr.bf16.mxu0 %v3074
        %3879 = vmatpush1.bf16.msra.mxu0 %v3073
        %3880 = vmatprep.mubr.bf16.mxu0 %v1092
        %3881 = vmatmul.mubr.bf16.gmra.mrb[0].mxu0 %v1091
        %v3882 = vpop.f32.mrb[0].mxu0
        %v3883 = vadd.f32 %v3840, %v3882
        %v3884 = vpop.f32.mrb[0].mxu0
        %v3885 = vadd.f32 %v3842, %v3884
        %v3886 = vpop.f32.mrb[0].mxu0
        %v3887 = vadd.f32 %v3844, %v3886
        %v3888 = vpop.f32.mrb[0].mxu0
        %v3889 = vadd.f32 %v3846, %v3888
        %3890 = vdwg.mxu0
        %3891 = vmatprep.subr.bf16.mxu0 %v2704
        %3892 = vmatpush1.bf16.msra.mxu0 %v2703
        %3893 = vmatprep.subr.bf16.mxu0 %v2716
        %3894 = vmatpush1.bf16.msra.mxu0 %v2715
        %3895 = vmatprep.subr.bf16.mxu0 %v2728
        %3896 = vmatpush1.bf16.msra.mxu0 %v2727
        %3897 = vmatprep.subr.bf16.mxu0 %v2740
        %3898 = vmatpush1.bf16.msra.mxu0 %v2739
        %3899 = vmatprep.subr.bf16.mxu0 %v2752
        %3900 = vmatpush1.bf16.msra.mxu0 %v2751
        %3901 = vmatprep.subr.bf16.mxu0 %v2764
        %3902 = vmatpush1.bf16.msra.mxu0 %v2763
        %3903 = vmatprep.subr.bf16.mxu0 %v2776
        %3904 = vmatpush1.bf16.msra.mxu0 %v2775
        %3905 = vmatprep.subr.bf16.mxu0 %v2788
        %3906 = vmatpush1.bf16.msra.mxu0 %v2787
        %3907 = vmatprep.subr.bf16.mxu0 %v2800
        %3908 = vmatpush1.bf16.msra.mxu0 %v2799
        %3909 = vmatprep.subr.bf16.mxu0 %v2812
        %3910 = vmatpush1.bf16.msra.mxu0 %v2811
        %3911 = vmatprep.subr.bf16.mxu0 %v2824
        %3912 = vmatpush1.bf16.msra.mxu0 %v2823
        %3913 = vmatprep.subr.bf16.mxu0 %v2836
        %3914 = vmatpush1.bf16.msra.mxu0 %v2835
        %3915 = vmatprep.subr.bf16.mxu0 %v2848
        %3916 = vmatpush1.bf16.msra.mxu0 %v2847
        %3917 = vmatprep.subr.bf16.mxu0 %v2860
        %3918 = vmatpush1.bf16.msra.mxu0 %v2859
        %3919 = vmatprep.subr.bf16.mxu0 %v2872
        %3920 = vmatpush1.bf16.msra.mxu0 %v2871
        %3921 = vmatprep.subr.bf16.mxu0 %v2884
        %3922 = vmatpush1.bf16.msra.mxu0 %v2883
        %3923 = vmatprep.mubr.bf16.mxu0 %v1090
        %3924 = vmatmul.mubr.bf16.gmra.mrb[0].mxu0 %v1089
        %v3925 = vpop.f32.mrb[0].mxu0
        %v3926 = vadd.f32 %v1524, %v3925
        %v3927 = vpop.f32.mrb[0].mxu0
        %v3928 = vadd.f32 %v1528, %v3927
        %v3929 = vpop.f32.mrb[0].mxu0
        %v3930 = vadd.f32 %v1524, %v3929
        %v3931 = vpop.f32.mrb[0].mxu0
        %v3932 = vadd.f32 %v1528, %v3931
        %3933 = vdwg.mxu0
        %3934 = vmatprep.subr.bf16.mxu0 %v2896
        %3935 = vmatpush1.bf16.msra.mxu0 %v2895
        %3936 = vmatprep.subr.bf16.mxu0 %v2908
        %3937 = vmatpush1.bf16.msra.mxu0 %v2907
        %3938 = vmatprep.subr.bf16.mxu0 %v2920
        %3939 = vmatpush1.bf16.msra.mxu0 %v2919
        %3940 = vmatprep.subr.bf16.mxu0 %v2932
        %3941 = vmatpush1.bf16.msra.mxu0 %v2931
        %3942 = vmatprep.subr.bf16.mxu0 %v2944
        %3943 = vmatpush1.bf16.msra.mxu0 %v2943
        %3944 = vmatprep.subr.bf16.mxu0 %v2956
        %3945 = vmatpush1.bf16.msra.mxu0 %v2955
        %3946 = vmatprep.subr.bf16.mxu0 %v2968
        %3947 = vmatpush1.bf16.msra.mxu0 %v2967
        %3948 = vmatprep.subr.bf16.mxu0 %v2980
        %3949 = vmatpush1.bf16.msra.mxu0 %v2979
        %3950 = vmatprep.subr.bf16.mxu0 %v2992
        %3951 = vmatpush1.bf16.msra.mxu0 %v2991
        %3952 = vmatprep.subr.bf16.mxu0 %v3004
        %3953 = vmatpush1.bf16.msra.mxu0 %v3003
        %3954 = vmatprep.subr.bf16.mxu0 %v3016
        %3955 = vmatpush1.bf16.msra.mxu0 %v3015
        %3956 = vmatprep.subr.bf16.mxu0 %v3028
        %3957 = vmatpush1.bf16.msra.mxu0 %v3027
        %3958 = vmatprep.subr.bf16.mxu0 %v3040
        %3959 = vmatpush1.bf16.msra.mxu0 %v3039
        %3960 = vmatprep.subr.bf16.mxu0 %v3052
        %3961 = vmatpush1.bf16.msra.mxu0 %v3051
        %3962 = vmatprep.subr.bf16.mxu0 %v3064
        %3963 = vmatpush1.bf16.msra.mxu0 %v3063
        %3964 = vmatprep.subr.bf16.mxu0 %v3076
        %3965 = vmatpush1.bf16.msra.mxu0 %v3075
        %3966 = vmatprep.mubr.bf16.mxu0 %v1092
        %3967 = vmatmul.mubr.bf16.gmra.mrb[0].mxu0 %v1091
        %v3968 = vpop.f32.mrb[0].mxu0
        %v3969 = vadd.f32 %v3926, %v3968
        %v3970 = vpop.f32.mrb[0].mxu0
        %v3971 = vadd.f32 %v3928, %v3970
        %v3972 = vpop.f32.mrb[0].mxu0
        %v3973 = vadd.f32 %v3930, %v3972
        %v3974 = vpop.f32.mrb[0].mxu0
        %v3975 = vadd.f32 %v3932, %v3974
        %3976 = vdwg.mxu0
        %v3977 = vpack.c.bf16 %v3539, %v3539
        %v3978 = vpack.c.bf16 %v3711, %v3711
        %vm3979 = vcmask 523264
        %v3981 = vsel %vm3979, %v3977, 0
        %v3984 = vsel %vm3979, %v3978, 0
        %3986 = vmatprep.subr.bf16.mxu0 0
        %3987 = vmatpush1.bf16.xpose.msra.mxu0 %v3984
        %3988 = vmatprep.subr.bf16.mxu0 0
        %3989 = vmatpush1.bf16.xpose.msra.mxu0 0
        %3990 = vmatprep.subr.bf16.mxu0 0
        %3991 = vmatpush1.bf16.xpose.msra.mxu0 0
        %3992 = vmatprep.subr.bf16.mxu0 0
        %3993 = vmatpush1.bf16.xpose.msra.mxu0 0
        %3994 = vmatprep.subr.bf16.mxu0 0
        %3995 = vmatpush1.bf16.xpose.msra.mxu0 0
        %3996 = vmatprep.subr.bf16.mxu0 0
        %3997 = vmatpush1.bf16.xpose.msra.mxu0 0
        %3998 = vmatprep.subr.bf16.mxu0 0
        %3999 = vmatpush1.bf16.xpose.msra.mxu0 0
        %4000 = vmatprep.subr.bf16.mxu0 0
        %4001 = vmatpush1.bf16.xpose.msra.mxu0 0
        %4002 = vmatprep.subr.bf16.mxu0 0
        %4003 = vmatpush1.bf16.xpose.msra.mxu0 0
        %4004 = vmatprep.subr.bf16.mxu0 0
        %4005 = vmatpush1.bf16.xpose.msra.mxu0 0
        %4006 = vmatprep.subr.bf16.mxu0 0
        %4007 = vmatpush1.bf16.xpose.msra.mxu0 0
        %4008 = vmatprep.subr.bf16.mxu0 0
        %4009 = vmatpush1.bf16.xpose.msra.mxu0 0
        %4010 = vmatprep.subr.bf16.mxu0 0
        %4011 = vmatpush1.bf16.xpose.msra.mxu0 0
        %4012 = vmatprep.subr.bf16.mxu0 0
        %4013 = vmatpush1.bf16.xpose.msra.mxu0 0
        %4014 = vmatprep.subr.bf16.mxu0 0
        %4015 = vmatpush1.bf16.xpose.msra.mxu0 0
        %4016 = vmatprep.subr.bf16.mxu0 0
        %4017 = vmatpush1.bf16.xpose.msra.mxu0 0
        %4018 = vmatprep.mubr.bf16.mxu0 0
        %4019 = vmatmul.mubr.bf16.gmra.mrb[0].mxu0 %v3981
        %v4020 = vpop.f32.mrb[0].mxu0
        %v4021 = vadd.f32 0.0, %v4020
        %v4022 = vpop.f32.mrb[0].mxu0
        %v4023 = vpop.f32.mrb[0].mxu0
        %v4024 = vpop.f32.mrb[0].mxu0
        %4025 = vdwg.mxu0
        %4027 = vrot.lane.b32.xlu0 %v3977, 64
        %v4028 = vpop.permute.xlu0 %4027
        %4030 = vrot.lane.b32.xlu0 %v3978, 64
        %v4031 = vpop.permute.xlu0 %4030
        %v4033 = vsel %vm3979, %v4028, 0
        %v4036 = vsel %vm3979, %v4031, 0
        %4038 = vmatprep.subr.bf16.mxu0 0
        %4039 = vmatpush1.bf16.xpose.msra.mxu0 %v4036
        %4040 = vmatprep.subr.bf16.mxu0 0
        %4041 = vmatpush1.bf16.xpose.msra.mxu0 0
        %4042 = vmatprep.subr.bf16.mxu0 0
        %4043 = vmatpush1.bf16.xpose.msra.mxu0 0
        %4044 = vmatprep.subr.bf16.mxu0 0
        %4045 = vmatpush1.bf16.xpose.msra.mxu0 0
        %4046 = vmatprep.subr.bf16.mxu0 0
        %4047 = vmatpush1.bf16.xpose.msra.mxu0 0
        %4048 = vmatprep.subr.bf16.mxu0 0
        %4049 = vmatpush1.bf16.xpose.msra.mxu0 0
        %4050 = vmatprep.subr.bf16.mxu0 0
        %4051 = vmatpush1.bf16.xpose.msra.mxu0 0
        %4052 = vmatprep.subr.bf16.mxu0 0
        %4053 = vmatpush1.bf16.xpose.msra.mxu0 0
        %4054 = vmatprep.subr.bf16.mxu0 0
        %4055 = vmatpush1.bf16.xpose.msra.mxu0 0
        %4056 = vmatprep.subr.bf16.mxu0 0
        %4057 = vmatpush1.bf16.xpose.msra.mxu0 0
        %4058 = vmatprep.subr.bf16.mxu0 0
        %4059 = vmatpush1.bf16.xpose.msra.mxu0 0
        %4060 = vmatprep.subr.bf16.mxu0 0
        %4061 = vmatpush1.bf16.xpose.msra.mxu0 0
        %4062 = vmatprep.subr.bf16.mxu0 0
        %4063 = vmatpush1.bf16.xpose.msra.mxu0 0
        %4064 = vmatprep.subr.bf16.mxu0 0
        %4065 = vmatpush1.bf16.xpose.msra.mxu0 0
        %4066 = vmatprep.subr.bf16.mxu0 0
        %4067 = vmatpush1.bf16.xpose.msra.mxu0 0
        %4068 = vmatprep.subr.bf16.mxu0 0
        %4069 = vmatpush1.bf16.xpose.msra.mxu0 0
        %4070 = vmatprep.mubr.bf16.mxu0 0
        %4071 = vmatmul.mubr.bf16.gmra.mrb[0].mxu0 %v4033
        %v4072 = vpop.f32.mrb[0].mxu0
        %v4073 = vadd.f32 0.0, %v4072
        %v4074 = vpop.f32.mrb[0].mxu0
        %v4075 = vpop.f32.mrb[0].mxu0
        %v4076 = vpop.f32.mrb[0].mxu0
        %4077 = vdwg.mxu0
        %v4078 = vpack.c.bf16 %v3541, %v3541
        %v4079 = vpack.c.bf16 %v3713, %v3713
        %v4081 = vsel %vm3979, %v4078, 0
        %v4084 = vsel %vm3979, %v4079, 0
        %4086 = vmatprep.subr.bf16.mxu0 0
        %4087 = vmatpush1.bf16.xpose.msra.mxu0 %v4084
        %4088 = vmatprep.subr.bf16.mxu0 0
        %4089 = vmatpush1.bf16.xpose.msra.mxu0 0
        %4090 = vmatprep.subr.bf16.mxu0 0
        %4091 = vmatpush1.bf16.xpose.msra.mxu0 0
        %4092 = vmatprep.subr.bf16.mxu0 0
        %4093 = vmatpush1.bf16.xpose.msra.mxu0 0
        %4094 = vmatprep.subr.bf16.mxu0 0
        %4095 = vmatpush1.bf16.xpose.msra.mxu0 0
        %4096 = vmatprep.subr.bf16.mxu0 0
        %4097 = vmatpush1.bf16.xpose.msra.mxu0 0
        %4098 = vmatprep.subr.bf16.mxu0 0
        %4099 = vmatpush1.bf16.xpose.msra.mxu0 0
        %4100 = vmatprep.subr.bf16.mxu0 0
        %4101 = vmatpush1.bf16.xpose.msra.mxu0 0
        %4102 = vmatprep.subr.bf16.mxu0 0
        %4103 = vmatpush1.bf16.xpose.msra.mxu0 0
        %4104 = vmatprep.subr.bf16.mxu0 0
        %4105 = vmatpush1.bf16.xpose.msra.mxu0 0
        %4106 = vmatprep.subr.bf16.mxu0 0
        %4107 = vmatpush1.bf16.xpose.msra.mxu0 0
        %4108 = vmatprep.subr.bf16.mxu0 0
        %4109 = vmatpush1.bf16.xpose.msra.mxu0 0
        %4110 = vmatprep.subr.bf16.mxu0 0
        %4111 = vmatpush1.bf16.xpose.msra.mxu0 0
        %4112 = vmatprep.subr.bf16.mxu0 0
        %4113 = vmatpush1.bf16.xpose.msra.mxu0 0
        %4114 = vmatprep.subr.bf16.mxu0 0
        %4115 = vmatpush1.bf16.xpose.msra.mxu0 0
        %4116 = vmatprep.subr.bf16.mxu0 0
        %4117 = vmatpush1.bf16.xpose.msra.mxu0 0
        %4118 = vmatprep.mubr.bf16.mxu0 0
        %4119 = vmatmul.mubr.bf16.gmra.mrb[0].mxu0 %v4081
        %v4120 = vpop.f32.mrb[0].mxu0
        %v4121 = vadd.f32 0.0, %v4120
        %v4122 = vpop.f32.mrb[0].mxu0
        %v4123 = vpop.f32.mrb[0].mxu0
        %v4124 = vpop.f32.mrb[0].mxu0
        %4125 = vdwg.mxu0
        %4127 = vrot.lane.b32.xlu0 %v4078, 64
        %v4128 = vpop.permute.xlu0 %4127
        %4130 = vrot.lane.b32.xlu0 %v4079, 64
        %v4131 = vpop.permute.xlu0 %4130
        %v4133 = vsel %vm3979, %v4128, 0
        %v4136 = vsel %vm3979, %v4131, 0
        %4138 = vmatprep.subr.bf16.mxu0 0
        %4139 = vmatpush1.bf16.xpose.msra.mxu0 %v4136
        %4140 = vmatprep.subr.bf16.mxu0 0
        %4141 = vmatpush1.bf16.xpose.msra.mxu0 0
        %4142 = vmatprep.subr.bf16.mxu0 0
        %4143 = vmatpush1.bf16.xpose.msra.mxu0 0
        %4144 = vmatprep.subr.bf16.mxu0 0
        %4145 = vmatpush1.bf16.xpose.msra.mxu0 0
        %4146 = vmatprep.subr.bf16.mxu0 0
        %4147 = vmatpush1.bf16.xpose.msra.mxu0 0
        %4148 = vmatprep.subr.bf16.mxu0 0
        %4149 = vmatpush1.bf16.xpose.msra.mxu0 0
        %4150 = vmatprep.subr.bf16.mxu0 0
        %4151 = vmatpush1.bf16.xpose.msra.mxu0 0
        %4152 = vmatprep.subr.bf16.mxu0 0
        %4153 = vmatpush1.bf16.xpose.msra.mxu0 0
        %4154 = vmatprep.subr.bf16.mxu0 0
        %4155 = vmatpush1.bf16.xpose.msra.mxu0 0
        %4156 = vmatprep.subr.bf16.mxu0 0
        %4157 = vmatpush1.bf16.xpose.msra.mxu0 0
        %4158 = vmatprep.subr.bf16.mxu0 0
        %4159 = vmatpush1.bf16.xpose.msra.mxu0 0
        %4160 = vmatprep.subr.bf16.mxu0 0
        %4161 = vmatpush1.bf16.xpose.msra.mxu0 0
        %4162 = vmatprep.subr.bf16.mxu0 0
        %4163 = vmatpush1.bf16.xpose.msra.mxu0 0
        %4164 = vmatprep.subr.bf16.mxu0 0
        %4165 = vmatpush1.bf16.xpose.msra.mxu0 0
        %4166 = vmatprep.subr.bf16.mxu0 0
        %4167 = vmatpush1.bf16.xpose.msra.mxu0 0
        %4168 = vmatprep.subr.bf16.mxu0 0
        %4169 = vmatpush1.bf16.xpose.msra.mxu0 0
        %4170 = vmatprep.mubr.bf16.mxu0 0
        %4171 = vmatmul.mubr.bf16.gmra.mrb[0].mxu0 %v4133
        %v4172 = vpop.f32.mrb[0].mxu0
        %v4173 = vadd.f32 0.0, %v4172
        %v4174 = vpop.f32.mrb[0].mxu0
        %v4175 = vpop.f32.mrb[0].mxu0
        %v4176 = vpop.f32.mrb[0].mxu0
        %4177 = vdwg.mxu0
        %v4178 = vpack.c.bf16 %v3625, %v3625
        %v4179 = vpack.c.bf16 %v3797, %v3797
        %v4181 = vsel %vm3979, %v4178, 0
        %v4184 = vsel %vm3979, %v4179, 0
        %4186 = vmatprep.subr.bf16.mxu0 0
        %4187 = vmatpush1.bf16.xpose.msra.mxu0 %v4184
        %4188 = vmatprep.subr.bf16.mxu0 0
        %4189 = vmatpush1.bf16.xpose.msra.mxu0 0
        %4190 = vmatprep.subr.bf16.mxu0 0
        %4191 = vmatpush1.bf16.xpose.msra.mxu0 0
        %4192 = vmatprep.subr.bf16.mxu0 0
        %4193 = vmatpush1.bf16.xpose.msra.mxu0 0
        %4194 = vmatprep.subr.bf16.mxu0 0
        %4195 = vmatpush1.bf16.xpose.msra.mxu0 0
        %4196 = vmatprep.subr.bf16.mxu0 0
        %4197 = vmatpush1.bf16.xpose.msra.mxu0 0
        %4198 = vmatprep.subr.bf16.mxu0 0
        %4199 = vmatpush1.bf16.xpose.msra.mxu0 0
        %4200 = vmatprep.subr.bf16.mxu0 0
        %4201 = vmatpush1.bf16.xpose.msra.mxu0 0
        %4202 = vmatprep.subr.bf16.mxu0 0
        %4203 = vmatpush1.bf16.xpose.msra.mxu0 0
        %4204 = vmatprep.subr.bf16.mxu0 0
        %4205 = vmatpush1.bf16.xpose.msra.mxu0 0
        %4206 = vmatprep.subr.bf16.mxu0 0
        %4207 = vmatpush1.bf16.xpose.msra.mxu0 0
        %4208 = vmatprep.subr.bf16.mxu0 0
        %4209 = vmatpush1.bf16.xpose.msra.mxu0 0
        %4210 = vmatprep.subr.bf16.mxu0 0
        %4211 = vmatpush1.bf16.xpose.msra.mxu0 0
        %4212 = vmatprep.subr.bf16.mxu0 0
        %4213 = vmatpush1.bf16.xpose.msra.mxu0 0
        %4214 = vmatprep.subr.bf16.mxu0 0
        %4215 = vmatpush1.bf16.xpose.msra.mxu0 0
        %4216 = vmatprep.subr.bf16.mxu0 0
        %4217 = vmatpush1.bf16.xpose.msra.mxu0 0
        %4218 = vmatprep.mubr.bf16.mxu0 0
        %4219 = vmatmul.mubr.bf16.gmra.mrb[0].mxu0 %v4181
        %v4220 = vpop.f32.mrb[0].mxu0
        %v4221 = vadd.f32 0.0, %v4220
        %v4222 = vpop.f32.mrb[0].mxu0
        %v4223 = vpop.f32.mrb[0].mxu0
        %v4224 = vpop.f32.mrb[0].mxu0
        %4225 = vdwg.mxu0
        %4227 = vrot.lane.b32.xlu0 %v4178, 64
        %v4228 = vpop.permute.xlu0 %4227
        %4230 = vrot.lane.b32.xlu0 %v4179, 64
        %v4231 = vpop.permute.xlu0 %4230
        %v4233 = vsel %vm3979, %v4228, 0
        %v4236 = vsel %vm3979, %v4231, 0
        %4238 = vmatprep.subr.bf16.mxu0 0
        %4239 = vmatpush1.bf16.xpose.msra.mxu0 %v4236
        %4240 = vmatprep.subr.bf16.mxu0 0
        %4241 = vmatpush1.bf16.xpose.msra.mxu0 0
        %4242 = vmatprep.subr.bf16.mxu0 0
        %4243 = vmatpush1.bf16.xpose.msra.mxu0 0
        %4244 = vmatprep.subr.bf16.mxu0 0
        %4245 = vmatpush1.bf16.xpose.msra.mxu0 0
        %4246 = vmatprep.subr.bf16.mxu0 0
        %4247 = vmatpush1.bf16.xpose.msra.mxu0 0
        %4248 = vmatprep.subr.bf16.mxu0 0
        %4249 = vmatpush1.bf16.xpose.msra.mxu0 0
        %4250 = vmatprep.subr.bf16.mxu0 0
        %4251 = vmatpush1.bf16.xpose.msra.mxu0 0
        %4252 = vmatprep.subr.bf16.mxu0 0
        %4253 = vmatpush1.bf16.xpose.msra.mxu0 0
        %4254 = vmatprep.subr.bf16.mxu0 0
        %4255 = vmatpush1.bf16.xpose.msra.mxu0 0
        %4256 = vmatprep.subr.bf16.mxu0 0
        %4257 = vmatpush1.bf16.xpose.msra.mxu0 0
        %4258 = vmatprep.subr.bf16.mxu0 0
        %4259 = vmatpush1.bf16.xpose.msra.mxu0 0
        %4260 = vmatprep.subr.bf16.mxu0 0
        %4261 = vmatpush1.bf16.xpose.msra.mxu0 0
        %4262 = vmatprep.subr.bf16.mxu0 0
        %4263 = vmatpush1.bf16.xpose.msra.mxu0 0
        %4264 = vmatprep.subr.bf16.mxu0 0
        %4265 = vmatpush1.bf16.xpose.msra.mxu0 0
        %4266 = vmatprep.subr.bf16.mxu0 0
        %4267 = vmatpush1.bf16.xpose.msra.mxu0 0
        %4268 = vmatprep.subr.bf16.mxu0 0
        %4269 = vmatpush1.bf16.xpose.msra.mxu0 0
        %4270 = vmatprep.mubr.bf16.mxu0 0
        %4271 = vmatmul.mubr.bf16.gmra.mrb[0].mxu0 %v4233
        %v4272 = vpop.f32.mrb[0].mxu0
        %v4273 = vadd.f32 0.0, %v4272
        %v4274 = vpop.f32.mrb[0].mxu0
        %v4275 = vpop.f32.mrb[0].mxu0
        %v4276 = vpop.f32.mrb[0].mxu0
        %4277 = vdwg.mxu0
        %v4278 = vpack.c.bf16 %v3627, %v3627
        %v4279 = vpack.c.bf16 %v3799, %v3799
        %v4281 = vsel %vm3979, %v4278, 0
        %v4284 = vsel %vm3979, %v4279, 0
        %4286 = vmatprep.subr.bf16.mxu0 0
        %4287 = vmatpush1.bf16.xpose.msra.mxu0 %v4284
        %4288 = vmatprep.subr.bf16.mxu0 0
        %4289 = vmatpush1.bf16.xpose.msra.mxu0 0
        %4290 = vmatprep.subr.bf16.mxu0 0
        %4291 = vmatpush1.bf16.xpose.msra.mxu0 0
        %4292 = vmatprep.subr.bf16.mxu0 0
        %4293 = vmatpush1.bf16.xpose.msra.mxu0 0
        %4294 = vmatprep.subr.bf16.mxu0 0
        %4295 = vmatpush1.bf16.xpose.msra.mxu0 0
        %4296 = vmatprep.subr.bf16.mxu0 0
        %4297 = vmatpush1.bf16.xpose.msra.mxu0 0
        %4298 = vmatprep.subr.bf16.mxu0 0
        %4299 = vmatpush1.bf16.xpose.msra.mxu0 0
        %4300 = vmatprep.subr.bf16.mxu0 0
        %4301 = vmatpush1.bf16.xpose.msra.mxu0 0
        %4302 = vmatprep.subr.bf16.mxu0 0
        %4303 = vmatpush1.bf16.xpose.msra.mxu0 0
        %4304 = vmatprep.subr.bf16.mxu0 0
        %4305 = vmatpush1.bf16.xpose.msra.mxu0 0
        %4306 = vmatprep.subr.bf16.mxu0 0
        %4307 = vmatpush1.bf16.xpose.msra.mxu0 0
        %4308 = vmatprep.subr.bf16.mxu0 0
        %4309 = vmatpush1.bf16.xpose.msra.mxu0 0
        %4310 = vmatprep.subr.bf16.mxu0 0
        %4311 = vmatpush1.bf16.xpose.msra.mxu0 0
        %4312 = vmatprep.subr.bf16.mxu0 0
        %4313 = vmatpush1.bf16.xpose.msra.mxu0 0
        %4314 = vmatprep.subr.bf16.mxu0 0
        %4315 = vmatpush1.bf16.xpose.msra.mxu0 0
        %4316 = vmatprep.subr.bf16.mxu0 0
        %4317 = vmatpush1.bf16.xpose.msra.mxu0 0
        %4318 = vmatprep.mubr.bf16.mxu0 0
        %4319 = vmatmul.mubr.bf16.gmra.mrb[0].mxu0 %v4281
        %v4320 = vpop.f32.mrb[0].mxu0
        %v4321 = vadd.f32 0.0, %v4320
        %v4322 = vpop.f32.mrb[0].mxu0
        %v4323 = vpop.f32.mrb[0].mxu0
        %v4324 = vpop.f32.mrb[0].mxu0
        %4325 = vdwg.mxu0
        %4327 = vrot.lane.b32.xlu0 %v4278, 64
        %v4328 = vpop.permute.xlu0 %4327
        %4330 = vrot.lane.b32.xlu0 %v4279, 64
        %v4331 = vpop.permute.xlu0 %4330
        %v4333 = vsel %vm3979, %v4328, 0
        %v4336 = vsel %vm3979, %v4331, 0
        %4338 = vmatprep.subr.bf16.mxu0 0
        %4339 = vmatpush1.bf16.xpose.msra.mxu0 %v4336
        %4340 = vmatprep.subr.bf16.mxu0 0
        %4341 = vmatpush1.bf16.xpose.msra.mxu0 0
        %4342 = vmatprep.subr.bf16.mxu0 0
        %4343 = vmatpush1.bf16.xpose.msra.mxu0 0
        %4344 = vmatprep.subr.bf16.mxu0 0
        %4345 = vmatpush1.bf16.xpose.msra.mxu0 0
        %4346 = vmatprep.subr.bf16.mxu0 0
        %4347 = vmatpush1.bf16.xpose.msra.mxu0 0
        %4348 = vmatprep.subr.bf16.mxu0 0
        %4349 = vmatpush1.bf16.xpose.msra.mxu0 0
        %4350 = vmatprep.subr.bf16.mxu0 0
        %4351 = vmatpush1.bf16.xpose.msra.mxu0 0
        %4352 = vmatprep.subr.bf16.mxu0 0
        %4353 = vmatpush1.bf16.xpose.msra.mxu0 0
        %4354 = vmatprep.subr.bf16.mxu0 0
        %4355 = vmatpush1.bf16.xpose.msra.mxu0 0
        %4356 = vmatprep.subr.bf16.mxu0 0
        %4357 = vmatpush1.bf16.xpose.msra.mxu0 0
        %4358 = vmatprep.subr.bf16.mxu0 0
        %4359 = vmatpush1.bf16.xpose.msra.mxu0 0
        %4360 = vmatprep.subr.bf16.mxu0 0
        %4361 = vmatpush1.bf16.xpose.msra.mxu0 0
        %4362 = vmatprep.subr.bf16.mxu0 0
        %4363 = vmatpush1.bf16.xpose.msra.mxu0 0
        %4364 = vmatprep.subr.bf16.mxu0 0
        %4365 = vmatpush1.bf16.xpose.msra.mxu0 0
        %4366 = vmatprep.subr.bf16.mxu0 0
        %4367 = vmatpush1.bf16.xpose.msra.mxu0 0
        %4368 = vmatprep.subr.bf16.mxu0 0
        %4369 = vmatpush1.bf16.xpose.msra.mxu0 0
        %4370 = vmatprep.mubr.bf16.mxu0 0
        %4371 = vmatmul.mubr.bf16.gmra.mrb[0].mxu0 %v4333
        %v4372 = vpop.f32.mrb[0].mxu0
        %v4373 = vadd.f32 0.0, %v4372
        %v4374 = vpop.f32.mrb[0].mxu0
        %v4375 = vpop.f32.mrb[0].mxu0
        %v4376 = vpop.f32.mrb[0].mxu0
        %4377 = vdwg.mxu0
        %v4378 = vpack.c.bf16 %v3543, %v3543
        %v4379 = vpack.c.bf16 %v3715, %v3715
        %v4381 = vsel %vm3979, %v4378, 0
        %v4384 = vsel %vm3979, %v4379, 0
        %4386 = vmatprep.subr.bf16.mxu0 0
        %4387 = vmatpush1.bf16.xpose.msra.mxu0 %v4384
        %4388 = vmatprep.subr.bf16.mxu0 0
        %4389 = vmatpush1.bf16.xpose.msra.mxu0 0
        %4390 = vmatprep.subr.bf16.mxu0 0
        %4391 = vmatpush1.bf16.xpose.msra.mxu0 0
        %4392 = vmatprep.subr.bf16.mxu0 0
        %4393 = vmatpush1.bf16.xpose.msra.mxu0 0
        %4394 = vmatprep.subr.bf16.mxu0 0
        %4395 = vmatpush1.bf16.xpose.msra.mxu0 0
        %4396 = vmatprep.subr.bf16.mxu0 0
        %4397 = vmatpush1.bf16.xpose.msra.mxu0 0
        %4398 = vmatprep.subr.bf16.mxu0 0
        %4399 = vmatpush1.bf16.xpose.msra.mxu0 0
        %4400 = vmatprep.subr.bf16.mxu0 0
        %4401 = vmatpush1.bf16.xpose.msra.mxu0 0
        %4402 = vmatprep.subr.bf16.mxu0 0
        %4403 = vmatpush1.bf16.xpose.msra.mxu0 0
        %4404 = vmatprep.subr.bf16.mxu0 0
        %4405 = vmatpush1.bf16.xpose.msra.mxu0 0
        %4406 = vmatprep.subr.bf16.mxu0 0
        %4407 = vmatpush1.bf16.xpose.msra.mxu0 0
        %4408 = vmatprep.subr.bf16.mxu0 0
        %4409 = vmatpush1.bf16.xpose.msra.mxu0 0
        %4410 = vmatprep.subr.bf16.mxu0 0
        %4411 = vmatpush1.bf16.xpose.msra.mxu0 0
        %4412 = vmatprep.subr.bf16.mxu0 0
        %4413 = vmatpush1.bf16.xpose.msra.mxu0 0
        %4414 = vmatprep.subr.bf16.mxu0 0
        %4415 = vmatpush1.bf16.xpose.msra.mxu0 0
        %4416 = vmatprep.subr.bf16.mxu0 0
        %4417 = vmatpush1.bf16.xpose.msra.mxu0 0
        %4418 = vmatprep.mubr.bf16.mxu0 0
        %4419 = vmatmul.mubr.bf16.gmra.mrb[0].mxu0 %v4381
        %v4420 = vpop.f32.mrb[0].mxu0
        %v4421 = vadd.f32 0.0, %v4420
        %v4422 = vpop.f32.mrb[0].mxu0
        %v4423 = vpop.f32.mrb[0].mxu0
        %v4424 = vpop.f32.mrb[0].mxu0
        %4425 = vdwg.mxu0
        %4427 = vrot.lane.b32.xlu0 %v4378, 64
        %v4428 = vpop.permute.xlu0 %4427
        %4430 = vrot.lane.b32.xlu0 %v4379, 64
        %v4431 = vpop.permute.xlu0 %4430
        %v4433 = vsel %vm3979, %v4428, 0
        %v4436 = vsel %vm3979, %v4431, 0
        %4438 = vmatprep.subr.bf16.mxu0 0
        %4439 = vmatpush1.bf16.xpose.msra.mxu0 %v4436
        %4440 = vmatprep.subr.bf16.mxu0 0
        %4441 = vmatpush1.bf16.xpose.msra.mxu0 0
        %4442 = vmatprep.subr.bf16.mxu0 0
        %4443 = vmatpush1.bf16.xpose.msra.mxu0 0
        %4444 = vmatprep.subr.bf16.mxu0 0
        %4445 = vmatpush1.bf16.xpose.msra.mxu0 0
        %4446 = vmatprep.subr.bf16.mxu0 0
        %4447 = vmatpush1.bf16.xpose.msra.mxu0 0
        %4448 = vmatprep.subr.bf16.mxu0 0
        %4449 = vmatpush1.bf16.xpose.msra.mxu0 0
        %4450 = vmatprep.subr.bf16.mxu0 0
        %4451 = vmatpush1.bf16.xpose.msra.mxu0 0
        %4452 = vmatprep.subr.bf16.mxu0 0
        %4453 = vmatpush1.bf16.xpose.msra.mxu0 0
        %4454 = vmatprep.subr.bf16.mxu0 0
        %4455 = vmatpush1.bf16.xpose.msra.mxu0 0
        %4456 = vmatprep.subr.bf16.mxu0 0
        %4457 = vmatpush1.bf16.xpose.msra.mxu0 0
        %4458 = vmatprep.subr.bf16.mxu0 0
        %4459 = vmatpush1.bf16.xpose.msra.mxu0 0
        %4460 = vmatprep.subr.bf16.mxu0 0
        %4461 = vmatpush1.bf16.xpose.msra.mxu0 0
        %4462 = vmatprep.subr.bf16.mxu0 0
        %4463 = vmatpush1.bf16.xpose.msra.mxu0 0
        %4464 = vmatprep.subr.bf16.mxu0 0
        %4465 = vmatpush1.bf16.xpose.msra.mxu0 0
        %4466 = vmatprep.subr.bf16.mxu0 0
        %4467 = vmatpush1.bf16.xpose.msra.mxu0 0
        %4468 = vmatprep.subr.bf16.mxu0 0
        %4469 = vmatpush1.bf16.xpose.msra.mxu0 0
        %4470 = vmatprep.mubr.bf16.mxu0 0
        %4471 = vmatmul.mubr.bf16.gmra.mrb[0].mxu0 %v4433
        %v4472 = vpop.f32.mrb[0].mxu0
        %v4473 = vadd.f32 0.0, %v4472
        %v4474 = vpop.f32.mrb[0].mxu0
        %v4475 = vpop.f32.mrb[0].mxu0
        %v4476 = vpop.f32.mrb[0].mxu0
        %4477 = vdwg.mxu0
        %v4478 = vpack.c.bf16 %v3545, %v3545
        %v4479 = vpack.c.bf16 %v3717, %v3717
        %v4481 = vsel %vm3979, %v4478, 0
        %v4484 = vsel %vm3979, %v4479, 0
        %4486 = vmatprep.subr.bf16.mxu0 0
        %4487 = vmatpush1.bf16.xpose.msra.mxu0 %v4484
        %4488 = vmatprep.subr.bf16.mxu0 0
        %4489 = vmatpush1.bf16.xpose.msra.mxu0 0
        %4490 = vmatprep.subr.bf16.mxu0 0
        %4491 = vmatpush1.bf16.xpose.msra.mxu0 0
        %4492 = vmatprep.subr.bf16.mxu0 0
        %4493 = vmatpush1.bf16.xpose.msra.mxu0 0
        %4494 = vmatprep.subr.bf16.mxu0 0
        %4495 = vmatpush1.bf16.xpose.msra.mxu0 0
        %4496 = vmatprep.subr.bf16.mxu0 0
        %4497 = vmatpush1.bf16.xpose.msra.mxu0 0
        %4498 = vmatprep.subr.bf16.mxu0 0
        %4499 = vmatpush1.bf16.xpose.msra.mxu0 0
        %4500 = vmatprep.subr.bf16.mxu0 0
        %4501 = vmatpush1.bf16.xpose.msra.mxu0 0
        %4502 = vmatprep.subr.bf16.mxu0 0
        %4503 = vmatpush1.bf16.xpose.msra.mxu0 0
        %4504 = vmatprep.subr.bf16.mxu0 0
        %4505 = vmatpush1.bf16.xpose.msra.mxu0 0
        %4506 = vmatprep.subr.bf16.mxu0 0
        %4507 = vmatpush1.bf16.xpose.msra.mxu0 0
        %4508 = vmatprep.subr.bf16.mxu0 0
        %4509 = vmatpush1.bf16.xpose.msra.mxu0 0
        %4510 = vmatprep.subr.bf16.mxu0 0
        %4511 = vmatpush1.bf16.xpose.msra.mxu0 0
        %4512 = vmatprep.subr.bf16.mxu0 0
        %4513 = vmatpush1.bf16.xpose.msra.mxu0 0
        %4514 = vmatprep.subr.bf16.mxu0 0
        %4515 = vmatpush1.bf16.xpose.msra.mxu0 0
        %4516 = vmatprep.subr.bf16.mxu0 0
        %4517 = vmatpush1.bf16.xpose.msra.mxu0 0
        %4518 = vmatprep.mubr.bf16.mxu0 0
        %4519 = vmatmul.mubr.bf16.gmra.mrb[0].mxu0 %v4481
        %v4520 = vpop.f32.mrb[0].mxu0
        %v4521 = vadd.f32 0.0, %v4520
        %v4522 = vpop.f32.mrb[0].mxu0
        %v4523 = vpop.f32.mrb[0].mxu0
        %v4524 = vpop.f32.mrb[0].mxu0
        %4525 = vdwg.mxu0
        %4527 = vrot.lane.b32.xlu0 %v4478, 64
        %v4528 = vpop.permute.xlu0 %4527
        %4530 = vrot.lane.b32.xlu0 %v4479, 64
        %v4531 = vpop.permute.xlu0 %4530
        %v4533 = vsel %vm3979, %v4528, 0
        %v4536 = vsel %vm3979, %v4531, 0
        %4538 = vmatprep.subr.bf16.mxu0 0
        %4539 = vmatpush1.bf16.xpose.msra.mxu0 %v4536
        %4540 = vmatprep.subr.bf16.mxu0 0
        %4541 = vmatpush1.bf16.xpose.msra.mxu0 0
        %4542 = vmatprep.subr.bf16.mxu0 0
        %4543 = vmatpush1.bf16.xpose.msra.mxu0 0
        %4544 = vmatprep.subr.bf16.mxu0 0
        %4545 = vmatpush1.bf16.xpose.msra.mxu0 0
        %4546 = vmatprep.subr.bf16.mxu0 0
        %4547 = vmatpush1.bf16.xpose.msra.mxu0 0
        %4548 = vmatprep.subr.bf16.mxu0 0
        %4549 = vmatpush1.bf16.xpose.msra.mxu0 0
        %4550 = vmatprep.subr.bf16.mxu0 0
        %4551 = vmatpush1.bf16.xpose.msra.mxu0 0
        %4552 = vmatprep.subr.bf16.mxu0 0
        %4553 = vmatpush1.bf16.xpose.msra.mxu0 0
        %4554 = vmatprep.subr.bf16.mxu0 0
        %4555 = vmatpush1.bf16.xpose.msra.mxu0 0
        %4556 = vmatprep.subr.bf16.mxu0 0
        %4557 = vmatpush1.bf16.xpose.msra.mxu0 0
        %4558 = vmatprep.subr.bf16.mxu0 0
        %4559 = vmatpush1.bf16.xpose.msra.mxu0 0
        %4560 = vmatprep.subr.bf16.mxu0 0
        %4561 = vmatpush1.bf16.xpose.msra.mxu0 0
        %4562 = vmatprep.subr.bf16.mxu0 0
        %4563 = vmatpush1.bf16.xpose.msra.mxu0 0
        %4564 = vmatprep.subr.bf16.mxu0 0
        %4565 = vmatpush1.bf16.xpose.msra.mxu0 0
        %4566 = vmatprep.subr.bf16.mxu0 0
        %4567 = vmatpush1.bf16.xpose.msra.mxu0 0
        %4568 = vmatprep.subr.bf16.mxu0 0
        %4569 = vmatpush1.bf16.xpose.msra.mxu0 0
        %4570 = vmatprep.mubr.bf16.mxu0 0
        %4571 = vmatmul.mubr.bf16.gmra.mrb[0].mxu0 %v4533
        %v4572 = vpop.f32.mrb[0].mxu0
        %v4573 = vadd.f32 0.0, %v4572
        %v4574 = vpop.f32.mrb[0].mxu0
        %v4575 = vpop.f32.mrb[0].mxu0
        %v4576 = vpop.f32.mrb[0].mxu0
        %4577 = vdwg.mxu0
        %v4578 = vpack.c.bf16 %v3629, %v3629
        %v4579 = vpack.c.bf16 %v3801, %v3801
        %v4581 = vsel %vm3979, %v4578, 0
        %v4584 = vsel %vm3979, %v4579, 0
        %4586 = vmatprep.subr.bf16.mxu0 0
        %4587 = vmatpush1.bf16.xpose.msra.mxu0 %v4584
        %4588 = vmatprep.subr.bf16.mxu0 0
        %4589 = vmatpush1.bf16.xpose.msra.mxu0 0
        %4590 = vmatprep.subr.bf16.mxu0 0
        %4591 = vmatpush1.bf16.xpose.msra.mxu0 0
        %4592 = vmatprep.subr.bf16.mxu0 0
        %4593 = vmatpush1.bf16.xpose.msra.mxu0 0
        %4594 = vmatprep.subr.bf16.mxu0 0
        %4595 = vmatpush1.bf16.xpose.msra.mxu0 0
        %4596 = vmatprep.subr.bf16.mxu0 0
        %4597 = vmatpush1.bf16.xpose.msra.mxu0 0
        %4598 = vmatprep.subr.bf16.mxu0 0
        %4599 = vmatpush1.bf16.xpose.msra.mxu0 0
        %4600 = vmatprep.subr.bf16.mxu0 0
        %4601 = vmatpush1.bf16.xpose.msra.mxu0 0
        %4602 = vmatprep.subr.bf16.mxu0 0
        %4603 = vmatpush1.bf16.xpose.msra.mxu0 0
        %4604 = vmatprep.subr.bf16.mxu0 0
        %4605 = vmatpush1.bf16.xpose.msra.mxu0 0
        %4606 = vmatprep.subr.bf16.mxu0 0
        %4607 = vmatpush1.bf16.xpose.msra.mxu0 0
        %4608 = vmatprep.subr.bf16.mxu0 0
        %4609 = vmatpush1.bf16.xpose.msra.mxu0 0
        %4610 = vmatprep.subr.bf16.mxu0 0
        %4611 = vmatpush1.bf16.xpose.msra.mxu0 0
        %4612 = vmatprep.subr.bf16.mxu0 0
        %4613 = vmatpush1.bf16.xpose.msra.mxu0 0
        %4614 = vmatprep.subr.bf16.mxu0 0
        %4615 = vmatpush1.bf16.xpose.msra.mxu0 0
        %4616 = vmatprep.subr.bf16.mxu0 0
        %4617 = vmatpush1.bf16.xpose.msra.mxu0 0
        %4618 = vmatprep.mubr.bf16.mxu0 0
        %4619 = vmatmul.mubr.bf16.gmra.mrb[0].mxu0 %v4581
        %v4620 = vpop.f32.mrb[0].mxu0
        %v4621 = vadd.f32 0.0, %v4620
        %v4622 = vpop.f32.mrb[0].mxu0
        %v4623 = vpop.f32.mrb[0].mxu0
        %v4624 = vpop.f32.mrb[0].mxu0
        %4625 = vdwg.mxu0
        %4627 = vrot.lane.b32.xlu0 %v4578, 64
        %v4628 = vpop.permute.xlu0 %4627
        %4630 = vrot.lane.b32.xlu0 %v4579, 64
        %v4631 = vpop.permute.xlu0 %4630
        %v4633 = vsel %vm3979, %v4628, 0
        %v4636 = vsel %vm3979, %v4631, 0
        %4638 = vmatprep.subr.bf16.mxu0 0
        %4639 = vmatpush1.bf16.xpose.msra.mxu0 %v4636
        %4640 = vmatprep.subr.bf16.mxu0 0
        %4641 = vmatpush1.bf16.xpose.msra.mxu0 0
        %4642 = vmatprep.subr.bf16.mxu0 0
        %4643 = vmatpush1.bf16.xpose.msra.mxu0 0
        %4644 = vmatprep.subr.bf16.mxu0 0
        %4645 = vmatpush1.bf16.xpose.msra.mxu0 0
        %4646 = vmatprep.subr.bf16.mxu0 0
        %4647 = vmatpush1.bf16.xpose.msra.mxu0 0
        %4648 = vmatprep.subr.bf16.mxu0 0
        %4649 = vmatpush1.bf16.xpose.msra.mxu0 0
        %4650 = vmatprep.subr.bf16.mxu0 0
        %4651 = vmatpush1.bf16.xpose.msra.mxu0 0
        %4652 = vmatprep.subr.bf16.mxu0 0
        %4653 = vmatpush1.bf16.xpose.msra.mxu0 0
        %4654 = vmatprep.subr.bf16.mxu0 0
        %4655 = vmatpush1.bf16.xpose.msra.mxu0 0
        %4656 = vmatprep.subr.bf16.mxu0 0
        %4657 = vmatpush1.bf16.xpose.msra.mxu0 0
        %4658 = vmatprep.subr.bf16.mxu0 0
        %4659 = vmatpush1.bf16.xpose.msra.mxu0 0
        %4660 = vmatprep.subr.bf16.mxu0 0
        %4661 = vmatpush1.bf16.xpose.msra.mxu0 0
        %4662 = vmatprep.subr.bf16.mxu0 0
        %4663 = vmatpush1.bf16.xpose.msra.mxu0 0
        %4664 = vmatprep.subr.bf16.mxu0 0
        %4665 = vmatpush1.bf16.xpose.msra.mxu0 0
        %4666 = vmatprep.subr.bf16.mxu0 0
        %4667 = vmatpush1.bf16.xpose.msra.mxu0 0
        %4668 = vmatprep.subr.bf16.mxu0 0
        %4669 = vmatpush1.bf16.xpose.msra.mxu0 0
        %4670 = vmatprep.mubr.bf16.mxu0 0
        %4671 = vmatmul.mubr.bf16.gmra.mrb[0].mxu0 %v4633
        %v4672 = vpop.f32.mrb[0].mxu0
        %v4673 = vadd.f32 0.0, %v4672
        %v4674 = vpop.f32.mrb[0].mxu0
        %v4675 = vpop.f32.mrb[0].mxu0
        %v4676 = vpop.f32.mrb[0].mxu0
        %4677 = vdwg.mxu0
        %v4678 = vpack.c.bf16 %v3631, %v3631
        %v4679 = vpack.c.bf16 %v3803, %v3803
        %v4681 = vsel %vm3979, %v4678, 0
        %v4684 = vsel %vm3979, %v4679, 0
        %4686 = vmatprep.subr.bf16.mxu0 0
        %4687 = vmatpush1.bf16.xpose.msra.mxu0 %v4684
        %4688 = vmatprep.subr.bf16.mxu0 0
        %4689 = vmatpush1.bf16.xpose.msra.mxu0 0
        %4690 = vmatprep.subr.bf16.mxu0 0
        %4691 = vmatpush1.bf16.xpose.msra.mxu0 0
        %4692 = vmatprep.subr.bf16.mxu0 0
        %4693 = vmatpush1.bf16.xpose.msra.mxu0 0
        %4694 = vmatprep.subr.bf16.mxu0 0
        %4695 = vmatpush1.bf16.xpose.msra.mxu0 0
        %4696 = vmatprep.subr.bf16.mxu0 0
        %4697 = vmatpush1.bf16.xpose.msra.mxu0 0
        %4698 = vmatprep.subr.bf16.mxu0 0
        %4699 = vmatpush1.bf16.xpose.msra.mxu0 0
        %4700 = vmatprep.subr.bf16.mxu0 0
        %4701 = vmatpush1.bf16.xpose.msra.mxu0 0
        %4702 = vmatprep.subr.bf16.mxu0 0
        %4703 = vmatpush1.bf16.xpose.msra.mxu0 0
        %4704 = vmatprep.subr.bf16.mxu0 0
        %4705 = vmatpush1.bf16.xpose.msra.mxu0 0
        %4706 = vmatprep.subr.bf16.mxu0 0
        %4707 = vmatpush1.bf16.xpose.msra.mxu0 0
        %4708 = vmatprep.subr.bf16.mxu0 0
        %4709 = vmatpush1.bf16.xpose.msra.mxu0 0
        %4710 = vmatprep.subr.bf16.mxu0 0
        %4711 = vmatpush1.bf16.xpose.msra.mxu0 0
        %4712 = vmatprep.subr.bf16.mxu0 0
        %4713 = vmatpush1.bf16.xpose.msra.mxu0 0
        %4714 = vmatprep.subr.bf16.mxu0 0
        %4715 = vmatpush1.bf16.xpose.msra.mxu0 0
        %4716 = vmatprep.subr.bf16.mxu0 0
        %4717 = vmatpush1.bf16.xpose.msra.mxu0 0
        %4718 = vmatprep.mubr.bf16.mxu0 0
        %4719 = vmatmul.mubr.bf16.gmra.mrb[0].mxu0 %v4681
        %v4720 = vpop.f32.mrb[0].mxu0
        %v4721 = vadd.f32 0.0, %v4720
        %v4722 = vpop.f32.mrb[0].mxu0
        %v4723 = vpop.f32.mrb[0].mxu0
        %v4724 = vpop.f32.mrb[0].mxu0
        %4725 = vdwg.mxu0
        %4727 = vrot.lane.b32.xlu0 %v4678, 64
        %v4728 = vpop.permute.xlu0 %4727
        %4730 = vrot.lane.b32.xlu0 %v4679, 64
        %v4731 = vpop.permute.xlu0 %4730
        %v4733 = vsel %vm3979, %v4728, 0
        %v4736 = vsel %vm3979, %v4731, 0
        %4738 = vmatprep.subr.bf16.mxu0 0
        %4739 = vmatpush1.bf16.xpose.msra.mxu0 %v4736
        %4740 = vmatprep.subr.bf16.mxu0 0
        %4741 = vmatpush1.bf16.xpose.msra.mxu0 0
        %4742 = vmatprep.subr.bf16.mxu0 0
        %4743 = vmatpush1.bf16.xpose.msra.mxu0 0
        %4744 = vmatprep.subr.bf16.mxu0 0
        %4745 = vmatpush1.bf16.xpose.msra.mxu0 0
        %4746 = vmatprep.subr.bf16.mxu0 0
        %4747 = vmatpush1.bf16.xpose.msra.mxu0 0
        %4748 = vmatprep.subr.bf16.mxu0 0
        %4749 = vmatpush1.bf16.xpose.msra.mxu0 0
        %4750 = vmatprep.subr.bf16.mxu0 0
        %4751 = vmatpush1.bf16.xpose.msra.mxu0 0
        %4752 = vmatprep.subr.bf16.mxu0 0
        %4753 = vmatpush1.bf16.xpose.msra.mxu0 0
        %4754 = vmatprep.subr.bf16.mxu0 0
        %4755 = vmatpush1.bf16.xpose.msra.mxu0 0
        %4756 = vmatprep.subr.bf16.mxu0 0
        %4757 = vmatpush1.bf16.xpose.msra.mxu0 0
        %4758 = vmatprep.subr.bf16.mxu0 0
        %4759 = vmatpush1.bf16.xpose.msra.mxu0 0
        %4760 = vmatprep.subr.bf16.mxu0 0
        %4761 = vmatpush1.bf16.xpose.msra.mxu0 0
        %4762 = vmatprep.subr.bf16.mxu0 0
        %4763 = vmatpush1.bf16.xpose.msra.mxu0 0
        %4764 = vmatprep.subr.bf16.mxu0 0
        %4765 = vmatpush1.bf16.xpose.msra.mxu0 0
        %4766 = vmatprep.subr.bf16.mxu0 0
        %4767 = vmatpush1.bf16.xpose.msra.mxu0 0
        %4768 = vmatprep.subr.bf16.mxu0 0
        %4769 = vmatpush1.bf16.xpose.msra.mxu0 0
        %4770 = vmatprep.mubr.bf16.mxu0 0
        %4771 = vmatmul.mubr.bf16.gmra.mrb[0].mxu0 %v4733
        %v4772 = vpop.f32.mrb[0].mxu0
        %v4773 = vadd.f32 0.0, %v4772
        %v4774 = vpop.f32.mrb[0].mxu0
        %v4775 = vpop.f32.mrb[0].mxu0
        %v4776 = vpop.f32.mrb[0].mxu0
        %4777 = vdwg.mxu0
        %vm4778 = vcmask 64512
        %v4779 = vsel %vm4778, %v4021, -inf
        %4780 = vmax.xlane.f32.xlu0 %v4779
        %v4781 = vpop.xlane.xlu0 %4780
        %v4782 = vsel %vm4778, %v4073, -inf
        %4783 = vmax.xlane.f32.xlu0 %v4782
        %v4784 = vpop.xlane.xlu0 %4783
        %v4785 = vsel %vm4778, %v4121, -inf
        %4786 = vmax.xlane.f32.xlu0 %v4785
        %v4787 = vpop.xlane.xlu0 %4786
        %v4788 = vsel %vm4778, %v4173, -inf
        %4789 = vmax.xlane.f32.xlu0 %v4788
        %v4790 = vpop.xlane.xlu0 %4789
        %v4791 = vsel %vm4778, %v4221, -inf
        %4792 = vmax.xlane.f32.xlu0 %v4791
        %v4793 = vpop.xlane.xlu0 %4792
        %v4794 = vsel %vm4778, %v4273, -inf
        %4795 = vmax.xlane.f32.xlu0 %v4794
        %v4796 = vpop.xlane.xlu0 %4795
        %v4797 = vsel %vm4778, %v4321, -inf
        %4798 = vmax.xlane.f32.xlu0 %v4797
        %v4799 = vpop.xlane.xlu0 %4798
        %v4800 = vsel %vm4778, %v4373, -inf
        %4801 = vmax.xlane.f32.xlu0 %v4800
        %v4802 = vpop.xlane.xlu0 %4801
        %v4803 = vsel %vm4778, %v4421, -inf
        %4804 = vmax.xlane.f32.xlu0 %v4803
        %v4805 = vpop.xlane.xlu0 %4804
        %v4806 = vsel %vm4778, %v4473, -inf
        %4807 = vmax.xlane.f32.xlu0 %v4806
        %v4808 = vpop.xlane.xlu0 %4807
        %v4809 = vsel %vm4778, %v4521, -inf
        %4810 = vmax.xlane.f32.xlu0 %v4809
        %v4811 = vpop.xlane.xlu0 %4810
        %v4812 = vsel %vm4778, %v4573, -inf
        %4813 = vmax.xlane.f32.xlu0 %v4812
        %v4814 = vpop.xlane.xlu0 %4813
        %v4815 = vsel %vm4778, %v4621, -inf
        %4816 = vmax.xlane.f32.xlu0 %v4815
        %v4817 = vpop.xlane.xlu0 %4816
        %v4818 = vsel %vm4778, %v4673, -inf
        %4819 = vmax.xlane.f32.xlu0 %v4818
        %v4820 = vpop.xlane.xlu0 %4819
        %v4821 = vsel %vm4778, %v4721, -inf
        %4822 = vmax.xlane.f32.xlu0 %v4821
        %v4823 = vpop.xlane.xlu0 %4822
        %v4824 = vsel %vm4778, %v4773, -inf
        %4825 = vmax.xlane.f32.xlu0 %v4824
        %v4826 = vpop.xlane.xlu0 %4825
        %v4827 = vsub.f32 %v4021, %v4781
        %v4828 = vsub.f32 %v4073, %v4784
        %v4829 = vsub.f32 %v4121, %v4787
        %v4830 = vsub.f32 %v4173, %v4790
        %v4831 = vsub.f32 %v4221, %v4793
        %v4832 = vsub.f32 %v4273, %v4796
        %v4833 = vsub.f32 %v4321, %v4799
        %v4834 = vsub.f32 %v4373, %v4802
        %v4835 = vsub.f32 %v4421, %v4805
        %v4836 = vsub.f32 %v4473, %v4808
        %v4837 = vsub.f32 %v4521, %v4811
        %v4838 = vsub.f32 %v4573, %v4814
        %v4839 = vsub.f32 %v4621, %v4817
        %v4840 = vsub.f32 %v4673, %v4820
        %v4841 = vsub.f32 %v4721, %v4823
        %v4842 = vsub.f32 %v4773, %v4826
        %v4843 = vmul.f32 %v4827, 1.442695
        %v4844 = vpow.pop %v4843
        %v4845 = vmul.f32 %v4828, 1.442695
        %v4846 = vpow.pop %v4845
        %v4847 = vmul.f32 %v4829, 1.442695
        %v4848 = vpow.pop %v4847
        %v4849 = vmul.f32 %v4830, 1.442695
        %v4850 = vpow.pop %v4849
        %v4851 = vmul.f32 %v4831, 1.442695
        %v4852 = vpow.pop %v4851
        %v4853 = vmul.f32 %v4832, 1.442695
        %v4854 = vpow.pop %v4853
        %v4855 = vmul.f32 %v4833, 1.442695
        %v4856 = vpow.pop %v4855
        %v4857 = vmul.f32 %v4834, 1.442695
        %v4858 = vpow.pop %v4857
        %v4859 = vmul.f32 %v4835, 1.442695
        %v4860 = vpow.pop %v4859
        %v4861 = vmul.f32 %v4836, 1.442695
        %v4862 = vpow.pop %v4861
        %v4863 = vmul.f32 %v4837, 1.442695
        %v4864 = vpow.pop %v4863
        %v4865 = vmul.f32 %v4838, 1.442695
        %v4866 = vpow.pop %v4865
        %v4867 = vmul.f32 %v4839, 1.442695
        %v4868 = vpow.pop %v4867
        %v4869 = vmul.f32 %v4840, 1.442695
        %v4870 = vpow.pop %v4869
        %v4871 = vmul.f32 %v4841, 1.442695
        %v4872 = vpow.pop %v4871
        %v4873 = vmul.f32 %v4842, 1.442695
        %v4874 = vpow.pop %v4873
        %v4875 = vsel %vm4778, %v4844, 0.0
        %4876 = vadd.xlane.f32.xlu0 %v4875
        %v4877 = vpop.xlane.xlu0 %4876
        %v4878 = vsel %vm4778, %v4846, 0.0
        %4879 = vadd.xlane.f32.xlu0 %v4878
        %v4880 = vpop.xlane.xlu0 %4879
        %v4881 = vsel %vm4778, %v4848, 0.0
        %4882 = vadd.xlane.f32.xlu0 %v4881
        %v4883 = vpop.xlane.xlu0 %4882
        %v4884 = vsel %vm4778, %v4850, 0.0
        %4885 = vadd.xlane.f32.xlu0 %v4884
        %v4886 = vpop.xlane.xlu0 %4885
        %v4887 = vsel %vm4778, %v4852, 0.0
        %4888 = vadd.xlane.f32.xlu0 %v4887
        %v4889 = vpop.xlane.xlu0 %4888
        %v4890 = vsel %vm4778, %v4854, 0.0
        %4891 = vadd.xlane.f32.xlu0 %v4890
        %v4892 = vpop.xlane.xlu0 %4891
        %v4893 = vsel %vm4778, %v4856, 0.0
        %4894 = vadd.xlane.f32.xlu0 %v4893
        %v4895 = vpop.xlane.xlu0 %4894
        %v4896 = vsel %vm4778, %v4858, 0.0
        %4897 = vadd.xlane.f32.xlu0 %v4896
        %v4898 = vpop.xlane.xlu0 %4897
        %v4899 = vsel %vm4778, %v4860, 0.0
        %4900 = vadd.xlane.f32.xlu0 %v4899
        %v4901 = vpop.xlane.xlu0 %4900
        %v4902 = vsel %vm4778, %v4862, 0.0
        %4903 = vadd.xlane.f32.xlu0 %v4902
        %v4904 = vpop.xlane.xlu0 %4903
        %v4905 = vsel %vm4778, %v4864, 0.0
        %4906 = vadd.xlane.f32.xlu0 %v4905
        %v4907 = vpop.xlane.xlu0 %4906
        %v4908 = vsel %vm4778, %v4866, 0.0
        %4909 = vadd.xlane.f32.xlu0 %v4908
        %v4910 = vpop.xlane.xlu0 %4909
        %v4911 = vsel %vm4778, %v4868, 0.0
        %4912 = vadd.xlane.f32.xlu0 %v4911
        %v4913 = vpop.xlane.xlu0 %4912
        %v4914 = vsel %vm4778, %v4870, 0.0
        %4915 = vadd.xlane.f32.xlu0 %v4914
        %v4916 = vpop.xlane.xlu0 %4915
        %v4917 = vsel %vm4778, %v4872, 0.0
        %4918 = vadd.xlane.f32.xlu0 %v4917
        %v4919 = vpop.xlane.xlu0 %4918
        %v4920 = vsel %vm4778, %v4874, 0.0
        %4921 = vadd.xlane.f32.xlu0 %v4920
        %v4922 = vpop.xlane.xlu0 %4921
        %v4923 = vrcp.pop %v4877
        %v4924 = vmul.f32 %v4844, %v4923
        %v4925 = vrcp.pop %v4880
        %v4926 = vmul.f32 %v4846, %v4925
        %v4927 = vrcp.pop %v4883
        %v4928 = vmul.f32 %v4848, %v4927
        %v4929 = vrcp.pop %v4886
        %v4930 = vmul.f32 %v4850, %v4929
        %v4931 = vrcp.pop %v4889
        %v4932 = vmul.f32 %v4852, %v4931
        %v4933 = vrcp.pop %v4892
        %v4934 = vmul.f32 %v4854, %v4933
        %v4935 = vrcp.pop %v4895
        %v4936 = vmul.f32 %v4856, %v4935
        %v4937 = vrcp.pop %v4898
        %v4938 = vmul.f32 %v4858, %v4937
        %v4939 = vrcp.pop %v4901
        %v4940 = vmul.f32 %v4860, %v4939
        %v4941 = vrcp.pop %v4904
        %v4942 = vmul.f32 %v4862, %v4941
        %v4943 = vrcp.pop %v4907
        %v4944 = vmul.f32 %v4864, %v4943
        %v4945 = vrcp.pop %v4910
        %v4946 = vmul.f32 %v4866, %v4945
        %v4947 = vrcp.pop %v4913
        %v4948 = vmul.f32 %v4868, %v4947
        %v4949 = vrcp.pop %v4916
        %v4950 = vmul.f32 %v4870, %v4949
        %v4951 = vrcp.pop %v4919
        %v4952 = vmul.f32 %v4872, %v4951
        %v4953 = vrcp.pop %v4922
        %v4954 = vmul.f32 %v4874, %v4953
        %v4955 = vpack.c.bf16 %v4924, %v4924
        %v4956 = vpack.c.bf16 %v3883, %v3883
        %v4958 = vsel %vm4778, %v4955, 0
        %vm4960 = vcmask 1043456
        %v4962 = vsel %vm4960, %v4956, 0
        %4964 = vmatprep.subr.bf16.mxu0 0
        %4965 = vmatpush1.bf16.msra.mxu0 %v4962
        %4966 = vmatprep.subr.bf16.mxu0 0
        %4967 = vmatpush1.bf16.msra.mxu0 0
        %4968 = vmatprep.subr.bf16.mxu0 0
        %4969 = vmatpush1.bf16.msra.mxu0 0
        %4970 = vmatprep.subr.bf16.mxu0 0
        %4971 = vmatpush1.bf16.msra.mxu0 0
        %4972 = vmatprep.subr.bf16.mxu0 0
        %4973 = vmatpush1.bf16.msra.mxu0 0
        %4974 = vmatprep.subr.bf16.mxu0 0
        %4975 = vmatpush1.bf16.msra.mxu0 0
        %4976 = vmatprep.subr.bf16.mxu0 0
        %4977 = vmatpush1.bf16.msra.mxu0 0
        %4978 = vmatprep.subr.bf16.mxu0 0
        %4979 = vmatpush1.bf16.msra.mxu0 0
        %4980 = vmatprep.subr.bf16.mxu0 0
        %4981 = vmatpush1.bf16.msra.mxu0 0
        %4982 = vmatprep.subr.bf16.mxu0 0
        %4983 = vmatpush1.bf16.msra.mxu0 0
        %4984 = vmatprep.subr.bf16.mxu0 0
        %4985 = vmatpush1.bf16.msra.mxu0 0
        %4986 = vmatprep.subr.bf16.mxu0 0
        %4987 = vmatpush1.bf16.msra.mxu0 0
        %4988 = vmatprep.subr.bf16.mxu0 0
        %4989 = vmatpush1.bf16.msra.mxu0 0
        %4990 = vmatprep.subr.bf16.mxu0 0
        %4991 = vmatpush1.bf16.msra.mxu0 0
        %4992 = vmatprep.subr.bf16.mxu0 0
        %4993 = vmatpush1.bf16.msra.mxu0 0
        %4994 = vmatprep.subr.bf16.mxu0 0
        %4995 = vmatpush1.bf16.msra.mxu0 0
        %4996 = vmatprep.mubr.bf16.mxu0 0
        %4997 = vmatmul.mubr.bf16.gmra.mrb[0].mxu0 %v4958
        %v4998 = vpop.f32.mrb[0].mxu0
        %v4999 = vadd.f32 0.0, %v4998
        %v5000 = vpop.f32.mrb[0].mxu0
        %v5001 = vpop.f32.mrb[0].mxu0
        %v5002 = vpop.f32.mrb[0].mxu0
        %5003 = vdwg.mxu0
        %v5004 = vpack.c.bf16 %v4926, %v4926
        %5006 = vrot.lane.b32.xlu0 %v4956, 64
        %v5007 = vpop.permute.xlu0 %5006
        %v5009 = vsel %vm4778, %v5004, 0
        %v5012 = vsel %vm4960, %v5007, 0
        %5014 = vmatprep.subr.bf16.mxu0 0
        %5015 = vmatpush1.bf16.msra.mxu0 %v5012
        %5016 = vmatprep.subr.bf16.mxu0 0
        %5017 = vmatpush1.bf16.msra.mxu0 0
        %5018 = vmatprep.subr.bf16.mxu0 0
        %5019 = vmatpush1.bf16.msra.mxu0 0
        %5020 = vmatprep.subr.bf16.mxu0 0
        %5021 = vmatpush1.bf16.msra.mxu0 0
        %5022 = vmatprep.subr.bf16.mxu0 0
        %5023 = vmatpush1.bf16.msra.mxu0 0
        %5024 = vmatprep.subr.bf16.mxu0 0
        %5025 = vmatpush1.bf16.msra.mxu0 0
        %5026 = vmatprep.subr.bf16.mxu0 0
        %5027 = vmatpush1.bf16.msra.mxu0 0
        %5028 = vmatprep.subr.bf16.mxu0 0
        %5029 = vmatpush1.bf16.msra.mxu0 0
        %5030 = vmatprep.subr.bf16.mxu0 0
        %5031 = vmatpush1.bf16.msra.mxu0 0
        %5032 = vmatprep.subr.bf16.mxu0 0
        %5033 = vmatpush1.bf16.msra.mxu0 0
        %5034 = vmatprep.subr.bf16.mxu0 0
        %5035 = vmatpush1.bf16.msra.mxu0 0
        %5036 = vmatprep.subr.bf16.mxu0 0
        %5037 = vmatpush1.bf16.msra.mxu0 0
        %5038 = vmatprep.subr.bf16.mxu0 0
        %5039 = vmatpush1.bf16.msra.mxu0 0
        %5040 = vmatprep.subr.bf16.mxu0 0
        %5041 = vmatpush1.bf16.msra.mxu0 0
        %5042 = vmatprep.subr.bf16.mxu0 0
        %5043 = vmatpush1.bf16.msra.mxu0 0
        %5044 = vmatprep.subr.bf16.mxu0 0
        %5045 = vmatpush1.bf16.msra.mxu0 0
        %5046 = vmatprep.mubr.bf16.mxu0 0
        %5047 = vmatmul.mubr.bf16.gmra.mrb[0].mxu0 %v5009
        %v5048 = vpop.f32.mrb[0].mxu0
        %v5049 = vadd.f32 0.0, %v5048
        %v5050 = vpop.f32.mrb[0].mxu0
        %v5051 = vpop.f32.mrb[0].mxu0
        %v5052 = vpop.f32.mrb[0].mxu0
        %5053 = vdwg.mxu0
        %v5054 = vpack.c.bf16 %v4928, %v4928
        %v5055 = vpack.c.bf16 %v3885, %v3885
        %v5057 = vsel %vm4778, %v5054, 0
        %v5060 = vsel %vm4960, %v5055, 0
        %5062 = vmatprep.subr.bf16.mxu0 0
        %5063 = vmatpush1.bf16.msra.mxu0 %v5060
        %5064 = vmatprep.subr.bf16.mxu0 0
        %5065 = vmatpush1.bf16.msra.mxu0 0
        %5066 = vmatprep.subr.bf16.mxu0 0
        %5067 = vmatpush1.bf16.msra.mxu0 0
        %5068 = vmatprep.subr.bf16.mxu0 0
        %5069 = vmatpush1.bf16.msra.mxu0 0
        %5070 = vmatprep.subr.bf16.mxu0 0
        %5071 = vmatpush1.bf16.msra.mxu0 0
        %5072 = vmatprep.subr.bf16.mxu0 0
        %5073 = vmatpush1.bf16.msra.mxu0 0
        %5074 = vmatprep.subr.bf16.mxu0 0
        %5075 = vmatpush1.bf16.msra.mxu0 0
        %5076 = vmatprep.subr.bf16.mxu0 0
        %5077 = vmatpush1.bf16.msra.mxu0 0
        %5078 = vmatprep.subr.bf16.mxu0 0
        %5079 = vmatpush1.bf16.msra.mxu0 0
        %5080 = vmatprep.subr.bf16.mxu0 0
        %5081 = vmatpush1.bf16.msra.mxu0 0
        %5082 = vmatprep.subr.bf16.mxu0 0
        %5083 = vmatpush1.bf16.msra.mxu0 0
        %5084 = vmatprep.subr.bf16.mxu0 0
        %5085 = vmatpush1.bf16.msra.mxu0 0
        %5086 = vmatprep.subr.bf16.mxu0 0
        %5087 = vmatpush1.bf16.msra.mxu0 0
        %5088 = vmatprep.subr.bf16.mxu0 0
        %5089 = vmatpush1.bf16.msra.mxu0 0
        %5090 = vmatprep.subr.bf16.mxu0 0
        %5091 = vmatpush1.bf16.msra.mxu0 0
        %5092 = vmatprep.subr.bf16.mxu0 0
        %5093 = vmatpush1.bf16.msra.mxu0 0
        %5094 = vmatprep.mubr.bf16.mxu0 0
        %5095 = vmatmul.mubr.bf16.gmra.mrb[0].mxu0 %v5057
        %v5096 = vpop.f32.mrb[0].mxu0
        %v5097 = vadd.f32 0.0, %v5096
        %v5098 = vpop.f32.mrb[0].mxu0
        %v5099 = vpop.f32.mrb[0].mxu0
        %v5100 = vpop.f32.mrb[0].mxu0
        %5101 = vdwg.mxu0
        %v5102 = vpack.c.bf16 %v4930, %v4930
        %5104 = vrot.lane.b32.xlu0 %v5055, 64
        %v5105 = vpop.permute.xlu0 %5104
        %v5107 = vsel %vm4778, %v5102, 0
        %v5110 = vsel %vm4960, %v5105, 0
        %5112 = vmatprep.subr.bf16.mxu0 0
        %5113 = vmatpush1.bf16.msra.mxu0 %v5110
        %5114 = vmatprep.subr.bf16.mxu0 0
        %5115 = vmatpush1.bf16.msra.mxu0 0
        %5116 = vmatprep.subr.bf16.mxu0 0
        %5117 = vmatpush1.bf16.msra.mxu0 0
        %5118 = vmatprep.subr.bf16.mxu0 0
        %5119 = vmatpush1.bf16.msra.mxu0 0
        %5120 = vmatprep.subr.bf16.mxu0 0
        %5121 = vmatpush1.bf16.msra.mxu0 0
        %5122 = vmatprep.subr.bf16.mxu0 0
        %5123 = vmatpush1.bf16.msra.mxu0 0
        %5124 = vmatprep.subr.bf16.mxu0 0
        %5125 = vmatpush1.bf16.msra.mxu0 0
        %5126 = vmatprep.subr.bf16.mxu0 0
        %5127 = vmatpush1.bf16.msra.mxu0 0
        %5128 = vmatprep.subr.bf16.mxu0 0
        %5129 = vmatpush1.bf16.msra.mxu0 0
        %5130 = vmatprep.subr.bf16.mxu0 0
        %5131 = vmatpush1.bf16.msra.mxu0 0
        %5132 = vmatprep.subr.bf16.mxu0 0
        %5133 = vmatpush1.bf16.msra.mxu0 0
        %5134 = vmatprep.subr.bf16.mxu0 0
        %5135 = vmatpush1.bf16.msra.mxu0 0
        %5136 = vmatprep.subr.bf16.mxu0 0
        %5137 = vmatpush1.bf16.msra.mxu0 0
        %5138 = vmatprep.subr.bf16.mxu0 0
        %5139 = vmatpush1.bf16.msra.mxu0 0
        %5140 = vmatprep.subr.bf16.mxu0 0
        %5141 = vmatpush1.bf16.msra.mxu0 0
        %5142 = vmatprep.subr.bf16.mxu0 0
        %5143 = vmatpush1.bf16.msra.mxu0 0
        %5144 = vmatprep.mubr.bf16.mxu0 0
        %5145 = vmatmul.mubr.bf16.gmra.mrb[0].mxu0 %v5107
        %v5146 = vpop.f32.mrb[0].mxu0
        %v5147 = vadd.f32 0.0, %v5146
        %v5148 = vpop.f32.mrb[0].mxu0
        %v5149 = vpop.f32.mrb[0].mxu0
        %v5150 = vpop.f32.mrb[0].mxu0
        %5151 = vdwg.mxu0
        %v5152 = vpack.c.bf16 %v4932, %v4932
        %v5153 = vpack.c.bf16 %v3969, %v3969
        %v5155 = vsel %vm4778, %v5152, 0
        %v5158 = vsel %vm4960, %v5153, 0
        %5160 = vmatprep.subr.bf16.mxu0 0
        %5161 = vmatpush1.bf16.msra.mxu0 %v5158
        %5162 = vmatprep.subr.bf16.mxu0 0
        %5163 = vmatpush1.bf16.msra.mxu0 0
        %5164 = vmatprep.subr.bf16.mxu0 0
        %5165 = vmatpush1.bf16.msra.mxu0 0
        %5166 = vmatprep.subr.bf16.mxu0 0
        %5167 = vmatpush1.bf16.msra.mxu0 0
        %5168 = vmatprep.subr.bf16.mxu0 0
        %5169 = vmatpush1.bf16.msra.mxu0 0
        %5170 = vmatprep.subr.bf16.mxu0 0
        %5171 = vmatpush1.bf16.msra.mxu0 0
        %5172 = vmatprep.subr.bf16.mxu0 0
        %5173 = vmatpush1.bf16.msra.mxu0 0
        %5174 = vmatprep.subr.bf16.mxu0 0
        %5175 = vmatpush1.bf16.msra.mxu0 0
        %5176 = vmatprep.subr.bf16.mxu0 0
        %5177 = vmatpush1.bf16.msra.mxu0 0
        %5178 = vmatprep.subr.bf16.mxu0 0
        %5179 = vmatpush1.bf16.msra.mxu0 0
        %5180 = vmatprep.subr.bf16.mxu0 0
        %5181 = vmatpush1.bf16.msra.mxu0 0
        %5182 = vmatprep.subr.bf16.mxu0 0
        %5183 = vmatpush1.bf16.msra.mxu0 0
        %5184 = vmatprep.subr.bf16.mxu0 0
        %5185 = vmatpush1.bf16.msra.mxu0 0
        %5186 = vmatprep.subr.bf16.mxu0 0
        %5187 = vmatpush1.bf16.msra.mxu0 0
        %5188 = vmatprep.subr.bf16.mxu0 0
        %5189 = vmatpush1.bf16.msra.mxu0 0
        %5190 = vmatprep.subr.bf16.mxu0 0
        %5191 = vmatpush1.bf16.msra.mxu0 0
        %5192 = vmatprep.mubr.bf16.mxu0 0
        %5193 = vmatmul.mubr.bf16.gmra.mrb[0].mxu0 %v5155
        %v5194 = vpop.f32.mrb[0].mxu0
        %v5195 = vadd.f32 0.0, %v5194
        %v5196 = vpop.f32.mrb[0].mxu0
        %v5197 = vpop.f32.mrb[0].mxu0
        %v5198 = vpop.f32.mrb[0].mxu0
        %5199 = vdwg.mxu0
        %v5200 = vpack.c.bf16 %v4934, %v4934
        %5202 = vrot.lane.b32.xlu0 %v5153, 64
        %v5203 = vpop.permute.xlu0 %5202
        %v5205 = vsel %vm4778, %v5200, 0
        %v5208 = vsel %vm4960, %v5203, 0
        %5210 = vmatprep.subr.bf16.mxu0 0
        %5211 = vmatpush1.bf16.msra.mxu0 %v5208
        %5212 = vmatprep.subr.bf16.mxu0 0
        %5213 = vmatpush1.bf16.msra.mxu0 0
        %5214 = vmatprep.subr.bf16.mxu0 0
        %5215 = vmatpush1.bf16.msra.mxu0 0
        %5216 = vmatprep.subr.bf16.mxu0 0
        %5217 = vmatpush1.bf16.msra.mxu0 0
        %5218 = vmatprep.subr.bf16.mxu0 0
        %5219 = vmatpush1.bf16.msra.mxu0 0
        %5220 = vmatprep.subr.bf16.mxu0 0
        %5221 = vmatpush1.bf16.msra.mxu0 0
        %5222 = vmatprep.subr.bf16.mxu0 0
        %5223 = vmatpush1.bf16.msra.mxu0 0
        %5224 = vmatprep.subr.bf16.mxu0 0
        %5225 = vmatpush1.bf16.msra.mxu0 0
        %5226 = vmatprep.subr.bf16.mxu0 0
        %5227 = vmatpush1.bf16.msra.mxu0 0
        %5228 = vmatprep.subr.bf16.mxu0 0
        %5229 = vmatpush1.bf16.msra.mxu0 0
        %5230 = vmatprep.subr.bf16.mxu0 0
        %5231 = vmatpush1.bf16.msra.mxu0 0
        %5232 = vmatprep.subr.bf16.mxu0 0
        %5233 = vmatpush1.bf16.msra.mxu0 0
        %5234 = vmatprep.subr.bf16.mxu0 0
        %5235 = vmatpush1.bf16.msra.mxu0 0
        %5236 = vmatprep.subr.bf16.mxu0 0
        %5237 = vmatpush1.bf16.msra.mxu0 0
        %5238 = vmatprep.subr.bf16.mxu0 0
        %5239 = vmatpush1.bf16.msra.mxu0 0
        %5240 = vmatprep.subr.bf16.mxu0 0
        %5241 = vmatpush1.bf16.msra.mxu0 0
        %5242 = vmatprep.mubr.bf16.mxu0 0
        %5243 = vmatmul.mubr.bf16.gmra.mrb[0].mxu0 %v5205
        %v5244 = vpop.f32.mrb[0].mxu0
        %v5245 = vadd.f32 0.0, %v5244
        %v5246 = vpop.f32.mrb[0].mxu0
        %v5247 = vpop.f32.mrb[0].mxu0
        %v5248 = vpop.f32.mrb[0].mxu0
        %5249 = vdwg.mxu0
        %v5250 = vpack.c.bf16 %v4936, %v4936
        %v5251 = vpack.c.bf16 %v3971, %v3971
        %v5253 = vsel %vm4778, %v5250, 0
        %v5256 = vsel %vm4960, %v5251, 0
        %5258 = vmatprep.subr.bf16.mxu0 0
        %5259 = vmatpush1.bf16.msra.mxu0 %v5256
        %5260 = vmatprep.subr.bf16.mxu0 0
        %5261 = vmatpush1.bf16.msra.mxu0 0
        %5262 = vmatprep.subr.bf16.mxu0 0
        %5263 = vmatpush1.bf16.msra.mxu0 0
        %5264 = vmatprep.subr.bf16.mxu0 0
        %5265 = vmatpush1.bf16.msra.mxu0 0
        %5266 = vmatprep.subr.bf16.mxu0 0
        %5267 = vmatpush1.bf16.msra.mxu0 0
        %5268 = vmatprep.subr.bf16.mxu0 0
        %5269 = vmatpush1.bf16.msra.mxu0 0
        %5270 = vmatprep.subr.bf16.mxu0 0
        %5271 = vmatpush1.bf16.msra.mxu0 0
        %5272 = vmatprep.subr.bf16.mxu0 0
        %5273 = vmatpush1.bf16.msra.mxu0 0
        %5274 = vmatprep.subr.bf16.mxu0 0
        %5275 = vmatpush1.bf16.msra.mxu0 0
        %5276 = vmatprep.subr.bf16.mxu0 0
        %5277 = vmatpush1.bf16.msra.mxu0 0
        %5278 = vmatprep.subr.bf16.mxu0 0
        %5279 = vmatpush1.bf16.msra.mxu0 0
        %5280 = vmatprep.subr.bf16.mxu0 0
        %5281 = vmatpush1.bf16.msra.mxu0 0
        %5282 = vmatprep.subr.bf16.mxu0 0
        %5283 = vmatpush1.bf16.msra.mxu0 0
        %5284 = vmatprep.subr.bf16.mxu0 0
        %5285 = vmatpush1.bf16.msra.mxu0 0
        %5286 = vmatprep.subr.bf16.mxu0 0
        %5287 = vmatpush1.bf16.msra.mxu0 0
        %5288 = vmatprep.subr.bf16.mxu0 0
        %5289 = vmatpush1.bf16.msra.mxu0 0
        %5290 = vmatprep.mubr.bf16.mxu0 0
        %5291 = vmatmul.mubr.bf16.gmra.mrb[0].mxu0 %v5253
        %v5292 = vpop.f32.mrb[0].mxu0
        %v5293 = vadd.f32 0.0, %v5292
        %v5294 = vpop.f32.mrb[0].mxu0
        %v5295 = vpop.f32.mrb[0].mxu0
        %v5296 = vpop.f32.mrb[0].mxu0
        %5297 = vdwg.mxu0
        %v5298 = vpack.c.bf16 %v4938, %v4938
        %5300 = vrot.lane.b32.xlu0 %v5251, 64
        %v5301 = vpop.permute.xlu0 %5300
        %v5303 = vsel %vm4778, %v5298, 0
        %v5306 = vsel %vm4960, %v5301, 0
        %5308 = vmatprep.subr.bf16.mxu0 0
        %5309 = vmatpush1.bf16.msra.mxu0 %v5306
        %5310 = vmatprep.subr.bf16.mxu0 0
        %5311 = vmatpush1.bf16.msra.mxu0 0
        %5312 = vmatprep.subr.bf16.mxu0 0
        %5313 = vmatpush1.bf16.msra.mxu0 0
        %5314 = vmatprep.subr.bf16.mxu0 0
        %5315 = vmatpush1.bf16.msra.mxu0 0
        %5316 = vmatprep.subr.bf16.mxu0 0
        %5317 = vmatpush1.bf16.msra.mxu0 0
        %5318 = vmatprep.subr.bf16.mxu0 0
        %5319 = vmatpush1.bf16.msra.mxu0 0
        %5320 = vmatprep.subr.bf16.mxu0 0
        %5321 = vmatpush1.bf16.msra.mxu0 0
        %5322 = vmatprep.subr.bf16.mxu0 0
        %5323 = vmatpush1.bf16.msra.mxu0 0
        %5324 = vmatprep.subr.bf16.mxu0 0
        %5325 = vmatpush1.bf16.msra.mxu0 0
        %5326 = vmatprep.subr.bf16.mxu0 0
        %5327 = vmatpush1.bf16.msra.mxu0 0
        %5328 = vmatprep.subr.bf16.mxu0 0
        %5329 = vmatpush1.bf16.msra.mxu0 0
        %5330 = vmatprep.subr.bf16.mxu0 0
        %5331 = vmatpush1.bf16.msra.mxu0 0
        %5332 = vmatprep.subr.bf16.mxu0 0
        %5333 = vmatpush1.bf16.msra.mxu0 0
        %5334 = vmatprep.subr.bf16.mxu0 0
        %5335 = vmatpush1.bf16.msra.mxu0 0
        %5336 = vmatprep.subr.bf16.mxu0 0
        %5337 = vmatpush1.bf16.msra.mxu0 0
        %5338 = vmatprep.subr.bf16.mxu0 0
        %5339 = vmatpush1.bf16.msra.mxu0 0
        %5340 = vmatprep.mubr.bf16.mxu0 0
        %5341 = vmatmul.mubr.bf16.gmra.mrb[0].mxu0 %v5303
        %v5342 = vpop.f32.mrb[0].mxu0
        %v5343 = vadd.f32 0.0, %v5342
        %v5344 = vpop.f32.mrb[0].mxu0
        %v5345 = vpop.f32.mrb[0].mxu0
        %v5346 = vpop.f32.mrb[0].mxu0
        %5347 = vdwg.mxu0
        %5349 = vrot.lane.b32.xlu0 %v5049, 64
        %v5350 = vpop.permute.xlu0 %5349
        %5353 = vrot.lane.b32.xlu0 %v5147, 64
        %v5354 = vpop.permute.xlu0 %5353
        %5357 = vrot.lane.b32.xlu0 %v5245, 64
        %v5358 = vpop.permute.xlu0 %5357
        %5361 = vrot.lane.b32.xlu0 %v5343, 64
        %v5362 = vpop.permute.xlu0 %5361
        %v5364 = vsel %vm3979, %v4999, %v5350
        %v5365 = vsel %vm3979, %v5097, %v5354
        %v5366 = vsel %vm3979, %v5195, %v5358
        %v5367 = vsel %vm3979, %v5293, %v5362
        %v5368 = vpack.c.bf16 %v4940, %v4940
        %v5369 = vpack.c.bf16 %v3887, %v3887
        %v5371 = vsel %vm4778, %v5368, 0
        %v5374 = vsel %vm4960, %v5369, 0
        %5376 = vmatprep.subr.bf16.mxu0 0
        %5377 = vmatpush1.bf16.msra.mxu0 %v5374
        %5378 = vmatprep.subr.bf16.mxu0 0
        %5379 = vmatpush1.bf16.msra.mxu0 0
        %5380 = vmatprep.subr.bf16.mxu0 0
        %5381 = vmatpush1.bf16.msra.mxu0 0
        %5382 = vmatprep.subr.bf16.mxu0 0
        %5383 = vmatpush1.bf16.msra.mxu0 0
        %5384 = vmatprep.subr.bf16.mxu0 0
        %5385 = vmatpush1.bf16.msra.mxu0 0
        %5386 = vmatprep.subr.bf16.mxu0 0
        %5387 = vmatpush1.bf16.msra.mxu0 0
        %5388 = vmatprep.subr.bf16.mxu0 0
        %5389 = vmatpush1.bf16.msra.mxu0 0
        %5390 = vmatprep.subr.bf16.mxu0 0
        %5391 = vmatpush1.bf16.msra.mxu0 0
        %5392 = vmatprep.subr.bf16.mxu0 0
        %5393 = vmatpush1.bf16.msra.mxu0 0
        %5394 = vmatprep.subr.bf16.mxu0 0
        %5395 = vmatpush1.bf16.msra.mxu0 0
        %5396 = vmatprep.subr.bf16.mxu0 0
        %5397 = vmatpush1.bf16.msra.mxu0 0
        %5398 = vmatprep.subr.bf16.mxu0 0
        %5399 = vmatpush1.bf16.msra.mxu0 0
        %5400 = vmatprep.subr.bf16.mxu0 0
        %5401 = vmatpush1.bf16.msra.mxu0 0
        %5402 = vmatprep.subr.bf16.mxu0 0
        %5403 = vmatpush1.bf16.msra.mxu0 0
        %5404 = vmatprep.subr.bf16.mxu0 0
        %5405 = vmatpush1.bf16.msra.mxu0 0
        %5406 = vmatprep.subr.bf16.mxu0 0
        %5407 = vmatpush1.bf16.msra.mxu0 0
        %5408 = vmatprep.mubr.bf16.mxu0 0
        %5409 = vmatmul.mubr.bf16.gmra.mrb[0].mxu0 %v5371
        %v5410 = vpop.f32.mrb[0].mxu0
        %v5411 = vadd.f32 0.0, %v5410
        %v5412 = vpop.f32.mrb[0].mxu0
        %v5413 = vpop.f32.mrb[0].mxu0
        %v5414 = vpop.f32.mrb[0].mxu0
        %5415 = vdwg.mxu0
        %v5416 = vpack.c.bf16 %v4942, %v4942
        %5418 = vrot.lane.b32.xlu0 %v5369, 64
        %v5419 = vpop.permute.xlu0 %5418
        %v5421 = vsel %vm4778, %v5416, 0
        %v5424 = vsel %vm4960, %v5419, 0
        %5426 = vmatprep.subr.bf16.mxu0 0
        %5427 = vmatpush1.bf16.msra.mxu0 %v5424
        %5428 = vmatprep.subr.bf16.mxu0 0
        %5429 = vmatpush1.bf16.msra.mxu0 0
        %5430 = vmatprep.subr.bf16.mxu0 0
        %5431 = vmatpush1.bf16.msra.mxu0 0
        %5432 = vmatprep.subr.bf16.mxu0 0
        %5433 = vmatpush1.bf16.msra.mxu0 0
        %5434 = vmatprep.subr.bf16.mxu0 0
        %5435 = vmatpush1.bf16.msra.mxu0 0
        %5436 = vmatprep.subr.bf16.mxu0 0
        %5437 = vmatpush1.bf16.msra.mxu0 0
        %5438 = vmatprep.subr.bf16.mxu0 0
        %5439 = vmatpush1.bf16.msra.mxu0 0
        %5440 = vmatprep.subr.bf16.mxu0 0
        %5441 = vmatpush1.bf16.msra.mxu0 0
        %5442 = vmatprep.subr.bf16.mxu0 0
        %5443 = vmatpush1.bf16.msra.mxu0 0
        %5444 = vmatprep.subr.bf16.mxu0 0
        %5445 = vmatpush1.bf16.msra.mxu0 0
        %5446 = vmatprep.subr.bf16.mxu0 0
        %5447 = vmatpush1.bf16.msra.mxu0 0
        %5448 = vmatprep.subr.bf16.mxu0 0
        %5449 = vmatpush1.bf16.msra.mxu0 0
        %5450 = vmatprep.subr.bf16.mxu0 0
        %5451 = vmatpush1.bf16.msra.mxu0 0
        %5452 = vmatprep.subr.bf16.mxu0 0
        %5453 = vmatpush1.bf16.msra.mxu0 0
        %5454 = vmatprep.subr.bf16.mxu0 0
        %5455 = vmatpush1.bf16.msra.mxu0 0
        %5456 = vmatprep.subr.bf16.mxu0 0
        %5457 = vmatpush1.bf16.msra.mxu0 0
        %5458 = vmatprep.mubr.bf16.mxu0 0
        %5459 = vmatmul.mubr.bf16.gmra.mrb[0].mxu0 %v5421
        %v5460 = vpop.f32.mrb[0].mxu0
        %v5461 = vadd.f32 0.0, %v5460
        %v5462 = vpop.f32.mrb[0].mxu0
        %v5463 = vpop.f32.mrb[0].mxu0
        %v5464 = vpop.f32.mrb[0].mxu0
        %5465 = vdwg.mxu0
        %v5466 = vpack.c.bf16 %v4944, %v4944
        %v5467 = vpack.c.bf16 %v3889, %v3889
        %v5469 = vsel %vm4778, %v5466, 0
        %v5472 = vsel %vm4960, %v5467, 0
        %5474 = vmatprep.subr.bf16.mxu0 0
        %5475 = vmatpush1.bf16.msra.mxu0 %v5472
        %5476 = vmatprep.subr.bf16.mxu0 0
        %5477 = vmatpush1.bf16.msra.mxu0 0
        %5478 = vmatprep.subr.bf16.mxu0 0
        %5479 = vmatpush1.bf16.msra.mxu0 0
        %5480 = vmatprep.subr.bf16.mxu0 0
        %5481 = vmatpush1.bf16.msra.mxu0 0
        %5482 = vmatprep.subr.bf16.mxu0 0
        %5483 = vmatpush1.bf16.msra.mxu0 0
        %5484 = vmatprep.subr.bf16.mxu0 0
        %5485 = vmatpush1.bf16.msra.mxu0 0
        %5486 = vmatprep.subr.bf16.mxu0 0
        %5487 = vmatpush1.bf16.msra.mxu0 0
        %5488 = vmatprep.subr.bf16.mxu0 0
        %5489 = vmatpush1.bf16.msra.mxu0 0
        %5490 = vmatprep.subr.bf16.mxu0 0
        %5491 = vmatpush1.bf16.msra.mxu0 0
        %5492 = vmatprep.subr.bf16.mxu0 0
        %5493 = vmatpush1.bf16.msra.mxu0 0
        %5494 = vmatprep.subr.bf16.mxu0 0
        %5495 = vmatpush1.bf16.msra.mxu0 0
        %5496 = vmatprep.subr.bf16.mxu0 0
        %5497 = vmatpush1.bf16.msra.mxu0 0
        %5498 = vmatprep.subr.bf16.mxu0 0
        %5499 = vmatpush1.bf16.msra.mxu0 0
        %5500 = vmatprep.subr.bf16.mxu0 0
        %5501 = vmatpush1.bf16.msra.mxu0 0
        %5502 = vmatprep.subr.bf16.mxu0 0
        %5503 = vmatpush1.bf16.msra.mxu0 0
        %5504 = vmatprep.subr.bf16.mxu0 0
        %5505 = vmatpush1.bf16.msra.mxu0 0
        %5506 = vmatprep.mubr.bf16.mxu0 0
        %5507 = vmatmul.mubr.bf16.gmra.mrb[0].mxu0 %v5469
        %v5508 = vpop.f32.mrb[0].mxu0
        %v5509 = vadd.f32 0.0, %v5508
        %v5510 = vpop.f32.mrb[0].mxu0
        %v5511 = vpop.f32.mrb[0].mxu0
        %v5512 = vpop.f32.mrb[0].mxu0
        %5513 = vdwg.mxu0
        %v5514 = vpack.c.bf16 %v4946, %v4946
        %5516 = vrot.lane.b32.xlu0 %v5467, 64
        %v5517 = vpop.permute.xlu0 %5516
        %v5519 = vsel %vm4778, %v5514, 0
        %v5522 = vsel %vm4960, %v5517, 0
        %5524 = vmatprep.subr.bf16.mxu0 0
        %5525 = vmatpush1.bf16.msra.mxu0 %v5522
        %5526 = vmatprep.subr.bf16.mxu0 0
        %5527 = vmatpush1.bf16.msra.mxu0 0
        %5528 = vmatprep.subr.bf16.mxu0 0
        %5529 = vmatpush1.bf16.msra.mxu0 0
        %5530 = vmatprep.subr.bf16.mxu0 0
        %5531 = vmatpush1.bf16.msra.mxu0 0
        %5532 = vmatprep.subr.bf16.mxu0 0
        %5533 = vmatpush1.bf16.msra.mxu0 0
        %5534 = vmatprep.subr.bf16.mxu0 0
        %5535 = vmatpush1.bf16.msra.mxu0 0
        %5536 = vmatprep.subr.bf16.mxu0 0
        %5537 = vmatpush1.bf16.msra.mxu0 0
        %5538 = vmatprep.subr.bf16.mxu0 0
        %5539 = vmatpush1.bf16.msra.mxu0 0
        %5540 = vmatprep.subr.bf16.mxu0 0
        %5541 = vmatpush1.bf16.msra.mxu0 0
        %5542 = vmatprep.subr.bf16.mxu0 0
        %5543 = vmatpush1.bf16.msra.mxu0 0
        %5544 = vmatprep.subr.bf16.mxu0 0
        %5545 = vmatpush1.bf16.msra.mxu0 0
        %5546 = vmatprep.subr.bf16.mxu0 0
        %5547 = vmatpush1.bf16.msra.mxu0 0
        %5548 = vmatprep.subr.bf16.mxu0 0
        %5549 = vmatpush1.bf16.msra.mxu0 0
        %5550 = vmatprep.subr.bf16.mxu0 0
        %5551 = vmatpush1.bf16.msra.mxu0 0
        %5552 = vmatprep.subr.bf16.mxu0 0
        %5553 = vmatpush1.bf16.msra.mxu0 0
        %5554 = vmatprep.subr.bf16.mxu0 0
        %5555 = vmatpush1.bf16.msra.mxu0 0
        %5556 = vmatprep.mubr.bf16.mxu0 0
        %5557 = vmatmul.mubr.bf16.gmra.mrb[0].mxu0 %v5519
        %v5558 = vpop.f32.mrb[0].mxu0
        %v5559 = vadd.f32 0.0, %v5558
        %v5560 = vpop.f32.mrb[0].mxu0
        %v5561 = vpop.f32.mrb[0].mxu0
        %v5562 = vpop.f32.mrb[0].mxu0
        %5563 = vdwg.mxu0
        %v5564 = vpack.c.bf16 %v4948, %v4948
        %v5565 = vpack.c.bf16 %v3973, %v3973
        %v5567 = vsel %vm4778, %v5564, 0
        %v5570 = vsel %vm4960, %v5565, 0
        %5572 = vmatprep.subr.bf16.mxu0 0
        %5573 = vmatpush1.bf16.msra.mxu0 %v5570
        %5574 = vmatprep.subr.bf16.mxu0 0
        %5575 = vmatpush1.bf16.msra.mxu0 0
        %5576 = vmatprep.subr.bf16.mxu0 0
        %5577 = vmatpush1.bf16.msra.mxu0 0
        %5578 = vmatprep.subr.bf16.mxu0 0
        %5579 = vmatpush1.bf16.msra.mxu0 0
        %5580 = vmatprep.subr.bf16.mxu0 0
        %5581 = vmatpush1.bf16.msra.mxu0 0
        %5582 = vmatprep.subr.bf16.mxu0 0
        %5583 = vmatpush1.bf16.msra.mxu0 0
        %5584 = vmatprep.subr.bf16.mxu0 0
        %5585 = vmatpush1.bf16.msra.mxu0 0
        %5586 = vmatprep.subr.bf16.mxu0 0
        %5587 = vmatpush1.bf16.msra.mxu0 0
        %5588 = vmatprep.subr.bf16.mxu0 0
        %5589 = vmatpush1.bf16.msra.mxu0 0
        %5590 = vmatprep.subr.bf16.mxu0 0
        %5591 = vmatpush1.bf16.msra.mxu0 0
        %5592 = vmatprep.subr.bf16.mxu0 0
        %5593 = vmatpush1.bf16.msra.mxu0 0
        %5594 = vmatprep.subr.bf16.mxu0 0
        %5595 = vmatpush1.bf16.msra.mxu0 0
        %5596 = vmatprep.subr.bf16.mxu0 0
        %5597 = vmatpush1.bf16.msra.mxu0 0
        %5598 = vmatprep.subr.bf16.mxu0 0
        %5599 = vmatpush1.bf16.msra.mxu0 0
        %5600 = vmatprep.subr.bf16.mxu0 0
        %5601 = vmatpush1.bf16.msra.mxu0 0
        %5602 = vmatprep.subr.bf16.mxu0 0
        %5603 = vmatpush1.bf16.msra.mxu0 0
        %5604 = vmatprep.mubr.bf16.mxu0 0
        %5605 = vmatmul.mubr.bf16.gmra.mrb[0].mxu0 %v5567
        %v5606 = vpop.f32.mrb[0].mxu0
        %v5607 = vadd.f32 0.0, %v5606
        %v5608 = vpop.f32.mrb[0].mxu0
        %v5609 = vpop.f32.mrb[0].mxu0
        %v5610 = vpop.f32.mrb[0].mxu0
        %5611 = vdwg.mxu0
        %v5612 = vpack.c.bf16 %v4950, %v4950
        %5614 = vrot.lane.b32.xlu0 %v5565, 64
        %v5615 = vpop.permute.xlu0 %5614
        %v5617 = vsel %vm4778, %v5612, 0
        %v5620 = vsel %vm4960, %v5615, 0
        %5622 = vmatprep.subr.bf16.mxu0 0
        %5623 = vmatpush1.bf16.msra.mxu0 %v5620
        %5624 = vmatprep.subr.bf16.mxu0 0
        %5625 = vmatpush1.bf16.msra.mxu0 0
        %5626 = vmatprep.subr.bf16.mxu0 0
        %5627 = vmatpush1.bf16.msra.mxu0 0
        %5628 = vmatprep.subr.bf16.mxu0 0
        %5629 = vmatpush1.bf16.msra.mxu0 0
        %5630 = vmatprep.subr.bf16.mxu0 0
        %5631 = vmatpush1.bf16.msra.mxu0 0
        %5632 = vmatprep.subr.bf16.mxu0 0
        %5633 = vmatpush1.bf16.msra.mxu0 0
        %5634 = vmatprep.subr.bf16.mxu0 0
        %5635 = vmatpush1.bf16.msra.mxu0 0
        %5636 = vmatprep.subr.bf16.mxu0 0
        %5637 = vmatpush1.bf16.msra.mxu0 0
        %5638 = vmatprep.subr.bf16.mxu0 0
        %5639 = vmatpush1.bf16.msra.mxu0 0
        %5640 = vmatprep.subr.bf16.mxu0 0
        %5641 = vmatpush1.bf16.msra.mxu0 0
        %5642 = vmatprep.subr.bf16.mxu0 0
        %5643 = vmatpush1.bf16.msra.mxu0 0
        %5644 = vmatprep.subr.bf16.mxu0 0
        %5645 = vmatpush1.bf16.msra.mxu0 0
        %5646 = vmatprep.subr.bf16.mxu0 0
        %5647 = vmatpush1.bf16.msra.mxu0 0
        %5648 = vmatprep.subr.bf16.mxu0 0
        %5649 = vmatpush1.bf16.msra.mxu0 0
        %5650 = vmatprep.subr.bf16.mxu0 0
        %5651 = vmatpush1.bf16.msra.mxu0 0
        %5652 = vmatprep.subr.bf16.mxu0 0
        %5653 = vmatpush1.bf16.msra.mxu0 0
        %5654 = vmatprep.mubr.bf16.mxu0 0
        %5655 = vmatmul.mubr.bf16.gmra.mrb[0].mxu0 %v5617
        %v5656 = vpop.f32.mrb[0].mxu0
        %v5657 = vadd.f32 0.0, %v5656
        %v5658 = vpop.f32.mrb[0].mxu0
        %v5659 = vpop.f32.mrb[0].mxu0
        %v5660 = vpop.f32.mrb[0].mxu0
        %5661 = vdwg.mxu0
        %v5662 = vpack.c.bf16 %v4952, %v4952
        %v5663 = vpack.c.bf16 %v3975, %v3975
        %v5665 = vsel %vm4778, %v5662, 0
        %v5668 = vsel %vm4960, %v5663, 0
        %5670 = vmatprep.subr.bf16.mxu0 0
        %5671 = vmatpush1.bf16.msra.mxu0 %v5668
        %5672 = vmatprep.subr.bf16.mxu0 0
        %5673 = vmatpush1.bf16.msra.mxu0 0
        %5674 = vmatprep.subr.bf16.mxu0 0
        %5675 = vmatpush1.bf16.msra.mxu0 0
        %5676 = vmatprep.subr.bf16.mxu0 0
        %5677 = vmatpush1.bf16.msra.mxu0 0
        %5678 = vmatprep.subr.bf16.mxu0 0
        %5679 = vmatpush1.bf16.msra.mxu0 0
        %5680 = vmatprep.subr.bf16.mxu0 0
        %5681 = vmatpush1.bf16.msra.mxu0 0
        %5682 = vmatprep.subr.bf16.mxu0 0
        %5683 = vmatpush1.bf16.msra.mxu0 0
        %5684 = vmatprep.subr.bf16.mxu0 0
        %5685 = vmatpush1.bf16.msra.mxu0 0
        %5686 = vmatprep.subr.bf16.mxu0 0
        %5687 = vmatpush1.bf16.msra.mxu0 0
        %5688 = vmatprep.subr.bf16.mxu0 0
        %5689 = vmatpush1.bf16.msra.mxu0 0
        %5690 = vmatprep.subr.bf16.mxu0 0
        %5691 = vmatpush1.bf16.msra.mxu0 0
        %5692 = vmatprep.subr.bf16.mxu0 0
        %5693 = vmatpush1.bf16.msra.mxu0 0
        %5694 = vmatprep.subr.bf16.mxu0 0
        %5695 = vmatpush1.bf16.msra.mxu0 0
        %5696 = vmatprep.subr.bf16.mxu0 0
        %5697 = vmatpush1.bf16.msra.mxu0 0
        %5698 = vmatprep.subr.bf16.mxu0 0
        %5699 = vmatpush1.bf16.msra.mxu0 0
        %5700 = vmatprep.subr.bf16.mxu0 0
        %5701 = vmatpush1.bf16.msra.mxu0 0
        %5702 = vmatprep.mubr.bf16.mxu0 0
        %5703 = vmatmul.mubr.bf16.gmra.mrb[0].mxu0 %v5665
        %v5704 = vpop.f32.mrb[0].mxu0
        %v5705 = vadd.f32 0.0, %v5704
        %v5706 = vpop.f32.mrb[0].mxu0
        %v5707 = vpop.f32.mrb[0].mxu0
        %v5708 = vpop.f32.mrb[0].mxu0
        %5709 = vdwg.mxu0
        %v5710 = vpack.c.bf16 %v4954, %v4954
        %5712 = vrot.lane.b32.xlu0 %v5663, 64
        %v5713 = vpop.permute.xlu0 %5712
        %v5715 = vsel %vm4778, %v5710, 0
        %v5718 = vsel %vm4960, %v5713, 0
        %5720 = vmatprep.subr.bf16.mxu0 0
        %5721 = vmatpush1.bf16.msra.mxu0 %v5718
        %5722 = vmatprep.subr.bf16.mxu0 0
        %5723 = vmatpush1.bf16.msra.mxu0 0
        %5724 = vmatprep.subr.bf16.mxu0 0
        %5725 = vmatpush1.bf16.msra.mxu0 0
        %5726 = vmatprep.subr.bf16.mxu0 0
        %5727 = vmatpush1.bf16.msra.mxu0 0
        %5728 = vmatprep.subr.bf16.mxu0 0
        %5729 = vmatpush1.bf16.msra.mxu0 0
        %5730 = vmatprep.subr.bf16.mxu0 0
        %5731 = vmatpush1.bf16.msra.mxu0 0
        %5732 = vmatprep.subr.bf16.mxu0 0
        %5733 = vmatpush1.bf16.msra.mxu0 0
        %5734 = vmatprep.subr.bf16.mxu0 0
        %5735 = vmatpush1.bf16.msra.mxu0 0
        %5736 = vmatprep.subr.bf16.mxu0 0
        %5737 = vmatpush1.bf16.msra.mxu0 0
        %5738 = vmatprep.subr.bf16.mxu0 0
        %5739 = vmatpush1.bf16.msra.mxu0 0
        %5740 = vmatprep.subr.bf16.mxu0 0
        %5741 = vmatpush1.bf16.msra.mxu0 0
        %5742 = vmatprep.subr.bf16.mxu0 0
        %5743 = vmatpush1.bf16.msra.mxu0 0
        %5744 = vmatprep.subr.bf16.mxu0 0
        %5745 = vmatpush1.bf16.msra.mxu0 0
        %5746 = vmatprep.subr.bf16.mxu0 0
        %5747 = vmatpush1.bf16.msra.mxu0 0
        %5748 = vmatprep.subr.bf16.mxu0 0
        %5749 = vmatpush1.bf16.msra.mxu0 0
        %5750 = vmatprep.subr.bf16.mxu0 0
        %5751 = vmatpush1.bf16.msra.mxu0 0
        %5752 = vmatprep.mubr.bf16.mxu0 0
        %5753 = vmatmul.mubr.bf16.gmra.mrb[0].mxu0 %v5715
        %v5754 = vpop.f32.mrb[0].mxu0
        %v5755 = vadd.f32 0.0, %v5754
        %v5756 = vpop.f32.mrb[0].mxu0
        %v5757 = vpop.f32.mrb[0].mxu0
        %v5758 = vpop.f32.mrb[0].mxu0
        %5759 = vdwg.mxu0
        %5761 = vrot.lane.b32.xlu0 %v5461, 64
        %v5762 = vpop.permute.xlu0 %5761
        %5765 = vrot.lane.b32.xlu0 %v5559, 64
        %v5766 = vpop.permute.xlu0 %5765
        %5769 = vrot.lane.b32.xlu0 %v5657, 64
        %v5770 = vpop.permute.xlu0 %5769
        %5773 = vrot.lane.b32.xlu0 %v5755, 64
        %v5774 = vpop.permute.xlu0 %5773
        %v5776 = vsel %vm3979, %v5411, %v5762
        %v5777 = vsel %vm3979, %v5509, %v5766
        %v5778 = vsel %vm3979, %v5607, %v5770
        %v5779 = vsel %vm3979, %v5705, %v5774
        %v5780 = vpack.c.bf16 %v5776, %v5364
        %v5781 = vpack.c.bf16 %v5777, %v5365
        %v5782 = vpack.c.bf16 %v5778, %v5366
        %v5783 = vpack.c.bf16 %v5779, %v5367
        %v5784 = vld [vmem:[%s779] sm:$0xff]
        %v5785 = vld [vmem:[%s779 + $0x8] sm:$0xff]
        %v5786 = vld [vmem:[%s779 + $0x10] sm:$0xff]
        %v5787 = vld [vmem:[%s779 + $0x18] sm:$0xff]
        %v5788 = vld [vmem:[%s779 + $0x20] sm:$0xff]
        %v5789 = vld [vmem:[%s779 + $0x28] sm:$0xff]
        %v5790 = vld [vmem:[%s779 + $0x30] sm:$0xff]
        %v5791 = vld [vmem:[%s779 + $0x38] sm:$0xff]
        %v5792 = vld [vmem:[%s779 + $0x40] sm:$0xff]
        %v5793 = vld [vmem:[%s779 + $0x48] sm:$0xff]
        %v5794 = vld [vmem:[%s779 + $0x50] sm:$0xff]
        %v5795 = vld [vmem:[%s779 + $0x58] sm:$0xff]
        %v5796 = vld [vmem:[%s779 + $0x60] sm:$0xff]
        %v5797 = vld [vmem:[%s779 + $0x68] sm:$0xff]
        %v5798 = vld [vmem:[%s779 + $0x70] sm:$0xff]
        %v5799 = vld [vmem:[%s779 + $0x78] sm:$0xff]
        %v5800 = vld [vmem:[%s779 + $0x80] sm:$0xff]
        %v5801 = vld [vmem:[%s779 + $0x88] sm:$0xff]
        %v5802 = vld [vmem:[%s779 + $0x90] sm:$0xff]
        %v5803 = vld [vmem:[%s779 + $0x98] sm:$0xff]
        %v5804 = vld [vmem:[%s779 + $0xa0] sm:$0xff]
        %v5805 = vld [vmem:[%s779 + $0xa8] sm:$0xff]
        %v5806 = vld [vmem:[%s779 + $0xb0] sm:$0xff]
        %v5807 = vld [vmem:[%s779 + $0xb8] sm:$0xff]
        %v5808 = vld [vmem:[%s779 + $0xc0] sm:$0xff]
        %v5809 = vld [vmem:[%s779 + $0xc8] sm:$0xff]
        %v5810 = vld [vmem:[%s779 + $0xd0] sm:$0xff]
        %v5811 = vld [vmem:[%s779 + $0xd8] sm:$0xff]
        %v5812 = vld [vmem:[%s779 + $0xe0] sm:$0xff]
        %v5813 = vld [vmem:[%s779 + $0xe8] sm:$0xff]
        %v5814 = vld [vmem:[%s779 + $0xf0] sm:$0xff]
        %v5815 = vld [vmem:[%s779 + $0xf8] sm:$0xff]
        %v5816 = vld [vmem:[%s779 + $0x100] sm:$0xff]
        %v5817 = vld [vmem:[%s779 + $0x108] sm:$0xff]
        %v5818 = vld [vmem:[%s779 + $0x110] sm:$0xff]
        %v5819 = vld [vmem:[%s779 + $0x118] sm:$0xff]
        %v5820 = vld [vmem:[%s779 + $0x120] sm:$0xff]
        %v5821 = vld [vmem:[%s779 + $0x128] sm:$0xff]
        %v5822 = vld [vmem:[%s779 + $0x130] sm:$0xff]
        %v5823 = vld [vmem:[%s779 + $0x138] sm:$0xff]
        %v5824 = vld [vmem:[%s779 + $0x140] sm:$0xff]
        %v5825 = vld [vmem:[%s779 + $0x148] sm:$0xff]
        %v5826 = vld [vmem:[%s779 + $0x150] sm:$0xff]
        %v5827 = vld [vmem:[%s779 + $0x158] sm:$0xff]
        %v5828 = vld [vmem:[%s779 + $0x160] sm:$0xff]
        %v5829 = vld [vmem:[%s779 + $0x168] sm:$0xff]
        %v5830 = vld [vmem:[%s779 + $0x170] sm:$0xff]
        %v5831 = vld [vmem:[%s779 + $0x178] sm:$0xff]
        %v5832 = vld [vmem:[%s779 + $0x180] sm:$0xff]
        %v5833 = vld [vmem:[%s779 + $0x188] sm:$0xff]
        %v5834 = vld [vmem:[%s779 + $0x190] sm:$0xff]
        %v5835 = vld [vmem:[%s779 + $0x198] sm:$0xff]
        %v5836 = vld [vmem:[%s779 + $0x1a0] sm:$0xff]
        %v5837 = vld [vmem:[%s779 + $0x1a8] sm:$0xff]
        %v5838 = vld [vmem:[%s779 + $0x1b0] sm:$0xff]
        %v5839 = vld [vmem:[%s779 + $0x1b8] sm:$0xff]
        %v5840 = vld [vmem:[%s779 + $0x1c0] sm:$0xff]
        %v5841 = vld [vmem:[%s779 + $0x1c8] sm:$0xff]
        %v5842 = vld [vmem:[%s779 + $0x1d0] sm:$0xff]
        %v5843 = vld [vmem:[%s779 + $0x1d8] sm:$0xff]
        %v5844 = vld [vmem:[%s779 + $0x1e0] sm:$0xff]
        %v5845 = vld [vmem:[%s779 + $0x1e8] sm:$0xff]
        %v5846 = vld [vmem:[%s779 + $0x1f0] sm:$0xff]
        %v5847 = vld [vmem:[%s779 + $0x1f8] sm:$0xff]
        %v5848 = vld [vmem:[%s779 + $0x200] sm:$0xff]
        %v5849 = vld [vmem:[%s779 + $0x208] sm:$0xff]
        %v5850 = vld [vmem:[%s779 + $0x210] sm:$0xff]
        %v5851 = vld [vmem:[%s779 + $0x218] sm:$0xff]
        %v5852 = vld [vmem:[%s779 + $0x220] sm:$0xff]
        %v5853 = vld [vmem:[%s779 + $0x228] sm:$0xff]
        %v5854 = vld [vmem:[%s779 + $0x230] sm:$0xff]
        %v5855 = vld [vmem:[%s779 + $0x238] sm:$0xff]
        %v5856 = vld [vmem:[%s779 + $0x240] sm:$0xff]
        %v5857 = vld [vmem:[%s779 + $0x248] sm:$0xff]
        %v5858 = vld [vmem:[%s779 + $0x250] sm:$0xff]
        %v5859 = vld [vmem:[%s779 + $0x258] sm:$0xff]
        %v5860 = vld [vmem:[%s779 + $0x260] sm:$0xff]
        %v5861 = vld [vmem:[%s779 + $0x268] sm:$0xff]
        %v5862 = vld [vmem:[%s779 + $0x270] sm:$0xff]
        %v5863 = vld [vmem:[%s779 + $0x278] sm:$0xff]
        %v5864 = vld [vmem:[%s779 + $0x280] sm:$0xff]
        %v5865 = vld [vmem:[%s779 + $0x288] sm:$0xff]
        %v5866 = vld [vmem:[%s779 + $0x290] sm:$0xff]
        %v5867 = vld [vmem:[%s779 + $0x298] sm:$0xff]
        %v5868 = vld [vmem:[%s779 + $0x2a0] sm:$0xff]
        %v5869 = vld [vmem:[%s779 + $0x2a8] sm:$0xff]
        %v5870 = vld [vmem:[%s779 + $0x2b0] sm:$0xff]
        %v5871 = vld [vmem:[%s779 + $0x2b8] sm:$0xff]
        %v5872 = vld [vmem:[%s779 + $0x2c0] sm:$0xff]
        %v5873 = vld [vmem:[%s779 + $0x2c8] sm:$0xff]
        %v5874 = vld [vmem:[%s779 + $0x2d0] sm:$0xff]
        %v5875 = vld [vmem:[%s779 + $0x2d8] sm:$0xff]
        %v5876 = vld [vmem:[%s779 + $0x2e0] sm:$0xff]
        %v5877 = vld [vmem:[%s779 + $0x2e8] sm:$0xff]
        %v5878 = vld [vmem:[%s779 + $0x2f0] sm:$0xff]
        %v5879 = vld [vmem:[%s779 + $0x2f8] sm:$0xff]
        %v5880 = vld [vmem:[%s779 + $0x300] sm:$0xff]
        %v5881 = vld [vmem:[%s779 + $0x308] sm:$0xff]
        %v5882 = vld [vmem:[%s779 + $0x310] sm:$0xff]
        %v5883 = vld [vmem:[%s779 + $0x318] sm:$0xff]
        %v5884 = vld [vmem:[%s779 + $0x320] sm:$0xff]
        %v5885 = vld [vmem:[%s779 + $0x328] sm:$0xff]
        %v5886 = vld [vmem:[%s779 + $0x330] sm:$0xff]
        %v5887 = vld [vmem:[%s779 + $0x338] sm:$0xff]
        %v5888 = vld [vmem:[%s779 + $0x340] sm:$0xff]
        %v5889 = vld [vmem:[%s779 + $0x348] sm:$0xff]
        %v5890 = vld [vmem:[%s779 + $0x350] sm:$0xff]
        %v5891 = vld [vmem:[%s779 + $0x358] sm:$0xff]
        %v5892 = vld [vmem:[%s779 + $0x360] sm:$0xff]
        %v5893 = vld [vmem:[%s779 + $0x368] sm:$0xff]
        %v5894 = vld [vmem:[%s779 + $0x370] sm:$0xff]
        %v5895 = vld [vmem:[%s779 + $0x378] sm:$0xff]
        %v5896 = vld [vmem:[%s779 + $0x380] sm:$0xff]
        %v5897 = vld [vmem:[%s779 + $0x388] sm:$0xff]
        %v5898 = vld [vmem:[%s779 + $0x390] sm:$0xff]
        %v5899 = vld [vmem:[%s779 + $0x398] sm:$0xff]
        %v5900 = vld [vmem:[%s779 + $0x3a0] sm:$0xff]
        %v5901 = vld [vmem:[%s779 + $0x3a8] sm:$0xff]
        %v5902 = vld [vmem:[%s779 + $0x3b0] sm:$0xff]
        %v5903 = vld [vmem:[%s779 + $0x3b8] sm:$0xff]
        %v5904 = vld [vmem:[%s779 + $0x3c0] sm:$0xff]
        %v5905 = vld [vmem:[%s779 + $0x3c8] sm:$0xff]
        %v5906 = vld [vmem:[%s779 + $0x3d0] sm:$0xff]
        %v5907 = vld [vmem:[%s779 + $0x3d8] sm:$0xff]
        %v5908 = vld [vmem:[%s779 + $0x3e0] sm:$0xff]
        %v5909 = vld [vmem:[%s779 + $0x3e8] sm:$0xff]
        %v5910 = vld [vmem:[%s779 + $0x3f0] sm:$0xff]
        %v5911 = vld [vmem:[%s779 + $0x3f8] sm:$0xff]
        %v5912 = vld [vmem:[%s788] sm:$0xf]
        %v5914 = vlaneseq
        %v5915 = vshrl.u32 %v5914, 7
        %v5916 = vsub.s32 0, %v5915
        %v5917 = vrot.slane %v5912, %v5916
        %v5918 = vlaneseq
        %v5919 = vshrl.u32 %v5918, 7
        %v5920 = vsub.s32 1, %v5919
        %v5921 = vrot.slane %v5912, %v5920
        %v5922 = vlaneseq
        %v5923 = vshrl.u32 %v5922, 7
        %v5924 = vsub.s32 2, %v5923
        %v5925 = vrot.slane %v5912, %v5924
        %v5926 = vlaneseq
        %v5927 = vshrl.u32 %v5926, 7
        %v5928 = vsub.s32 3, %v5927
        %v5929 = vrot.slane %v5912, %v5928
        %v6062 = vunpack.c.l.b16 %v5784
        %v6063 = vunpack.c.h.b16 %v5784
        %v6064 = vunpack.c.l.b16 %v5785
        %v6065 = vunpack.c.h.b16 %v5785
        %v6066 = vunpack.c.l.b16 %v5786
        %v6067 = vunpack.c.h.b16 %v5786
        %v6068 = vunpack.c.l.b16 %v5787
        %v6069 = vunpack.c.h.b16 %v5787
        %v6070 = vunpack.c.l.b16 %v5788
        %v6071 = vunpack.c.h.b16 %v5788
        %v6072 = vunpack.c.l.b16 %v5789
        %v6073 = vunpack.c.h.b16 %v5789
        %v6074 = vunpack.c.l.b16 %v5790
        %v6075 = vunpack.c.h.b16 %v5790
        %v6076 = vunpack.c.l.b16 %v5791
        %v6077 = vunpack.c.h.b16 %v5791
        %v6078 = vunpack.c.l.b16 %v5792
        %v6079 = vunpack.c.h.b16 %v5792
        %v6080 = vunpack.c.l.b16 %v5793
        %v6081 = vunpack.c.h.b16 %v5793
        %v6082 = vunpack.c.l.b16 %v5794
        %v6083 = vunpack.c.h.b16 %v5794
        %v6084 = vunpack.c.l.b16 %v5795
        %v6085 = vunpack.c.h.b16 %v5795
        %v6086 = vunpack.c.l.b16 %v5796
        %v6087 = vunpack.c.h.b16 %v5796
        %v6088 = vunpack.c.l.b16 %v5797
        %v6089 = vunpack.c.h.b16 %v5797
        %v6090 = vunpack.c.l.b16 %v5798
        %v6091 = vunpack.c.h.b16 %v5798
        %v6092 = vunpack.c.l.b16 %v5799
        %v6093 = vunpack.c.h.b16 %v5799
        %v6094 = vunpack.c.l.b16 %v5800
        %v6095 = vunpack.c.h.b16 %v5800
        %v6096 = vunpack.c.l.b16 %v5801
        %v6097 = vunpack.c.h.b16 %v5801
        %v6098 = vunpack.c.l.b16 %v5802
        %v6099 = vunpack.c.h.b16 %v5802
        %v6100 = vunpack.c.l.b16 %v5803
        %v6101 = vunpack.c.h.b16 %v5803
        %v6102 = vunpack.c.l.b16 %v5804
        %v6103 = vunpack.c.h.b16 %v5804
        %v6104 = vunpack.c.l.b16 %v5805
        %v6105 = vunpack.c.h.b16 %v5805
        %v6106 = vunpack.c.l.b16 %v5806
        %v6107 = vunpack.c.h.b16 %v5806
        %v6108 = vunpack.c.l.b16 %v5807
        %v6109 = vunpack.c.h.b16 %v5807
        %v6110 = vunpack.c.l.b16 %v5808
        %v6111 = vunpack.c.h.b16 %v5808
        %v6112 = vunpack.c.l.b16 %v5809
        %v6113 = vunpack.c.h.b16 %v5809
        %v6114 = vunpack.c.l.b16 %v5810
        %v6115 = vunpack.c.h.b16 %v5810
        %v6116 = vunpack.c.l.b16 %v5811
        %v6117 = vunpack.c.h.b16 %v5811
        %v6118 = vunpack.c.l.b16 %v5812
        %v6119 = vunpack.c.h.b16 %v5812
        %v6120 = vunpack.c.l.b16 %v5813
        %v6121 = vunpack.c.h.b16 %v5813
        %v6122 = vunpack.c.l.b16 %v5814
        %v6123 = vunpack.c.h.b16 %v5814
        %v6124 = vunpack.c.l.b16 %v5815
        %v6125 = vunpack.c.h.b16 %v5815
        %v6126 = vunpack.c.l.b16 %v5816
        %v6127 = vunpack.c.h.b16 %v5816
        %v6128 = vunpack.c.l.b16 %v5817
        %v6129 = vunpack.c.h.b16 %v5817
        %v6130 = vunpack.c.l.b16 %v5818
        %v6131 = vunpack.c.h.b16 %v5818
        %v6132 = vunpack.c.l.b16 %v5819
        %v6133 = vunpack.c.h.b16 %v5819
        %v6134 = vunpack.c.l.b16 %v5820
        %v6135 = vunpack.c.h.b16 %v5820
        %v6136 = vunpack.c.l.b16 %v5821
        %v6137 = vunpack.c.h.b16 %v5821
        %v6138 = vunpack.c.l.b16 %v5822
        %v6139 = vunpack.c.h.b16 %v5822
        %v6140 = vunpack.c.l.b16 %v5823
        %v6141 = vunpack.c.h.b16 %v5823
        %v6142 = vunpack.c.l.b16 %v5824
        %v6143 = vunpack.c.h.b16 %v5824
        %v6144 = vunpack.c.l.b16 %v5825
        %v6145 = vunpack.c.h.b16 %v5825
        %v6146 = vunpack.c.l.b16 %v5826
        %v6147 = vunpack.c.h.b16 %v5826
        %v6148 = vunpack.c.l.b16 %v5827
        %v6149 = vunpack.c.h.b16 %v5827
        %v6150 = vunpack.c.l.b16 %v5828
        %v6151 = vunpack.c.h.b16 %v5828
        %v6152 = vunpack.c.l.b16 %v5829
        %v6153 = vunpack.c.h.b16 %v5829
        %v6154 = vunpack.c.l.b16 %v5830
        %v6155 = vunpack.c.h.b16 %v5830
        %v6156 = vunpack.c.l.b16 %v5831
        %v6157 = vunpack.c.h.b16 %v5831
        %v6158 = vunpack.c.l.b16 %v5832
        %v6159 = vunpack.c.h.b16 %v5832
        %v6160 = vunpack.c.l.b16 %v5833
        %v6161 = vunpack.c.h.b16 %v5833
        %v6162 = vunpack.c.l.b16 %v5834
        %v6163 = vunpack.c.h.b16 %v5834
        %v6164 = vunpack.c.l.b16 %v5835
        %v6165 = vunpack.c.h.b16 %v5835
        %v6166 = vunpack.c.l.b16 %v5836
        %v6167 = vunpack.c.h.b16 %v5836
        %v6168 = vunpack.c.l.b16 %v5837
        %v6169 = vunpack.c.h.b16 %v5837
        %v6170 = vunpack.c.l.b16 %v5838
        %v6171 = vunpack.c.h.b16 %v5838
        %v6172 = vunpack.c.l.b16 %v5839
        %v6173 = vunpack.c.h.b16 %v5839
        %v6174 = vunpack.c.l.b16 %v5840
        %v6175 = vunpack.c.h.b16 %v5840
        %v6176 = vunpack.c.l.b16 %v5841
        %v6177 = vunpack.c.h.b16 %v5841
        %v6178 = vunpack.c.l.b16 %v5842
        %v6179 = vunpack.c.h.b16 %v5842
        %v6180 = vunpack.c.l.b16 %v5843
        %v6181 = vunpack.c.h.b16 %v5843
        %v6182 = vunpack.c.l.b16 %v5844
        %v6183 = vunpack.c.h.b16 %v5844
        %v6184 = vunpack.c.l.b16 %v5845
        %v6185 = vunpack.c.h.b16 %v5845
        %v6186 = vunpack.c.l.b16 %v5846
        %v6187 = vunpack.c.h.b16 %v5846
        %v6188 = vunpack.c.l.b16 %v5847
        %v6189 = vunpack.c.h.b16 %v5847
        %v6190 = vunpack.c.l.b16 %v5848
        %v6191 = vunpack.c.h.b16 %v5848
        %v6192 = vunpack.c.l.b16 %v5849
        %v6193 = vunpack.c.h.b16 %v5849
        %v6194 = vunpack.c.l.b16 %v5850
        %v6195 = vunpack.c.h.b16 %v5850
        %v6196 = vunpack.c.l.b16 %v5851
        %v6197 = vunpack.c.h.b16 %v5851
        %v6198 = vunpack.c.l.b16 %v5852
        %v6199 = vunpack.c.h.b16 %v5852
        %v6200 = vunpack.c.l.b16 %v5853
        %v6201 = vunpack.c.h.b16 %v5853
        %v6202 = vunpack.c.l.b16 %v5854
        %v6203 = vunpack.c.h.b16 %v5854
        %v6204 = vunpack.c.l.b16 %v5855
        %v6205 = vunpack.c.h.b16 %v5855
        %v6206 = vunpack.c.l.b16 %v5856
        %v6207 = vunpack.c.h.b16 %v5856
        %v6208 = vunpack.c.l.b16 %v5857
        %v6209 = vunpack.c.h.b16 %v5857
        %v6210 = vunpack.c.l.b16 %v5858
        %v6211 = vunpack.c.h.b16 %v5858
        %v6212 = vunpack.c.l.b16 %v5859
        %v6213 = vunpack.c.h.b16 %v5859
        %v6214 = vunpack.c.l.b16 %v5860
        %v6215 = vunpack.c.h.b16 %v5860
        %v6216 = vunpack.c.l.b16 %v5861
        %v6217 = vunpack.c.h.b16 %v5861
        %v6218 = vunpack.c.l.b16 %v5862
        %v6219 = vunpack.c.h.b16 %v5862
        %v6220 = vunpack.c.l.b16 %v5863
        %v6221 = vunpack.c.h.b16 %v5863
        %v6222 = vunpack.c.l.b16 %v5864
        %v6223 = vunpack.c.h.b16 %v5864
        %v6224 = vunpack.c.l.b16 %v5865
        %v6225 = vunpack.c.h.b16 %v5865
        %v6226 = vunpack.c.l.b16 %v5866
        %v6227 = vunpack.c.h.b16 %v5866
        %v6228 = vunpack.c.l.b16 %v5867
        %v6229 = vunpack.c.h.b16 %v5867
        %v6230 = vunpack.c.l.b16 %v5868
        %v6231 = vunpack.c.h.b16 %v5868
        %v6232 = vunpack.c.l.b16 %v5869
        %v6233 = vunpack.c.h.b16 %v5869
        %v6234 = vunpack.c.l.b16 %v5870
        %v6235 = vunpack.c.h.b16 %v5870
        %v6236 = vunpack.c.l.b16 %v5871
        %v6237 = vunpack.c.h.b16 %v5871
        %v6238 = vunpack.c.l.b16 %v5872
        %v6239 = vunpack.c.h.b16 %v5872
        %v6240 = vunpack.c.l.b16 %v5873
        %v6241 = vunpack.c.h.b16 %v5873
        %v6242 = vunpack.c.l.b16 %v5874
        %v6243 = vunpack.c.h.b16 %v5874
        %v6244 = vunpack.c.l.b16 %v5875
        %v6245 = vunpack.c.h.b16 %v5875
        %v6246 = vunpack.c.l.b16 %v5876
        %v6247 = vunpack.c.h.b16 %v5876
        %v6248 = vunpack.c.l.b16 %v5877
        %v6249 = vunpack.c.h.b16 %v5877
        %v6250 = vunpack.c.l.b16 %v5878
        %v6251 = vunpack.c.h.b16 %v5878
        %v6252 = vunpack.c.l.b16 %v5879
        %v6253 = vunpack.c.h.b16 %v5879
        %v6254 = vunpack.c.l.b16 %v5880
        %v6255 = vunpack.c.h.b16 %v5880
        %v6256 = vunpack.c.l.b16 %v5881
        %v6257 = vunpack.c.h.b16 %v5881
        %v6258 = vunpack.c.l.b16 %v5882
        %v6259 = vunpack.c.h.b16 %v5882
        %v6260 = vunpack.c.l.b16 %v5883
        %v6261 = vunpack.c.h.b16 %v5883
        %v6262 = vunpack.c.l.b16 %v5884
        %v6263 = vunpack.c.h.b16 %v5884
        %v6264 = vunpack.c.l.b16 %v5885
        %v6265 = vunpack.c.h.b16 %v5885
        %v6266 = vunpack.c.l.b16 %v5886
        %v6267 = vunpack.c.h.b16 %v5886
        %v6268 = vunpack.c.l.b16 %v5887
        %v6269 = vunpack.c.h.b16 %v5887
        %v6270 = vunpack.c.l.b16 %v5888
        %v6271 = vunpack.c.h.b16 %v5888
        %v6272 = vunpack.c.l.b16 %v5889
        %v6273 = vunpack.c.h.b16 %v5889
        %v6274 = vunpack.c.l.b16 %v5890
        %v6275 = vunpack.c.h.b16 %v5890
        %v6276 = vunpack.c.l.b16 %v5891
        %v6277 = vunpack.c.h.b16 %v5891
        %v6278 = vunpack.c.l.b16 %v5892
        %v6279 = vunpack.c.h.b16 %v5892
        %v6280 = vunpack.c.l.b16 %v5893
        %v6281 = vunpack.c.h.b16 %v5893
        %v6282 = vunpack.c.l.b16 %v5894
        %v6283 = vunpack.c.h.b16 %v5894
        %v6284 = vunpack.c.l.b16 %v5895
        %v6285 = vunpack.c.h.b16 %v5895
        %v6286 = vunpack.c.l.b16 %v5896
        %v6287 = vunpack.c.h.b16 %v5896
        %v6288 = vunpack.c.l.b16 %v5897
        %v6289 = vunpack.c.h.b16 %v5897
        %v6290 = vunpack.c.l.b16 %v5898
        %v6291 = vunpack.c.h.b16 %v5898
        %v6292 = vunpack.c.l.b16 %v5899
        %v6293 = vunpack.c.h.b16 %v5899
        %v6294 = vunpack.c.l.b16 %v5900
        %v6295 = vunpack.c.h.b16 %v5900
        %v6296 = vunpack.c.l.b16 %v5901
        %v6297 = vunpack.c.h.b16 %v5901
        %v6298 = vunpack.c.l.b16 %v5902
        %v6299 = vunpack.c.h.b16 %v5902
        %v6300 = vunpack.c.l.b16 %v5903
        %v6301 = vunpack.c.h.b16 %v5903
        %v6302 = vunpack.c.l.b16 %v5904
        %v6303 = vunpack.c.h.b16 %v5904
        %v6304 = vunpack.c.l.b16 %v5905
        %v6305 = vunpack.c.h.b16 %v5905
        %v6306 = vunpack.c.l.b16 %v5906
        %v6307 = vunpack.c.h.b16 %v5906
        %v6308 = vunpack.c.l.b16 %v5907
        %v6309 = vunpack.c.h.b16 %v5907
        %v6310 = vunpack.c.l.b16 %v5908
        %v6311 = vunpack.c.h.b16 %v5908
        %v6312 = vunpack.c.l.b16 %v5909
        %v6313 = vunpack.c.h.b16 %v5909
        %v6314 = vunpack.c.l.b16 %v5910
        %v6315 = vunpack.c.h.b16 %v5910
        %v6316 = vunpack.c.l.b16 %v5911
        %v6317 = vunpack.c.h.b16 %v5911
        %v6318 = vpack.c.b16 %v6066, %v6062
        %v6319 = vpack.c.b16 %v6067, %v6063
        %v6320 = vpack.c.b16 %v6068, %v6064
        %v6321 = vpack.c.b16 %v6069, %v6065
        %v6322 = vpack.c.b16 %v6074, %v6070
        %v6323 = vpack.c.b16 %v6075, %v6071
        %v6324 = vpack.c.b16 %v6076, %v6072
        %v6325 = vpack.c.b16 %v6077, %v6073
        %v6326 = vpack.c.b16 %v6082, %v6078
        %v6327 = vpack.c.b16 %v6083, %v6079
        %v6328 = vpack.c.b16 %v6084, %v6080
        %v6329 = vpack.c.b16 %v6085, %v6081
        %v6330 = vpack.c.b16 %v6090, %v6086
        %v6331 = vpack.c.b16 %v6091, %v6087
        %v6332 = vpack.c.b16 %v6092, %v6088
        %v6333 = vpack.c.b16 %v6093, %v6089
        %v6334 = vpack.c.b16 %v6098, %v6094
        %v6335 = vpack.c.b16 %v6099, %v6095
        %v6336 = vpack.c.b16 %v6100, %v6096
        %v6337 = vpack.c.b16 %v6101, %v6097
        %v6338 = vpack.c.b16 %v6106, %v6102
        %v6339 = vpack.c.b16 %v6107, %v6103
        %v6340 = vpack.c.b16 %v6108, %v6104
        %v6341 = vpack.c.b16 %v6109, %v6105
        %v6342 = vpack.c.b16 %v6114, %v6110
        %v6343 = vpack.c.b16 %v6115, %v6111
        %v6344 = vpack.c.b16 %v6116, %v6112
        %v6345 = vpack.c.b16 %v6117, %v6113
        %v6346 = vpack.c.b16 %v6122, %v6118
        %v6347 = vpack.c.b16 %v6123, %v6119
        %v6348 = vpack.c.b16 %v6124, %v6120
        %v6349 = vpack.c.b16 %v6125, %v6121
        %v6350 = vpack.c.b16 %v6130, %v6126
        %v6351 = vpack.c.b16 %v6131, %v6127
        %v6352 = vpack.c.b16 %v6132, %v6128
        %v6353 = vpack.c.b16 %v6133, %v6129
        %v6354 = vpack.c.b16 %v6138, %v6134
        %v6355 = vpack.c.b16 %v6139, %v6135
        %v6356 = vpack.c.b16 %v6140, %v6136
        %v6357 = vpack.c.b16 %v6141, %v6137
        %v6358 = vpack.c.b16 %v6146, %v6142
        %v6359 = vpack.c.b16 %v6147, %v6143
        %v6360 = vpack.c.b16 %v6148, %v6144
        %v6361 = vpack.c.b16 %v6149, %v6145
        %v6362 = vpack.c.b16 %v6154, %v6150
        %v6363 = vpack.c.b16 %v6155, %v6151
        %v6364 = vpack.c.b16 %v6156, %v6152
        %v6365 = vpack.c.b16 %v6157, %v6153
        %v6366 = vpack.c.b16 %v6162, %v6158
        %v6367 = vpack.c.b16 %v6163, %v6159
        %v6368 = vpack.c.b16 %v6164, %v6160
        %v6369 = vpack.c.b16 %v6165, %v6161
        %v6370 = vpack.c.b16 %v6170, %v6166
        %v6371 = vpack.c.b16 %v6171, %v6167
        %v6372 = vpack.c.b16 %v6172, %v6168
        %v6373 = vpack.c.b16 %v6173, %v6169
        %v6374 = vpack.c.b16 %v6178, %v6174
        %v6375 = vpack.c.b16 %v6179, %v6175
        %v6376 = vpack.c.b16 %v6180, %v6176
        %v6377 = vpack.c.b16 %v6181, %v6177
        %v6378 = vpack.c.b16 %v6186, %v6182
        %v6379 = vpack.c.b16 %v6187, %v6183
        %v6380 = vpack.c.b16 %v6188, %v6184
        %v6381 = vpack.c.b16 %v6189, %v6185
        %v6382 = vpack.c.b16 %v6194, %v6190
        %v6383 = vpack.c.b16 %v6195, %v6191
        %v6384 = vpack.c.b16 %v6196, %v6192
        %v6385 = vpack.c.b16 %v6197, %v6193
        %v6386 = vpack.c.b16 %v6202, %v6198
        %v6387 = vpack.c.b16 %v6203, %v6199
        %v6388 = vpack.c.b16 %v6204, %v6200
        %v6389 = vpack.c.b16 %v6205, %v6201
        %v6390 = vpack.c.b16 %v6210, %v6206
        %v6391 = vpack.c.b16 %v6211, %v6207
        %v6392 = vpack.c.b16 %v6212, %v6208
        %v6393 = vpack.c.b16 %v6213, %v6209
        %v6394 = vpack.c.b16 %v6218, %v6214
        %v6395 = vpack.c.b16 %v6219, %v6215
        %v6396 = vpack.c.b16 %v6220, %v6216
        %v6397 = vpack.c.b16 %v6221, %v6217
        %v6398 = vpack.c.b16 %v6226, %v6222
        %v6399 = vpack.c.b16 %v6227, %v6223
        %v6400 = vpack.c.b16 %v6228, %v6224
        %v6401 = vpack.c.b16 %v6229, %v6225
        %v6402 = vpack.c.b16 %v6234, %v6230
        %v6403 = vpack.c.b16 %v6235, %v6231
        %v6404 = vpack.c.b16 %v6236, %v6232
        %v6405 = vpack.c.b16 %v6237, %v6233
        %v6406 = vpack.c.b16 %v6242, %v6238
        %v6407 = vpack.c.b16 %v6243, %v6239
        %v6408 = vpack.c.b16 %v6244, %v6240
        %v6409 = vpack.c.b16 %v6245, %v6241
        %v6410 = vpack.c.b16 %v6250, %v6246
        %v6411 = vpack.c.b16 %v6251, %v6247
        %v6412 = vpack.c.b16 %v6252, %v6248
        %v6413 = vpack.c.b16 %v6253, %v6249
        %v6414 = vpack.c.b16 %v6258, %v6254
        %v6415 = vpack.c.b16 %v6259, %v6255
        %v6416 = vpack.c.b16 %v6260, %v6256
        %v6417 = vpack.c.b16 %v6261, %v6257
        %v6418 = vpack.c.b16 %v6266, %v6262
        %v6419 = vpack.c.b16 %v6267, %v6263
        %v6420 = vpack.c.b16 %v6268, %v6264
        %v6421 = vpack.c.b16 %v6269, %v6265
        %v6422 = vpack.c.b16 %v6274, %v6270
        %v6423 = vpack.c.b16 %v6275, %v6271
        %v6424 = vpack.c.b16 %v6276, %v6272
        %v6425 = vpack.c.b16 %v6277, %v6273
        %v6426 = vpack.c.b16 %v6282, %v6278
        %v6427 = vpack.c.b16 %v6283, %v6279
        %v6428 = vpack.c.b16 %v6284, %v6280
        %v6429 = vpack.c.b16 %v6285, %v6281
        %v6430 = vpack.c.b16 %v6290, %v6286
        %v6431 = vpack.c.b16 %v6291, %v6287
        %v6432 = vpack.c.b16 %v6292, %v6288
        %v6433 = vpack.c.b16 %v6293, %v6289
        %v6434 = vpack.c.b16 %v6298, %v6294
        %v6435 = vpack.c.b16 %v6299, %v6295
        %v6436 = vpack.c.b16 %v6300, %v6296
        %v6437 = vpack.c.b16 %v6301, %v6297
        %v6438 = vpack.c.b16 %v6306, %v6302
        %v6439 = vpack.c.b16 %v6307, %v6303
        %v6440 = vpack.c.b16 %v6308, %v6304
        %v6441 = vpack.c.b16 %v6309, %v6305
        %v6442 = vpack.c.b16 %v6314, %v6310
        %v6443 = vpack.c.b16 %v6315, %v6311
        %v6444 = vpack.c.b16 %v6316, %v6312
        %v6445 = vpack.c.b16 %v6317, %v6313
        %6574 = vmatprep.subr.bf16.mxu0 %v6319
        %6575 = vmatpush1.bf16.msra.mxu0 %v6318
        %6576 = vmatprep.subr.bf16.mxu0 %v6323
        %6577 = vmatpush1.bf16.msra.mxu0 %v6322
        %6578 = vmatprep.subr.bf16.mxu0 %v6327
        %6579 = vmatpush1.bf16.msra.mxu0 %v6326
        %6580 = vmatprep.subr.bf16.mxu0 %v6331
        %6581 = vmatpush1.bf16.msra.mxu0 %v6330
        %6582 = vmatprep.subr.bf16.mxu0 %v6335
        %6583 = vmatpush1.bf16.msra.mxu0 %v6334
        %6584 = vmatprep.subr.bf16.mxu0 %v6339
        %6585 = vmatpush1.bf16.msra.mxu0 %v6338
        %6586 = vmatprep.subr.bf16.mxu0 %v6343
        %6587 = vmatpush1.bf16.msra.mxu0 %v6342
        %6588 = vmatprep.subr.bf16.mxu0 %v6347
        %6589 = vmatpush1.bf16.msra.mxu0 %v6346
        %6590 = vmatprep.subr.bf16.mxu0 %v6351
        %6591 = vmatpush1.bf16.msra.mxu0 %v6350
        %6592 = vmatprep.subr.bf16.mxu0 %v6355
        %6593 = vmatpush1.bf16.msra.mxu0 %v6354
        %6594 = vmatprep.subr.bf16.mxu0 %v6359
        %6595 = vmatpush1.bf16.msra.mxu0 %v6358
        %6596 = vmatprep.subr.bf16.mxu0 %v6363
        %6597 = vmatpush1.bf16.msra.mxu0 %v6362
        %6598 = vmatprep.subr.bf16.mxu0 %v6367
        %6599 = vmatpush1.bf16.msra.mxu0 %v6366
        %6600 = vmatprep.subr.bf16.mxu0 %v6371
        %6601 = vmatpush1.bf16.msra.mxu0 %v6370
        %6602 = vmatprep.subr.bf16.mxu0 %v6375
        %6603 = vmatpush1.bf16.msra.mxu0 %v6374
        %6604 = vmatprep.subr.bf16.mxu0 %v6379
        %6605 = vmatpush1.bf16.msra.mxu0 %v6378
        %6606 = vmatprep.mubr.bf16.mxu0 %v5781
        %6607 = vmatmul.mubr.bf16.gmra.mrb[0].mxu0 %v5780
        %v6608 = vpop.f32.mrb[0].mxu0
        %v6609 = vadd.f32 %v5917, %v6608
        %v6610 = vpop.f32.mrb[0].mxu0
        %v6611 = vadd.f32 %v5921, %v6610
        %v6612 = vpop.f32.mrb[0].mxu0
        %v6613 = vadd.f32 %v5917, %v6612
        %v6614 = vpop.f32.mrb[0].mxu0
        %v6615 = vadd.f32 %v5921, %v6614
        %6616 = vdwg.mxu0
        %6617 = vmatprep.subr.bf16.mxu0 %v6383
        %6618 = vmatpush1.bf16.msra.mxu0 %v6382
        %6619 = vmatprep.subr.bf16.mxu0 %v6387
        %6620 = vmatpush1.bf16.msra.mxu0 %v6386
        %6621 = vmatprep.subr.bf16.mxu0 %v6391
        %6622 = vmatpush1.bf16.msra.mxu0 %v6390
        %6623 = vmatprep.subr.bf16.mxu0 %v6395
        %6624 = vmatpush1.bf16.msra.mxu0 %v6394
        %6625 = vmatprep.subr.bf16.mxu0 %v6399
        %6626 = vmatpush1.bf16.msra.mxu0 %v6398
        %6627 = vmatprep.subr.bf16.mxu0 %v6403
        %6628 = vmatpush1.bf16.msra.mxu0 %v6402
        %6629 = vmatprep.subr.bf16.mxu0 %v6407
        %6630 = vmatpush1.bf16.msra.mxu0 %v6406
        %6631 = vmatprep.subr.bf16.mxu0 %v6411
        %6632 = vmatpush1.bf16.msra.mxu0 %v6410
        %6633 = vmatprep.subr.bf16.mxu0 %v6415
        %6634 = vmatpush1.bf16.msra.mxu0 %v6414
        %6635 = vmatprep.subr.bf16.mxu0 %v6419
        %6636 = vmatpush1.bf16.msra.mxu0 %v6418
        %6637 = vmatprep.subr.bf16.mxu0 %v6423
        %6638 = vmatpush1.bf16.msra.mxu0 %v6422
        %6639 = vmatprep.subr.bf16.mxu0 %v6427
        %6640 = vmatpush1.bf16.msra.mxu0 %v6426
        %6641 = vmatprep.subr.bf16.mxu0 %v6431
        %6642 = vmatpush1.bf16.msra.mxu0 %v6430
        %6643 = vmatprep.subr.bf16.mxu0 %v6435
        %6644 = vmatpush1.bf16.msra.mxu0 %v6434
        %6645 = vmatprep.subr.bf16.mxu0 %v6439
        %6646 = vmatpush1.bf16.msra.mxu0 %v6438
        %6647 = vmatprep.subr.bf16.mxu0 %v6443
        %6648 = vmatpush1.bf16.msra.mxu0 %v6442
        %6649 = vmatprep.mubr.bf16.mxu0 %v5783
        %6650 = vmatmul.mubr.bf16.gmra.mrb[0].mxu0 %v5782
        %v6651 = vpop.f32.mrb[0].mxu0
        %v6652 = vadd.f32 %v6609, %v6651
        %v6653 = vpop.f32.mrb[0].mxu0
        %v6654 = vadd.f32 %v6611, %v6653
        %v6655 = vpop.f32.mrb[0].mxu0
        %v6656 = vadd.f32 %v6613, %v6655
        %v6657 = vpop.f32.mrb[0].mxu0
        %v6658 = vadd.f32 %v6615, %v6657
        %6659 = vdwg.mxu0
        %6660 = vmatprep.subr.bf16.mxu0 %v6321
        %6661 = vmatpush1.bf16.msra.mxu0 %v6320
        %6662 = vmatprep.subr.bf16.mxu0 %v6325
        %6663 = vmatpush1.bf16.msra.mxu0 %v6324
        %6664 = vmatprep.subr.bf16.mxu0 %v6329
        %6665 = vmatpush1.bf16.msra.mxu0 %v6328
        %6666 = vmatprep.subr.bf16.mxu0 %v6333
        %6667 = vmatpush1.bf16.msra.mxu0 %v6332
        %6668 = vmatprep.subr.bf16.mxu0 %v6337
        %6669 = vmatpush1.bf16.msra.mxu0 %v6336
        %6670 = vmatprep.subr.bf16.mxu0 %v6341
        %6671 = vmatpush1.bf16.msra.mxu0 %v6340
        %6672 = vmatprep.subr.bf16.mxu0 %v6345
        %6673 = vmatpush1.bf16.msra.mxu0 %v6344
        %6674 = vmatprep.subr.bf16.mxu0 %v6349
        %6675 = vmatpush1.bf16.msra.mxu0 %v6348
        %6676 = vmatprep.subr.bf16.mxu0 %v6353
        %6677 = vmatpush1.bf16.msra.mxu0 %v6352
        %6678 = vmatprep.subr.bf16.mxu0 %v6357
        %6679 = vmatpush1.bf16.msra.mxu0 %v6356
        %6680 = vmatprep.subr.bf16.mxu0 %v6361
        %6681 = vmatpush1.bf16.msra.mxu0 %v6360
        %6682 = vmatprep.subr.bf16.mxu0 %v6365
        %6683 = vmatpush1.bf16.msra.mxu0 %v6364
        %6684 = vmatprep.subr.bf16.mxu0 %v6369
        %6685 = vmatpush1.bf16.msra.mxu0 %v6368
        %6686 = vmatprep.subr.bf16.mxu0 %v6373
        %6687 = vmatpush1.bf16.msra.mxu0 %v6372
        %6688 = vmatprep.subr.bf16.mxu0 %v6377
        %6689 = vmatpush1.bf16.msra.mxu0 %v6376
        %6690 = vmatprep.subr.bf16.mxu0 %v6381
        %6691 = vmatpush1.bf16.msra.mxu0 %v6380
        %6692 = vmatprep.mubr.bf16.mxu0 %v5781
        %6693 = vmatmul.mubr.bf16.gmra.mrb[0].mxu0 %v5780
        %v6694 = vpop.f32.mrb[0].mxu0
        %v6695 = vadd.f32 %v5925, %v6694
        %v6696 = vpop.f32.mrb[0].mxu0
        %v6697 = vadd.f32 %v5929, %v6696
        %v6698 = vpop.f32.mrb[0].mxu0
        %v6699 = vadd.f32 %v5925, %v6698
        %v6700 = vpop.f32.mrb[0].mxu0
        %v6701 = vadd.f32 %v5929, %v6700
        %6702 = vdwg.mxu0
        %6703 = vmatprep.subr.bf16.mxu0 %v6385
        %6704 = vmatpush1.bf16.msra.mxu0 %v6384
        %6705 = vmatprep.subr.bf16.mxu0 %v6389
        %6706 = vmatpush1.bf16.msra.mxu0 %v6388
        %6707 = vmatprep.subr.bf16.mxu0 %v6393
        %6708 = vmatpush1.bf16.msra.mxu0 %v6392
        %6709 = vmatprep.subr.bf16.mxu0 %v6397
        %6710 = vmatpush1.bf16.msra.mxu0 %v6396
        %6711 = vmatprep.subr.bf16.mxu0 %v6401
        %6712 = vmatpush1.bf16.msra.mxu0 %v6400
        %6713 = vmatprep.subr.bf16.mxu0 %v6405
        %6714 = vmatpush1.bf16.msra.mxu0 %v6404
        %6715 = vmatprep.subr.bf16.mxu0 %v6409
        %6716 = vmatpush1.bf16.msra.mxu0 %v6408
        %6717 = vmatprep.subr.bf16.mxu0 %v6413
        %6718 = vmatpush1.bf16.msra.mxu0 %v6412
        %6719 = vmatprep.subr.bf16.mxu0 %v6417
        %6720 = vmatpush1.bf16.msra.mxu0 %v6416
        %6721 = vmatprep.subr.bf16.mxu0 %v6421
        %6722 = vmatpush1.bf16.msra.mxu0 %v6420
        %6723 = vmatprep.subr.bf16.mxu0 %v6425
        %6724 = vmatpush1.bf16.msra.mxu0 %v6424
        %6725 = vmatprep.subr.bf16.mxu0 %v6429
        %6726 = vmatpush1.bf16.msra.mxu0 %v6428
        %6727 = vmatprep.subr.bf16.mxu0 %v6433
        %6728 = vmatpush1.bf16.msra.mxu0 %v6432
        %6729 = vmatprep.subr.bf16.mxu0 %v6437
        %6730 = vmatpush1.bf16.msra.mxu0 %v6436
        %6731 = vmatprep.subr.bf16.mxu0 %v6441
        %6732 = vmatpush1.bf16.msra.mxu0 %v6440
        %6733 = vmatprep.subr.bf16.mxu0 %v6445
        %6734 = vmatpush1.bf16.msra.mxu0 %v6444
        %6735 = vmatprep.mubr.bf16.mxu0 %v5783
        %6736 = vmatmul.mubr.bf16.gmra.mrb[0].mxu0 %v5782
        %v6737 = vpop.f32.mrb[0].mxu0
        %v6738 = vadd.f32 %v6695, %v6737
        %v6739 = vpop.f32.mrb[0].mxu0
        %v6740 = vadd.f32 %v6697, %v6739
        %v6741 = vpop.f32.mrb[0].mxu0
        %v6742 = vadd.f32 %v6699, %v6741
        %v6743 = vpop.f32.mrb[0].mxu0
        %v6744 = vadd.f32 %v6701, %v6743
        %6745 = vdwg.mxu0
        %v6746 = vadd.f32 %v968, %v6652
        %v6747 = vadd.f32 %v969, %v6654
        %v6748 = vadd.f32 %v970, %v6738
        %v6749 = vadd.f32 %v971, %v6740
        %v6750 = vadd.f32 %v972, %v6656
        %v6751 = vadd.f32 %v973, %v6658
        %v6752 = vadd.f32 %v974, %v6742
        %v6753 = vadd.f32 %v975, %v6744
        %v6754 = vld [vmem:[%s797] sm:$0xf]
        %v6755 = vld [vmem:[%s806] sm:$0xf]
        %v6756 = vadd.f32 %v6746, %v6747
        %v6757 = vadd.f32 %v6756, %v6748
        %v6758 = vadd.f32 %v6757, %v6749
        %6759 = vadd.xlane.f32.xlu0 %v6758
        %v6760 = vpop.xlane.xlu0 %6759
        %v6761 = vadd.f32 %v6750, %v6751
        %v6762 = vadd.f32 %v6761, %v6752
        %v6763 = vadd.f32 %v6762, %v6753
        %6764 = vadd.xlane.f32.xlu0 %v6763
        %v6765 = vpop.xlane.xlu0 %6764
        %v6766 = vmul.f32 %v6760, %v988
        %v6767 = vmul.f32 %v6765, %v988
        %v6768 = vsub.f32 %v6746, %v6766
        %v6769 = vsub.f32 %v6747, %v6766
        %v6770 = vsub.f32 %v6748, %v6766
        %v6771 = vsub.f32 %v6749, %v6766
        %v6772 = vsub.f32 %v6750, %v6767
        %v6773 = vsub.f32 %v6751, %v6767
        %v6774 = vsub.f32 %v6752, %v6767
        %v6775 = vsub.f32 %v6753, %v6767
        %v6776 = vmul.f32 %v6768, %v6768
        %v6777 = vmul.f32 %v6769, %v6769
        %v6778 = vmul.f32 %v6770, %v6770
        %v6779 = vmul.f32 %v6771, %v6771
        %v6780 = vmul.f32 %v6772, %v6772
        %v6781 = vmul.f32 %v6773, %v6773
        %v6782 = vmul.f32 %v6774, %v6774
        %v6783 = vmul.f32 %v6775, %v6775
        %v6784 = vadd.f32 %v6776, %v6777
        %v6785 = vadd.f32 %v6784, %v6778
        %v6786 = vadd.f32 %v6785, %v6779
        %6787 = vadd.xlane.f32.xlu0 %v6786
        %v6788 = vpop.xlane.xlu0 %6787
        %v6789 = vadd.f32 %v6780, %v6781
        %v6790 = vadd.f32 %v6789, %v6782
        %v6791 = vadd.f32 %v6790, %v6783
        %6792 = vadd.xlane.f32.xlu0 %v6791
        %v6793 = vpop.xlane.xlu0 %6792
        %v6794 = vmul.f32 %v6788, %v988
        %v6795 = vmul.f32 %v6793, %v988
        %v6796 = vadd.f32 %v6794, 1e-06
        %v6797 = vadd.f32 %v6795, 1e-06
        %v6798 = vrsqrt.pop %v6796
        %v6799 = vrsqrt.pop %v6797
        %v6800 = vmul.f32 %v6768, %v6798
        %v6801 = vmul.f32 %v6769, %v6798
        %v6802 = vmul.f32 %v6770, %v6798
        %v6803 = vmul.f32 %v6771, %v6798
        %v6804 = vmul.f32 %v6772, %v6799
        %v6805 = vmul.f32 %v6773, %v6799
        %v6806 = vmul.f32 %v6774, %v6799
        %v6807 = vmul.f32 %v6775, %v6799
        %v6809 = vlaneseq
        %v6810 = vshrl.u32 %v6809, 7
        %v6811 = vsub.s32 0, %v6810
        %v6812 = vrot.slane %v6754, %v6811
        %v6813 = vlaneseq
        %v6814 = vshrl.u32 %v6813, 7
        %v6815 = vsub.s32 1, %v6814
        %v6816 = vrot.slane %v6754, %v6815
        %v6817 = vlaneseq
        %v6818 = vshrl.u32 %v6817, 7
        %v6819 = vsub.s32 2, %v6818
        %v6820 = vrot.slane %v6754, %v6819
        %v6821 = vlaneseq
        %v6822 = vshrl.u32 %v6821, 7
        %v6823 = vsub.s32 3, %v6822
        %v6824 = vrot.slane %v6754, %v6823
        %v6829 = vmul.f32 %v6800, %v6812
        %v6830 = vmul.f32 %v6801, %v6816
        %v6831 = vmul.f32 %v6802, %v6820
        %v6832 = vmul.f32 %v6803, %v6824
        %v6833 = vmul.f32 %v6804, %v6812
        %v6834 = vmul.f32 %v6805, %v6816
        %v6835 = vmul.f32 %v6806, %v6820
        %v6836 = vmul.f32 %v6807, %v6824
        %v6838 = vlaneseq
        %v6839 = vshrl.u32 %v6838, 7
        %v6840 = vsub.s32 0, %v6839
        %v6841 = vrot.slane %v6755, %v6840
        %v6842 = vlaneseq
        %v6843 = vshrl.u32 %v6842, 7
        %v6844 = vsub.s32 1, %v6843
        %v6845 = vrot.slane %v6755, %v6844
        %v6846 = vlaneseq
        %v6847 = vshrl.u32 %v6846, 7
        %v6848 = vsub.s32 2, %v6847
        %v6849 = vrot.slane %v6755, %v6848
        %v6850 = vlaneseq
        %v6851 = vshrl.u32 %v6850, 7
        %v6852 = vsub.s32 3, %v6851
        %v6853 = vrot.slane %v6755, %v6852
        %v6858 = vadd.f32 %v6829, %v6841
        %v6859 = vadd.f32 %v6830, %v6845
        %v6860 = vadd.f32 %v6831, %v6849
        %v6861 = vadd.f32 %v6832, %v6853
        %v6862 = vadd.f32 %v6833, %v6841
        %v6863 = vadd.f32 %v6834, %v6845
        %v6864 = vadd.f32 %v6835, %v6849
        %v6865 = vadd.f32 %v6836, %v6853
        %v6866 = vpack.c.bf16 %v6862, %v6858
        %v6867 = vpack.c.bf16 %v6863, %v6859
        %v6868 = vpack.c.bf16 %v6864, %v6860
        %v6869 = vpack.c.bf16 %v6865, %v6861
        %v6870 = vld [vmem:[%s815] sm:$0xff]
        %v6871 = vld [vmem:[%s815 + $0x8] sm:$0xff]
        %v6872 = vld [vmem:[%s815 + $0x10] sm:$0xff]
        %v6873 = vld [vmem:[%s815 + $0x18] sm:$0xff]
        %v6874 = vld [vmem:[%s815 + $0x20] sm:$0xff]
        %v6875 = vld [vmem:[%s815 + $0x28] sm:$0xff]
        %v6876 = vld [vmem:[%s815 + $0x30] sm:$0xff]
        %v6877 = vld [vmem:[%s815 + $0x38] sm:$0xff]
        %v6878 = vld [vmem:[%s815 + $0x40] sm:$0xff]
        %v6879 = vld [vmem:[%s815 + $0x48] sm:$0xff]
        %v6880 = vld [vmem:[%s815 + $0x50] sm:$0xff]
        %v6881 = vld [vmem:[%s815 + $0x58] sm:$0xff]
        %v6882 = vld [vmem:[%s815 + $0x60] sm:$0xff]
        %v6883 = vld [vmem:[%s815 + $0x68] sm:$0xff]
        %v6884 = vld [vmem:[%s815 + $0x70] sm:$0xff]
        %v6885 = vld [vmem:[%s815 + $0x78] sm:$0xff]
        %v6886 = vld [vmem:[%s815 + $0x80] sm:$0xff]
        %v6887 = vld [vmem:[%s815 + $0x88] sm:$0xff]
        %v6888 = vld [vmem:[%s815 + $0x90] sm:$0xff]
        %v6889 = vld [vmem:[%s815 + $0x98] sm:$0xff]
        %v6890 = vld [vmem:[%s815 + $0xa0] sm:$0xff]
        %v6891 = vld [vmem:[%s815 + $0xa8] sm:$0xff]
        %v6892 = vld [vmem:[%s815 + $0xb0] sm:$0xff]
        %v6893 = vld [vmem:[%s815 + $0xb8] sm:$0xff]
        %v6894 = vld [vmem:[%s815 + $0xc0] sm:$0xff]
        %v6895 = vld [vmem:[%s815 + $0xc8] sm:$0xff]
        %v6896 = vld [vmem:[%s815 + $0xd0] sm:$0xff]
        %v6897 = vld [vmem:[%s815 + $0xd8] sm:$0xff]
        %v6898 = vld [vmem:[%s815 + $0xe0] sm:$0xff]
        %v6899 = vld [vmem:[%s815 + $0xe8] sm:$0xff]
        %v6900 = vld [vmem:[%s815 + $0xf0] sm:$0xff]
        %v6901 = vld [vmem:[%s815 + $0xf8] sm:$0xff]
        %v6902 = vld [vmem:[%s815 + $0x100] sm:$0xff]
        %v6903 = vld [vmem:[%s815 + $0x108] sm:$0xff]
        %v6904 = vld [vmem:[%s815 + $0x110] sm:$0xff]
        %v6905 = vld [vmem:[%s815 + $0x118] sm:$0xff]
        %v6906 = vld [vmem:[%s815 + $0x120] sm:$0xff]
        %v6907 = vld [vmem:[%s815 + $0x128] sm:$0xff]
        %v6908 = vld [vmem:[%s815 + $0x130] sm:$0xff]
        %v6909 = vld [vmem:[%s815 + $0x138] sm:$0xff]
        %v6910 = vld [vmem:[%s815 + $0x140] sm:$0xff]
        %v6911 = vld [vmem:[%s815 + $0x148] sm:$0xff]
        %v6912 = vld [vmem:[%s815 + $0x150] sm:$0xff]
        %v6913 = vld [vmem:[%s815 + $0x158] sm:$0xff]
        %v6914 = vld [vmem:[%s815 + $0x160] sm:$0xff]
        %v6915 = vld [vmem:[%s815 + $0x168] sm:$0xff]
        %v6916 = vld [vmem:[%s815 + $0x170] sm:$0xff]
        %v6917 = vld [vmem:[%s815 + $0x178] sm:$0xff]
        %v6918 = vld [vmem:[%s815 + $0x180] sm:$0xff]
        %v6919 = vld [vmem:[%s815 + $0x188] sm:$0xff]
        %v6920 = vld [vmem:[%s815 + $0x190] sm:$0xff]
        %v6921 = vld [vmem:[%s815 + $0x198] sm:$0xff]
        %v6922 = vld [vmem:[%s815 + $0x1a0] sm:$0xff]
        %v6923 = vld [vmem:[%s815 + $0x1a8] sm:$0xff]
        %v6924 = vld [vmem:[%s815 + $0x1b0] sm:$0xff]
        %v6925 = vld [vmem:[%s815 + $0x1b8] sm:$0xff]
        %v6926 = vld [vmem:[%s815 + $0x1c0] sm:$0xff]
        %v6927 = vld [vmem:[%s815 + $0x1c8] sm:$0xff]
        %v6928 = vld [vmem:[%s815 + $0x1d0] sm:$0xff]
        %v6929 = vld [vmem:[%s815 + $0x1d8] sm:$0xff]
        %v6930 = vld [vmem:[%s815 + $0x1e0] sm:$0xff]
        %v6931 = vld [vmem:[%s815 + $0x1e8] sm:$0xff]
        %v6932 = vld [vmem:[%s815 + $0x1f0] sm:$0xff]
        %v6933 = vld [vmem:[%s815 + $0x1f8] sm:$0xff]
        %v6934 = vld [vmem:[%s815 + $0x200] sm:$0xff]
        %v6935 = vld [vmem:[%s815 + $0x208] sm:$0xff]
        %v6936 = vld [vmem:[%s815 + $0x210] sm:$0xff]
        %v6937 = vld [vmem:[%s815 + $0x218] sm:$0xff]
        %v6938 = vld [vmem:[%s815 + $0x220] sm:$0xff]
        %v6939 = vld [vmem:[%s815 + $0x228] sm:$0xff]
        %v6940 = vld [vmem:[%s815 + $0x230] sm:$0xff]
        %v6941 = vld [vmem:[%s815 + $0x238] sm:$0xff]
        %v6942 = vld [vmem:[%s815 + $0x240] sm:$0xff]
        %v6943 = vld [vmem:[%s815 + $0x248] sm:$0xff]
        %v6944 = vld [vmem:[%s815 + $0x250] sm:$0xff]
        %v6945 = vld [vmem:[%s815 + $0x258] sm:$0xff]
        %v6946 = vld [vmem:[%s815 + $0x260] sm:$0xff]
        %v6947 = vld [vmem:[%s815 + $0x268] sm:$0xff]
        %v6948 = vld [vmem:[%s815 + $0x270] sm:$0xff]
        %v6949 = vld [vmem:[%s815 + $0x278] sm:$0xff]
        %v6950 = vld [vmem:[%s815 + $0x280] sm:$0xff]
        %v6951 = vld [vmem:[%s815 + $0x288] sm:$0xff]
        %v6952 = vld [vmem:[%s815 + $0x290] sm:$0xff]
        %v6953 = vld [vmem:[%s815 + $0x298] sm:$0xff]
        %v6954 = vld [vmem:[%s815 + $0x2a0] sm:$0xff]
        %v6955 = vld [vmem:[%s815 + $0x2a8] sm:$0xff]
        %v6956 = vld [vmem:[%s815 + $0x2b0] sm:$0xff]
        %v6957 = vld [vmem:[%s815 + $0x2b8] sm:$0xff]
        %v6958 = vld [vmem:[%s815 + $0x2c0] sm:$0xff]
        %v6959 = vld [vmem:[%s815 + $0x2c8] sm:$0xff]
        %v6960 = vld [vmem:[%s815 + $0x2d0] sm:$0xff]
        %v6961 = vld [vmem:[%s815 + $0x2d8] sm:$0xff]
        %v6962 = vld [vmem:[%s815 + $0x2e0] sm:$0xff]
        %v6963 = vld [vmem:[%s815 + $0x2e8] sm:$0xff]
        %v6964 = vld [vmem:[%s815 + $0x2f0] sm:$0xff]
        %v6965 = vld [vmem:[%s815 + $0x2f8] sm:$0xff]
        %v6966 = vld [vmem:[%s815 + $0x300] sm:$0xff]
        %v6967 = vld [vmem:[%s815 + $0x308] sm:$0xff]
        %v6968 = vld [vmem:[%s815 + $0x310] sm:$0xff]
        %v6969 = vld [vmem:[%s815 + $0x318] sm:$0xff]
        %v6970 = vld [vmem:[%s815 + $0x320] sm:$0xff]
        %v6971 = vld [vmem:[%s815 + $0x328] sm:$0xff]
        %v6972 = vld [vmem:[%s815 + $0x330] sm:$0xff]
        %v6973 = vld [vmem:[%s815 + $0x338] sm:$0xff]
        %v6974 = vld [vmem:[%s815 + $0x340] sm:$0xff]
        %v6975 = vld [vmem:[%s815 + $0x348] sm:$0xff]
        %v6976 = vld [vmem:[%s815 + $0x350] sm:$0xff]
        %v6977 = vld [vmem:[%s815 + $0x358] sm:$0xff]
        %v6978 = vld [vmem:[%s815 + $0x360] sm:$0xff]
        %v6979 = vld [vmem:[%s815 + $0x368] sm:$0xff]
        %v6980 = vld [vmem:[%s815 + $0x370] sm:$0xff]
        %v6981 = vld [vmem:[%s815 + $0x378] sm:$0xff]
        %v6982 = vld [vmem:[%s815 + $0x380] sm:$0xff]
        %v6983 = vld [vmem:[%s815 + $0x388] sm:$0xff]
        %v6984 = vld [vmem:[%s815 + $0x390] sm:$0xff]
        %v6985 = vld [vmem:[%s815 + $0x398] sm:$0xff]
        %v6986 = vld [vmem:[%s815 + $0x3a0] sm:$0xff]
        %v6987 = vld [vmem:[%s815 + $0x3a8] sm:$0xff]
        %v6988 = vld [vmem:[%s815 + $0x3b0] sm:$0xff]
        %v6989 = vld [vmem:[%s815 + $0x3b8] sm:$0xff]
        %v6990 = vld [vmem:[%s815 + $0x3c0] sm:$0xff]
        %v6991 = vld [vmem:[%s815 + $0x3c8] sm:$0xff]
        %v6992 = vld [vmem:[%s815 + $0x3d0] sm:$0xff]
        %v6993 = vld [vmem:[%s815 + $0x3d8] sm:$0xff]
        %v6994 = vld [vmem:[%s815 + $0x3e0] sm:$0xff]
        %v6995 = vld [vmem:[%s815 + $0x3e8] sm:$0xff]
        %v6996 = vld [vmem:[%s815 + $0x3f0] sm:$0xff]
        %v6997 = vld [vmem:[%s815 + $0x3f8] sm:$0xff]
        %v6998 = vld [vmem:[%s815 + $0x400] sm:$0xff]
        %v6999 = vld [vmem:[%s815 + $0x408] sm:$0xff]
        %v7000 = vld [vmem:[%s815 + $0x410] sm:$0xff]
        %v7001 = vld [vmem:[%s815 + $0x418] sm:$0xff]
        %v7002 = vld [vmem:[%s815 + $0x420] sm:$0xff]
        %v7003 = vld [vmem:[%s815 + $0x428] sm:$0xff]
        %v7004 = vld [vmem:[%s815 + $0x430] sm:$0xff]
        %v7005 = vld [vmem:[%s815 + $0x438] sm:$0xff]
        %v7006 = vld [vmem:[%s815 + $0x440] sm:$0xff]
        %v7007 = vld [vmem:[%s815 + $0x448] sm:$0xff]
        %v7008 = vld [vmem:[%s815 + $0x450] sm:$0xff]
        %v7009 = vld [vmem:[%s815 + $0x458] sm:$0xff]
        %v7010 = vld [vmem:[%s815 + $0x460] sm:$0xff]
        %v7011 = vld [vmem:[%s815 + $0x468] sm:$0xff]
        %v7012 = vld [vmem:[%s815 + $0x470] sm:$0xff]
        %v7013 = vld [vmem:[%s815 + $0x478] sm:$0xff]
        %v7014 = vld [vmem:[%s815 + $0x480] sm:$0xff]
        %v7015 = vld [vmem:[%s815 + $0x488] sm:$0xff]
        %v7016 = vld [vmem:[%s815 + $0x490] sm:$0xff]
        %v7017 = vld [vmem:[%s815 + $0x498] sm:$0xff]
        %v7018 = vld [vmem:[%s815 + $0x4a0] sm:$0xff]
        %v7019 = vld [vmem:[%s815 + $0x4a8] sm:$0xff]
        %v7020 = vld [vmem:[%s815 + $0x4b0] sm:$0xff]
        %v7021 = vld [vmem:[%s815 + $0x4b8] sm:$0xff]
        %v7022 = vld [vmem:[%s815 + $0x4c0] sm:$0xff]
        %v7023 = vld [vmem:[%s815 + $0x4c8] sm:$0xff]
        %v7024 = vld [vmem:[%s815 + $0x4d0] sm:$0xff]
        %v7025 = vld [vmem:[%s815 + $0x4d8] sm:$0xff]
        %v7026 = vld [vmem:[%s815 + $0x4e0] sm:$0xff]
        %v7027 = vld [vmem:[%s815 + $0x4e8] sm:$0xff]
        %v7028 = vld [vmem:[%s815 + $0x4f0] sm:$0xff]
        %v7029 = vld [vmem:[%s815 + $0x4f8] sm:$0xff]
        %v7030 = vld [vmem:[%s815 + $0x500] sm:$0xff]
        %v7031 = vld [vmem:[%s815 + $0x508] sm:$0xff]
        %v7032 = vld [vmem:[%s815 + $0x510] sm:$0xff]
        %v7033 = vld [vmem:[%s815 + $0x518] sm:$0xff]
        %v7034 = vld [vmem:[%s815 + $0x520] sm:$0xff]
        %v7035 = vld [vmem:[%s815 + $0x528] sm:$0xff]
        %v7036 = vld [vmem:[%s815 + $0x530] sm:$0xff]
        %v7037 = vld [vmem:[%s815 + $0x538] sm:$0xff]
        %v7038 = vld [vmem:[%s815 + $0x540] sm:$0xff]
        %v7039 = vld [vmem:[%s815 + $0x548] sm:$0xff]
        %v7040 = vld [vmem:[%s815 + $0x550] sm:$0xff]
        %v7041 = vld [vmem:[%s815 + $0x558] sm:$0xff]
        %v7042 = vld [vmem:[%s815 + $0x560] sm:$0xff]
        %v7043 = vld [vmem:[%s815 + $0x568] sm:$0xff]
        %v7044 = vld [vmem:[%s815 + $0x570] sm:$0xff]
        %v7045 = vld [vmem:[%s815 + $0x578] sm:$0xff]
        %v7046 = vld [vmem:[%s815 + $0x580] sm:$0xff]
        %v7047 = vld [vmem:[%s815 + $0x588] sm:$0xff]
        %v7048 = vld [vmem:[%s815 + $0x590] sm:$0xff]
        %v7049 = vld [vmem:[%s815 + $0x598] sm:$0xff]
        %v7050 = vld [vmem:[%s815 + $0x5a0] sm:$0xff]
        %v7051 = vld [vmem:[%s815 + $0x5a8] sm:$0xff]
        %v7052 = vld [vmem:[%s815 + $0x5b0] sm:$0xff]
        %v7053 = vld [vmem:[%s815 + $0x5b8] sm:$0xff]
        %v7054 = vld [vmem:[%s815 + $0x5c0] sm:$0xff]
        %v7055 = vld [vmem:[%s815 + $0x5c8] sm:$0xff]
        %v7056 = vld [vmem:[%s815 + $0x5d0] sm:$0xff]
        %v7057 = vld [vmem:[%s815 + $0x5d8] sm:$0xff]
        %v7058 = vld [vmem:[%s815 + $0x5e0] sm:$0xff]
        %v7059 = vld [vmem:[%s815 + $0x5e8] sm:$0xff]
        %v7060 = vld [vmem:[%s815 + $0x5f0] sm:$0xff]
        %v7061 = vld [vmem:[%s815 + $0x5f8] sm:$0xff]
        %v7062 = vld [vmem:[%s815 + $0x600] sm:$0xff]
        %v7063 = vld [vmem:[%s815 + $0x608] sm:$0xff]
        %v7064 = vld [vmem:[%s815 + $0x610] sm:$0xff]
        %v7065 = vld [vmem:[%s815 + $0x618] sm:$0xff]
        %v7066 = vld [vmem:[%s815 + $0x620] sm:$0xff]
        %v7067 = vld [vmem:[%s815 + $0x628] sm:$0xff]
        %v7068 = vld [vmem:[%s815 + $0x630] sm:$0xff]
        %v7069 = vld [vmem:[%s815 + $0x638] sm:$0xff]
        %v7070 = vld [vmem:[%s815 + $0x640] sm:$0xff]
        %v7071 = vld [vmem:[%s815 + $0x648] sm:$0xff]
        %v7072 = vld [vmem:[%s815 + $0x650] sm:$0xff]
        %v7073 = vld [vmem:[%s815 + $0x658] sm:$0xff]
        %v7074 = vld [vmem:[%s815 + $0x660] sm:$0xff]
        %v7075 = vld [vmem:[%s815 + $0x668] sm:$0xff]
        %v7076 = vld [vmem:[%s815 + $0x670] sm:$0xff]
        %v7077 = vld [vmem:[%s815 + $0x678] sm:$0xff]
        %v7078 = vld [vmem:[%s815 + $0x680] sm:$0xff]
        %v7079 = vld [vmem:[%s815 + $0x688] sm:$0xff]
        %v7080 = vld [vmem:[%s815 + $0x690] sm:$0xff]
        %v7081 = vld [vmem:[%s815 + $0x698] sm:$0xff]
        %v7082 = vld [vmem:[%s815 + $0x6a0] sm:$0xff]
        %v7083 = vld [vmem:[%s815 + $0x6a8] sm:$0xff]
        %v7084 = vld [vmem:[%s815 + $0x6b0] sm:$0xff]
        %v7085 = vld [vmem:[%s815 + $0x6b8] sm:$0xff]
        %v7086 = vld [vmem:[%s815 + $0x6c0] sm:$0xff]
        %v7087 = vld [vmem:[%s815 + $0x6c8] sm:$0xff]
        %v7088 = vld [vmem:[%s815 + $0x6d0] sm:$0xff]
        %v7089 = vld [vmem:[%s815 + $0x6d8] sm:$0xff]
        %v7090 = vld [vmem:[%s815 + $0x6e0] sm:$0xff]
        %v7091 = vld [vmem:[%s815 + $0x6e8] sm:$0xff]
        %v7092 = vld [vmem:[%s815 + $0x6f0] sm:$0xff]
        %v7093 = vld [vmem:[%s815 + $0x6f8] sm:$0xff]
        %v7094 = vld [vmem:[%s815 + $0x700] sm:$0xff]
        %v7095 = vld [vmem:[%s815 + $0x708] sm:$0xff]
        %v7096 = vld [vmem:[%s815 + $0x710] sm:$0xff]
        %v7097 = vld [vmem:[%s815 + $0x718] sm:$0xff]
        %v7098 = vld [vmem:[%s815 + $0x720] sm:$0xff]
        %v7099 = vld [vmem:[%s815 + $0x728] sm:$0xff]
        %v7100 = vld [vmem:[%s815 + $0x730] sm:$0xff]
        %v7101 = vld [vmem:[%s815 + $0x738] sm:$0xff]
        %v7102 = vld [vmem:[%s815 + $0x740] sm:$0xff]
        %v7103 = vld [vmem:[%s815 + $0x748] sm:$0xff]
        %v7104 = vld [vmem:[%s815 + $0x750] sm:$0xff]
        %v7105 = vld [vmem:[%s815 + $0x758] sm:$0xff]
        %v7106 = vld [vmem:[%s815 + $0x760] sm:$0xff]
        %v7107 = vld [vmem:[%s815 + $0x768] sm:$0xff]
        %v7108 = vld [vmem:[%s815 + $0x770] sm:$0xff]
        %v7109 = vld [vmem:[%s815 + $0x778] sm:$0xff]
        %v7110 = vld [vmem:[%s815 + $0x780] sm:$0xff]
        %v7111 = vld [vmem:[%s815 + $0x788] sm:$0xff]
        %v7112 = vld [vmem:[%s815 + $0x790] sm:$0xff]
        %v7113 = vld [vmem:[%s815 + $0x798] sm:$0xff]
        %v7114 = vld [vmem:[%s815 + $0x7a0] sm:$0xff]
        %v7115 = vld [vmem:[%s815 + $0x7a8] sm:$0xff]
        %v7116 = vld [vmem:[%s815 + $0x7b0] sm:$0xff]
        %v7117 = vld [vmem:[%s815 + $0x7b8] sm:$0xff]
        %v7118 = vld [vmem:[%s815 + $0x7c0] sm:$0xff]
        %v7119 = vld [vmem:[%s815 + $0x7c8] sm:$0xff]
        %v7120 = vld [vmem:[%s815 + $0x7d0] sm:$0xff]
        %v7121 = vld [vmem:[%s815 + $0x7d8] sm:$0xff]
        %v7122 = vld [vmem:[%s815 + $0x7e0] sm:$0xff]
        %v7123 = vld [vmem:[%s815 + $0x7e8] sm:$0xff]
        %v7124 = vld [vmem:[%s815 + $0x7f0] sm:$0xff]
        %v7125 = vld [vmem:[%s815 + $0x7f8] sm:$0xff]
        %v7126 = vld [vmem:[%s824] sm:$0xff]
        %v7128 = vlaneseq
        %v7129 = vshrl.u32 %v7128, 7
        %v7130 = vsub.s32 0, %v7129
        %v7131 = vrot.slane %v7126, %v7130
        %v7132 = vlaneseq
        %v7133 = vshrl.u32 %v7132, 7
        %v7134 = vsub.s32 1, %v7133
        %v7135 = vrot.slane %v7126, %v7134
        %v7136 = vlaneseq
        %v7137 = vshrl.u32 %v7136, 7
        %v7138 = vsub.s32 2, %v7137
        %v7139 = vrot.slane %v7126, %v7138
        %v7140 = vlaneseq
        %v7141 = vshrl.u32 %v7140, 7
        %v7142 = vsub.s32 3, %v7141
        %v7143 = vrot.slane %v7126, %v7142
        %v7144 = vlaneseq
        %v7145 = vshrl.u32 %v7144, 7
        %v7146 = vsub.s32 4, %v7145
        %v7147 = vrot.slane %v7126, %v7146
        %v7148 = vlaneseq
        %v7149 = vshrl.u32 %v7148, 7
        %v7150 = vsub.s32 5, %v7149
        %v7151 = vrot.slane %v7126, %v7150
        %v7152 = vlaneseq
        %v7153 = vshrl.u32 %v7152, 7
        %v7154 = vsub.s32 6, %v7153
        %v7155 = vrot.slane %v7126, %v7154
        %v7156 = vlaneseq
        %v7157 = vshrl.u32 %v7156, 7
        %v7158 = vsub.s32 7, %v7157
        %v7159 = vrot.slane %v7126, %v7158
        %v7424 = vunpack.c.l.b16 %v6870
        %v7425 = vunpack.c.h.b16 %v6870
        %v7426 = vunpack.c.l.b16 %v6871
        %v7427 = vunpack.c.h.b16 %v6871
        %v7428 = vunpack.c.l.b16 %v6872
        %v7429 = vunpack.c.h.b16 %v6872
        %v7430 = vunpack.c.l.b16 %v6873
        %v7431 = vunpack.c.h.b16 %v6873
        %v7432 = vunpack.c.l.b16 %v6874
        %v7433 = vunpack.c.h.b16 %v6874
        %v7434 = vunpack.c.l.b16 %v6875
        %v7435 = vunpack.c.h.b16 %v6875
        %v7436 = vunpack.c.l.b16 %v6876
        %v7437 = vunpack.c.h.b16 %v6876
        %v7438 = vunpack.c.l.b16 %v6877
        %v7439 = vunpack.c.h.b16 %v6877
        %v7440 = vunpack.c.l.b16 %v6878
        %v7441 = vunpack.c.h.b16 %v6878
        %v7442 = vunpack.c.l.b16 %v6879
        %v7443 = vunpack.c.h.b16 %v6879
        %v7444 = vunpack.c.l.b16 %v6880
        %v7445 = vunpack.c.h.b16 %v6880
        %v7446 = vunpack.c.l.b16 %v6881
        %v7447 = vunpack.c.h.b16 %v6881
        %v7448 = vunpack.c.l.b16 %v6882
        %v7449 = vunpack.c.h.b16 %v6882
        %v7450 = vunpack.c.l.b16 %v6883
        %v7451 = vunpack.c.h.b16 %v6883
        %v7452 = vunpack.c.l.b16 %v6884
        %v7453 = vunpack.c.h.b16 %v6884
        %v7454 = vunpack.c.l.b16 %v6885
        %v7455 = vunpack.c.h.b16 %v6885
        %v7456 = vunpack.c.l.b16 %v6886
        %v7457 = vunpack.c.h.b16 %v6886
        %v7458 = vunpack.c.l.b16 %v6887
        %v7459 = vunpack.c.h.b16 %v6887
        %v7460 = vunpack.c.l.b16 %v6888
        %v7461 = vunpack.c.h.b16 %v6888
        %v7462 = vunpack.c.l.b16 %v6889
        %v7463 = vunpack.c.h.b16 %v6889
        %v7464 = vunpack.c.l.b16 %v6890
        %v7465 = vunpack.c.h.b16 %v6890
        %v7466 = vunpack.c.l.b16 %v6891
        %v7467 = vunpack.c.h.b16 %v6891
        %v7468 = vunpack.c.l.b16 %v6892
        %v7469 = vunpack.c.h.b16 %v6892
        %v7470 = vunpack.c.l.b16 %v6893
        %v7471 = vunpack.c.h.b16 %v6893
        %v7472 = vunpack.c.l.b16 %v6894
        %v7473 = vunpack.c.h.b16 %v6894
        %v7474 = vunpack.c.l.b16 %v6895
        %v7475 = vunpack.c.h.b16 %v6895
        %v7476 = vunpack.c.l.b16 %v6896
        %v7477 = vunpack.c.h.b16 %v6896
        %v7478 = vunpack.c.l.b16 %v6897
        %v7479 = vunpack.c.h.b16 %v6897
        %v7480 = vunpack.c.l.b16 %v6898
        %v7481 = vunpack.c.h.b16 %v6898
        %v7482 = vunpack.c.l.b16 %v6899
        %v7483 = vunpack.c.h.b16 %v6899
        %v7484 = vunpack.c.l.b16 %v6900
        %v7485 = vunpack.c.h.b16 %v6900
        %v7486 = vunpack.c.l.b16 %v6901
        %v7487 = vunpack.c.h.b16 %v6901
        %v7488 = vunpack.c.l.b16 %v6902
        %v7489 = vunpack.c.h.b16 %v6902
        %v7490 = vunpack.c.l.b16 %v6903
        %v7491 = vunpack.c.h.b16 %v6903
        %v7492 = vunpack.c.l.b16 %v6904
        %v7493 = vunpack.c.h.b16 %v6904
        %v7494 = vunpack.c.l.b16 %v6905
        %v7495 = vunpack.c.h.b16 %v6905
        %v7496 = vunpack.c.l.b16 %v6906
        %v7497 = vunpack.c.h.b16 %v6906
        %v7498 = vunpack.c.l.b16 %v6907
        %v7499 = vunpack.c.h.b16 %v6907
        %v7500 = vunpack.c.l.b16 %v6908
        %v7501 = vunpack.c.h.b16 %v6908
        %v7502 = vunpack.c.l.b16 %v6909
        %v7503 = vunpack.c.h.b16 %v6909
        %v7504 = vunpack.c.l.b16 %v6910
        %v7505 = vunpack.c.h.b16 %v6910
        %v7506 = vunpack.c.l.b16 %v6911
        %v7507 = vunpack.c.h.b16 %v6911
        %v7508 = vunpack.c.l.b16 %v6912
        %v7509 = vunpack.c.h.b16 %v6912
        %v7510 = vunpack.c.l.b16 %v6913
        %v7511 = vunpack.c.h.b16 %v6913
        %v7512 = vunpack.c.l.b16 %v6914
        %v7513 = vunpack.c.h.b16 %v6914
        %v7514 = vunpack.c.l.b16 %v6915
        %v7515 = vunpack.c.h.b16 %v6915
        %v7516 = vunpack.c.l.b16 %v6916
        %v7517 = vunpack.c.h.b16 %v6916
        %v7518 = vunpack.c.l.b16 %v6917
        %v7519 = vunpack.c.h.b16 %v6917
        %v7520 = vunpack.c.l.b16 %v6918
        %v7521 = vunpack.c.h.b16 %v6918
        %v7522 = vunpack.c.l.b16 %v6919
        %v7523 = vunpack.c.h.b16 %v6919
        %v7524 = vunpack.c.l.b16 %v6920
        %v7525 = vunpack.c.h.b16 %v6920
        %v7526 = vunpack.c.l.b16 %v6921
        %v7527 = vunpack.c.h.b16 %v6921
        %v7528 = vunpack.c.l.b16 %v6922
        %v7529 = vunpack.c.h.b16 %v6922
        %v7530 = vunpack.c.l.b16 %v6923
        %v7531 = vunpack.c.h.b16 %v6923
        %v7532 = vunpack.c.l.b16 %v6924
        %v7533 = vunpack.c.h.b16 %v6924
        %v7534 = vunpack.c.l.b16 %v6925
        %v7535 = vunpack.c.h.b16 %v6925
        %v7536 = vunpack.c.l.b16 %v6926
        %v7537 = vunpack.c.h.b16 %v6926
        %v7538 = vunpack.c.l.b16 %v6927
        %v7539 = vunpack.c.h.b16 %v6927
        %v7540 = vunpack.c.l.b16 %v6928
        %v7541 = vunpack.c.h.b16 %v6928
        %v7542 = vunpack.c.l.b16 %v6929
        %v7543 = vunpack.c.h.b16 %v6929
        %v7544 = vunpack.c.l.b16 %v6930
        %v7545 = vunpack.c.h.b16 %v6930
        %v7546 = vunpack.c.l.b16 %v6931
        %v7547 = vunpack.c.h.b16 %v6931
        %v7548 = vunpack.c.l.b16 %v6932
        %v7549 = vunpack.c.h.b16 %v6932
        %v7550 = vunpack.c.l.b16 %v6933
        %v7551 = vunpack.c.h.b16 %v6933
        %v7552 = vunpack.c.l.b16 %v6934
        %v7553 = vunpack.c.h.b16 %v6934
        %v7554 = vunpack.c.l.b16 %v6935
        %v7555 = vunpack.c.h.b16 %v6935
        %v7556 = vunpack.c.l.b16 %v6936
        %v7557 = vunpack.c.h.b16 %v6936
        %v7558 = vunpack.c.l.b16 %v6937
        %v7559 = vunpack.c.h.b16 %v6937
        %v7560 = vunpack.c.l.b16 %v6938
        %v7561 = vunpack.c.h.b16 %v6938
        %v7562 = vunpack.c.l.b16 %v6939
        %v7563 = vunpack.c.h.b16 %v6939
        %v7564 = vunpack.c.l.b16 %v6940
        %v7565 = vunpack.c.h.b16 %v6940
        %v7566 = vunpack.c.l.b16 %v6941
        %v7567 = vunpack.c.h.b16 %v6941
        %v7568 = vunpack.c.l.b16 %v6942
        %v7569 = vunpack.c.h.b16 %v6942
        %v7570 = vunpack.c.l.b16 %v6943
        %v7571 = vunpack.c.h.b16 %v6943
        %v7572 = vunpack.c.l.b16 %v6944
        %v7573 = vunpack.c.h.b16 %v6944
        %v7574 = vunpack.c.l.b16 %v6945
        %v7575 = vunpack.c.h.b16 %v6945
        %v7576 = vunpack.c.l.b16 %v6946
        %v7577 = vunpack.c.h.b16 %v6946
        %v7578 = vunpack.c.l.b16 %v6947
        %v7579 = vunpack.c.h.b16 %v6947
        %v7580 = vunpack.c.l.b16 %v6948
        %v7581 = vunpack.c.h.b16 %v6948
        %v7582 = vunpack.c.l.b16 %v6949
        %v7583 = vunpack.c.h.b16 %v6949
        %v7584 = vunpack.c.l.b16 %v6950
        %v7585 = vunpack.c.h.b16 %v6950
        %v7586 = vunpack.c.l.b16 %v6951
        %v7587 = vunpack.c.h.b16 %v6951
        %v7588 = vunpack.c.l.b16 %v6952
        %v7589 = vunpack.c.h.b16 %v6952
        %v7590 = vunpack.c.l.b16 %v6953
        %v7591 = vunpack.c.h.b16 %v6953
        %v7592 = vunpack.c.l.b16 %v6954
        %v7593 = vunpack.c.h.b16 %v6954
        %v7594 = vunpack.c.l.b16 %v6955
        %v7595 = vunpack.c.h.b16 %v6955
        %v7596 = vunpack.c.l.b16 %v6956
        %v7597 = vunpack.c.h.b16 %v6956
        %v7598 = vunpack.c.l.b16 %v6957
        %v7599 = vunpack.c.h.b16 %v6957
        %v7600 = vunpack.c.l.b16 %v6958
        %v7601 = vunpack.c.h.b16 %v6958
        %v7602 = vunpack.c.l.b16 %v6959
        %v7603 = vunpack.c.h.b16 %v6959
        %v7604 = vunpack.c.l.b16 %v6960
        %v7605 = vunpack.c.h.b16 %v6960
        %v7606 = vunpack.c.l.b16 %v6961
        %v7607 = vunpack.c.h.b16 %v6961
        %v7608 = vunpack.c.l.b16 %v6962
        %v7609 = vunpack.c.h.b16 %v6962
        %v7610 = vunpack.c.l.b16 %v6963
        %v7611 = vunpack.c.h.b16 %v6963
        %v7612 = vunpack.c.l.b16 %v6964
        %v7613 = vunpack.c.h.b16 %v6964
        %v7614 = vunpack.c.l.b16 %v6965
        %v7615 = vunpack.c.h.b16 %v6965
        %v7616 = vunpack.c.l.b16 %v6966
        %v7617 = vunpack.c.h.b16 %v6966
        %v7618 = vunpack.c.l.b16 %v6967
        %v7619 = vunpack.c.h.b16 %v6967
        %v7620 = vunpack.c.l.b16 %v6968
        %v7621 = vunpack.c.h.b16 %v6968
        %v7622 = vunpack.c.l.b16 %v6969
        %v7623 = vunpack.c.h.b16 %v6969
        %v7624 = vunpack.c.l.b16 %v6970
        %v7625 = vunpack.c.h.b16 %v6970
        %v7626 = vunpack.c.l.b16 %v6971
        %v7627 = vunpack.c.h.b16 %v6971
        %v7628 = vunpack.c.l.b16 %v6972
        %v7629 = vunpack.c.h.b16 %v6972
        %v7630 = vunpack.c.l.b16 %v6973
        %v7631 = vunpack.c.h.b16 %v6973
        %v7632 = vunpack.c.l.b16 %v6974
        %v7633 = vunpack.c.h.b16 %v6974
        %v7634 = vunpack.c.l.b16 %v6975
        %v7635 = vunpack.c.h.b16 %v6975
        %v7636 = vunpack.c.l.b16 %v6976
        %v7637 = vunpack.c.h.b16 %v6976
        %v7638 = vunpack.c.l.b16 %v6977
        %v7639 = vunpack.c.h.b16 %v6977
        %v7640 = vunpack.c.l.b16 %v6978
        %v7641 = vunpack.c.h.b16 %v6978
        %v7642 = vunpack.c.l.b16 %v6979
        %v7643 = vunpack.c.h.b16 %v6979
        %v7644 = vunpack.c.l.b16 %v6980
        %v7645 = vunpack.c.h.b16 %v6980
        %v7646 = vunpack.c.l.b16 %v6981
        %v7647 = vunpack.c.h.b16 %v6981
        %v7648 = vunpack.c.l.b16 %v6982
        %v7649 = vunpack.c.h.b16 %v6982
        %v7650 = vunpack.c.l.b16 %v6983
        %v7651 = vunpack.c.h.b16 %v6983
        %v7652 = vunpack.c.l.b16 %v6984
        %v7653 = vunpack.c.h.b16 %v6984
        %v7654 = vunpack.c.l.b16 %v6985
        %v7655 = vunpack.c.h.b16 %v6985
        %v7656 = vunpack.c.l.b16 %v6986
        %v7657 = vunpack.c.h.b16 %v6986
        %v7658 = vunpack.c.l.b16 %v6987
        %v7659 = vunpack.c.h.b16 %v6987
        %v7660 = vunpack.c.l.b16 %v6988
        %v7661 = vunpack.c.h.b16 %v6988
        %v7662 = vunpack.c.l.b16 %v6989
        %v7663 = vunpack.c.h.b16 %v6989
        %v7664 = vunpack.c.l.b16 %v6990
        %v7665 = vunpack.c.h.b16 %v6990
        %v7666 = vunpack.c.l.b16 %v6991
        %v7667 = vunpack.c.h.b16 %v6991
        %v7668 = vunpack.c.l.b16 %v6992
        %v7669 = vunpack.c.h.b16 %v6992
        %v7670 = vunpack.c.l.b16 %v6993
        %v7671 = vunpack.c.h.b16 %v6993
        %v7672 = vunpack.c.l.b16 %v6994
        %v7673 = vunpack.c.h.b16 %v6994
        %v7674 = vunpack.c.l.b16 %v6995
        %v7675 = vunpack.c.h.b16 %v6995
        %v7676 = vunpack.c.l.b16 %v6996
        %v7677 = vunpack.c.h.b16 %v6996
        %v7678 = vunpack.c.l.b16 %v6997
        %v7679 = vunpack.c.h.b16 %v6997
        %v7680 = vunpack.c.l.b16 %v6998
        %v7681 = vunpack.c.h.b16 %v6998
        %v7682 = vunpack.c.l.b16 %v6999
        %v7683 = vunpack.c.h.b16 %v6999
        %v7684 = vunpack.c.l.b16 %v7000
        %v7685 = vunpack.c.h.b16 %v7000
        %v7686 = vunpack.c.l.b16 %v7001
        %v7687 = vunpack.c.h.b16 %v7001
        %v7688 = vunpack.c.l.b16 %v7002
        %v7689 = vunpack.c.h.b16 %v7002
        %v7690 = vunpack.c.l.b16 %v7003
        %v7691 = vunpack.c.h.b16 %v7003
        %v7692 = vunpack.c.l.b16 %v7004
        %v7693 = vunpack.c.h.b16 %v7004
        %v7694 = vunpack.c.l.b16 %v7005
        %v7695 = vunpack.c.h.b16 %v7005
        %v7696 = vunpack.c.l.b16 %v7006
        %v7697 = vunpack.c.h.b16 %v7006
        %v7698 = vunpack.c.l.b16 %v7007
        %v7699 = vunpack.c.h.b16 %v7007
        %v7700 = vunpack.c.l.b16 %v7008
        %v7701 = vunpack.c.h.b16 %v7008
        %v7702 = vunpack.c.l.b16 %v7009
        %v7703 = vunpack.c.h.b16 %v7009
        %v7704 = vunpack.c.l.b16 %v7010
        %v7705 = vunpack.c.h.b16 %v7010
        %v7706 = vunpack.c.l.b16 %v7011
        %v7707 = vunpack.c.h.b16 %v7011
        %v7708 = vunpack.c.l.b16 %v7012
        %v7709 = vunpack.c.h.b16 %v7012
        %v7710 = vunpack.c.l.b16 %v7013
        %v7711 = vunpack.c.h.b16 %v7013
        %v7712 = vunpack.c.l.b16 %v7014
        %v7713 = vunpack.c.h.b16 %v7014
        %v7714 = vunpack.c.l.b16 %v7015
        %v7715 = vunpack.c.h.b16 %v7015
        %v7716 = vunpack.c.l.b16 %v7016
        %v7717 = vunpack.c.h.b16 %v7016
        %v7718 = vunpack.c.l.b16 %v7017
        %v7719 = vunpack.c.h.b16 %v7017
        %v7720 = vunpack.c.l.b16 %v7018
        %v7721 = vunpack.c.h.b16 %v7018
        %v7722 = vunpack.c.l.b16 %v7019
        %v7723 = vunpack.c.h.b16 %v7019
        %v7724 = vunpack.c.l.b16 %v7020
        %v7725 = vunpack.c.h.b16 %v7020
        %v7726 = vunpack.c.l.b16 %v7021
        %v7727 = vunpack.c.h.b16 %v7021
        %v7728 = vunpack.c.l.b16 %v7022
        %v7729 = vunpack.c.h.b16 %v7022
        %v7730 = vunpack.c.l.b16 %v7023
        %v7731 = vunpack.c.h.b16 %v7023
        %v7732 = vunpack.c.l.b16 %v7024
        %v7733 = vunpack.c.h.b16 %v7024
        %v7734 = vunpack.c.l.b16 %v7025
        %v7735 = vunpack.c.h.b16 %v7025
        %v7736 = vunpack.c.l.b16 %v7026
        %v7737 = vunpack.c.h.b16 %v7026
        %v7738 = vunpack.c.l.b16 %v7027
        %v7739 = vunpack.c.h.b16 %v7027
        %v7740 = vunpack.c.l.b16 %v7028
        %v7741 = vunpack.c.h.b16 %v7028
        %v7742 = vunpack.c.l.b16 %v7029
        %v7743 = vunpack.c.h.b16 %v7029
        %v7744 = vunpack.c.l.b16 %v7030
        %v7745 = vunpack.c.h.b16 %v7030
        %v7746 = vunpack.c.l.b16 %v7031
        %v7747 = vunpack.c.h.b16 %v7031
        %v7748 = vunpack.c.l.b16 %v7032
        %v7749 = vunpack.c.h.b16 %v7032
        %v7750 = vunpack.c.l.b16 %v7033
        %v7751 = vunpack.c.h.b16 %v7033
        %v7752 = vunpack.c.l.b16 %v7034
        %v7753 = vunpack.c.h.b16 %v7034
        %v7754 = vunpack.c.l.b16 %v7035
        %v7755 = vunpack.c.h.b16 %v7035
        %v7756 = vunpack.c.l.b16 %v7036
        %v7757 = vunpack.c.h.b16 %v7036
        %v7758 = vunpack.c.l.b16 %v7037
        %v7759 = vunpack.c.h.b16 %v7037
        %v7760 = vunpack.c.l.b16 %v7038
        %v7761 = vunpack.c.h.b16 %v7038
        %v7762 = vunpack.c.l.b16 %v7039
        %v7763 = vunpack.c.h.b16 %v7039
        %v7764 = vunpack.c.l.b16 %v7040
        %v7765 = vunpack.c.h.b16 %v7040
        %v7766 = vunpack.c.l.b16 %v7041
        %v7767 = vunpack.c.h.b16 %v7041
        %v7768 = vunpack.c.l.b16 %v7042
        %v7769 = vunpack.c.h.b16 %v7042
        %v7770 = vunpack.c.l.b16 %v7043
        %v7771 = vunpack.c.h.b16 %v7043
        %v7772 = vunpack.c.l.b16 %v7044
        %v7773 = vunpack.c.h.b16 %v7044
        %v7774 = vunpack.c.l.b16 %v7045
        %v7775 = vunpack.c.h.b16 %v7045
        %v7776 = vunpack.c.l.b16 %v7046
        %v7777 = vunpack.c.h.b16 %v7046
        %v7778 = vunpack.c.l.b16 %v7047
        %v7779 = vunpack.c.h.b16 %v7047
        %v7780 = vunpack.c.l.b16 %v7048
        %v7781 = vunpack.c.h.b16 %v7048
        %v7782 = vunpack.c.l.b16 %v7049
        %v7783 = vunpack.c.h.b16 %v7049
        %v7784 = vunpack.c.l.b16 %v7050
        %v7785 = vunpack.c.h.b16 %v7050
        %v7786 = vunpack.c.l.b16 %v7051
        %v7787 = vunpack.c.h.b16 %v7051
        %v7788 = vunpack.c.l.b16 %v7052
        %v7789 = vunpack.c.h.b16 %v7052
        %v7790 = vunpack.c.l.b16 %v7053
        %v7791 = vunpack.c.h.b16 %v7053
        %v7792 = vunpack.c.l.b16 %v7054
        %v7793 = vunpack.c.h.b16 %v7054
        %v7794 = vunpack.c.l.b16 %v7055
        %v7795 = vunpack.c.h.b16 %v7055
        %v7796 = vunpack.c.l.b16 %v7056
        %v7797 = vunpack.c.h.b16 %v7056
        %v7798 = vunpack.c.l.b16 %v7057
        %v7799 = vunpack.c.h.b16 %v7057
        %v7800 = vunpack.c.l.b16 %v7058
        %v7801 = vunpack.c.h.b16 %v7058
        %v7802 = vunpack.c.l.b16 %v7059
        %v7803 = vunpack.c.h.b16 %v7059
        %v7804 = vunpack.c.l.b16 %v7060
        %v7805 = vunpack.c.h.b16 %v7060
        %v7806 = vunpack.c.l.b16 %v7061
        %v7807 = vunpack.c.h.b16 %v7061
        %v7808 = vunpack.c.l.b16 %v7062
        %v7809 = vunpack.c.h.b16 %v7062
        %v7810 = vunpack.c.l.b16 %v7063
        %v7811 = vunpack.c.h.b16 %v7063
        %v7812 = vunpack.c.l.b16 %v7064
        %v7813 = vunpack.c.h.b16 %v7064
        %v7814 = vunpack.c.l.b16 %v7065
        %v7815 = vunpack.c.h.b16 %v7065
        %v7816 = vunpack.c.l.b16 %v7066
        %v7817 = vunpack.c.h.b16 %v7066
        %v7818 = vunpack.c.l.b16 %v7067
        %v7819 = vunpack.c.h.b16 %v7067
        %v7820 = vunpack.c.l.b16 %v7068
        %v7821 = vunpack.c.h.b16 %v7068
        %v7822 = vunpack.c.l.b16 %v7069
        %v7823 = vunpack.c.h.b16 %v7069
        %v7824 = vunpack.c.l.b16 %v7070
        %v7825 = vunpack.c.h.b16 %v7070
        %v7826 = vunpack.c.l.b16 %v7071
        %v7827 = vunpack.c.h.b16 %v7071
        %v7828 = vunpack.c.l.b16 %v7072
        %v7829 = vunpack.c.h.b16 %v7072
        %v7830 = vunpack.c.l.b16 %v7073
        %v7831 = vunpack.c.h.b16 %v7073
        %v7832 = vunpack.c.l.b16 %v7074
        %v7833 = vunpack.c.h.b16 %v7074
        %v7834 = vunpack.c.l.b16 %v7075
        %v7835 = vunpack.c.h.b16 %v7075
        %v7836 = vunpack.c.l.b16 %v7076
        %v7837 = vunpack.c.h.b16 %v7076
        %v7838 = vunpack.c.l.b16 %v7077
        %v7839 = vunpack.c.h.b16 %v7077
        %v7840 = vunpack.c.l.b16 %v7078
        %v7841 = vunpack.c.h.b16 %v7078
        %v7842 = vunpack.c.l.b16 %v7079
        %v7843 = vunpack.c.h.b16 %v7079
        %v7844 = vunpack.c.l.b16 %v7080
        %v7845 = vunpack.c.h.b16 %v7080
        %v7846 = vunpack.c.l.b16 %v7081
        %v7847 = vunpack.c.h.b16 %v7081
        %v7848 = vunpack.c.l.b16 %v7082
        %v7849 = vunpack.c.h.b16 %v7082
        %v7850 = vunpack.c.l.b16 %v7083
        %v7851 = vunpack.c.h.b16 %v7083
        %v7852 = vunpack.c.l.b16 %v7084
        %v7853 = vunpack.c.h.b16 %v7084
        %v7854 = vunpack.c.l.b16 %v7085
        %v7855 = vunpack.c.h.b16 %v7085
        %v7856 = vunpack.c.l.b16 %v7086
        %v7857 = vunpack.c.h.b16 %v7086
        %v7858 = vunpack.c.l.b16 %v7087
        %v7859 = vunpack.c.h.b16 %v7087
        %v7860 = vunpack.c.l.b16 %v7088
        %v7861 = vunpack.c.h.b16 %v7088
        %v7862 = vunpack.c.l.b16 %v7089
        %v7863 = vunpack.c.h.b16 %v7089
        %v7864 = vunpack.c.l.b16 %v7090
        %v7865 = vunpack.c.h.b16 %v7090
        %v7866 = vunpack.c.l.b16 %v7091
        %v7867 = vunpack.c.h.b16 %v7091
        %v7868 = vunpack.c.l.b16 %v7092
        %v7869 = vunpack.c.h.b16 %v7092
        %v7870 = vunpack.c.l.b16 %v7093
        %v7871 = vunpack.c.h.b16 %v7093
        %v7872 = vunpack.c.l.b16 %v7094
        %v7873 = vunpack.c.h.b16 %v7094
        %v7874 = vunpack.c.l.b16 %v7095
        %v7875 = vunpack.c.h.b16 %v7095
        %v7876 = vunpack.c.l.b16 %v7096
        %v7877 = vunpack.c.h.b16 %v7096
        %v7878 = vunpack.c.l.b16 %v7097
        %v7879 = vunpack.c.h.b16 %v7097
        %v7880 = vunpack.c.l.b16 %v7098
        %v7881 = vunpack.c.h.b16 %v7098
        %v7882 = vunpack.c.l.b16 %v7099
        %v7883 = vunpack.c.h.b16 %v7099
        %v7884 = vunpack.c.l.b16 %v7100
        %v7885 = vunpack.c.h.b16 %v7100
        %v7886 = vunpack.c.l.b16 %v7101
        %v7887 = vunpack.c.h.b16 %v7101
        %v7888 = vunpack.c.l.b16 %v7102
        %v7889 = vunpack.c.h.b16 %v7102
        %v7890 = vunpack.c.l.b16 %v7103
        %v7891 = vunpack.c.h.b16 %v7103
        %v7892 = vunpack.c.l.b16 %v7104
        %v7893 = vunpack.c.h.b16 %v7104
        %v7894 = vunpack.c.l.b16 %v7105
        %v7895 = vunpack.c.h.b16 %v7105
        %v7896 = vunpack.c.l.b16 %v7106
        %v7897 = vunpack.c.h.b16 %v7106
        %v7898 = vunpack.c.l.b16 %v7107
        %v7899 = vunpack.c.h.b16 %v7107
        %v7900 = vunpack.c.l.b16 %v7108
        %v7901 = vunpack.c.h.b16 %v7108
        %v7902 = vunpack.c.l.b16 %v7109
        %v7903 = vunpack.c.h.b16 %v7109
        %v7904 = vunpack.c.l.b16 %v7110
        %v7905 = vunpack.c.h.b16 %v7110
        %v7906 = vunpack.c.l.b16 %v7111
        %v7907 = vunpack.c.h.b16 %v7111
        %v7908 = vunpack.c.l.b16 %v7112
        %v7909 = vunpack.c.h.b16 %v7112
        %v7910 = vunpack.c.l.b16 %v7113
        %v7911 = vunpack.c.h.b16 %v7113
        %v7912 = vunpack.c.l.b16 %v7114
        %v7913 = vunpack.c.h.b16 %v7114
        %v7914 = vunpack.c.l.b16 %v7115
        %v7915 = vunpack.c.h.b16 %v7115
        %v7916 = vunpack.c.l.b16 %v7116
        %v7917 = vunpack.c.h.b16 %v7116
        %v7918 = vunpack.c.l.b16 %v7117
        %v7919 = vunpack.c.h.b16 %v7117
        %v7920 = vunpack.c.l.b16 %v7118
        %v7921 = vunpack.c.h.b16 %v7118
        %v7922 = vunpack.c.l.b16 %v7119
        %v7923 = vunpack.c.h.b16 %v7119
        %v7924 = vunpack.c.l.b16 %v7120
        %v7925 = vunpack.c.h.b16 %v7120
        %v7926 = vunpack.c.l.b16 %v7121
        %v7927 = vunpack.c.h.b16 %v7121
        %v7928 = vunpack.c.l.b16 %v7122
        %v7929 = vunpack.c.h.b16 %v7122
        %v7930 = vunpack.c.l.b16 %v7123
        %v7931 = vunpack.c.h.b16 %v7123
        %v7932 = vunpack.c.l.b16 %v7124
        %v7933 = vunpack.c.h.b16 %v7124
        %v7934 = vunpack.c.l.b16 %v7125
        %v7935 = vunpack.c.h.b16 %v7125
        %v7936 = vpack.c.b16 %v7432, %v7424
        %v7937 = vpack.c.b16 %v7433, %v7425
        %v7938 = vpack.c.b16 %v7434, %v7426
        %v7939 = vpack.c.b16 %v7435, %v7427
        %v7940 = vpack.c.b16 %v7436, %v7428
        %v7941 = vpack.c.b16 %v7437, %v7429
        %v7942 = vpack.c.b16 %v7438, %v7430
        %v7943 = vpack.c.b16 %v7439, %v7431
        %v7944 = vpack.c.b16 %v7448, %v7440
        %v7945 = vpack.c.b16 %v7449, %v7441
        %v7946 = vpack.c.b16 %v7450, %v7442
        %v7947 = vpack.c.b16 %v7451, %v7443
        %v7948 = vpack.c.b16 %v7452, %v7444
        %v7949 = vpack.c.b16 %v7453, %v7445
        %v7950 = vpack.c.b16 %v7454, %v7446
        %v7951 = vpack.c.b16 %v7455, %v7447
        %v7952 = vpack.c.b16 %v7464, %v7456
        %v7953 = vpack.c.b16 %v7465, %v7457
        %v7954 = vpack.c.b16 %v7466, %v7458
        %v7955 = vpack.c.b16 %v7467, %v7459
        %v7956 = vpack.c.b16 %v7468, %v7460
        %v7957 = vpack.c.b16 %v7469, %v7461
        %v7958 = vpack.c.b16 %v7470, %v7462
        %v7959 = vpack.c.b16 %v7471, %v7463
        %v7960 = vpack.c.b16 %v7480, %v7472
        %v7961 = vpack.c.b16 %v7481, %v7473
        %v7962 = vpack.c.b16 %v7482, %v7474
        %v7963 = vpack.c.b16 %v7483, %v7475
        %v7964 = vpack.c.b16 %v7484, %v7476
        %v7965 = vpack.c.b16 %v7485, %v7477
        %v7966 = vpack.c.b16 %v7486, %v7478
        %v7967 = vpack.c.b16 %v7487, %v7479
        %v7968 = vpack.c.b16 %v7496, %v7488
        %v7969 = vpack.c.b16 %v7497, %v7489
        %v7970 = vpack.c.b16 %v7498, %v7490
        %v7971 = vpack.c.b16 %v7499, %v7491
        %v7972 = vpack.c.b16 %v7500, %v7492
        %v7973 = vpack.c.b16 %v7501, %v7493
        %v7974 = vpack.c.b16 %v7502, %v7494
        %v7975 = vpack.c.b16 %v7503, %v7495
        %v7976 = vpack.c.b16 %v7512, %v7504
        %v7977 = vpack.c.b16 %v7513, %v7505
        %v7978 = vpack.c.b16 %v7514, %v7506
        %v7979 = vpack.c.b16 %v7515, %v7507
        %v7980 = vpack.c.b16 %v7516, %v7508
        %v7981 = vpack.c.b16 %v7517, %v7509
        %v7982 = vpack.c.b16 %v7518, %v7510
        %v7983 = vpack.c.b16 %v7519, %v7511
        %v7984 = vpack.c.b16 %v7528, %v7520
        %v7985 = vpack.c.b16 %v7529, %v7521
        %v7986 = vpack.c.b16 %v7530, %v7522
        %v7987 = vpack.c.b16 %v7531, %v7523
        %v7988 = vpack.c.b16 %v7532, %v7524
        %v7989 = vpack.c.b16 %v7533, %v7525
        %v7990 = vpack.c.b16 %v7534, %v7526
        %v7991 = vpack.c.b16 %v7535, %v7527
        %v7992 = vpack.c.b16 %v7544, %v7536
        %v7993 = vpack.c.b16 %v7545, %v7537
        %v7994 = vpack.c.b16 %v7546, %v7538
        %v7995 = vpack.c.b16 %v7547, %v7539
        %v7996 = vpack.c.b16 %v7548, %v7540
        %v7997 = vpack.c.b16 %v7549, %v7541
        %v7998 = vpack.c.b16 %v7550, %v7542
        %v7999 = vpack.c.b16 %v7551, %v7543
        %v8000 = vpack.c.b16 %v7560, %v7552
        %v8001 = vpack.c.b16 %v7561, %v7553
        %v8002 = vpack.c.b16 %v7562, %v7554
        %v8003 = vpack.c.b16 %v7563, %v7555
        %v8004 = vpack.c.b16 %v7564, %v7556
        %v8005 = vpack.c.b16 %v7565, %v7557
        %v8006 = vpack.c.b16 %v7566, %v7558
        %v8007 = vpack.c.b16 %v7567, %v7559
        %v8008 = vpack.c.b16 %v7576, %v7568
        %v8009 = vpack.c.b16 %v7577, %v7569
        %v8010 = vpack.c.b16 %v7578, %v7570
        %v8011 = vpack.c.b16 %v7579, %v7571
        %v8012 = vpack.c.b16 %v7580, %v7572
        %v8013 = vpack.c.b16 %v7581, %v7573
        %v8014 = vpack.c.b16 %v7582, %v7574
        %v8015 = vpack.c.b16 %v7583, %v7575
        %v8016 = vpack.c.b16 %v7592, %v7584
        %v8017 = vpack.c.b16 %v7593, %v7585
        %v8018 = vpack.c.b16 %v7594, %v7586
        %v8019 = vpack.c.b16 %v7595, %v7587
        %v8020 = vpack.c.b16 %v7596, %v7588
        %v8021 = vpack.c.b16 %v7597, %v7589
        %v8022 = vpack.c.b16 %v7598, %v7590
        %v8023 = vpack.c.b16 %v7599, %v7591
        %v8024 = vpack.c.b16 %v7608, %v7600
        %v8025 = vpack.c.b16 %v7609, %v7601
        %v8026 = vpack.c.b16 %v7610, %v7602
        %v8027 = vpack.c.b16 %v7611, %v7603
        %v8028 = vpack.c.b16 %v7612, %v7604
        %v8029 = vpack.c.b16 %v7613, %v7605
        %v8030 = vpack.c.b16 %v7614, %v7606
        %v8031 = vpack.c.b16 %v7615, %v7607
        %v8032 = vpack.c.b16 %v7624, %v7616
        %v8033 = vpack.c.b16 %v7625, %v7617
        %v8034 = vpack.c.b16 %v7626, %v7618
        %v8035 = vpack.c.b16 %v7627, %v7619
        %v8036 = vpack.c.b16 %v7628, %v7620
        %v8037 = vpack.c.b16 %v7629, %v7621
        %v8038 = vpack.c.b16 %v7630, %v7622
        %v8039 = vpack.c.b16 %v7631, %v7623
        %v8040 = vpack.c.b16 %v7640, %v7632
        %v8041 = vpack.c.b16 %v7641, %v7633
        %v8042 = vpack.c.b16 %v7642, %v7634
        %v8043 = vpack.c.b16 %v7643, %v7635
        %v8044 = vpack.c.b16 %v7644, %v7636
        %v8045 = vpack.c.b16 %v7645, %v7637
        %v8046 = vpack.c.b16 %v7646, %v7638
        %v8047 = vpack.c.b16 %v7647, %v7639
        %v8048 = vpack.c.b16 %v7656, %v7648
        %v8049 = vpack.c.b16 %v7657, %v7649
        %v8050 = vpack.c.b16 %v7658, %v7650
        %v8051 = vpack.c.b16 %v7659, %v7651
        %v8052 = vpack.c.b16 %v7660, %v7652
        %v8053 = vpack.c.b16 %v7661, %v7653
        %v8054 = vpack.c.b16 %v7662, %v7654
        %v8055 = vpack.c.b16 %v7663, %v7655
        %v8056 = vpack.c.b16 %v7672, %v7664
        %v8057 = vpack.c.b16 %v7673, %v7665
        %v8058 = vpack.c.b16 %v7674, %v7666
        %v8059 = vpack.c.b16 %v7675, %v7667
        %v8060 = vpack.c.b16 %v7676, %v7668
        %v8061 = vpack.c.b16 %v7677, %v7669
        %v8062 = vpack.c.b16 %v7678, %v7670
        %v8063 = vpack.c.b16 %v7679, %v7671
        %v8064 = vpack.c.b16 %v7688, %v7680
        %v8065 = vpack.c.b16 %v7689, %v7681
        %v8066 = vpack.c.b16 %v7690, %v7682
        %v8067 = vpack.c.b16 %v7691, %v7683
        %v8068 = vpack.c.b16 %v7692, %v7684
        %v8069 = vpack.c.b16 %v7693, %v7685
        %v8070 = vpack.c.b16 %v7694, %v7686
        %v8071 = vpack.c.b16 %v7695, %v7687
        %v8072 = vpack.c.b16 %v7704, %v7696
        %v8073 = vpack.c.b16 %v7705, %v7697
        %v8074 = vpack.c.b16 %v7706, %v7698
        %v8075 = vpack.c.b16 %v7707, %v7699
        %v8076 = vpack.c.b16 %v7708, %v7700
        %v8077 = vpack.c.b16 %v7709, %v7701
        %v8078 = vpack.c.b16 %v7710, %v7702
        %v8079 = vpack.c.b16 %v7711, %v7703
        %v8080 = vpack.c.b16 %v7720, %v7712
        %v8081 = vpack.c.b16 %v7721, %v7713
        %v8082 = vpack.c.b16 %v7722, %v7714
        %v8083 = vpack.c.b16 %v7723, %v7715
        %v8084 = vpack.c.b16 %v7724, %v7716
        %v8085 = vpack.c.b16 %v7725, %v7717
        %v8086 = vpack.c.b16 %v7726, %v7718
        %v8087 = vpack.c.b16 %v7727, %v7719
        %v8088 = vpack.c.b16 %v7736, %v7728
        %v8089 = vpack.c.b16 %v7737, %v7729
        %v8090 = vpack.c.b16 %v7738, %v7730
        %v8091 = vpack.c.b16 %v7739, %v7731
        %v8092 = vpack.c.b16 %v7740, %v7732
        %v8093 = vpack.c.b16 %v7741, %v7733
        %v8094 = vpack.c.b16 %v7742, %v7734
        %v8095 = vpack.c.b16 %v7743, %v7735
        %v8096 = vpack.c.b16 %v7752, %v7744
        %v8097 = vpack.c.b16 %v7753, %v7745
        %v8098 = vpack.c.b16 %v7754, %v7746
        %v8099 = vpack.c.b16 %v7755, %v7747
        %v8100 = vpack.c.b16 %v7756, %v7748
        %v8101 = vpack.c.b16 %v7757, %v7749
        %v8102 = vpack.c.b16 %v7758, %v7750
        %v8103 = vpack.c.b16 %v7759, %v7751
        %v8104 = vpack.c.b16 %v7768, %v7760
        %v8105 = vpack.c.b16 %v7769, %v7761
        %v8106 = vpack.c.b16 %v7770, %v7762
        %v8107 = vpack.c.b16 %v7771, %v7763
        %v8108 = vpack.c.b16 %v7772, %v7764
        %v8109 = vpack.c.b16 %v7773, %v7765
        %v8110 = vpack.c.b16 %v7774, %v7766
        %v8111 = vpack.c.b16 %v7775, %v7767
        %v8112 = vpack.c.b16 %v7784, %v7776
        %v8113 = vpack.c.b16 %v7785, %v7777
        %v8114 = vpack.c.b16 %v7786, %v7778
        %v8115 = vpack.c.b16 %v7787, %v7779
        %v8116 = vpack.c.b16 %v7788, %v7780
        %v8117 = vpack.c.b16 %v7789, %v7781
        %v8118 = vpack.c.b16 %v7790, %v7782
        %v8119 = vpack.c.b16 %v7791, %v7783
        %v8120 = vpack.c.b16 %v7800, %v7792
        %v8121 = vpack.c.b16 %v7801, %v7793
        %v8122 = vpack.c.b16 %v7802, %v7794
        %v8123 = vpack.c.b16 %v7803, %v7795
        %v8124 = vpack.c.b16 %v7804, %v7796
        %v8125 = vpack.c.b16 %v7805, %v7797
        %v8126 = vpack.c.b16 %v7806, %v7798
        %v8127 = vpack.c.b16 %v7807, %v7799
        %v8128 = vpack.c.b16 %v7816, %v7808
        %v8129 = vpack.c.b16 %v7817, %v7809
        %v8130 = vpack.c.b16 %v7818, %v7810
        %v8131 = vpack.c.b16 %v7819, %v7811
        %v8132 = vpack.c.b16 %v7820, %v7812
        %v8133 = vpack.c.b16 %v7821, %v7813
        %v8134 = vpack.c.b16 %v7822, %v7814
        %v8135 = vpack.c.b16 %v7823, %v7815
        %v8136 = vpack.c.b16 %v7832, %v7824
        %v8137 = vpack.c.b16 %v7833, %v7825
        %v8138 = vpack.c.b16 %v7834, %v7826
        %v8139 = vpack.c.b16 %v7835, %v7827
        %v8140 = vpack.c.b16 %v7836, %v7828
        %v8141 = vpack.c.b16 %v7837, %v7829
        %v8142 = vpack.c.b16 %v7838, %v7830
        %v8143 = vpack.c.b16 %v7839, %v7831
        %v8144 = vpack.c.b16 %v7848, %v7840
        %v8145 = vpack.c.b16 %v7849, %v7841
        %v8146 = vpack.c.b16 %v7850, %v7842
        %v8147 = vpack.c.b16 %v7851, %v7843
        %v8148 = vpack.c.b16 %v7852, %v7844
        %v8149 = vpack.c.b16 %v7853, %v7845
        %v8150 = vpack.c.b16 %v7854, %v7846
        %v8151 = vpack.c.b16 %v7855, %v7847
        %v8152 = vpack.c.b16 %v7864, %v7856
        %v8153 = vpack.c.b16 %v7865, %v7857
        %v8154 = vpack.c.b16 %v7866, %v7858
        %v8155 = vpack.c.b16 %v7867, %v7859
        %v8156 = vpack.c.b16 %v7868, %v7860
        %v8157 = vpack.c.b16 %v7869, %v7861
        %v8158 = vpack.c.b16 %v7870, %v7862
        %v8159 = vpack.c.b16 %v7871, %v7863
        %v8160 = vpack.c.b16 %v7880, %v7872
        %v8161 = vpack.c.b16 %v7881, %v7873
        %v8162 = vpack.c.b16 %v7882, %v7874
        %v8163 = vpack.c.b16 %v7883, %v7875
        %v8164 = vpack.c.b16 %v7884, %v7876
        %v8165 = vpack.c.b16 %v7885, %v7877
        %v8166 = vpack.c.b16 %v7886, %v7878
        %v8167 = vpack.c.b16 %v7887, %v7879
        %v8168 = vpack.c.b16 %v7896, %v7888
        %v8169 = vpack.c.b16 %v7897, %v7889
        %v8170 = vpack.c.b16 %v7898, %v7890
        %v8171 = vpack.c.b16 %v7899, %v7891
        %v8172 = vpack.c.b16 %v7900, %v7892
        %v8173 = vpack.c.b16 %v7901, %v7893
        %v8174 = vpack.c.b16 %v7902, %v7894
        %v8175 = vpack.c.b16 %v7903, %v7895
        %v8176 = vpack.c.b16 %v7912, %v7904
        %v8177 = vpack.c.b16 %v7913, %v7905
        %v8178 = vpack.c.b16 %v7914, %v7906
        %v8179 = vpack.c.b16 %v7915, %v7907
        %v8180 = vpack.c.b16 %v7916, %v7908
        %v8181 = vpack.c.b16 %v7917, %v7909
        %v8182 = vpack.c.b16 %v7918, %v7910
        %v8183 = vpack.c.b16 %v7919, %v7911
        %v8184 = vpack.c.b16 %v7928, %v7920
        %v8185 = vpack.c.b16 %v7929, %v7921
        %v8186 = vpack.c.b16 %v7930, %v7922
        %v8187 = vpack.c.b16 %v7931, %v7923
        %v8188 = vpack.c.b16 %v7932, %v7924
        %v8189 = vpack.c.b16 %v7933, %v7925
        %v8190 = vpack.c.b16 %v7934, %v7926
        %v8191 = vpack.c.b16 %v7935, %v7927
        %8448 = vmatprep.subr.bf16.mxu0 %v7937
        %8449 = vmatpush1.bf16.msra.mxu0 %v7936
        %8450 = vmatprep.subr.bf16.mxu0 %v7945
        %8451 = vmatpush1.bf16.msra.mxu0 %v7944
        %8452 = vmatprep.subr.bf16.mxu0 %v7953
        %8453 = vmatpush1.bf16.msra.mxu0 %v7952
        %8454 = vmatprep.subr.bf16.mxu0 %v7961
        %8455 = vmatpush1.bf16.msra.mxu0 %v7960
        %8456 = vmatprep.subr.bf16.mxu0 %v7969
        %8457 = vmatpush1.bf16.msra.mxu0 %v7968
        %8458 = vmatprep.subr.bf16.mxu0 %v7977
        %8459 = vmatpush1.bf16.msra.mxu0 %v7976
        %8460 = vmatprep.subr.bf16.mxu0 %v7985
        %8461 = vmatpush1.bf16.msra.mxu0 %v7984
        %8462 = vmatprep.subr.bf16.mxu0 %v7993
        %8463 = vmatpush1.bf16.msra.mxu0 %v7992
        %8464 = vmatprep.subr.bf16.mxu0 %v8001
        %8465 = vmatpush1.bf16.msra.mxu0 %v8000
        %8466 = vmatprep.subr.bf16.mxu0 %v8009
        %8467 = vmatpush1.bf16.msra.mxu0 %v8008
        %8468 = vmatprep.subr.bf16.mxu0 %v8017
        %8469 = vmatpush1.bf16.msra.mxu0 %v8016
        %8470 = vmatprep.subr.bf16.mxu0 %v8025
        %8471 = vmatpush1.bf16.msra.mxu0 %v8024
        %8472 = vmatprep.subr.bf16.mxu0 %v8033
        %8473 = vmatpush1.bf16.msra.mxu0 %v8032
        %8474 = vmatprep.subr.bf16.mxu0 %v8041
        %8475 = vmatpush1.bf16.msra.mxu0 %v8040
        %8476 = vmatprep.subr.bf16.mxu0 %v8049
        %8477 = vmatpush1.bf16.msra.mxu0 %v8048
        %8478 = vmatprep.subr.bf16.mxu0 %v8057
        %8479 = vmatpush1.bf16.msra.mxu0 %v8056
        %8480 = vmatprep.mubr.bf16.mxu0 %v6867
        %8481 = vmatmul.mubr.bf16.gmra.mrb[0].mxu0 %v6866
        %v8482 = vpop.f32.mrb[0].mxu0
        %v8483 = vadd.f32 %v7131, %v8482
        %v8484 = vpop.f32.mrb[0].mxu0
        %v8485 = vadd.f32 %v7135, %v8484
        %v8486 = vpop.f32.mrb[0].mxu0
        %v8487 = vadd.f32 %v7131, %v8486
        %v8488 = vpop.f32.mrb[0].mxu0
        %v8489 = vadd.f32 %v7135, %v8488
        %8490 = vdwg.mxu0
        %8491 = vmatprep.subr.bf16.mxu0 %v8065
        %8492 = vmatpush1.bf16.msra.mxu0 %v8064
        %8493 = vmatprep.subr.bf16.mxu0 %v8073
        %8494 = vmatpush1.bf16.msra.mxu0 %v8072
        %8495 = vmatprep.subr.bf16.mxu0 %v8081
        %8496 = vmatpush1.bf16.msra.mxu0 %v8080
        %8497 = vmatprep.subr.bf16.mxu0 %v8089
        %8498 = vmatpush1.bf16.msra.mxu0 %v8088
        %8499 = vmatprep.subr.bf16.mxu0 %v8097
        %8500 = vmatpush1.bf16.msra.mxu0 %v8096
        %8501 = vmatprep.subr.bf16.mxu0 %v8105
        %8502 = vmatpush1.bf16.msra.mxu0 %v8104
        %8503 = vmatprep.subr.bf16.mxu0 %v8113
        %8504 = vmatpush1.bf16.msra.mxu0 %v8112
        %8505 = vmatprep.subr.bf16.mxu0 %v8121
        %8506 = vmatpush1.bf16.msra.mxu0 %v8120
        %8507 = vmatprep.subr.bf16.mxu0 %v8129
        %8508 = vmatpush1.bf16.msra.mxu0 %v8128
        %8509 = vmatprep.subr.bf16.mxu0 %v8137
        %8510 = vmatpush1.bf16.msra.mxu0 %v8136
        %8511 = vmatprep.subr.bf16.mxu0 %v8145
        %8512 = vmatpush1.bf16.msra.mxu0 %v8144
        %8513 = vmatprep.subr.bf16.mxu0 %v8153
        %8514 = vmatpush1.bf16.msra.mxu0 %v8152
        %8515 = vmatprep.subr.bf16.mxu0 %v8161
        %8516 = vmatpush1.bf16.msra.mxu0 %v8160
        %8517 = vmatprep.subr.bf16.mxu0 %v8169
        %8518 = vmatpush1.bf16.msra.mxu0 %v8168
        %8519 = vmatprep.subr.bf16.mxu0 %v8177
        %8520 = vmatpush1.bf16.msra.mxu0 %v8176
        %8521 = vmatprep.subr.bf16.mxu0 %v8185
        %8522 = vmatpush1.bf16.msra.mxu0 %v8184
        %8523 = vmatprep.mubr.bf16.mxu0 %v6869
        %8524 = vmatmul.mubr.bf16.gmra.mrb[0].mxu0 %v6868
        %v8525 = vpop.f32.mrb[0].mxu0
        %v8526 = vadd.f32 %v8483, %v8525
        %v8527 = vpop.f32.mrb[0].mxu0
        %v8528 = vadd.f32 %v8485, %v8527
        %v8529 = vpop.f32.mrb[0].mxu0
        %v8530 = vadd.f32 %v8487, %v8529
        %v8531 = vpop.f32.mrb[0].mxu0
        %v8532 = vadd.f32 %v8489, %v8531
        %8533 = vdwg.mxu0
        %8534 = vmatprep.subr.bf16.mxu0 %v7939
        %8535 = vmatpush1.bf16.msra.mxu0 %v7938
        %8536 = vmatprep.subr.bf16.mxu0 %v7947
        %8537 = vmatpush1.bf16.msra.mxu0 %v7946
        %8538 = vmatprep.subr.bf16.mxu0 %v7955
        %8539 = vmatpush1.bf16.msra.mxu0 %v7954
        %8540 = vmatprep.subr.bf16.mxu0 %v7963
        %8541 = vmatpush1.bf16.msra.mxu0 %v7962
        %8542 = vmatprep.subr.bf16.mxu0 %v7971
        %8543 = vmatpush1.bf16.msra.mxu0 %v7970
        %8544 = vmatprep.subr.bf16.mxu0 %v7979
        %8545 = vmatpush1.bf16.msra.mxu0 %v7978
        %8546 = vmatprep.subr.bf16.mxu0 %v7987
        %8547 = vmatpush1.bf16.msra.mxu0 %v7986
        %8548 = vmatprep.subr.bf16.mxu0 %v7995
        %8549 = vmatpush1.bf16.msra.mxu0 %v7994
        %8550 = vmatprep.subr.bf16.mxu0 %v8003
        %8551 = vmatpush1.bf16.msra.mxu0 %v8002
        %8552 = vmatprep.subr.bf16.mxu0 %v8011
        %8553 = vmatpush1.bf16.msra.mxu0 %v8010
        %8554 = vmatprep.subr.bf16.mxu0 %v8019
        %8555 = vmatpush1.bf16.msra.mxu0 %v8018
        %8556 = vmatprep.subr.bf16.mxu0 %v8027
        %8557 = vmatpush1.bf16.msra.mxu0 %v8026
        %8558 = vmatprep.subr.bf16.mxu0 %v8035
        %8559 = vmatpush1.bf16.msra.mxu0 %v8034
        %8560 = vmatprep.subr.bf16.mxu0 %v8043
        %8561 = vmatpush1.bf16.msra.mxu0 %v8042
        %8562 = vmatprep.subr.bf16.mxu0 %v8051
        %8563 = vmatpush1.bf16.msra.mxu0 %v8050
        %8564 = vmatprep.subr.bf16.mxu0 %v8059
        %8565 = vmatpush1.bf16.msra.mxu0 %v8058
        %8566 = vmatprep.mubr.bf16.mxu0 %v6867
        %8567 = vmatmul.mubr.bf16.gmra.mrb[0].mxu0 %v6866
        %v8568 = vpop.f32.mrb[0].mxu0
        %v8569 = vadd.f32 %v7139, %v8568
        %v8570 = vpop.f32.mrb[0].mxu0
        %v8571 = vadd.f32 %v7143, %v8570
        %v8572 = vpop.f32.mrb[0].mxu0
        %v8573 = vadd.f32 %v7139, %v8572
        %v8574 = vpop.f32.mrb[0].mxu0
        %v8575 = vadd.f32 %v7143, %v8574
        %8576 = vdwg.mxu0
        %8577 = vmatprep.subr.bf16.mxu0 %v8067
        %8578 = vmatpush1.bf16.msra.mxu0 %v8066
        %8579 = vmatprep.subr.bf16.mxu0 %v8075
        %8580 = vmatpush1.bf16.msra.mxu0 %v8074
        %8581 = vmatprep.subr.bf16.mxu0 %v8083
        %8582 = vmatpush1.bf16.msra.mxu0 %v8082
        %8583 = vmatprep.subr.bf16.mxu0 %v8091
        %8584 = vmatpush1.bf16.msra.mxu0 %v8090
        %8585 = vmatprep.subr.bf16.mxu0 %v8099
        %8586 = vmatpush1.bf16.msra.mxu0 %v8098
        %8587 = vmatprep.subr.bf16.mxu0 %v8107
        %8588 = vmatpush1.bf16.msra.mxu0 %v8106
        %8589 = vmatprep.subr.bf16.mxu0 %v8115
        %8590 = vmatpush1.bf16.msra.mxu0 %v8114
        %8591 = vmatprep.subr.bf16.mxu0 %v8123
        %8592 = vmatpush1.bf16.msra.mxu0 %v8122
        %8593 = vmatprep.subr.bf16.mxu0 %v8131
        %8594 = vmatpush1.bf16.msra.mxu0 %v8130
        %8595 = vmatprep.subr.bf16.mxu0 %v8139
        %8596 = vmatpush1.bf16.msra.mxu0 %v8138
        %8597 = vmatprep.subr.bf16.mxu0 %v8147
        %8598 = vmatpush1.bf16.msra.mxu0 %v8146
        %8599 = vmatprep.subr.bf16.mxu0 %v8155
        %8600 = vmatpush1.bf16.msra.mxu0 %v8154
        %8601 = vmatprep.subr.bf16.mxu0 %v8163
        %8602 = vmatpush1.bf16.msra.mxu0 %v8162
        %8603 = vmatprep.subr.bf16.mxu0 %v8171
        %8604 = vmatpush1.bf16.msra.mxu0 %v8170
        %8605 = vmatprep.subr.bf16.mxu0 %v8179
        %8606 = vmatpush1.bf16.msra.mxu0 %v8178
        %8607 = vmatprep.subr.bf16.mxu0 %v8187
        %8608 = vmatpush1.bf16.msra.mxu0 %v8186
        %8609 = vmatprep.mubr.bf16.mxu0 %v6869
        %8610 = vmatmul.mubr.bf16.gmra.mrb[0].mxu0 %v6868
        %v8611 = vpop.f32.mrb[0].mxu0
        %v8612 = vadd.f32 %v8569, %v8611
        %v8613 = vpop.f32.mrb[0].mxu0
        %v8614 = vadd.f32 %v8571, %v8613
        %v8615 = vpop.f32.mrb[0].mxu0
        %v8616 = vadd.f32 %v8573, %v8615
        %v8617 = vpop.f32.mrb[0].mxu0
        %v8618 = vadd.f32 %v8575, %v8617
        %8619 = vdwg.mxu0
        %8620 = vmatprep.subr.bf16.mxu0 %v7941
        %8621 = vmatpush1.bf16.msra.mxu0 %v7940
        %8622 = vmatprep.subr.bf16.mxu0 %v7949
        %8623 = vmatpush1.bf16.msra.mxu0 %v7948
        %8624 = vmatprep.subr.bf16.mxu0 %v7957
        %8625 = vmatpush1.bf16.msra.mxu0 %v7956
        %8626 = vmatprep.subr.bf16.mxu0 %v7965
        %8627 = vmatpush1.bf16.msra.mxu0 %v7964
        %8628 = vmatprep.subr.bf16.mxu0 %v7973
        %8629 = vmatpush1.bf16.msra.mxu0 %v7972
        %8630 = vmatprep.subr.bf16.mxu0 %v7981
        %8631 = vmatpush1.bf16.msra.mxu0 %v7980
        %8632 = vmatprep.subr.bf16.mxu0 %v7989
        %8633 = vmatpush1.bf16.msra.mxu0 %v7988
        %8634 = vmatprep.subr.bf16.mxu0 %v7997
        %8635 = vmatpush1.bf16.msra.mxu0 %v7996
        %8636 = vmatprep.subr.bf16.mxu0 %v8005
        %8637 = vmatpush1.bf16.msra.mxu0 %v8004
        %8638 = vmatprep.subr.bf16.mxu0 %v8013
        %8639 = vmatpush1.bf16.msra.mxu0 %v8012
        %8640 = vmatprep.subr.bf16.mxu0 %v8021
        %8641 = vmatpush1.bf16.msra.mxu0 %v8020
        %8642 = vmatprep.subr.bf16.mxu0 %v8029
        %8643 = vmatpush1.bf16.msra.mxu0 %v8028
        %8644 = vmatprep.subr.bf16.mxu0 %v8037
        %8645 = vmatpush1.bf16.msra.mxu0 %v8036
        %8646 = vmatprep.subr.bf16.mxu0 %v8045
        %8647 = vmatpush1.bf16.msra.mxu0 %v8044
        %8648 = vmatprep.subr.bf16.mxu0 %v8053
        %8649 = vmatpush1.bf16.msra.mxu0 %v8052
        %8650 = vmatprep.subr.bf16.mxu0 %v8061
        %8651 = vmatpush1.bf16.msra.mxu0 %v8060
        %8652 = vmatprep.mubr.bf16.mxu0 %v6867
        %8653 = vmatmul.mubr.bf16.gmra.mrb[0].mxu0 %v6866
        %v8654 = vpop.f32.mrb[0].mxu0
        %v8655 = vadd.f32 %v7147, %v8654
        %v8656 = vpop.f32.mrb[0].mxu0
        %v8657 = vadd.f32 %v7151, %v8656
        %v8658 = vpop.f32.mrb[0].mxu0
        %v8659 = vadd.f32 %v7147, %v8658
        %v8660 = vpop.f32.mrb[0].mxu0
        %v8661 = vadd.f32 %v7151, %v8660
        %8662 = vdwg.mxu0
        %8663 = vmatprep.subr.bf16.mxu0 %v8069
        %8664 = vmatpush1.bf16.msra.mxu0 %v8068
        %8665 = vmatprep.subr.bf16.mxu0 %v8077
        %8666 = vmatpush1.bf16.msra.mxu0 %v8076
        %8667 = vmatprep.subr.bf16.mxu0 %v8085
        %8668 = vmatpush1.bf16.msra.mxu0 %v8084
        %8669 = vmatprep.subr.bf16.mxu0 %v8093
        %8670 = vmatpush1.bf16.msra.mxu0 %v8092
        %8671 = vmatprep.subr.bf16.mxu0 %v8101
        %8672 = vmatpush1.bf16.msra.mxu0 %v8100
        %8673 = vmatprep.subr.bf16.mxu0 %v8109
        %8674 = vmatpush1.bf16.msra.mxu0 %v8108
        %8675 = vmatprep.subr.bf16.mxu0 %v8117
        %8676 = vmatpush1.bf16.msra.mxu0 %v8116
        %8677 = vmatprep.subr.bf16.mxu0 %v8125
        %8678 = vmatpush1.bf16.msra.mxu0 %v8124
        %8679 = vmatprep.subr.bf16.mxu0 %v8133
        %8680 = vmatpush1.bf16.msra.mxu0 %v8132
        %8681 = vmatprep.subr.bf16.mxu0 %v8141
        %8682 = vmatpush1.bf16.msra.mxu0 %v8140
        %8683 = vmatprep.subr.bf16.mxu0 %v8149
        %8684 = vmatpush1.bf16.msra.mxu0 %v8148
        %8685 = vmatprep.subr.bf16.mxu0 %v8157
        %8686 = vmatpush1.bf16.msra.mxu0 %v8156
        %8687 = vmatprep.subr.bf16.mxu0 %v8165
        %8688 = vmatpush1.bf16.msra.mxu0 %v8164
        %8689 = vmatprep.subr.bf16.mxu0 %v8173
        %8690 = vmatpush1.bf16.msra.mxu0 %v8172
        %8691 = vmatprep.subr.bf16.mxu0 %v8181
        %8692 = vmatpush1.bf16.msra.mxu0 %v8180
        %8693 = vmatprep.subr.bf16.mxu0 %v8189
        %8694 = vmatpush1.bf16.msra.mxu0 %v8188
        %8695 = vmatprep.mubr.bf16.mxu0 %v6869
        %8696 = vmatmul.mubr.bf16.gmra.mrb[0].mxu0 %v6868
        %v8697 = vpop.f32.mrb[0].mxu0
        %v8698 = vadd.f32 %v8655, %v8697
        %v8699 = vpop.f32.mrb[0].mxu0
        %v8700 = vadd.f32 %v8657, %v8699
        %v8701 = vpop.f32.mrb[0].mxu0
        %v8702 = vadd.f32 %v8659, %v8701
        %v8703 = vpop.f32.mrb[0].mxu0
        %v8704 = vadd.f32 %v8661, %v8703
        %8705 = vdwg.mxu0
        %8706 = vmatprep.subr.bf16.mxu0 %v7943
        %8707 = vmatpush1.bf16.msra.mxu0 %v7942
        %8708 = vmatprep.subr.bf16.mxu0 %v7951
        %8709 = vmatpush1.bf16.msra.mxu0 %v7950
        %8710 = vmatprep.subr.bf16.mxu0 %v7959
        %8711 = vmatpush1.bf16.msra.mxu0 %v7958
        %8712 = vmatprep.subr.bf16.mxu0 %v7967
        %8713 = vmatpush1.bf16.msra.mxu0 %v7966
        %8714 = vmatprep.subr.bf16.mxu0 %v7975
        %8715 = vmatpush1.bf16.msra.mxu0 %v7974
        %8716 = vmatprep.subr.bf16.mxu0 %v7983
        %8717 = vmatpush1.bf16.msra.mxu0 %v7982
        %8718 = vmatprep.subr.bf16.mxu0 %v7991
        %8719 = vmatpush1.bf16.msra.mxu0 %v7990
        %8720 = vmatprep.subr.bf16.mxu0 %v7999
        %8721 = vmatpush1.bf16.msra.mxu0 %v7998
        %8722 = vmatprep.subr.bf16.mxu0 %v8007
        %8723 = vmatpush1.bf16.msra.mxu0 %v8006
        %8724 = vmatprep.subr.bf16.mxu0 %v8015
        %8725 = vmatpush1.bf16.msra.mxu0 %v8014
        %8726 = vmatprep.subr.bf16.mxu0 %v8023
        %8727 = vmatpush1.bf16.msra.mxu0 %v8022
        %8728 = vmatprep.subr.bf16.mxu0 %v8031
        %8729 = vmatpush1.bf16.msra.mxu0 %v8030
        %8730 = vmatprep.subr.bf16.mxu0 %v8039
        %8731 = vmatpush1.bf16.msra.mxu0 %v8038
        %8732 = vmatprep.subr.bf16.mxu0 %v8047
        %8733 = vmatpush1.bf16.msra.mxu0 %v8046
        %8734 = vmatprep.subr.bf16.mxu0 %v8055
        %8735 = vmatpush1.bf16.msra.mxu0 %v8054
        %8736 = vmatprep.subr.bf16.mxu0 %v8063
        %8737 = vmatpush1.bf16.msra.mxu0 %v8062
        %8738 = vmatprep.mubr.bf16.mxu0 %v6867
        %8739 = vmatmul.mubr.bf16.gmra.mrb[0].mxu0 %v6866
        %v8740 = vpop.f32.mrb[0].mxu0
        %v8741 = vadd.f32 %v7155, %v8740
        %v8742 = vpop.f32.mrb[0].mxu0
        %v8743 = vadd.f32 %v7159, %v8742
        %v8744 = vpop.f32.mrb[0].mxu0
        %v8745 = vadd.f32 %v7155, %v8744
        %v8746 = vpop.f32.mrb[0].mxu0
        %v8747 = vadd.f32 %v7159, %v8746
        %8748 = vdwg.mxu0
        %8749 = vmatprep.subr.bf16.mxu0 %v8071
        %8750 = vmatpush1.bf16.msra.mxu0 %v8070
        %8751 = vmatprep.subr.bf16.mxu0 %v8079
        %8752 = vmatpush1.bf16.msra.mxu0 %v8078
        %8753 = vmatprep.subr.bf16.mxu0 %v8087
        %8754 = vmatpush1.bf16.msra.mxu0 %v8086
        %8755 = vmatprep.subr.bf16.mxu0 %v8095
        %8756 = vmatpush1.bf16.msra.mxu0 %v8094
        %8757 = vmatprep.subr.bf16.mxu0 %v8103
        %8758 = vmatpush1.bf16.msra.mxu0 %v8102
        %8759 = vmatprep.subr.bf16.mxu0 %v8111
        %8760 = vmatpush1.bf16.msra.mxu0 %v8110
        %8761 = vmatprep.subr.bf16.mxu0 %v8119
        %8762 = vmatpush1.bf16.msra.mxu0 %v8118
        %8763 = vmatprep.subr.bf16.mxu0 %v8127
        %8764 = vmatpush1.bf16.msra.mxu0 %v8126
        %8765 = vmatprep.subr.bf16.mxu0 %v8135
        %8766 = vmatpush1.bf16.msra.mxu0 %v8134
        %8767 = vmatprep.subr.bf16.mxu0 %v8143
        %8768 = vmatpush1.bf16.msra.mxu0 %v8142
        %8769 = vmatprep.subr.bf16.mxu0 %v8151
        %8770 = vmatpush1.bf16.msra.mxu0 %v8150
        %8771 = vmatprep.subr.bf16.mxu0 %v8159
        %8772 = vmatpush1.bf16.msra.mxu0 %v8158
        %8773 = vmatprep.subr.bf16.mxu0 %v8167
        %8774 = vmatpush1.bf16.msra.mxu0 %v8166
        %8775 = vmatprep.subr.bf16.mxu0 %v8175
        %8776 = vmatpush1.bf16.msra.mxu0 %v8174
        %8777 = vmatprep.subr.bf16.mxu0 %v8183
        %8778 = vmatpush1.bf16.msra.mxu0 %v8182
        %8779 = vmatprep.subr.bf16.mxu0 %v8191
        %8780 = vmatpush1.bf16.msra.mxu0 %v8190
        %8781 = vmatprep.mubr.bf16.mxu0 %v6869
        %8782 = vmatmul.mubr.bf16.gmra.mrb[0].mxu0 %v6868
        %v8783 = vpop.f32.mrb[0].mxu0
        %v8784 = vadd.f32 %v8741, %v8783
        %v8785 = vpop.f32.mrb[0].mxu0
        %v8786 = vadd.f32 %v8743, %v8785
        %v8787 = vpop.f32.mrb[0].mxu0
        %v8788 = vadd.f32 %v8745, %v8787
        %v8789 = vpop.f32.mrb[0].mxu0
        %v8790 = vadd.f32 %v8747, %v8789
        %8791 = vdwg.mxu0
        %v8792 = vmul.f32 %v8526, %v8526
        %v8793 = vmul.f32 %v8528, %v8528
        %v8794 = vmul.f32 %v8612, %v8612
        %v8795 = vmul.f32 %v8614, %v8614
        %v8796 = vmul.f32 %v8698, %v8698
        %v8797 = vmul.f32 %v8700, %v8700
        %v8798 = vmul.f32 %v8784, %v8784
        %v8799 = vmul.f32 %v8786, %v8786
        %v8800 = vmul.f32 %v8530, %v8530
        %v8801 = vmul.f32 %v8532, %v8532
        %v8802 = vmul.f32 %v8616, %v8616
        %v8803 = vmul.f32 %v8618, %v8618
        %v8804 = vmul.f32 %v8702, %v8702
        %v8805 = vmul.f32 %v8704, %v8704
        %v8806 = vmul.f32 %v8788, %v8788
        %v8807 = vmul.f32 %v8790, %v8790
        %v8808 = vmul.f32 %v8526, %v8792
        %v8809 = vmul.f32 %v8528, %v8793
        %v8810 = vmul.f32 %v8612, %v8794
        %v8811 = vmul.f32 %v8614, %v8795
        %v8812 = vmul.f32 %v8698, %v8796
        %v8813 = vmul.f32 %v8700, %v8797
        %v8814 = vmul.f32 %v8784, %v8798
        %v8815 = vmul.f32 %v8786, %v8799
        %v8816 = vmul.f32 %v8530, %v8800
        %v8817 = vmul.f32 %v8532, %v8801
        %v8818 = vmul.f32 %v8616, %v8802
        %v8819 = vmul.f32 %v8618, %v8803
        %v8820 = vmul.f32 %v8702, %v8804
        %v8821 = vmul.f32 %v8704, %v8805
        %v8822 = vmul.f32 %v8788, %v8806
        %v8823 = vmul.f32 %v8790, %v8807
        %v8824 = vmul.f32 %v8808, 0.044715
        %v8825 = vmul.f32 %v8809, 0.044715
        %v8826 = vmul.f32 %v8810, 0.044715
        %v8827 = vmul.f32 %v8811, 0.044715
        %v8828 = vmul.f32 %v8812, 0.044715
        %v8829 = vmul.f32 %v8813, 0.044715
        %v8830 = vmul.f32 %v8814, 0.044715
        %v8831 = vmul.f32 %v8815, 0.044715
        %v8832 = vmul.f32 %v8816, 0.044715
        %v8833 = vmul.f32 %v8817, 0.044715
        %v8834 = vmul.f32 %v8818, 0.044715
        %v8835 = vmul.f32 %v8819, 0.044715
        %v8836 = vmul.f32 %v8820, 0.044715
        %v8837 = vmul.f32 %v8821, 0.044715
        %v8838 = vmul.f32 %v8822, 0.044715
        %v8839 = vmul.f32 %v8823, 0.044715
        %v8840 = vadd.f32 %v8526, %v8824
        %v8841 = vadd.f32 %v8528, %v8825
        %v8842 = vadd.f32 %v8612, %v8826
        %v8843 = vadd.f32 %v8614, %v8827
        %v8844 = vadd.f32 %v8698, %v8828
        %v8845 = vadd.f32 %v8700, %v8829
        %v8846 = vadd.f32 %v8784, %v8830
        %v8847 = vadd.f32 %v8786, %v8831
        %v8848 = vadd.f32 %v8530, %v8832
        %v8849 = vadd.f32 %v8532, %v8833
        %v8850 = vadd.f32 %v8616, %v8834
        %v8851 = vadd.f32 %v8618, %v8835
        %v8852 = vadd.f32 %v8702, %v8836
        %v8853 = vadd.f32 %v8704, %v8837
        %v8854 = vadd.f32 %v8788, %v8838
        %v8855 = vadd.f32 %v8790, %v8839
        %v8856 = vmul.f32 %v8840, 0.7978846
        %v8857 = vmul.f32 %v8841, 0.7978846
        %v8858 = vmul.f32 %v8842, 0.7978846
        %v8859 = vmul.f32 %v8843, 0.7978846
        %v8860 = vmul.f32 %v8844, 0.7978846
        %v8861 = vmul.f32 %v8845, 0.7978846
        %v8862 = vmul.f32 %v8846, 0.7978846
        %v8863 = vmul.f32 %v8847, 0.7978846
        %v8864 = vmul.f32 %v8848, 0.7978846
        %v8865 = vmul.f32 %v8849, 0.7978846
        %v8866 = vmul.f32 %v8850, 0.7978846
        %v8867 = vmul.f32 %v8851, 0.7978846
        %v8868 = vmul.f32 %v8852, 0.7978846
        %v8869 = vmul.f32 %v8853, 0.7978846
        %v8870 = vmul.f32 %v8854, 0.7978846
        %v8871 = vmul.f32 %v8855, 0.7978846
        %v8872 = vtanh.pop %v8856
        %v8873 = vtanh.pop %v8857
        %v8874 = vtanh.pop %v8858
        %v8875 = vtanh.pop %v8859
        %v8876 = vtanh.pop %v8860
        %v8877 = vtanh.pop %v8861
        %v8878 = vtanh.pop %v8862
        %v8879 = vtanh.pop %v8863
        %v8880 = vtanh.pop %v8864
        %v8881 = vtanh.pop %v8865
        %v8882 = vtanh.pop %v8866
        %v8883 = vtanh.pop %v8867
        %v8884 = vtanh.pop %v8868
        %v8885 = vtanh.pop %v8869
        %v8886 = vtanh.pop %v8870
        %v8887 = vtanh.pop %v8871
        %v8888 = vadd.f32 %v8872, 1.0
        %v8889 = vadd.f32 %v8873, 1.0
        %v8890 = vadd.f32 %v8874, 1.0
        %v8891 = vadd.f32 %v8875, 1.0
        %v8892 = vadd.f32 %v8876, 1.0
        %v8893 = vadd.f32 %v8877, 1.0
        %v8894 = vadd.f32 %v8878, 1.0
        %v8895 = vadd.f32 %v8879, 1.0
        %v8896 = vadd.f32 %v8880, 1.0
        %v8897 = vadd.f32 %v8881, 1.0
        %v8898 = vadd.f32 %v8882, 1.0
        %v8899 = vadd.f32 %v8883, 1.0
        %v8900 = vadd.f32 %v8884, 1.0
        %v8901 = vadd.f32 %v8885, 1.0
        %v8902 = vadd.f32 %v8886, 1.0
        %v8903 = vadd.f32 %v8887, 1.0
        %v8904 = vmul.f32 %v8888, 0.5
        %v8905 = vmul.f32 %v8889, 0.5
        %v8906 = vmul.f32 %v8890, 0.5
        %v8907 = vmul.f32 %v8891, 0.5
        %v8908 = vmul.f32 %v8892, 0.5
        %v8909 = vmul.f32 %v8893, 0.5
        %v8910 = vmul.f32 %v8894, 0.5
        %v8911 = vmul.f32 %v8895, 0.5
        %v8912 = vmul.f32 %v8896, 0.5
        %v8913 = vmul.f32 %v8897, 0.5
        %v8914 = vmul.f32 %v8898, 0.5
        %v8915 = vmul.f32 %v8899, 0.5
        %v8916 = vmul.f32 %v8900, 0.5
        %v8917 = vmul.f32 %v8901, 0.5
        %v8918 = vmul.f32 %v8902, 0.5
        %v8919 = vmul.f32 %v8903, 0.5
        %v8920 = vmul.f32 %v8526, %v8904
        %v8921 = vmul.f32 %v8528, %v8905
        %v8922 = vmul.f32 %v8612, %v8906
        %v8923 = vmul.f32 %v8614, %v8907
        %v8924 = vmul.f32 %v8698, %v8908
        %v8925 = vmul.f32 %v8700, %v8909
        %v8926 = vmul.f32 %v8784, %v8910
        %v8927 = vmul.f32 %v8786, %v8911
        %v8928 = vmul.f32 %v8530, %v8912
        %v8929 = vmul.f32 %v8532, %v8913
        %v8930 = vmul.f32 %v8616, %v8914
        %v8931 = vmul.f32 %v8618, %v8915
        %v8932 = vmul.f32 %v8702, %v8916
        %v8933 = vmul.f32 %v8704, %v8917
        %v8934 = vmul.f32 %v8788, %v8918
        %v8935 = vmul.f32 %v8790, %v8919
        %v8936 = vpack.c.bf16 %v8928, %v8920
        %v8937 = vpack.c.bf16 %v8929, %v8921
        %v8938 = vpack.c.bf16 %v8930, %v8922
        %v8939 = vpack.c.bf16 %v8931, %v8923
        %v8940 = vpack.c.bf16 %v8932, %v8924
        %v8941 = vpack.c.bf16 %v8933, %v8925
        %v8942 = vpack.c.bf16 %v8934, %v8926
        %v8943 = vpack.c.bf16 %v8935, %v8927
        %v8944 = vld [vmem:[%s833] sm:$0xff]
        %v8945 = vld [vmem:[%s833 + $0x8] sm:$0xff]
        %v8946 = vld [vmem:[%s833 + $0x10] sm:$0xff]
        %v8947 = vld [vmem:[%s833 + $0x18] sm:$0xff]
        %v8948 = vld [vmem:[%s833 + $0x20] sm:$0xff]
        %v8949 = vld [vmem:[%s833 + $0x28] sm:$0xff]
        %v8950 = vld [vmem:[%s833 + $0x30] sm:$0xff]
        %v8951 = vld [vmem:[%s833 + $0x38] sm:$0xff]
        %v8952 = vld [vmem:[%s833 + $0x40] sm:$0xff]
        %v8953 = vld [vmem:[%s833 + $0x48] sm:$0xff]
        %v8954 = vld [vmem:[%s833 + $0x50] sm:$0xff]
        %v8955 = vld [vmem:[%s833 + $0x58] sm:$0xff]
        %v8956 = vld [vmem:[%s833 + $0x60] sm:$0xff]
        %v8957 = vld [vmem:[%s833 + $0x68] sm:$0xff]
        %v8958 = vld [vmem:[%s833 + $0x70] sm:$0xff]
        %v8959 = vld [vmem:[%s833 + $0x78] sm:$0xff]
        %v8960 = vld [vmem:[%s833 + $0x80] sm:$0xff]
        %v8961 = vld [vmem:[%s833 + $0x88] sm:$0xff]
        %v8962 = vld [vmem:[%s833 + $0x90] sm:$0xff]
        %v8963 = vld [vmem:[%s833 + $0x98] sm:$0xff]
        %v8964 = vld [vmem:[%s833 + $0xa0] sm:$0xff]
        %v8965 = vld [vmem:[%s833 + $0xa8] sm:$0xff]
        %v8966 = vld [vmem:[%s833 + $0xb0] sm:$0xff]
        %v8967 = vld [vmem:[%s833 + $0xb8] sm:$0xff]
        %v8968 = vld [vmem:[%s833 + $0xc0] sm:$0xff]
        %v8969 = vld [vmem:[%s833 + $0xc8] sm:$0xff]
        %v8970 = vld [vmem:[%s833 + $0xd0] sm:$0xff]
        %v8971 = vld [vmem:[%s833 + $0xd8] sm:$0xff]
        %v8972 = vld [vmem:[%s833 + $0xe0] sm:$0xff]
        %v8973 = vld [vmem:[%s833 + $0xe8] sm:$0xff]
        %v8974 = vld [vmem:[%s833 + $0xf0] sm:$0xff]
        %v8975 = vld [vmem:[%s833 + $0xf8] sm:$0xff]
        %v8976 = vld [vmem:[%s833 + $0x100] sm:$0xff]
        %v8977 = vld [vmem:[%s833 + $0x108] sm:$0xff]
        %v8978 = vld [vmem:[%s833 + $0x110] sm:$0xff]
        %v8979 = vld [vmem:[%s833 + $0x118] sm:$0xff]
        %v8980 = vld [vmem:[%s833 + $0x120] sm:$0xff]
        %v8981 = vld [vmem:[%s833 + $0x128] sm:$0xff]
        %v8982 = vld [vmem:[%s833 + $0x130] sm:$0xff]
        %v8983 = vld [vmem:[%s833 + $0x138] sm:$0xff]
        %v8984 = vld [vmem:[%s833 + $0x140] sm:$0xff]
        %v8985 = vld [vmem:[%s833 + $0x148] sm:$0xff]
        %v8986 = vld [vmem:[%s833 + $0x150] sm:$0xff]
        %v8987 = vld [vmem:[%s833 + $0x158] sm:$0xff]
        %v8988 = vld [vmem:[%s833 + $0x160] sm:$0xff]
        %v8989 = vld [vmem:[%s833 + $0x168] sm:$0xff]
        %v8990 = vld [vmem:[%s833 + $0x170] sm:$0xff]
        %v8991 = vld [vmem:[%s833 + $0x178] sm:$0xff]
        %v8992 = vld [vmem:[%s833 + $0x180] sm:$0xff]
        %v8993 = vld [vmem:[%s833 + $0x188] sm:$0xff]
        %v8994 = vld [vmem:[%s833 + $0x190] sm:$0xff]
        %v8995 = vld [vmem:[%s833 + $0x198] sm:$0xff]
        %v8996 = vld [vmem:[%s833 + $0x1a0] sm:$0xff]
        %v8997 = vld [vmem:[%s833 + $0x1a8] sm:$0xff]
        %v8998 = vld [vmem:[%s833 + $0x1b0] sm:$0xff]
        %v8999 = vld [vmem:[%s833 + $0x1b8] sm:$0xff]
        %v9000 = vld [vmem:[%s833 + $0x1c0] sm:$0xff]
        %v9001 = vld [vmem:[%s833 + $0x1c8] sm:$0xff]
        %v9002 = vld [vmem:[%s833 + $0x1d0] sm:$0xff]
        %v9003 = vld [vmem:[%s833 + $0x1d8] sm:$0xff]
        %v9004 = vld [vmem:[%s833 + $0x1e0] sm:$0xff]
        %v9005 = vld [vmem:[%s833 + $0x1e8] sm:$0xff]
        %v9006 = vld [vmem:[%s833 + $0x1f0] sm:$0xff]
        %v9007 = vld [vmem:[%s833 + $0x1f8] sm:$0xff]
        %v9008 = vld [vmem:[%s833 + $0x200] sm:$0xff]
        %v9009 = vld [vmem:[%s833 + $0x208] sm:$0xff]
        %v9010 = vld [vmem:[%s833 + $0x210] sm:$0xff]
        %v9011 = vld [vmem:[%s833 + $0x218] sm:$0xff]
        %v9012 = vld [vmem:[%s833 + $0x220] sm:$0xff]
        %v9013 = vld [vmem:[%s833 + $0x228] sm:$0xff]
        %v9014 = vld [vmem:[%s833 + $0x230] sm:$0xff]
        %v9015 = vld [vmem:[%s833 + $0x238] sm:$0xff]
        %v9016 = vld [vmem:[%s833 + $0x240] sm:$0xff]
        %v9017 = vld [vmem:[%s833 + $0x248] sm:$0xff]
        %v9018 = vld [vmem:[%s833 + $0x250] sm:$0xff]
        %v9019 = vld [vmem:[%s833 + $0x258] sm:$0xff]
        %v9020 = vld [vmem:[%s833 + $0x260] sm:$0xff]
        %v9021 = vld [vmem:[%s833 + $0x268] sm:$0xff]
        %v9022 = vld [vmem:[%s833 + $0x270] sm:$0xff]
        %v9023 = vld [vmem:[%s833 + $0x278] sm:$0xff]
        %v9024 = vld [vmem:[%s833 + $0x280] sm:$0xff]
        %v9025 = vld [vmem:[%s833 + $0x288] sm:$0xff]
        %v9026 = vld [vmem:[%s833 + $0x290] sm:$0xff]
        %v9027 = vld [vmem:[%s833 + $0x298] sm:$0xff]
        %v9028 = vld [vmem:[%s833 + $0x2a0] sm:$0xff]
        %v9029 = vld [vmem:[%s833 + $0x2a8] sm:$0xff]
        %v9030 = vld [vmem:[%s833 + $0x2b0] sm:$0xff]
        %v9031 = vld [vmem:[%s833 + $0x2b8] sm:$0xff]
        %v9032 = vld [vmem:[%s833 + $0x2c0] sm:$0xff]
        %v9033 = vld [vmem:[%s833 + $0x2c8] sm:$0xff]
        %v9034 = vld [vmem:[%s833 + $0x2d0] sm:$0xff]
        %v9035 = vld [vmem:[%s833 + $0x2d8] sm:$0xff]
        %v9036 = vld [vmem:[%s833 + $0x2e0] sm:$0xff]
        %v9037 = vld [vmem:[%s833 + $0x2e8] sm:$0xff]
        %v9038 = vld [vmem:[%s833 + $0x2f0] sm:$0xff]
        %v9039 = vld [vmem:[%s833 + $0x2f8] sm:$0xff]
        %v9040 = vld [vmem:[%s833 + $0x300] sm:$0xff]
        %v9041 = vld [vmem:[%s833 + $0x308] sm:$0xff]
        %v9042 = vld [vmem:[%s833 + $0x310] sm:$0xff]
        %v9043 = vld [vmem:[%s833 + $0x318] sm:$0xff]
        %v9044 = vld [vmem:[%s833 + $0x320] sm:$0xff]
        %v9045 = vld [vmem:[%s833 + $0x328] sm:$0xff]
        %v9046 = vld [vmem:[%s833 + $0x330] sm:$0xff]
        %v9047 = vld [vmem:[%s833 + $0x338] sm:$0xff]
        %v9048 = vld [vmem:[%s833 + $0x340] sm:$0xff]
        %v9049 = vld [vmem:[%s833 + $0x348] sm:$0xff]
        %v9050 = vld [vmem:[%s833 + $0x350] sm:$0xff]
        %v9051 = vld [vmem:[%s833 + $0x358] sm:$0xff]
        %v9052 = vld [vmem:[%s833 + $0x360] sm:$0xff]
        %v9053 = vld [vmem:[%s833 + $0x368] sm:$0xff]
        %v9054 = vld [vmem:[%s833 + $0x370] sm:$0xff]
        %v9055 = vld [vmem:[%s833 + $0x378] sm:$0xff]
        %v9056 = vld [vmem:[%s833 + $0x380] sm:$0xff]
        %v9057 = vld [vmem:[%s833 + $0x388] sm:$0xff]
        %v9058 = vld [vmem:[%s833 + $0x390] sm:$0xff]
        %v9059 = vld [vmem:[%s833 + $0x398] sm:$0xff]
        %v9060 = vld [vmem:[%s833 + $0x3a0] sm:$0xff]
        %v9061 = vld [vmem:[%s833 + $0x3a8] sm:$0xff]
        %v9062 = vld [vmem:[%s833 + $0x3b0] sm:$0xff]
        %v9063 = vld [vmem:[%s833 + $0x3b8] sm:$0xff]
        %v9064 = vld [vmem:[%s833 + $0x3c0] sm:$0xff]
        %v9065 = vld [vmem:[%s833 + $0x3c8] sm:$0xff]
        %v9066 = vld [vmem:[%s833 + $0x3d0] sm:$0xff]
        %v9067 = vld [vmem:[%s833 + $0x3d8] sm:$0xff]
        %v9068 = vld [vmem:[%s833 + $0x3e0] sm:$0xff]
        %v9069 = vld [vmem:[%s833 + $0x3e8] sm:$0xff]
        %v9070 = vld [vmem:[%s833 + $0x3f0] sm:$0xff]
        %v9071 = vld [vmem:[%s833 + $0x3f8] sm:$0xff]
        %v9072 = vld [vmem:[%s833 + $0x400] sm:$0xff]
        %v9073 = vld [vmem:[%s833 + $0x408] sm:$0xff]
        %v9074 = vld [vmem:[%s833 + $0x410] sm:$0xff]
        %v9075 = vld [vmem:[%s833 + $0x418] sm:$0xff]
        %v9076 = vld [vmem:[%s833 + $0x420] sm:$0xff]
        %v9077 = vld [vmem:[%s833 + $0x428] sm:$0xff]
        %v9078 = vld [vmem:[%s833 + $0x430] sm:$0xff]
        %v9079 = vld [vmem:[%s833 + $0x438] sm:$0xff]
        %v9080 = vld [vmem:[%s833 + $0x440] sm:$0xff]
        %v9081 = vld [vmem:[%s833 + $0x448] sm:$0xff]
        %v9082 = vld [vmem:[%s833 + $0x450] sm:$0xff]
        %v9083 = vld [vmem:[%s833 + $0x458] sm:$0xff]
        %v9084 = vld [vmem:[%s833 + $0x460] sm:$0xff]
        %v9085 = vld [vmem:[%s833 + $0x468] sm:$0xff]
        %v9086 = vld [vmem:[%s833 + $0x470] sm:$0xff]
        %v9087 = vld [vmem:[%s833 + $0x478] sm:$0xff]
        %v9088 = vld [vmem:[%s833 + $0x480] sm:$0xff]
        %v9089 = vld [vmem:[%s833 + $0x488] sm:$0xff]
        %v9090 = vld [vmem:[%s833 + $0x490] sm:$0xff]
        %v9091 = vld [vmem:[%s833 + $0x498] sm:$0xff]
        %v9092 = vld [vmem:[%s833 + $0x4a0] sm:$0xff]
        %v9093 = vld [vmem:[%s833 + $0x4a8] sm:$0xff]
        %v9094 = vld [vmem:[%s833 + $0x4b0] sm:$0xff]
        %v9095 = vld [vmem:[%s833 + $0x4b8] sm:$0xff]
        %v9096 = vld [vmem:[%s833 + $0x4c0] sm:$0xff]
        %v9097 = vld [vmem:[%s833 + $0x4c8] sm:$0xff]
        %v9098 = vld [vmem:[%s833 + $0x4d0] sm:$0xff]
        %v9099 = vld [vmem:[%s833 + $0x4d8] sm:$0xff]
        %v9100 = vld [vmem:[%s833 + $0x4e0] sm:$0xff]
        %v9101 = vld [vmem:[%s833 + $0x4e8] sm:$0xff]
        %v9102 = vld [vmem:[%s833 + $0x4f0] sm:$0xff]
        %v9103 = vld [vmem:[%s833 + $0x4f8] sm:$0xff]
        %v9104 = vld [vmem:[%s833 + $0x500] sm:$0xff]
        %v9105 = vld [vmem:[%s833 + $0x508] sm:$0xff]
        %v9106 = vld [vmem:[%s833 + $0x510] sm:$0xff]
        %v9107 = vld [vmem:[%s833 + $0x518] sm:$0xff]
        %v9108 = vld [vmem:[%s833 + $0x520] sm:$0xff]
        %v9109 = vld [vmem:[%s833 + $0x528] sm:$0xff]
        %v9110 = vld [vmem:[%s833 + $0x530] sm:$0xff]
        %v9111 = vld [vmem:[%s833 + $0x538] sm:$0xff]
        %v9112 = vld [vmem:[%s833 + $0x540] sm:$0xff]
        %v9113 = vld [vmem:[%s833 + $0x548] sm:$0xff]
        %v9114 = vld [vmem:[%s833 + $0x550] sm:$0xff]
        %v9115 = vld [vmem:[%s833 + $0x558] sm:$0xff]
        %v9116 = vld [vmem:[%s833 + $0x560] sm:$0xff]
        %v9117 = vld [vmem:[%s833 + $0x568] sm:$0xff]
        %v9118 = vld [vmem:[%s833 + $0x570] sm:$0xff]
        %v9119 = vld [vmem:[%s833 + $0x578] sm:$0xff]
        %v9120 = vld [vmem:[%s833 + $0x580] sm:$0xff]
        %v9121 = vld [vmem:[%s833 + $0x588] sm:$0xff]
        %v9122 = vld [vmem:[%s833 + $0x590] sm:$0xff]
        %v9123 = vld [vmem:[%s833 + $0x598] sm:$0xff]
        %v9124 = vld [vmem:[%s833 + $0x5a0] sm:$0xff]
        %v9125 = vld [vmem:[%s833 + $0x5a8] sm:$0xff]
        %v9126 = vld [vmem:[%s833 + $0x5b0] sm:$0xff]
        %v9127 = vld [vmem:[%s833 + $0x5b8] sm:$0xff]
        %v9128 = vld [vmem:[%s833 + $0x5c0] sm:$0xff]
        %v9129 = vld [vmem:[%s833 + $0x5c8] sm:$0xff]
        %v9130 = vld [vmem:[%s833 + $0x5d0] sm:$0xff]
        %v9131 = vld [vmem:[%s833 + $0x5d8] sm:$0xff]
        %v9132 = vld [vmem:[%s833 + $0x5e0] sm:$0xff]
        %v9133 = vld [vmem:[%s833 + $0x5e8] sm:$0xff]
        %v9134 = vld [vmem:[%s833 + $0x5f0] sm:$0xff]
        %v9135 = vld [vmem:[%s833 + $0x5f8] sm:$0xff]
        %v9136 = vld [vmem:[%s833 + $0x600] sm:$0xff]
        %v9137 = vld [vmem:[%s833 + $0x608] sm:$0xff]
        %v9138 = vld [vmem:[%s833 + $0x610] sm:$0xff]
        %v9139 = vld [vmem:[%s833 + $0x618] sm:$0xff]
        %v9140 = vld [vmem:[%s833 + $0x620] sm:$0xff]
        %v9141 = vld [vmem:[%s833 + $0x628] sm:$0xff]
        %v9142 = vld [vmem:[%s833 + $0x630] sm:$0xff]
        %v9143 = vld [vmem:[%s833 + $0x638] sm:$0xff]
        %v9144 = vld [vmem:[%s833 + $0x640] sm:$0xff]
        %v9145 = vld [vmem:[%s833 + $0x648] sm:$0xff]
        %v9146 = vld [vmem:[%s833 + $0x650] sm:$0xff]
        %v9147 = vld [vmem:[%s833 + $0x658] sm:$0xff]
        %v9148 = vld [vmem:[%s833 + $0x660] sm:$0xff]
        %v9149 = vld [vmem:[%s833 + $0x668] sm:$0xff]
        %v9150 = vld [vmem:[%s833 + $0x670] sm:$0xff]
        %v9151 = vld [vmem:[%s833 + $0x678] sm:$0xff]
        %v9152 = vld [vmem:[%s833 + $0x680] sm:$0xff]
        %v9153 = vld [vmem:[%s833 + $0x688] sm:$0xff]
        %v9154 = vld [vmem:[%s833 + $0x690] sm:$0xff]
        %v9155 = vld [vmem:[%s833 + $0x698] sm:$0xff]
        %v9156 = vld [vmem:[%s833 + $0x6a0] sm:$0xff]
        %v9157 = vld [vmem:[%s833 + $0x6a8] sm:$0xff]
        %v9158 = vld [vmem:[%s833 + $0x6b0] sm:$0xff]
        %v9159 = vld [vmem:[%s833 + $0x6b8] sm:$0xff]
        %v9160 = vld [vmem:[%s833 + $0x6c0] sm:$0xff]
        %v9161 = vld [vmem:[%s833 + $0x6c8] sm:$0xff]
        %v9162 = vld [vmem:[%s833 + $0x6d0] sm:$0xff]
        %v9163 = vld [vmem:[%s833 + $0x6d8] sm:$0xff]
        %v9164 = vld [vmem:[%s833 + $0x6e0] sm:$0xff]
        %v9165 = vld [vmem:[%s833 + $0x6e8] sm:$0xff]
        %v9166 = vld [vmem:[%s833 + $0x6f0] sm:$0xff]
        %v9167 = vld [vmem:[%s833 + $0x6f8] sm:$0xff]
        %v9168 = vld [vmem:[%s833 + $0x700] sm:$0xff]
        %v9169 = vld [vmem:[%s833 + $0x708] sm:$0xff]
        %v9170 = vld [vmem:[%s833 + $0x710] sm:$0xff]
        %v9171 = vld [vmem:[%s833 + $0x718] sm:$0xff]
        %v9172 = vld [vmem:[%s833 + $0x720] sm:$0xff]
        %v9173 = vld [vmem:[%s833 + $0x728] sm:$0xff]
        %v9174 = vld [vmem:[%s833 + $0x730] sm:$0xff]
        %v9175 = vld [vmem:[%s833 + $0x738] sm:$0xff]
        %v9176 = vld [vmem:[%s833 + $0x740] sm:$0xff]
        %v9177 = vld [vmem:[%s833 + $0x748] sm:$0xff]
        %v9178 = vld [vmem:[%s833 + $0x750] sm:$0xff]
        %v9179 = vld [vmem:[%s833 + $0x758] sm:$0xff]
        %v9180 = vld [vmem:[%s833 + $0x760] sm:$0xff]
        %v9181 = vld [vmem:[%s833 + $0x768] sm:$0xff]
        %v9182 = vld [vmem:[%s833 + $0x770] sm:$0xff]
        %v9183 = vld [vmem:[%s833 + $0x778] sm:$0xff]
        %v9184 = vld [vmem:[%s833 + $0x780] sm:$0xff]
        %v9185 = vld [vmem:[%s833 + $0x788] sm:$0xff]
        %v9186 = vld [vmem:[%s833 + $0x790] sm:$0xff]
        %v9187 = vld [vmem:[%s833 + $0x798] sm:$0xff]
        %v9188 = vld [vmem:[%s833 + $0x7a0] sm:$0xff]
        %v9189 = vld [vmem:[%s833 + $0x7a8] sm:$0xff]
        %v9190 = vld [vmem:[%s833 + $0x7b0] sm:$0xff]
        %v9191 = vld [vmem:[%s833 + $0x7b8] sm:$0xff]
        %v9192 = vld [vmem:[%s833 + $0x7c0] sm:$0xff]
        %v9193 = vld [vmem:[%s833 + $0x7c8] sm:$0xff]
        %v9194 = vld [vmem:[%s833 + $0x7d0] sm:$0xff]
        %v9195 = vld [vmem:[%s833 + $0x7d8] sm:$0xff]
        %v9196 = vld [vmem:[%s833 + $0x7e0] sm:$0xff]
        %v9197 = vld [vmem:[%s833 + $0x7e8] sm:$0xff]
        %v9198 = vld [vmem:[%s833 + $0x7f0] sm:$0xff]
        %v9199 = vld [vmem:[%s833 + $0x7f8] sm:$0xff]
        %v9200 = vld [vmem:[%s842] sm:$0xf]
        %v9202 = vlaneseq
        %v9203 = vshrl.u32 %v9202, 7
        %v9204 = vsub.s32 0, %v9203
        %v9205 = vrot.slane %v9200, %v9204
        %v9206 = vlaneseq
        %v9207 = vshrl.u32 %v9206, 7
        %v9208 = vsub.s32 1, %v9207
        %v9209 = vrot.slane %v9200, %v9208
        %v9210 = vlaneseq
        %v9211 = vshrl.u32 %v9210, 7
        %v9212 = vsub.s32 2, %v9211
        %v9213 = vrot.slane %v9200, %v9212
        %v9214 = vlaneseq
        %v9215 = vshrl.u32 %v9214, 7
        %v9216 = vsub.s32 3, %v9215
        %v9217 = vrot.slane %v9200, %v9216
        %v9478 = vunpack.c.l.b16 %v8944
        %v9479 = vunpack.c.h.b16 %v8944
        %v9480 = vunpack.c.l.b16 %v8945
        %v9481 = vunpack.c.h.b16 %v8945
        %v9482 = vunpack.c.l.b16 %v8946
        %v9483 = vunpack.c.h.b16 %v8946
        %v9484 = vunpack.c.l.b16 %v8947
        %v9485 = vunpack.c.h.b16 %v8947
        %v9486 = vunpack.c.l.b16 %v8948
        %v9487 = vunpack.c.h.b16 %v8948
        %v9488 = vunpack.c.l.b16 %v8949
        %v9489 = vunpack.c.h.b16 %v8949
        %v9490 = vunpack.c.l.b16 %v8950
        %v9491 = vunpack.c.h.b16 %v8950
        %v9492 = vunpack.c.l.b16 %v8951
        %v9493 = vunpack.c.h.b16 %v8951
        %v9494 = vunpack.c.l.b16 %v8952
        %v9495 = vunpack.c.h.b16 %v8952
        %v9496 = vunpack.c.l.b16 %v8953
        %v9497 = vunpack.c.h.b16 %v8953
        %v9498 = vunpack.c.l.b16 %v8954
        %v9499 = vunpack.c.h.b16 %v8954
        %v9500 = vunpack.c.l.b16 %v8955
        %v9501 = vunpack.c.h.b16 %v8955
        %v9502 = vunpack.c.l.b16 %v8956
        %v9503 = vunpack.c.h.b16 %v8956
        %v9504 = vunpack.c.l.b16 %v8957
        %v9505 = vunpack.c.h.b16 %v8957
        %v9506 = vunpack.c.l.b16 %v8958
        %v9507 = vunpack.c.h.b16 %v8958
        %v9508 = vunpack.c.l.b16 %v8959
        %v9509 = vunpack.c.h.b16 %v8959
        %v9510 = vunpack.c.l.b16 %v8960
        %v9511 = vunpack.c.h.b16 %v8960
        %v9512 = vunpack.c.l.b16 %v8961
        %v9513 = vunpack.c.h.b16 %v8961
        %v9514 = vunpack.c.l.b16 %v8962
        %v9515 = vunpack.c.h.b16 %v8962
        %v9516 = vunpack.c.l.b16 %v8963
        %v9517 = vunpack.c.h.b16 %v8963
        %v9518 = vunpack.c.l.b16 %v8964
        %v9519 = vunpack.c.h.b16 %v8964
        %v9520 = vunpack.c.l.b16 %v8965
        %v9521 = vunpack.c.h.b16 %v8965
        %v9522 = vunpack.c.l.b16 %v8966
        %v9523 = vunpack.c.h.b16 %v8966
        %v9524 = vunpack.c.l.b16 %v8967
        %v9525 = vunpack.c.h.b16 %v8967
        %v9526 = vunpack.c.l.b16 %v8968
        %v9527 = vunpack.c.h.b16 %v8968
        %v9528 = vunpack.c.l.b16 %v8969
        %v9529 = vunpack.c.h.b16 %v8969
        %v9530 = vunpack.c.l.b16 %v8970
        %v9531 = vunpack.c.h.b16 %v8970
        %v9532 = vunpack.c.l.b16 %v8971
        %v9533 = vunpack.c.h.b16 %v8971
        %v9534 = vunpack.c.l.b16 %v8972
        %v9535 = vunpack.c.h.b16 %v8972
        %v9536 = vunpack.c.l.b16 %v8973
        %v9537 = vunpack.c.h.b16 %v8973
        %v9538 = vunpack.c.l.b16 %v8974
        %v9539 = vunpack.c.h.b16 %v8974
        %v9540 = vunpack.c.l.b16 %v8975
        %v9541 = vunpack.c.h.b16 %v8975
        %v9542 = vunpack.c.l.b16 %v8976
        %v9543 = vunpack.c.h.b16 %v8976
        %v9544 = vunpack.c.l.b16 %v8977
        %v9545 = vunpack.c.h.b16 %v8977
        %v9546 = vunpack.c.l.b16 %v8978
        %v9547 = vunpack.c.h.b16 %v8978
        %v9548 = vunpack.c.l.b16 %v8979
        %v9549 = vunpack.c.h.b16 %v8979
        %v9550 = vunpack.c.l.b16 %v8980
        %v9551 = vunpack.c.h.b16 %v8980
        %v9552 = vunpack.c.l.b16 %v8981
        %v9553 = vunpack.c.h.b16 %v8981
        %v9554 = vunpack.c.l.b16 %v8982
        %v9555 = vunpack.c.h.b16 %v8982
        %v9556 = vunpack.c.l.b16 %v8983
        %v9557 = vunpack.c.h.b16 %v8983
        %v9558 = vunpack.c.l.b16 %v8984
        %v9559 = vunpack.c.h.b16 %v8984
        %v9560 = vunpack.c.l.b16 %v8985
        %v9561 = vunpack.c.h.b16 %v8985
        %v9562 = vunpack.c.l.b16 %v8986
        %v9563 = vunpack.c.h.b16 %v8986
        %v9564 = vunpack.c.l.b16 %v8987
        %v9565 = vunpack.c.h.b16 %v8987
        %v9566 = vunpack.c.l.b16 %v8988
        %v9567 = vunpack.c.h.b16 %v8988
        %v9568 = vunpack.c.l.b16 %v8989
        %v9569 = vunpack.c.h.b16 %v8989
        %v9570 = vunpack.c.l.b16 %v8990
        %v9571 = vunpack.c.h.b16 %v8990
        %v9572 = vunpack.c.l.b16 %v8991
        %v9573 = vunpack.c.h.b16 %v8991
        %v9574 = vunpack.c.l.b16 %v8992
        %v9575 = vunpack.c.h.b16 %v8992
        %v9576 = vunpack.c.l.b16 %v8993
        %v9577 = vunpack.c.h.b16 %v8993
        %v9578 = vunpack.c.l.b16 %v8994
        %v9579 = vunpack.c.h.b16 %v8994
        %v9580 = vunpack.c.l.b16 %v8995
        %v9581 = vunpack.c.h.b16 %v8995
        %v9582 = vunpack.c.l.b16 %v8996
        %v9583 = vunpack.c.h.b16 %v8996
        %v9584 = vunpack.c.l.b16 %v8997
        %v9585 = vunpack.c.h.b16 %v8997
        %v9586 = vunpack.c.l.b16 %v8998
        %v9587 = vunpack.c.h.b16 %v8998
        %v9588 = vunpack.c.l.b16 %v8999
        %v9589 = vunpack.c.h.b16 %v8999
        %v9590 = vunpack.c.l.b16 %v9000
        %v9591 = vunpack.c.h.b16 %v9000
        %v9592 = vunpack.c.l.b16 %v9001
        %v9593 = vunpack.c.h.b16 %v9001
        %v9594 = vunpack.c.l.b16 %v9002
        %v9595 = vunpack.c.h.b16 %v9002
        %v9596 = vunpack.c.l.b16 %v9003
        %v9597 = vunpack.c.h.b16 %v9003
        %v9598 = vunpack.c.l.b16 %v9004
        %v9599 = vunpack.c.h.b16 %v9004
        %v9600 = vunpack.c.l.b16 %v9005
        %v9601 = vunpack.c.h.b16 %v9005
        %v9602 = vunpack.c.l.b16 %v9006
        %v9603 = vunpack.c.h.b16 %v9006
        %v9604 = vunpack.c.l.b16 %v9007
        %v9605 = vunpack.c.h.b16 %v9007
        %v9606 = vunpack.c.l.b16 %v9008
        %v9607 = vunpack.c.h.b16 %v9008
        %v9608 = vunpack.c.l.b16 %v9009
        %v9609 = vunpack.c.h.b16 %v9009
        %v9610 = vunpack.c.l.b16 %v9010
        %v9611 = vunpack.c.h.b16 %v9010
        %v9612 = vunpack.c.l.b16 %v9011
        %v9613 = vunpack.c.h.b16 %v9011
        %v9614 = vunpack.c.l.b16 %v9012
        %v9615 = vunpack.c.h.b16 %v9012
        %v9616 = vunpack.c.l.b16 %v9013
        %v9617 = vunpack.c.h.b16 %v9013
        %v9618 = vunpack.c.l.b16 %v9014
        %v9619 = vunpack.c.h.b16 %v9014
        %v9620 = vunpack.c.l.b16 %v9015
        %v9621 = vunpack.c.h.b16 %v9015
        %v9622 = vunpack.c.l.b16 %v9016
        %v9623 = vunpack.c.h.b16 %v9016
        %v9624 = vunpack.c.l.b16 %v9017
        %v9625 = vunpack.c.h.b16 %v9017
        %v9626 = vunpack.c.l.b16 %v9018
        %v9627 = vunpack.c.h.b16 %v9018
        %v9628 = vunpack.c.l.b16 %v9019
        %v9629 = vunpack.c.h.b16 %v9019
        %v9630 = vunpack.c.l.b16 %v9020
        %v9631 = vunpack.c.h.b16 %v9020
        %v9632 = vunpack.c.l.b16 %v9021
        %v9633 = vunpack.c.h.b16 %v9021
        %v9634 = vunpack.c.l.b16 %v9022
        %v9635 = vunpack.c.h.b16 %v9022
        %v9636 = vunpack.c.l.b16 %v9023
        %v9637 = vunpack.c.h.b16 %v9023
        %v9638 = vunpack.c.l.b16 %v9024
        %v9639 = vunpack.c.h.b16 %v9024
        %v9640 = vunpack.c.l.b16 %v9025
        %v9641 = vunpack.c.h.b16 %v9025
        %v9642 = vunpack.c.l.b16 %v9026
        %v9643 = vunpack.c.h.b16 %v9026
        %v9644 = vunpack.c.l.b16 %v9027
        %v9645 = vunpack.c.h.b16 %v9027
        %v9646 = vunpack.c.l.b16 %v9028
        %v9647 = vunpack.c.h.b16 %v9028
        %v9648 = vunpack.c.l.b16 %v9029
        %v9649 = vunpack.c.h.b16 %v9029
        %v9650 = vunpack.c.l.b16 %v9030
        %v9651 = vunpack.c.h.b16 %v9030
        %v9652 = vunpack.c.l.b16 %v9031
        %v9653 = vunpack.c.h.b16 %v9031
        %v9654 = vunpack.c.l.b16 %v9032
        %v9655 = vunpack.c.h.b16 %v9032
        %v9656 = vunpack.c.l.b16 %v9033
        %v9657 = vunpack.c.h.b16 %v9033
        %v9658 = vunpack.c.l.b16 %v9034
        %v9659 = vunpack.c.h.b16 %v9034
        %v9660 = vunpack.c.l.b16 %v9035
        %v9661 = vunpack.c.h.b16 %v9035
        %v9662 = vunpack.c.l.b16 %v9036
        %v9663 = vunpack.c.h.b16 %v9036
        %v9664 = vunpack.c.l.b16 %v9037
        %v9665 = vunpack.c.h.b16 %v9037
        %v9666 = vunpack.c.l.b16 %v9038
        %v9667 = vunpack.c.h.b16 %v9038
        %v9668 = vunpack.c.l.b16 %v9039
        %v9669 = vunpack.c.h.b16 %v9039
        %v9670 = vunpack.c.l.b16 %v9040
        %v9671 = vunpack.c.h.b16 %v9040
        %v9672 = vunpack.c.l.b16 %v9041
        %v9673 = vunpack.c.h.b16 %v9041
        %v9674 = vunpack.c.l.b16 %v9042
        %v9675 = vunpack.c.h.b16 %v9042
        %v9676 = vunpack.c.l.b16 %v9043
        %v9677 = vunpack.c.h.b16 %v9043
        %v9678 = vunpack.c.l.b16 %v9044
        %v9679 = vunpack.c.h.b16 %v9044
        %v9680 = vunpack.c.l.b16 %v9045
        %v9681 = vunpack.c.h.b16 %v9045
        %v9682 = vunpack.c.l.b16 %v9046
        %v9683 = vunpack.c.h.b16 %v9046
        %v9684 = vunpack.c.l.b16 %v9047
        %v9685 = vunpack.c.h.b16 %v9047
        %v9686 = vunpack.c.l.b16 %v9048
        %v9687 = vunpack.c.h.b16 %v9048
        %v9688 = vunpack.c.l.b16 %v9049
        %v9689 = vunpack.c.h.b16 %v9049
        %v9690 = vunpack.c.l.b16 %v9050
        %v9691 = vunpack.c.h.b16 %v9050
        %v9692 = vunpack.c.l.b16 %v9051
        %v9693 = vunpack.c.h.b16 %v9051
        %v9694 = vunpack.c.l.b16 %v9052
        %v9695 = vunpack.c.h.b16 %v9052
        %v9696 = vunpack.c.l.b16 %v9053
        %v9697 = vunpack.c.h.b16 %v9053
        %v9698 = vunpack.c.l.b16 %v9054
        %v9699 = vunpack.c.h.b16 %v9054
        %v9700 = vunpack.c.l.b16 %v9055
        %v9701 = vunpack.c.h.b16 %v9055
        %v9702 = vunpack.c.l.b16 %v9056
        %v9703 = vunpack.c.h.b16 %v9056
        %v9704 = vunpack.c.l.b16 %v9057
        %v9705 = vunpack.c.h.b16 %v9057
        %v9706 = vunpack.c.l.b16 %v9058
        %v9707 = vunpack.c.h.b16 %v9058
        %v9708 = vunpack.c.l.b16 %v9059
        %v9709 = vunpack.c.h.b16 %v9059
        %v9710 = vunpack.c.l.b16 %v9060
        %v9711 = vunpack.c.h.b16 %v9060
        %v9712 = vunpack.c.l.b16 %v9061
        %v9713 = vunpack.c.h.b16 %v9061
        %v9714 = vunpack.c.l.b16 %v9062
        %v9715 = vunpack.c.h.b16 %v9062
        %v9716 = vunpack.c.l.b16 %v9063
        %v9717 = vunpack.c.h.b16 %v9063
        %v9718 = vunpack.c.l.b16 %v9064
        %v9719 = vunpack.c.h.b16 %v9064
        %v9720 = vunpack.c.l.b16 %v9065
        %v9721 = vunpack.c.h.b16 %v9065
        %v9722 = vunpack.c.l.b16 %v9066
        %v9723 = vunpack.c.h.b16 %v9066
        %v9724 = vunpack.c.l.b16 %v9067
        %v9725 = vunpack.c.h.b16 %v9067
        %v9726 = vunpack.c.l.b16 %v9068
        %v9727 = vunpack.c.h.b16 %v9068
        %v9728 = vunpack.c.l.b16 %v9069
        %v9729 = vunpack.c.h.b16 %v9069
        %v9730 = vunpack.c.l.b16 %v9070
        %v9731 = vunpack.c.h.b16 %v9070
        %v9732 = vunpack.c.l.b16 %v9071
        %v9733 = vunpack.c.h.b16 %v9071
        %v9734 = vunpack.c.l.b16 %v9072
        %v9735 = vunpack.c.h.b16 %v9072
        %v9736 = vunpack.c.l.b16 %v9073
        %v9737 = vunpack.c.h.b16 %v9073
        %v9738 = vunpack.c.l.b16 %v9074
        %v9739 = vunpack.c.h.b16 %v9074
        %v9740 = vunpack.c.l.b16 %v9075
        %v9741 = vunpack.c.h.b16 %v9075
        %v9742 = vunpack.c.l.b16 %v9076
        %v9743 = vunpack.c.h.b16 %v9076
        %v9744 = vunpack.c.l.b16 %v9077
        %v9745 = vunpack.c.h.b16 %v9077
        %v9746 = vunpack.c.l.b16 %v9078
        %v9747 = vunpack.c.h.b16 %v9078
        %v9748 = vunpack.c.l.b16 %v9079
        %v9749 = vunpack.c.h.b16 %v9079
        %v9750 = vunpack.c.l.b16 %v9080
        %v9751 = vunpack.c.h.b16 %v9080
        %v9752 = vunpack.c.l.b16 %v9081
        %v9753 = vunpack.c.h.b16 %v9081
        %v9754 = vunpack.c.l.b16 %v9082
        %v9755 = vunpack.c.h.b16 %v9082
        %v9756 = vunpack.c.l.b16 %v9083
        %v9757 = vunpack.c.h.b16 %v9083
        %v9758 = vunpack.c.l.b16 %v9084
        %v9759 = vunpack.c.h.b16 %v9084
        %v9760 = vunpack.c.l.b16 %v9085
        %v9761 = vunpack.c.h.b16 %v9085
        %v9762 = vunpack.c.l.b16 %v9086
        %v9763 = vunpack.c.h.b16 %v9086
        %v9764 = vunpack.c.l.b16 %v9087
        %v9765 = vunpack.c.h.b16 %v9087
        %v9766 = vunpack.c.l.b16 %v9088
        %v9767 = vunpack.c.h.b16 %v9088
        %v9768 = vunpack.c.l.b16 %v9089
        %v9769 = vunpack.c.h.b16 %v9089
        %v9770 = vunpack.c.l.b16 %v9090
        %v9771 = vunpack.c.h.b16 %v9090
        %v9772 = vunpack.c.l.b16 %v9091
        %v9773 = vunpack.c.h.b16 %v9091
        %v9774 = vunpack.c.l.b16 %v9092
        %v9775 = vunpack.c.h.b16 %v9092
        %v9776 = vunpack.c.l.b16 %v9093
        %v9777 = vunpack.c.h.b16 %v9093
        %v9778 = vunpack.c.l.b16 %v9094
        %v9779 = vunpack.c.h.b16 %v9094
        %v9780 = vunpack.c.l.b16 %v9095
        %v9781 = vunpack.c.h.b16 %v9095
        %v9782 = vunpack.c.l.b16 %v9096
        %v9783 = vunpack.c.h.b16 %v9096
        %v9784 = vunpack.c.l.b16 %v9097
        %v9785 = vunpack.c.h.b16 %v9097
        %v9786 = vunpack.c.l.b16 %v9098
        %v9787 = vunpack.c.h.b16 %v9098
        %v9788 = vunpack.c.l.b16 %v9099
        %v9789 = vunpack.c.h.b16 %v9099
        %v9790 = vunpack.c.l.b16 %v9100
        %v9791 = vunpack.c.h.b16 %v9100
        %v9792 = vunpack.c.l.b16 %v9101
        %v9793 = vunpack.c.h.b16 %v9101
        %v9794 = vunpack.c.l.b16 %v9102
        %v9795 = vunpack.c.h.b16 %v9102
        %v9796 = vunpack.c.l.b16 %v9103
        %v9797 = vunpack.c.h.b16 %v9103
        %v9798 = vunpack.c.l.b16 %v9104
        %v9799 = vunpack.c.h.b16 %v9104
        %v9800 = vunpack.c.l.b16 %v9105
        %v9801 = vunpack.c.h.b16 %v9105
        %v9802 = vunpack.c.l.b16 %v9106
        %v9803 = vunpack.c.h.b16 %v9106
        %v9804 = vunpack.c.l.b16 %v9107
        %v9805 = vunpack.c.h.b16 %v9107
        %v9806 = vunpack.c.l.b16 %v9108
        %v9807 = vunpack.c.h.b16 %v9108
        %v9808 = vunpack.c.l.b16 %v9109
        %v9809 = vunpack.c.h.b16 %v9109
        %v9810 = vunpack.c.l.b16 %v9110
        %v9811 = vunpack.c.h.b16 %v9110
        %v9812 = vunpack.c.l.b16 %v9111
        %v9813 = vunpack.c.h.b16 %v9111
        %v9814 = vunpack.c.l.b16 %v9112
        %v9815 = vunpack.c.h.b16 %v9112
        %v9816 = vunpack.c.l.b16 %v9113
        %v9817 = vunpack.c.h.b16 %v9113
        %v9818 = vunpack.c.l.b16 %v9114
        %v9819 = vunpack.c.h.b16 %v9114
        %v9820 = vunpack.c.l.b16 %v9115
        %v9821 = vunpack.c.h.b16 %v9115
        %v9822 = vunpack.c.l.b16 %v9116
        %v9823 = vunpack.c.h.b16 %v9116
        %v9824 = vunpack.c.l.b16 %v9117
        %v9825 = vunpack.c.h.b16 %v9117
        %v9826 = vunpack.c.l.b16 %v9118
        %v9827 = vunpack.c.h.b16 %v9118
        %v9828 = vunpack.c.l.b16 %v9119
        %v9829 = vunpack.c.h.b16 %v9119
        %v9830 = vunpack.c.l.b16 %v9120
        %v9831 = vunpack.c.h.b16 %v9120
        %v9832 = vunpack.c.l.b16 %v9121
        %v9833 = vunpack.c.h.b16 %v9121
        %v9834 = vunpack.c.l.b16 %v9122
        %v9835 = vunpack.c.h.b16 %v9122
        %v9836 = vunpack.c.l.b16 %v9123
        %v9837 = vunpack.c.h.b16 %v9123
        %v9838 = vunpack.c.l.b16 %v9124
        %v9839 = vunpack.c.h.b16 %v9124
        %v9840 = vunpack.c.l.b16 %v9125
        %v9841 = vunpack.c.h.b16 %v9125
        %v9842 = vunpack.c.l.b16 %v9126
        %v9843 = vunpack.c.h.b16 %v9126
        %v9844 = vunpack.c.l.b16 %v9127
        %v9845 = vunpack.c.h.b16 %v9127
        %v9846 = vunpack.c.l.b16 %v9128
        %v9847 = vunpack.c.h.b16 %v9128
        %v9848 = vunpack.c.l.b16 %v9129
        %v9849 = vunpack.c.h.b16 %v9129
        %v9850 = vunpack.c.l.b16 %v9130
        %v9851 = vunpack.c.h.b16 %v9130
        %v9852 = vunpack.c.l.b16 %v9131
        %v9853 = vunpack.c.h.b16 %v9131
        %v9854 = vunpack.c.l.b16 %v9132
        %v9855 = vunpack.c.h.b16 %v9132
        %v9856 = vunpack.c.l.b16 %v9133
        %v9857 = vunpack.c.h.b16 %v9133
        %v9858 = vunpack.c.l.b16 %v9134
        %v9859 = vunpack.c.h.b16 %v9134
        %v9860 = vunpack.c.l.b16 %v9135
        %v9861 = vunpack.c.h.b16 %v9135
        %v9862 = vunpack.c.l.b16 %v9136
        %v9863 = vunpack.c.h.b16 %v9136
        %v9864 = vunpack.c.l.b16 %v9137
        %v9865 = vunpack.c.h.b16 %v9137
        %v9866 = vunpack.c.l.b16 %v9138
        %v9867 = vunpack.c.h.b16 %v9138
        %v9868 = vunpack.c.l.b16 %v9139
        %v9869 = vunpack.c.h.b16 %v9139
        %v9870 = vunpack.c.l.b16 %v9140
        %v9871 = vunpack.c.h.b16 %v9140
        %v9872 = vunpack.c.l.b16 %v9141
        %v9873 = vunpack.c.h.b16 %v9141
        %v9874 = vunpack.c.l.b16 %v9142
        %v9875 = vunpack.c.h.b16 %v9142
        %v9876 = vunpack.c.l.b16 %v9143
        %v9877 = vunpack.c.h.b16 %v9143
        %v9878 = vunpack.c.l.b16 %v9144
        %v9879 = vunpack.c.h.b16 %v9144
        %v9880 = vunpack.c.l.b16 %v9145
        %v9881 = vunpack.c.h.b16 %v9145
        %v9882 = vunpack.c.l.b16 %v9146
        %v9883 = vunpack.c.h.b16 %v9146
        %v9884 = vunpack.c.l.b16 %v9147
        %v9885 = vunpack.c.h.b16 %v9147
        %v9886 = vunpack.c.l.b16 %v9148
        %v9887 = vunpack.c.h.b16 %v9148
        %v9888 = vunpack.c.l.b16 %v9149
        %v9889 = vunpack.c.h.b16 %v9149
        %v9890 = vunpack.c.l.b16 %v9150
        %v9891 = vunpack.c.h.b16 %v9150
        %v9892 = vunpack.c.l.b16 %v9151
        %v9893 = vunpack.c.h.b16 %v9151
        %v9894 = vunpack.c.l.b16 %v9152
        %v9895 = vunpack.c.h.b16 %v9152
        %v9896 = vunpack.c.l.b16 %v9153
        %v9897 = vunpack.c.h.b16 %v9153
        %v9898 = vunpack.c.l.b16 %v9154
        %v9899 = vunpack.c.h.b16 %v9154
        %v9900 = vunpack.c.l.b16 %v9155
        %v9901 = vunpack.c.h.b16 %v9155
        %v9902 = vunpack.c.l.b16 %v9156
        %v9903 = vunpack.c.h.b16 %v9156
        %v9904 = vunpack.c.l.b16 %v9157
        %v9905 = vunpack.c.h.b16 %v9157
        %v9906 = vunpack.c.l.b16 %v9158
        %v9907 = vunpack.c.h.b16 %v9158
        %v9908 = vunpack.c.l.b16 %v9159
        %v9909 = vunpack.c.h.b16 %v9159
        %v9910 = vunpack.c.l.b16 %v9160
        %v9911 = vunpack.c.h.b16 %v9160
        %v9912 = vunpack.c.l.b16 %v9161
        %v9913 = vunpack.c.h.b16 %v9161
        %v9914 = vunpack.c.l.b16 %v9162
        %v9915 = vunpack.c.h.b16 %v9162
        %v9916 = vunpack.c.l.b16 %v9163
        %v9917 = vunpack.c.h.b16 %v9163
        %v9918 = vunpack.c.l.b16 %v9164
        %v9919 = vunpack.c.h.b16 %v9164
        %v9920 = vunpack.c.l.b16 %v9165
        %v9921 = vunpack.c.h.b16 %v9165
        %v9922 = vunpack.c.l.b16 %v9166
        %v9923 = vunpack.c.h.b16 %v9166
        %v9924 = vunpack.c.l.b16 %v9167
        %v9925 = vunpack.c.h.b16 %v9167
        %v9926 = vunpack.c.l.b16 %v9168
        %v9927 = vunpack.c.h.b16 %v9168
        %v9928 = vunpack.c.l.b16 %v9169
        %v9929 = vunpack.c.h.b16 %v9169
        %v9930 = vunpack.c.l.b16 %v9170
        %v9931 = vunpack.c.h.b16 %v9170
        %v9932 = vunpack.c.l.b16 %v9171
        %v9933 = vunpack.c.h.b16 %v9171
        %v9934 = vunpack.c.l.b16 %v9172
        %v9935 = vunpack.c.h.b16 %v9172
        %v9936 = vunpack.c.l.b16 %v9173
        %v9937 = vunpack.c.h.b16 %v9173
        %v9938 = vunpack.c.l.b16 %v9174
        %v9939 = vunpack.c.h.b16 %v9174
        %v9940 = vunpack.c.l.b16 %v9175
        %v9941 = vunpack.c.h.b16 %v9175
        %v9942 = vunpack.c.l.b16 %v9176
        %v9943 = vunpack.c.h.b16 %v9176
        %v9944 = vunpack.c.l.b16 %v9177
        %v9945 = vunpack.c.h.b16 %v9177
        %v9946 = vunpack.c.l.b16 %v9178
        %v9947 = vunpack.c.h.b16 %v9178
        %v9948 = vunpack.c.l.b16 %v9179
        %v9949 = vunpack.c.h.b16 %v9179
        %v9950 = vunpack.c.l.b16 %v9180
        %v9951 = vunpack.c.h.b16 %v9180
        %v9952 = vunpack.c.l.b16 %v9181
        %v9953 = vunpack.c.h.b16 %v9181
        %v9954 = vunpack.c.l.b16 %v9182
        %v9955 = vunpack.c.h.b16 %v9182
        %v9956 = vunpack.c.l.b16 %v9183
        %v9957 = vunpack.c.h.b16 %v9183
        %v9958 = vunpack.c.l.b16 %v9184
        %v9959 = vunpack.c.h.b16 %v9184
        %v9960 = vunpack.c.l.b16 %v9185
        %v9961 = vunpack.c.h.b16 %v9185
        %v9962 = vunpack.c.l.b16 %v9186
        %v9963 = vunpack.c.h.b16 %v9186
        %v9964 = vunpack.c.l.b16 %v9187
        %v9965 = vunpack.c.h.b16 %v9187
        %v9966 = vunpack.c.l.b16 %v9188
        %v9967 = vunpack.c.h.b16 %v9188
        %v9968 = vunpack.c.l.b16 %v9189
        %v9969 = vunpack.c.h.b16 %v9189
        %v9970 = vunpack.c.l.b16 %v9190
        %v9971 = vunpack.c.h.b16 %v9190
        %v9972 = vunpack.c.l.b16 %v9191
        %v9973 = vunpack.c.h.b16 %v9191
        %v9974 = vunpack.c.l.b16 %v9192
        %v9975 = vunpack.c.h.b16 %v9192
        %v9976 = vunpack.c.l.b16 %v9193
        %v9977 = vunpack.c.h.b16 %v9193
        %v9978 = vunpack.c.l.b16 %v9194
        %v9979 = vunpack.c.h.b16 %v9194
        %v9980 = vunpack.c.l.b16 %v9195
        %v9981 = vunpack.c.h.b16 %v9195
        %v9982 = vunpack.c.l.b16 %v9196
        %v9983 = vunpack.c.h.b16 %v9196
        %v9984 = vunpack.c.l.b16 %v9197
        %v9985 = vunpack.c.h.b16 %v9197
        %v9986 = vunpack.c.l.b16 %v9198
        %v9987 = vunpack.c.h.b16 %v9198
        %v9988 = vunpack.c.l.b16 %v9199
        %v9989 = vunpack.c.h.b16 %v9199
        %v9990 = vpack.c.b16 %v9482, %v9478
        %v9991 = vpack.c.b16 %v9483, %v9479
        %v9992 = vpack.c.b16 %v9484, %v9480
        %v9993 = vpack.c.b16 %v9485, %v9481
        %v9994 = vpack.c.b16 %v9490, %v9486
        %v9995 = vpack.c.b16 %v9491, %v9487
        %v9996 = vpack.c.b16 %v9492, %v9488
        %v9997 = vpack.c.b16 %v9493, %v9489
        %v9998 = vpack.c.b16 %v9498, %v9494
        %v9999 = vpack.c.b16 %v9499, %v9495
        %v10000 = vpack.c.b16 %v9500, %v9496
        %v10001 = vpack.c.b16 %v9501, %v9497
        %v10002 = vpack.c.b16 %v9506, %v9502
        %v10003 = vpack.c.b16 %v9507, %v9503
        %v10004 = vpack.c.b16 %v9508, %v9504
        %v10005 = vpack.c.b16 %v9509, %v9505
        %v10006 = vpack.c.b16 %v9514, %v9510
        %v10007 = vpack.c.b16 %v9515, %v9511
        %v10008 = vpack.c.b16 %v9516, %v9512
        %v10009 = vpack.c.b16 %v9517, %v9513
        %v10010 = vpack.c.b16 %v9522, %v9518
        %v10011 = vpack.c.b16 %v9523, %v9519
        %v10012 = vpack.c.b16 %v9524, %v9520
        %v10013 = vpack.c.b16 %v9525, %v9521
        %v10014 = vpack.c.b16 %v9530, %v9526
        %v10015 = vpack.c.b16 %v9531, %v9527
        %v10016 = vpack.c.b16 %v9532, %v9528
        %v10017 = vpack.c.b16 %v9533, %v9529
        %v10018 = vpack.c.b16 %v9538, %v9534
        %v10019 = vpack.c.b16 %v9539, %v9535
        %v10020 = vpack.c.b16 %v9540, %v9536
        %v10021 = vpack.c.b16 %v9541, %v9537
        %v10022 = vpack.c.b16 %v9546, %v9542
        %v10023 = vpack.c.b16 %v9547, %v9543
        %v10024 = vpack.c.b16 %v9548, %v9544
        %v10025 = vpack.c.b16 %v9549, %v9545
        %v10026 = vpack.c.b16 %v9554, %v9550
        %v10027 = vpack.c.b16 %v9555, %v9551
        %v10028 = vpack.c.b16 %v9556, %v9552
        %v10029 = vpack.c.b16 %v9557, %v9553
        %v10030 = vpack.c.b16 %v9562, %v9558
        %v10031 = vpack.c.b16 %v9563, %v9559
        %v10032 = vpack.c.b16 %v9564, %v9560
        %v10033 = vpack.c.b16 %v9565, %v9561
        %v10034 = vpack.c.b16 %v9570, %v9566
        %v10035 = vpack.c.b16 %v9571, %v9567
        %v10036 = vpack.c.b16 %v9572, %v9568
        %v10037 = vpack.c.b16 %v9573, %v9569
        %v10038 = vpack.c.b16 %v9578, %v9574
        %v10039 = vpack.c.b16 %v9579, %v9575
        %v10040 = vpack.c.b16 %v9580, %v9576
        %v10041 = vpack.c.b16 %v9581, %v9577
        %v10042 = vpack.c.b16 %v9586, %v9582
        %v10043 = vpack.c.b16 %v9587, %v9583
        %v10044 = vpack.c.b16 %v9588, %v9584
        %v10045 = vpack.c.b16 %v9589, %v9585
        %v10046 = vpack.c.b16 %v9594, %v9590
        %v10047 = vpack.c.b16 %v9595, %v9591
        %v10048 = vpack.c.b16 %v9596, %v9592
        %v10049 = vpack.c.b16 %v9597, %v9593
        %v10050 = vpack.c.b16 %v9602, %v9598
        %v10051 = vpack.c.b16 %v9603, %v9599
        %v10052 = vpack.c.b16 %v9604, %v9600
        %v10053 = vpack.c.b16 %v9605, %v9601
        %v10054 = vpack.c.b16 %v9610, %v9606
        %v10055 = vpack.c.b16 %v9611, %v9607
        %v10056 = vpack.c.b16 %v9612, %v9608
        %v10057 = vpack.c.b16 %v9613, %v9609
        %v10058 = vpack.c.b16 %v9618, %v9614
        %v10059 = vpack.c.b16 %v9619, %v9615
        %v10060 = vpack.c.b16 %v9620, %v9616
        %v10061 = vpack.c.b16 %v9621, %v9617
        %v10062 = vpack.c.b16 %v9626, %v9622
        %v10063 = vpack.c.b16 %v9627, %v9623
        %v10064 = vpack.c.b16 %v9628, %v9624
        %v10065 = vpack.c.b16 %v9629, %v9625
        %v10066 = vpack.c.b16 %v9634, %v9630
        %v10067 = vpack.c.b16 %v9635, %v9631
        %v10068 = vpack.c.b16 %v9636, %v9632
        %v10069 = vpack.c.b16 %v9637, %v9633
        %v10070 = vpack.c.b16 %v9642, %v9638
        %v10071 = vpack.c.b16 %v9643, %v9639
        %v10072 = vpack.c.b16 %v9644, %v9640
        %v10073 = vpack.c.b16 %v9645, %v9641
        %v10074 = vpack.c.b16 %v9650, %v9646
        %v10075 = vpack.c.b16 %v9651, %v9647
        %v10076 = vpack.c.b16 %v9652, %v9648
        %v10077 = vpack.c.b16 %v9653, %v9649
        %v10078 = vpack.c.b16 %v9658, %v9654
        %v10079 = vpack.c.b16 %v9659, %v9655
        %v10080 = vpack.c.b16 %v9660, %v9656
        %v10081 = vpack.c.b16 %v9661, %v9657
        %v10082 = vpack.c.b16 %v9666, %v9662
        %v10083 = vpack.c.b16 %v9667, %v9663
        %v10084 = vpack.c.b16 %v9668, %v9664
        %v10085 = vpack.c.b16 %v9669, %v9665
        %v10086 = vpack.c.b16 %v9674, %v9670
        %v10087 = vpack.c.b16 %v9675, %v9671
        %v10088 = vpack.c.b16 %v9676, %v9672
        %v10089 = vpack.c.b16 %v9677, %v9673
        %v10090 = vpack.c.b16 %v9682, %v9678
        %v10091 = vpack.c.b16 %v9683, %v9679
        %v10092 = vpack.c.b16 %v9684, %v9680
        %v10093 = vpack.c.b16 %v9685, %v9681
        %v10094 = vpack.c.b16 %v9690, %v9686
        %v10095 = vpack.c.b16 %v9691, %v9687
        %v10096 = vpack.c.b16 %v9692, %v9688
        %v10097 = vpack.c.b16 %v9693, %v9689
        %v10098 = vpack.c.b16 %v9698, %v9694
        %v10099 = vpack.c.b16 %v9699, %v9695
        %v10100 = vpack.c.b16 %v9700, %v9696
        %v10101 = vpack.c.b16 %v9701, %v9697
        %v10102 = vpack.c.b16 %v9706, %v9702
        %v10103 = vpack.c.b16 %v9707, %v9703
        %v10104 = vpack.c.b16 %v9708, %v9704
        %v10105 = vpack.c.b16 %v9709, %v9705
        %v10106 = vpack.c.b16 %v9714, %v9710
        %v10107 = vpack.c.b16 %v9715, %v9711
        %v10108 = vpack.c.b16 %v9716, %v9712
        %v10109 = vpack.c.b16 %v9717, %v9713
        %v10110 = vpack.c.b16 %v9722, %v9718
        %v10111 = vpack.c.b16 %v9723, %v9719
        %v10112 = vpack.c.b16 %v9724, %v9720
        %v10113 = vpack.c.b16 %v9725, %v9721
        %v10114 = vpack.c.b16 %v9730, %v9726
        %v10115 = vpack.c.b16 %v9731, %v9727
        %v10116 = vpack.c.b16 %v9732, %v9728
        %v10117 = vpack.c.b16 %v9733, %v9729
        %v10118 = vpack.c.b16 %v9738, %v9734
        %v10119 = vpack.c.b16 %v9739, %v9735
        %v10120 = vpack.c.b16 %v9740, %v9736
        %v10121 = vpack.c.b16 %v9741, %v9737
        %v10122 = vpack.c.b16 %v9746, %v9742
        %v10123 = vpack.c.b16 %v9747, %v9743
        %v10124 = vpack.c.b16 %v9748, %v9744
        %v10125 = vpack.c.b16 %v9749, %v9745
        %v10126 = vpack.c.b16 %v9754, %v9750
        %v10127 = vpack.c.b16 %v9755, %v9751
        %v10128 = vpack.c.b16 %v9756, %v9752
        %v10129 = vpack.c.b16 %v9757, %v9753
        %v10130 = vpack.c.b16 %v9762, %v9758
        %v10131 = vpack.c.b16 %v9763, %v9759
        %v10132 = vpack.c.b16 %v9764, %v9760
        %v10133 = vpack.c.b16 %v9765, %v9761
        %v10134 = vpack.c.b16 %v9770, %v9766
        %v10135 = vpack.c.b16 %v9771, %v9767
        %v10136 = vpack.c.b16 %v9772, %v9768
        %v10137 = vpack.c.b16 %v9773, %v9769
        %v10138 = vpack.c.b16 %v9778, %v9774
        %v10139 = vpack.c.b16 %v9779, %v9775
        %v10140 = vpack.c.b16 %v9780, %v9776
        %v10141 = vpack.c.b16 %v9781, %v9777
        %v10142 = vpack.c.b16 %v9786, %v9782
        %v10143 = vpack.c.b16 %v9787, %v9783
        %v10144 = vpack.c.b16 %v9788, %v9784
        %v10145 = vpack.c.b16 %v9789, %v9785
        %v10146 = vpack.c.b16 %v9794, %v9790
        %v10147 = vpack.c.b16 %v9795, %v9791
        %v10148 = vpack.c.b16 %v9796, %v9792
        %v10149 = vpack.c.b16 %v9797, %v9793
        %v10150 = vpack.c.b16 %v9802, %v9798
        %v10151 = vpack.c.b16 %v9803, %v9799
        %v10152 = vpack.c.b16 %v9804, %v9800
        %v10153 = vpack.c.b16 %v9805, %v9801
        %v10154 = vpack.c.b16 %v9810, %v9806
        %v10155 = vpack.c.b16 %v9811, %v9807
        %v10156 = vpack.c.b16 %v9812, %v9808
        %v10157 = vpack.c.b16 %v9813, %v9809
        %v10158 = vpack.c.b16 %v9818, %v9814
        %v10159 = vpack.c.b16 %v9819, %v9815
        %v10160 = vpack.c.b16 %v9820, %v9816
        %v10161 = vpack.c.b16 %v9821, %v9817
        %v10162 = vpack.c.b16 %v9826, %v9822
        %v10163 = vpack.c.b16 %v9827, %v9823
        %v10164 = vpack.c.b16 %v9828, %v9824
        %v10165 = vpack.c.b16 %v9829, %v9825
        %v10166 = vpack.c.b16 %v9834, %v9830
        %v10167 = vpack.c.b16 %v9835, %v9831
        %v10168 = vpack.c.b16 %v9836, %v9832
        %v10169 = vpack.c.b16 %v9837, %v9833
        %v10170 = vpack.c.b16 %v9842, %v9838
        %v10171 = vpack.c.b16 %v9843, %v9839
        %v10172 = vpack.c.b16 %v9844, %v9840
        %v10173 = vpack.c.b16 %v9845, %v9841
        %v10174 = vpack.c.b16 %v9850, %v9846
        %v10175 = vpack.c.b16 %v9851, %v9847
        %v10176 = vpack.c.b16 %v9852, %v9848
        %v10177 = vpack.c.b16 %v9853, %v9849
        %v10178 = vpack.c.b16 %v9858, %v9854
        %v10179 = vpack.c.b16 %v9859, %v9855
        %v10180 = vpack.c.b16 %v9860, %v9856
        %v10181 = vpack.c.b16 %v9861, %v9857
        %v10182 = vpack.c.b16 %v9866, %v9862
        %v10183 = vpack.c.b16 %v9867, %v9863
        %v10184 = vpack.c.b16 %v9868, %v9864
        %v10185 = vpack.c.b16 %v9869, %v9865
        %v10186 = vpack.c.b16 %v9874, %v9870
        %v10187 = vpack.c.b16 %v9875, %v9871
        %v10188 = vpack.c.b16 %v9876, %v9872
        %v10189 = vpack.c.b16 %v9877, %v9873
        %v10190 = vpack.c.b16 %v9882, %v9878
        %v10191 = vpack.c.b16 %v9883, %v9879
        %v10192 = vpack.c.b16 %v9884, %v9880
        %v10193 = vpack.c.b16 %v9885, %v9881
        %v10194 = vpack.c.b16 %v9890, %v9886
        %v10195 = vpack.c.b16 %v9891, %v9887
        %v10196 = vpack.c.b16 %v9892, %v9888
        %v10197 = vpack.c.b16 %v9893, %v9889
        %v10198 = vpack.c.b16 %v9898, %v9894
        %v10199 = vpack.c.b16 %v9899, %v9895
        %v10200 = vpack.c.b16 %v9900, %v9896
        %v10201 = vpack.c.b16 %v9901, %v9897
        %v10202 = vpack.c.b16 %v9906, %v9902
        %v10203 = vpack.c.b16 %v9907, %v9903
        %v10204 = vpack.c.b16 %v9908, %v9904
        %v10205 = vpack.c.b16 %v9909, %v9905
        %v10206 = vpack.c.b16 %v9914, %v9910
        %v10207 = vpack.c.b16 %v9915, %v9911
        %v10208 = vpack.c.b16 %v9916, %v9912
        %v10209 = vpack.c.b16 %v9917, %v9913
        %v10210 = vpack.c.b16 %v9922, %v9918
        %v10211 = vpack.c.b16 %v9923, %v9919
        %v10212 = vpack.c.b16 %v9924, %v9920
        %v10213 = vpack.c.b16 %v9925, %v9921
        %v10214 = vpack.c.b16 %v9930, %v9926
        %v10215 = vpack.c.b16 %v9931, %v9927
        %v10216 = vpack.c.b16 %v9932, %v9928
        %v10217 = vpack.c.b16 %v9933, %v9929
        %v10218 = vpack.c.b16 %v9938, %v9934
        %v10219 = vpack.c.b16 %v9939, %v9935
        %v10220 = vpack.c.b16 %v9940, %v9936
        %v10221 = vpack.c.b16 %v9941, %v9937
        %v10222 = vpack.c.b16 %v9946, %v9942
        %v10223 = vpack.c.b16 %v9947, %v9943
        %v10224 = vpack.c.b16 %v9948, %v9944
        %v10225 = vpack.c.b16 %v9949, %v9945
        %v10226 = vpack.c.b16 %v9954, %v9950
        %v10227 = vpack.c.b16 %v9955, %v9951
        %v10228 = vpack.c.b16 %v9956, %v9952
        %v10229 = vpack.c.b16 %v9957, %v9953
        %v10230 = vpack.c.b16 %v9962, %v9958
        %v10231 = vpack.c.b16 %v9963, %v9959
        %v10232 = vpack.c.b16 %v9964, %v9960
        %v10233 = vpack.c.b16 %v9965, %v9961
        %v10234 = vpack.c.b16 %v9970, %v9966
        %v10235 = vpack.c.b16 %v9971, %v9967
        %v10236 = vpack.c.b16 %v9972, %v9968
        %v10237 = vpack.c.b16 %v9973, %v9969
        %v10238 = vpack.c.b16 %v9978, %v9974
        %v10239 = vpack.c.b16 %v9979, %v9975
        %v10240 = vpack.c.b16 %v9980, %v9976
        %v10241 = vpack.c.b16 %v9981, %v9977
        %v10242 = vpack.c.b16 %v9986, %v9982
        %v10243 = vpack.c.b16 %v9987, %v9983
        %v10244 = vpack.c.b16 %v9988, %v9984
        %v10245 = vpack.c.b16 %v9989, %v9985
        %10502 = vmatprep.subr.bf16.mxu0 %v9991
        %10503 = vmatpush1.bf16.msra.mxu0 %v9990
        %10504 = vmatprep.subr.bf16.mxu0 %v9995
        %10505 = vmatpush1.bf16.msra.mxu0 %v9994
        %10506 = vmatprep.subr.bf16.mxu0 %v9999
        %10507 = vmatpush1.bf16.msra.mxu0 %v9998
        %10508 = vmatprep.subr.bf16.mxu0 %v10003
        %10509 = vmatpush1.bf16.msra.mxu0 %v10002
        %10510 = vmatprep.subr.bf16.mxu0 %v10007
        %10511 = vmatpush1.bf16.msra.mxu0 %v10006
        %10512 = vmatprep.subr.bf16.mxu0 %v10011
        %10513 = vmatpush1.bf16.msra.mxu0 %v10010
        %10514 = vmatprep.subr.bf16.mxu0 %v10015
        %10515 = vmatpush1.bf16.msra.mxu0 %v10014
        %10516 = vmatprep.subr.bf16.mxu0 %v10019
        %10517 = vmatpush1.bf16.msra.mxu0 %v10018
        %10518 = vmatprep.subr.bf16.mxu0 %v10023
        %10519 = vmatpush1.bf16.msra.mxu0 %v10022
        %10520 = vmatprep.subr.bf16.mxu0 %v10027
        %10521 = vmatpush1.bf16.msra.mxu0 %v10026
        %10522 = vmatprep.subr.bf16.mxu0 %v10031
        %10523 = vmatpush1.bf16.msra.mxu0 %v10030
        %10524 = vmatprep.subr.bf16.mxu0 %v10035
        %10525 = vmatpush1.bf16.msra.mxu0 %v10034
        %10526 = vmatprep.subr.bf16.mxu0 %v10039
        %10527 = vmatpush1.bf16.msra.mxu0 %v10038
        %10528 = vmatprep.subr.bf16.mxu0 %v10043
        %10529 = vmatpush1.bf16.msra.mxu0 %v10042
        %10530 = vmatprep.subr.bf16.mxu0 %v10047
        %10531 = vmatpush1.bf16.msra.mxu0 %v10046
        %10532 = vmatprep.subr.bf16.mxu0 %v10051
        %10533 = vmatpush1.bf16.msra.mxu0 %v10050
        %10534 = vmatprep.mubr.bf16.mxu0 %v8937
        %10535 = vmatmul.mubr.bf16.gmra.mrb[0].mxu0 %v8936
        %v10536 = vpop.f32.mrb[0].mxu0
        %v10537 = vadd.f32 %v9205, %v10536
        %v10538 = vpop.f32.mrb[0].mxu0
        %v10539 = vadd.f32 %v9209, %v10538
        %v10540 = vpop.f32.mrb[0].mxu0
        %v10541 = vadd.f32 %v9205, %v10540
        %v10542 = vpop.f32.mrb[0].mxu0
        %v10543 = vadd.f32 %v9209, %v10542
        %10544 = vdwg.mxu0
        %10545 = vmatprep.subr.bf16.mxu0 %v10055
        %10546 = vmatpush1.bf16.msra.mxu0 %v10054
        %10547 = vmatprep.subr.bf16.mxu0 %v10059
        %10548 = vmatpush1.bf16.msra.mxu0 %v10058
        %10549 = vmatprep.subr.bf16.mxu0 %v10063
        %10550 = vmatpush1.bf16.msra.mxu0 %v10062
        %10551 = vmatprep.subr.bf16.mxu0 %v10067
        %10552 = vmatpush1.bf16.msra.mxu0 %v10066
        %10553 = vmatprep.subr.bf16.mxu0 %v10071
        %10554 = vmatpush1.bf16.msra.mxu0 %v10070
        %10555 = vmatprep.subr.bf16.mxu0 %v10075
        %10556 = vmatpush1.bf16.msra.mxu0 %v10074
        %10557 = vmatprep.subr.bf16.mxu0 %v10079
        %10558 = vmatpush1.bf16.msra.mxu0 %v10078
        %10559 = vmatprep.subr.bf16.mxu0 %v10083
        %10560 = vmatpush1.bf16.msra.mxu0 %v10082
        %10561 = vmatprep.subr.bf16.mxu0 %v10087
        %10562 = vmatpush1.bf16.msra.mxu0 %v10086
        %10563 = vmatprep.subr.bf16.mxu0 %v10091
        %10564 = vmatpush1.bf16.msra.mxu0 %v10090
        %10565 = vmatprep.subr.bf16.mxu0 %v10095
        %10566 = vmatpush1.bf16.msra.mxu0 %v10094
        %10567 = vmatprep.subr.bf16.mxu0 %v10099
        %10568 = vmatpush1.bf16.msra.mxu0 %v10098
        %10569 = vmatprep.subr.bf16.mxu0 %v10103
        %10570 = vmatpush1.bf16.msra.mxu0 %v10102
        %10571 = vmatprep.subr.bf16.mxu0 %v10107
        %10572 = vmatpush1.bf16.msra.mxu0 %v10106
        %10573 = vmatprep.subr.bf16.mxu0 %v10111
        %10574 = vmatpush1.bf16.msra.mxu0 %v10110
        %10575 = vmatprep.subr.bf16.mxu0 %v10115
        %10576 = vmatpush1.bf16.msra.mxu0 %v10114
        %10577 = vmatprep.mubr.bf16.mxu0 %v8939
        %10578 = vmatmul.mubr.bf16.gmra.mrb[0].mxu0 %v8938
        %v10579 = vpop.f32.mrb[0].mxu0
        %v10580 = vadd.f32 %v10537, %v10579
        %v10581 = vpop.f32.mrb[0].mxu0
        %v10582 = vadd.f32 %v10539, %v10581
        %v10583 = vpop.f32.mrb[0].mxu0
        %v10584 = vadd.f32 %v10541, %v10583
        %v10585 = vpop.f32.mrb[0].mxu0
        %v10586 = vadd.f32 %v10543, %v10585
        %10587 = vdwg.mxu0
        %10588 = vmatprep.subr.bf16.mxu0 %v10119
        %10589 = vmatpush1.bf16.msra.mxu0 %v10118
        %10590 = vmatprep.subr.bf16.mxu0 %v10123
        %10591 = vmatpush1.bf16.msra.mxu0 %v10122
        %10592 = vmatprep.subr.bf16.mxu0 %v10127
        %10593 = vmatpush1.bf16.msra.mxu0 %v10126
        %10594 = vmatprep.subr.bf16.mxu0 %v10131
        %10595 = vmatpush1.bf16.msra.mxu0 %v10130
        %10596 = vmatprep.subr.bf16.mxu0 %v10135
        %10597 = vmatpush1.bf16.msra.mxu0 %v10134
        %10598 = vmatprep.subr.bf16.mxu0 %v10139
        %10599 = vmatpush1.bf16.msra.mxu0 %v10138
        %10600 = vmatprep.subr.bf16.mxu0 %v10143
        %10601 = vmatpush1.bf16.msra.mxu0 %v10142
        %10602 = vmatprep.subr.bf16.mxu0 %v10147
        %10603 = vmatpush1.bf16.msra.mxu0 %v10146
        %10604 = vmatprep.subr.bf16.mxu0 %v10151
        %10605 = vmatpush1.bf16.msra.mxu0 %v10150
        %10606 = vmatprep.subr.bf16.mxu0 %v10155
        %10607 = vmatpush1.bf16.msra.mxu0 %v10154
        %10608 = vmatprep.subr.bf16.mxu0 %v10159
        %10609 = vmatpush1.bf16.msra.mxu0 %v10158
        %10610 = vmatprep.subr.bf16.mxu0 %v10163
        %10611 = vmatpush1.bf16.msra.mxu0 %v10162
        %10612 = vmatprep.subr.bf16.mxu0 %v10167
        %10613 = vmatpush1.bf16.msra.mxu0 %v10166
        %10614 = vmatprep.subr.bf16.mxu0 %v10171
        %10615 = vmatpush1.bf16.msra.mxu0 %v10170
        %10616 = vmatprep.subr.bf16.mxu0 %v10175
        %10617 = vmatpush1.bf16.msra.mxu0 %v10174
        %10618 = vmatprep.subr.bf16.mxu0 %v10179
        %10619 = vmatpush1.bf16.msra.mxu0 %v10178
        %10620 = vmatprep.mubr.bf16.mxu0 %v8941
        %10621 = vmatmul.mubr.bf16.gmra.mrb[0].mxu0 %v8940
        %v10622 = vpop.f32.mrb[0].mxu0
        %v10623 = vadd.f32 %v10580, %v10622
        %v10624 = vpop.f32.mrb[0].mxu0
        %v10625 = vadd.f32 %v10582, %v10624
        %v10626 = vpop.f32.mrb[0].mxu0
        %v10627 = vadd.f32 %v10584, %v10626
        %v10628 = vpop.f32.mrb[0].mxu0
        %v10629 = vadd.f32 %v10586, %v10628
        %10630 = vdwg.mxu0
        %10631 = vmatprep.subr.bf16.mxu0 %v10183
        %10632 = vmatpush1.bf16.msra.mxu0 %v10182
        %10633 = vmatprep.subr.bf16.mxu0 %v10187
        %10634 = vmatpush1.bf16.msra.mxu0 %v10186
        %10635 = vmatprep.subr.bf16.mxu0 %v10191
        %10636 = vmatpush1.bf16.msra.mxu0 %v10190
        %10637 = vmatprep.subr.bf16.mxu0 %v10195
        %10638 = vmatpush1.bf16.msra.mxu0 %v10194
        %10639 = vmatprep.subr.bf16.mxu0 %v10199
        %10640 = vmatpush1.bf16.msra.mxu0 %v10198
        %10641 = vmatprep.subr.bf16.mxu0 %v10203
        %10642 = vmatpush1.bf16.msra.mxu0 %v10202
        %10643 = vmatprep.subr.bf16.mxu0 %v10207
        %10644 = vmatpush1.bf16.msra.mxu0 %v10206
        %10645 = vmatprep.subr.bf16.mxu0 %v10211
        %10646 = vmatpush1.bf16.msra.mxu0 %v10210
        %10647 = vmatprep.subr.bf16.mxu0 %v10215
        %10648 = vmatpush1.bf16.msra.mxu0 %v10214
        %10649 = vmatprep.subr.bf16.mxu0 %v10219
        %10650 = vmatpush1.bf16.msra.mxu0 %v10218
        %10651 = vmatprep.subr.bf16.mxu0 %v10223
        %10652 = vmatpush1.bf16.msra.mxu0 %v10222
        %10653 = vmatprep.subr.bf16.mxu0 %v10227
        %10654 = vmatpush1.bf16.msra.mxu0 %v10226
        %10655 = vmatprep.subr.bf16.mxu0 %v10231
        %10656 = vmatpush1.bf16.msra.mxu0 %v10230
        %10657 = vmatprep.subr.bf16.mxu0 %v10235
        %10658 = vmatpush1.bf16.msra.mxu0 %v10234
        %10659 = vmatprep.subr.bf16.mxu0 %v10239
        %10660 = vmatpush1.bf16.msra.mxu0 %v10238
        %10661 = vmatprep.subr.bf16.mxu0 %v10243
        %10662 = vmatpush1.bf16.msra.mxu0 %v10242
        %10663 = vmatprep.mubr.bf16.mxu0 %v8943
        %10664 = vmatmul.mubr.bf16.gmra.mrb[0].mxu0 %v8942
        %v10665 = vpop.f32.mrb[0].mxu0
        %v10666 = vadd.f32 %v10623, %v10665
        %v10667 = vpop.f32.mrb[0].mxu0
        %v10668 = vadd.f32 %v10625, %v10667
        %v10669 = vpop.f32.mrb[0].mxu0
        %v10670 = vadd.f32 %v10627, %v10669
        %v10671 = vpop.f32.mrb[0].mxu0
        %v10672 = vadd.f32 %v10629, %v10671
        %10673 = vdwg.mxu0
        %10674 = vmatprep.subr.bf16.mxu0 %v9993
        %10675 = vmatpush1.bf16.msra.mxu0 %v9992
        %10676 = vmatprep.subr.bf16.mxu0 %v9997
        %10677 = vmatpush1.bf16.msra.mxu0 %v9996
        %10678 = vmatprep.subr.bf16.mxu0 %v10001
        %10679 = vmatpush1.bf16.msra.mxu0 %v10000
        %10680 = vmatprep.subr.bf16.mxu0 %v10005
        %10681 = vmatpush1.bf16.msra.mxu0 %v10004
        %10682 = vmatprep.subr.bf16.mxu0 %v10009
        %10683 = vmatpush1.bf16.msra.mxu0 %v10008
        %10684 = vmatprep.subr.bf16.mxu0 %v10013
        %10685 = vmatpush1.bf16.msra.mxu0 %v10012
        %10686 = vmatprep.subr.bf16.mxu0 %v10017
        %10687 = vmatpush1.bf16.msra.mxu0 %v10016
        %10688 = vmatprep.subr.bf16.mxu0 %v10021
        %10689 = vmatpush1.bf16.msra.mxu0 %v10020
        %10690 = vmatprep.subr.bf16.mxu0 %v10025
        %10691 = vmatpush1.bf16.msra.mxu0 %v10024
        %10692 = vmatprep.subr.bf16.mxu0 %v10029
        %10693 = vmatpush1.bf16.msra.mxu0 %v10028
        %10694 = vmatprep.subr.bf16.mxu0 %v10033
        %10695 = vmatpush1.bf16.msra.mxu0 %v10032
        %10696 = vmatprep.subr.bf16.mxu0 %v10037
        %10697 = vmatpush1.bf16.msra.mxu0 %v10036
        %10698 = vmatprep.subr.bf16.mxu0 %v10041
        %10699 = vmatpush1.bf16.msra.mxu0 %v10040
        %10700 = vmatprep.subr.bf16.mxu0 %v10045
        %10701 = vmatpush1.bf16.msra.mxu0 %v10044
        %10702 = vmatprep.subr.bf16.mxu0 %v10049
        %10703 = vmatpush1.bf16.msra.mxu0 %v10048
        %10704 = vmatprep.subr.bf16.mxu0 %v10053
        %10705 = vmatpush1.bf16.msra.mxu0 %v10052
        %10706 = vmatprep.mubr.bf16.mxu0 %v8937
        %10707 = vmatmul.mubr.bf16.gmra.mrb[0].mxu0 %v8936
        %v10708 = vpop.f32.mrb[0].mxu0
        %v10709 = vadd.f32 %v9213, %v10708
        %v10710 = vpop.f32.mrb[0].mxu0
        %v10711 = vadd.f32 %v9217, %v10710
        %v10712 = vpop.f32.mrb[0].mxu0
        %v10713 = vadd.f32 %v9213, %v10712
        %v10714 = vpop.f32.mrb[0].mxu0
        %v10715 = vadd.f32 %v9217, %v10714
        %10716 = vdwg.mxu0
        %10717 = vmatprep.subr.bf16.mxu0 %v10057
        %10718 = vmatpush1.bf16.msra.mxu0 %v10056
        %10719 = vmatprep.subr.bf16.mxu0 %v10061
        %10720 = vmatpush1.bf16.msra.mxu0 %v10060
        %10721 = vmatprep.subr.bf16.mxu0 %v10065
        %10722 = vmatpush1.bf16.msra.mxu0 %v10064
        %10723 = vmatprep.subr.bf16.mxu0 %v10069
        %10724 = vmatpush1.bf16.msra.mxu0 %v10068
        %10725 = vmatprep.subr.bf16.mxu0 %v10073
        %10726 = vmatpush1.bf16.msra.mxu0 %v10072
        %10727 = vmatprep.subr.bf16.mxu0 %v10077
        %10728 = vmatpush1.bf16.msra.mxu0 %v10076
        %10729 = vmatprep.subr.bf16.mxu0 %v10081
        %10730 = vmatpush1.bf16.msra.mxu0 %v10080
        %10731 = vmatprep.subr.bf16.mxu0 %v10085
        %10732 = vmatpush1.bf16.msra.mxu0 %v10084
        %10733 = vmatprep.subr.bf16.mxu0 %v10089
        %10734 = vmatpush1.bf16.msra.mxu0 %v10088
        %10735 = vmatprep.subr.bf16.mxu0 %v10093
        %10736 = vmatpush1.bf16.msra.mxu0 %v10092
        %10737 = vmatprep.subr.bf16.mxu0 %v10097
        %10738 = vmatpush1.bf16.msra.mxu0 %v10096
        %10739 = vmatprep.subr.bf16.mxu0 %v10101
        %10740 = vmatpush1.bf16.msra.mxu0 %v10100
        %10741 = vmatprep.subr.bf16.mxu0 %v10105
        %10742 = vmatpush1.bf16.msra.mxu0 %v10104
        %10743 = vmatprep.subr.bf16.mxu0 %v10109
        %10744 = vmatpush1.bf16.msra.mxu0 %v10108
        %10745 = vmatprep.subr.bf16.mxu0 %v10113
        %10746 = vmatpush1.bf16.msra.mxu0 %v10112
        %10747 = vmatprep.subr.bf16.mxu0 %v10117
        %10748 = vmatpush1.bf16.msra.mxu0 %v10116
        %10749 = vmatprep.mubr.bf16.mxu0 %v8939
        %10750 = vmatmul.mubr.bf16.gmra.mrb[0].mxu0 %v8938
        %v10751 = vpop.f32.mrb[0].mxu0
        %v10752 = vadd.f32 %v10709, %v10751
        %v10753 = vpop.f32.mrb[0].mxu0
        %v10754 = vadd.f32 %v10711, %v10753
        %v10755 = vpop.f32.mrb[0].mxu0
        %v10756 = vadd.f32 %v10713, %v10755
        %v10757 = vpop.f32.mrb[0].mxu0
        %v10758 = vadd.f32 %v10715, %v10757
        %10759 = vdwg.mxu0
        %10760 = vmatprep.subr.bf16.mxu0 %v10121
        %10761 = vmatpush1.bf16.msra.mxu0 %v10120
        %10762 = vmatprep.subr.bf16.mxu0 %v10125
        %10763 = vmatpush1.bf16.msra.mxu0 %v10124
        %10764 = vmatprep.subr.bf16.mxu0 %v10129
        %10765 = vmatpush1.bf16.msra.mxu0 %v10128
        %10766 = vmatprep.subr.bf16.mxu0 %v10133
        %10767 = vmatpush1.bf16.msra.mxu0 %v10132
        %10768 = vmatprep.subr.bf16.mxu0 %v10137
        %10769 = vmatpush1.bf16.msra.mxu0 %v10136
        %10770 = vmatprep.subr.bf16.mxu0 %v10141
        %10771 = vmatpush1.bf16.msra.mxu0 %v10140
        %10772 = vmatprep.subr.bf16.mxu0 %v10145
        %10773 = vmatpush1.bf16.msra.mxu0 %v10144
        %10774 = vmatprep.subr.bf16.mxu0 %v10149
        %10775 = vmatpush1.bf16.msra.mxu0 %v10148
        %10776 = vmatprep.subr.bf16.mxu0 %v10153
        %10777 = vmatpush1.bf16.msra.mxu0 %v10152
        %10778 = vmatprep.subr.bf16.mxu0 %v10157
        %10779 = vmatpush1.bf16.msra.mxu0 %v10156
        %10780 = vmatprep.subr.bf16.mxu0 %v10161
        %10781 = vmatpush1.bf16.msra.mxu0 %v10160
        %10782 = vmatprep.subr.bf16.mxu0 %v10165
        %10783 = vmatpush1.bf16.msra.mxu0 %v10164
        %10784 = vmatprep.subr.bf16.mxu0 %v10169
        %10785 = vmatpush1.bf16.msra.mxu0 %v10168
        %10786 = vmatprep.subr.bf16.mxu0 %v10173
        %10787 = vmatpush1.bf16.msra.mxu0 %v10172
        %10788 = vmatprep.subr.bf16.mxu0 %v10177
        %10789 = vmatpush1.bf16.msra.mxu0 %v10176
        %10790 = vmatprep.subr.bf16.mxu0 %v10181
        %10791 = vmatpush1.bf16.msra.mxu0 %v10180
        %10792 = vmatprep.mubr.bf16.mxu0 %v8941
        %10793 = vmatmul.mubr.bf16.gmra.mrb[0].mxu0 %v8940
        %v10794 = vpop.f32.mrb[0].mxu0
        %v10795 = vadd.f32 %v10752, %v10794
        %v10796 = vpop.f32.mrb[0].mxu0
        %v10797 = vadd.f32 %v10754, %v10796
        %v10798 = vpop.f32.mrb[0].mxu0
        %v10799 = vadd.f32 %v10756, %v10798
        %v10800 = vpop.f32.mrb[0].mxu0
        %v10801 = vadd.f32 %v10758, %v10800
        %10802 = vdwg.mxu0
        %10803 = vmatprep.subr.bf16.mxu0 %v10185
        %10804 = vmatpush1.bf16.msra.mxu0 %v10184
        %10805 = vmatprep.subr.bf16.mxu0 %v10189
        %10806 = vmatpush1.bf16.msra.mxu0 %v10188
        %10807 = vmatprep.subr.bf16.mxu0 %v10193
        %10808 = vmatpush1.bf16.msra.mxu0 %v10192
        %10809 = vmatprep.subr.bf16.mxu0 %v10197
        %10810 = vmatpush1.bf16.msra.mxu0 %v10196
        %10811 = vmatprep.subr.bf16.mxu0 %v10201
        %10812 = vmatpush1.bf16.msra.mxu0 %v10200
        %10813 = vmatprep.subr.bf16.mxu0 %v10205
        %10814 = vmatpush1.bf16.msra.mxu0 %v10204
        %10815 = vmatprep.subr.bf16.mxu0 %v10209
        %10816 = vmatpush1.bf16.msra.mxu0 %v10208
        %10817 = vmatprep.subr.bf16.mxu0 %v10213
        %10818 = vmatpush1.bf16.msra.mxu0 %v10212
        %10819 = vmatprep.subr.bf16.mxu0 %v10217
        %10820 = vmatpush1.bf16.msra.mxu0 %v10216
        %10821 = vmatprep.subr.bf16.mxu0 %v10221
        %10822 = vmatpush1.bf16.msra.mxu0 %v10220
        %10823 = vmatprep.subr.bf16.mxu0 %v10225
        %10824 = vmatpush1.bf16.msra.mxu0 %v10224
        %10825 = vmatprep.subr.bf16.mxu0 %v10229
        %10826 = vmatpush1.bf16.msra.mxu0 %v10228
        %10827 = vmatprep.subr.bf16.mxu0 %v10233
        %10828 = vmatpush1.bf16.msra.mxu0 %v10232
        %10829 = vmatprep.subr.bf16.mxu0 %v10237
        %10830 = vmatpush1.bf16.msra.mxu0 %v10236
        %10831 = vmatprep.subr.bf16.mxu0 %v10241
        %10832 = vmatpush1.bf16.msra.mxu0 %v10240
        %10833 = vmatprep.subr.bf16.mxu0 %v10245
        %10834 = vmatpush1.bf16.msra.mxu0 %v10244
        %10835 = vmatprep.mubr.bf16.mxu0 %v8943
        %10836 = vmatmul.mubr.bf16.gmra.mrb[0].mxu0 %v8942
        %v10837 = vpop.f32.mrb[0].mxu0
        %v10838 = vadd.f32 %v10795, %v10837
        %v10839 = vpop.f32.mrb[0].mxu0
        %v10840 = vadd.f32 %v10797, %v10839
        %v10841 = vpop.f32.mrb[0].mxu0
        %v10842 = vadd.f32 %v10799, %v10841
        %v10843 = vpop.f32.mrb[0].mxu0
        %v10844 = vadd.f32 %v10801, %v10843
        %10845 = vdwg.mxu0
        %v10846 = vadd.f32 %v6746, %v10666
        %v10847 = vadd.f32 %v6747, %v10668
        %v10848 = vadd.f32 %v6748, %v10838
        %v10849 = vadd.f32 %v6749, %v10840
        %v10850 = vadd.f32 %v6750, %v10670
        %v10851 = vadd.f32 %v6751, %v10672
        %v10852 = vadd.f32 %v6752, %v10842
        %v10853 = vadd.f32 %v6753, %v10844
        %10854 = vst [vmem:[#allocation2] sm:$0xff] %v10846
        %10855 = vst [vmem:[#allocation2 + $0x8] sm:$0xff] %v10847
        %10856 = vst [vmem:[#allocation2 + $0x10] sm:$0xff] %v10848
        %10857 = vst [vmem:[#allocation2 + $0x18] sm:$0xff] %v10849
        %10858 = vst [vmem:[#allocation2 + $0x20] sm:$0xff] %v10850
        %10859 = vst [vmem:[#allocation2 + $0x28] sm:$0xff] %v10851
        %10860 = vst [vmem:[#allocation2 + $0x30] sm:$0xff] %v10852
        %10861 = vst [vmem:[#allocation2 + $0x38] sm:$0xff] %v10853
        %p10862 = scmp.eq.s32.totalorder %s47, 1
        // Predicated region
        $region145: #{tpu_custom_call.1} parent=79 // pred_check
          %p10863 = pneg %p10862
        $region146: #{tpu_custom_call.1} parent=79 // pred_check_branch
          %10865 = sbr.rel (%p10863) target = $region148
        $region147: #{tpu_custom_call.1} parent=79 // pred_region
          %v10866 = vld [vmem:[#allocation24] sm:$0xf]
          %v10867 = vld [vmem:[#allocation26] sm:$0xf]
          %v10868 = vadd.f32 %v10846, %v10847
          %v10869 = vadd.f32 %v10868, %v10848
          %v10870 = vadd.f32 %v10869, %v10849
          %10871 = vadd.xlane.f32.xlu0 %v10870
          %v10872 = vpop.xlane.xlu0 %10871
          %v10873 = vadd.f32 %v10850, %v10851
          %v10874 = vadd.f32 %v10873, %v10852
          %v10875 = vadd.f32 %v10874, %v10853
          %10876 = vadd.xlane.f32.xlu0 %v10875
          %v10877 = vpop.xlane.xlu0 %10876
          %v10878 = vmul.f32 %v10872, %v988
          %v10879 = vmul.f32 %v10877, %v988
          %v10880 = vsub.f32 %v10846, %v10878
          %v10881 = vsub.f32 %v10847, %v10878
          %v10882 = vsub.f32 %v10848, %v10878
          %v10883 = vsub.f32 %v10849, %v10878
          %v10884 = vsub.f32 %v10850, %v10879
          %v10885 = vsub.f32 %v10851, %v10879
          %v10886 = vsub.f32 %v10852, %v10879
          %v10887 = vsub.f32 %v10853, %v10879
          %v10888 = vmul.f32 %v10880, %v10880
          %v10889 = vmul.f32 %v10881, %v10881
          %v10890 = vmul.f32 %v10882, %v10882
          %v10891 = vmul.f32 %v10883, %v10883
          %v10892 = vmul.f32 %v10884, %v10884
          %v10893 = vmul.f32 %v10885, %v10885
          %v10894 = vmul.f32 %v10886, %v10886
          %v10895 = vmul.f32 %v10887, %v10887
          %v10896 = vadd.f32 %v10888, %v10889
          %v10897 = vadd.f32 %v10896, %v10890
          %v10898 = vadd.f32 %v10897, %v10891
          %10899 = vadd.xlane.f32.xlu0 %v10898
          %v10900 = vpop.xlane.xlu0 %10899
          %v10901 = vadd.f32 %v10892, %v10893
          %v10902 = vadd.f32 %v10901, %v10894
          %v10903 = vadd.f32 %v10902, %v10895
          %10904 = vadd.xlane.f32.xlu0 %v10903
          %v10905 = vpop.xlane.xlu0 %10904
          %v10906 = vmul.f32 %v10900, %v988
          %v10907 = vmul.f32 %v10905, %v988
          %v10908 = vadd.f32 %v10906, 1e-06
          %v10909 = vadd.f32 %v10907, 1e-06
          %v10910 = vrsqrt.pop %v10908
          %v10911 = vrsqrt.pop %v10909
          %v10912 = vmul.f32 %v10880, %v10910
          %v10913 = vmul.f32 %v10881, %v10910
          %v10914 = vmul.f32 %v10882, %v10910
          %v10915 = vmul.f32 %v10883, %v10910
          %v10916 = vmul.f32 %v10884, %v10911
          %v10917 = vmul.f32 %v10885, %v10911
          %v10918 = vmul.f32 %v10886, %v10911
          %v10919 = vmul.f32 %v10887, %v10911
          %v10921 = vlaneseq
          %v10922 = vshrl.u32 %v10921, 7
          %v10923 = vsub.s32 0, %v10922
          %v10924 = vrot.slane %v10866, %v10923
          %v10925 = vlaneseq
          %v10926 = vshrl.u32 %v10925, 7
          %v10927 = vsub.s32 1, %v10926
          %v10928 = vrot.slane %v10866, %v10927
          %v10929 = vlaneseq
          %v10930 = vshrl.u32 %v10929, 7
          %v10931 = vsub.s32 2, %v10930
          %v10932 = vrot.slane %v10866, %v10931
          %v10933 = vlaneseq
          %v10934 = vshrl.u32 %v10933, 7
          %v10935 = vsub.s32 3, %v10934
          %v10936 = vrot.slane %v10866, %v10935
          %v10941 = vmul.f32 %v10912, %v10924
          %v10942 = vmul.f32 %v10913, %v10928
          %v10943 = vmul.f32 %v10914, %v10932
          %v10944 = vmul.f32 %v10915, %v10936
          %v10945 = vmul.f32 %v10916, %v10924
          %v10946 = vmul.f32 %v10917, %v10928
          %v10947 = vmul.f32 %v10918, %v10932
          %v10948 = vmul.f32 %v10919, %v10936
          %v10950 = vlaneseq
          %v10951 = vshrl.u32 %v10950, 7
          %v10952 = vsub.s32 0, %v10951
          %v10953 = vrot.slane %v10867, %v10952
          %v10954 = vlaneseq
          %v10955 = vshrl.u32 %v10954, 7
          %v10956 = vsub.s32 1, %v10955
          %v10957 = vrot.slane %v10867, %v10956
          %v10958 = vlaneseq
          %v10959 = vshrl.u32 %v10958, 7
          %v10960 = vsub.s32 2, %v10959
          %v10961 = vrot.slane %v10867, %v10960
          %v10962 = vlaneseq
          %v10963 = vshrl.u32 %v10962, 7
          %v10964 = vsub.s32 3, %v10963
          %v10965 = vrot.slane %v10867, %v10964
          %v10970 = vadd.f32 %v10941, %v10953
          %v10971 = vadd.f32 %v10942, %v10957
          %v10972 = vadd.f32 %v10943, %v10961
          %v10973 = vadd.f32 %v10944, %v10965
          %v10974 = vadd.f32 %v10945, %v10953
          %v10975 = vadd.f32 %v10946, %v10957
          %v10976 = vadd.f32 %v10947, %v10961
          %v10977 = vadd.f32 %v10948, %v10965
          %10978 = vst [vmem:[#allocation27] sm:$0xff] %v10970
          %10979 = vst [vmem:[#allocation27 + $0x8] sm:$0xff] %v10971
          %10980 = vst [vmem:[#allocation27 + $0x10] sm:$0xff] %v10972
          %10981 = vst [vmem:[#allocation27 + $0x18] sm:$0xff] %v10973
          %10982 = vst [vmem:[#allocation27 + $0x20] sm:$0xff] %v10974
          %10983 = vst [vmem:[#allocation27 + $0x28] sm:$0xff] %v10975
          %10984 = vst [vmem:[#allocation27 + $0x30] sm:$0xff] %v10976
          %10985 = vst [vmem:[#allocation27 + $0x38] sm:$0xff] %v10977
        $region148: #{tpu_custom_call.1} parent=79 // pred_fallthru
          _
        // Predicated region
        $region149: #{tpu_custom_call.1} parent=79 // pred_check
          %p10986 = pneg %p435
        $region150: #{tpu_custom_call.1} parent=79 // pred_check_branch
          %10988 = sbr.rel (%p10986) target = $region152
        $region151: #{tpu_custom_call.1} parent=79 // pred_region
          %s10990 = ssub.s32 1024, 1024
          %10991 = vsyncadd [#allocation5], %s10990
          %s10992 = sshll.u32 [#allocation27], 4
          %s10993 = int_to_ptr.vmem [resolvable:$true] %s10992
          %10998 = dma.vmem_to_hbm [thread:$0]  %s10993, 1024, %s15, [#allocation5], 512, 512, 32
        $region152: #{tpu_custom_call.1} parent=79 // pred_fallthru
          _
        // Predicated region
        $region153: #{tpu_custom_call.1} parent=79 // pred_check
          %p10999 = pneg %p435
        $region154: #{tpu_custom_call.1} parent=79 // pred_check_branch
          %11001 = sbr.rel (%p10999) target = $region156
        $region155: #{tpu_custom_call.1} parent=79 // pred_region
          %11002 = dma.done [#allocation5], 1024
        $region156: #{tpu_custom_call.1} parent=79 // pred_fallthru
          _
      $region80: #{tpu_custom_call.1} parent=5 // pred_fallthru
        _
      %p11003 = scmp.le.s32.totalorder 2, %s42
      // Predicated region
      $region157: #{tpu_custom_call.1} parent=5 // pred_check
        %p11004 = pneg %p11003
      $region158: #{tpu_custom_call.1} parent=5 // pred_check_branch
        %11006 = sbr.rel (%p11004) target = $region160
      $region159: #{tpu_custom_call.1} parent=5 // pred_region
        %s11007 = ssub.s32 %s42, 2
      $region160: #{tpu_custom_call.1} parent=5 // pred_fallthru
        _
    $region6: #{tpu_custom_call.1} parent=1 // loop_footer
      %s46 = sadd.s32 1, %s42
    $region7: #{tpu_custom_call.1} parent=1 // loop_footer_branch
      %41 = sbr.rel target = $region3
    $region8: #{tpu_custom_call.1} parent=1 // loop_exit
      _
    %11008 = vsyncpa [#allocation4], 1
    %s11009 = scalar_lea.sflag [#allocation4], 1
    %11010 = vsyncpa %s11009, 1
    %11011 = vsyncpa [#allocation7], 1
    %s11012 = scalar_lea.sflag [#allocation7], 1
    %11013 = vsyncpa %s11012, 1
    %11014 = vsyncpa [#allocation10], 1
    %s11015 = scalar_lea.sflag [#allocation10], 1
    %11016 = vsyncpa %s11015, 1
    %11017 = vsyncpa [#allocation13], 1
    %s11018 = scalar_lea.sflag [#allocation13], 1
    %11019 = vsyncpa %s11018, 1
    %11020 = vsyncpa [#allocation16], 1
    %s11021 = scalar_lea.sflag [#allocation16], 1
    %11022 = vsyncpa %s11021, 1
    %11023 = vsyncpa [#allocation19], 1
    %s11024 = scalar_lea.sflag [#allocation19], 1
    %11025 = vsyncpa %s11024, 1
    %11026 = vsyncpa [#allocation22], 1
    %s11027 = scalar_lea.sflag [#allocation22], 1
    %11028 = vsyncpa %s11027, 1
    %11029 = vsyncpa [#allocation25], 1
    %11030 = vsyncpa [#allocation5], 1
    %s11031 = scalar_lea.sflag [#allocation5], 1
    %11032 = vsyncpa %s11031, 1

</llo_original>
